<compile_context>
chip_gen: v5e
topology: v5e:2x2
jax: 0.10.0
libtpu: 0.0.40
codegen_flags: <defaults>
</compile_context>

<pallas_src>
import functools

import jax
import jax.numpy as jnp
from jax.experimental import pallas as pl
from jax.experimental.pallas import tpu as pltpu


C_IN = 320                     # network input channels
C_FEAT = 64                    # trunk feature width
C_OUT = 3                      # RGB
C_OUT_PAD = 8                  # final conv Cout padded 3 -> 8 (compact output)
K_IM2COL = 9 * C_FEAT          # 576


# ---------------------------------------------------------------------------
# In-kernel helpers.
# ---------------------------------------------------------------------------
def _zero_borders(pad_ref, r, hs, ws):
    """Zero only the 1-pixel 'same'-padding border of every (H+2, W+2, 64)
    plane.  Interiors are fully overwritten before every read."""
    row = jnp.zeros((1, ws + 2, C_FEAT), jnp.float32)
    col = jnp.zeros((hs + 2, 1, C_FEAT), jnp.float32)
    for i in range(r):
        for j in range(r):
            pad_ref[i, j, 0:1, :, :] = row
            pad_ref[i, j, hs + 1:hs + 2, :, :] = row
            pad_ref[i, j, :, 0:1, :] = col
            pad_ref[i, j, :, ws + 1:ws + 2, :] = col


def _store_plane(pad_ref, i, j, v, hs, ws):
    """Write a (H*W, 64) f32 plane into the interior of padded plane (i, j)."""
    pad_ref[i, j, 1:1 + hs, 1:1 + ws, :] = v.reshape(hs, ws, C_FEAT)


def _fill_patch(pscr, row0, pad_ref, r_in, i, j, hs, ws):
    """im2col: write the (m, 576) bf16 patch for the 3x3 'same' conv evaluated
    at sub-pixel position (i, j) of an r_in x r_in planar image into rows
    [row0, row0+m) of the patch scratch (tap-major, cin-minor columns)."""
    m = hs * ws
    t = 0
    for dy in range(3):
        for dx in range(3):
            a = i + dy - 1
            b = j + dx - 1
            si, sh = a % r_in, a // r_in
            sj, sw = b % r_in, b // r_in
            win = pad_ref[si, sj, 1 + sh:1 + sh + hs, 1 + sw:1 + sw + ws, :]
            pscr[row0:row0 + m, t * C_FEAT:(t + 1) * C_FEAT] = (
                win.reshape(m, C_FEAT).astype(jnp.bfloat16))
            t += 1


def _make_kernel(scale_idx, hs, ws):
    R = (2, 3, 4)[scale_idx]
    m = hs * ws

    def kernel(*refs):
        if scale_idx == 2:
            (x_ref, w0, b0, w1, b1, wua, bua, wub, bub, wo, bo,
             o_ref, pad1, pad2, pad4, pscr) = refs
        else:
            (x_ref, w0, b0, w1, b1, wu, bu, wo, bo,
             o_ref, pad1, padr, pscr) = refs

        # Re-zero only the thin padding borders (cheap, megacore-safe).
        _zero_borders(pad1, 1, hs, ws)
        if scale_idx == 2:
            _zero_borders(pad2, 2, hs, ws)
            _zero_borders(pad4, 4, hs, ws)
        else:
            _zero_borders(padr, R, hs, ws)

        # ---- input.0 : 1x1 conv 320 -> 64 (pure GEMM) -----------------------
        x = x_ref[0]                                           # (m, 320) bf16
        t = jnp.dot(x, w0[...], preferred_element_type=jnp.float32) + b0[...]
        _store_plane(pad1, 0, 0, t, hs, ws)

        # ---- input.1 : 3x3 conv 64 -> 64 (one K=576 GEMM) --------------------
        _fill_patch(pscr, 0, pad1, 1, 0, 0, hs, ws)
        t = jnp.dot(pscr[0:m, :], w1[...],
                    preferred_element_type=jnp.float32) + b1[...]
        _store_plane(pad1, 0, 0, t, hs, ws)

        # ---- upscale conv(s): all sub-pixel planes in ONE wide GEMM ----------
        _fill_patch(pscr, 0, pad1, 1, 0, 0, hs, ws)
        if scale_idx in (0, 1):
            up = jnp.dot(pscr[0:m, :], wu[...],
                         preferred_element_type=jnp.float32) + bu[...]
            for q in range(R * R):
                _store_plane(padr, q // R, q % R,
                             up[:, q * C_FEAT:(q + 1) * C_FEAT], hs, ws)
            pad_last = padr
        else:
            # stage a: x2 -- (m,576) x (576,256)
            up_a = jnp.dot(pscr[0:m, :], wua[...],
                           preferred_element_type=jnp.float32) + bua[...]
            for q in range(4):
                _store_plane(pad2, q // 2, q % 2,
                             up_a[:, q * C_FEAT:(q + 1) * C_FEAT], hs, ws)
            # stage b: x2 again -- 4 patches fused along M into one GEMM.
            for q1 in range(4):
                _fill_patch(pscr, q1 * m, pad2, 2, q1 // 2, q1 % 2, hs, ws)
            up_b = jnp.dot(pscr[0:4 * m, :], wub[...],
                           preferred_element_type=jnp.float32) + bub[...]
            for q1 in range(4):
                i1, j1 = q1 // 2, q1 % 2
                for q2 in range(4):
                    i2, j2 = q2 // 2, q2 % 2
                    _store_plane(pad4, i1 * 2 + i2, j1 * 2 + j2,
                                 up_b[q1 * m:(q1 + 1) * m,
                                      q2 * C_FEAT:(q2 + 1) * C_FEAT], hs, ws)
            pad_last = pad4

        # ---- output conv 64 -> 3 (padded to 8): R^2 patches fused along M ---
        for q in range(R * R):
            _fill_patch(pscr, q * m, pad_last, R, q // R, q % R, hs, ws)
        o = jnp.dot(pscr[...], wo[...],
                    preferred_element_type=jnp.float32) + bo[...]
        o_ref[0] = o                                   # (R^2*m, 8) f32 compact

    return kernel


# ---------------------------------------------------------------------------
# Weight preparation (wrapper side, plain JAX, folded under jit).
# ---------------------------------------------------------------------------
def _flat(w):   # (K, K, Cin, Cout) -> (K*K*Cin, Cout), tap-major / cin-minor
    k, _, cin, cout = w.shape
    return w.reshape(k * k * cin, cout)


def _prep_trunk(w, b):
    return _flat(w).astype(jnp.bfloat16), b.reshape(1, -1).astype(jnp.float32)


def _prep_upscale(w, b, r):
    """Permute PixelShuffle channel order (c*r*r + i*r + j) into contiguous
    per-sub-position column blocks q*64 + c (q = i*r + j); ONE fused RHS."""
    wf = _flat(w)                                            # (576, 64*r*r)
    kf = wf.shape[0]
    wf = wf.reshape(kf, C_FEAT, r * r).transpose(0, 2, 1)
    wf = wf.reshape(kf, r * r * C_FEAT)
    bf = b.reshape(C_FEAT, r * r).transpose(1, 0).reshape(1, r * r * C_FEAT)
    return wf.astype(jnp.bfloat16), bf.astype(jnp.float32)


def _prep_output(w, b):
    wf = _flat(w)                                            # (576, 3)
    wf = jnp.pad(wf, ((0, 0), (0, C_OUT_PAD - C_OUT)))       # zero columns
    bf = jnp.pad(b, (0, C_OUT_PAD - C_OUT)).reshape(1, C_OUT_PAD)
    return wf.astype(jnp.bfloat16), bf.astype(jnp.float32)


# ---------------------------------------------------------------------------
# Forward pass.  scale_idx is static (mirrors the ModuleList selection).
# ---------------------------------------------------------------------------
@functools.partial(jax.jit, static_argnames=("scale_idx",))
def upscale_net_forward(params, x, scale_idx):
    """x: (N, H, W, 320) NHWC float32 -> (N, H*s, W*s, 3) float32."""
    N, H, W, cin = x.shape
    assert cin == C_IN and H % 8 == 0 and W % 8 == 0
    R = (2, 3, 4)[scale_idx]
    m = H * W

    w0, b0 = _prep_trunk(params["in0_w"], params["in0_b"])      # (320, 64)
    w1, b1 = _prep_trunk(params["in1_w"], params["in1_b"])      # (576, 64)
    wo, bo = _prep_output(params["out_w"], params["out_b"])     # (576, 8)

    x_bf = x.astype(jnp.bfloat16).reshape(N, m, C_IN)

    def wspec(a):
        nd = a.ndim
        return pl.BlockSpec(a.shape, lambda n: (0,) * nd)

    def pad_alloc(r):
        return pltpu.VMEM((r, r, H + 2, W + 2, C_FEAT), jnp.float32)

    common_in = [x_bf, w0, b0, w1, b1]
    common_specs = [pl.BlockSpec((1, m, C_IN), lambda n: (n, 0, 0))] + \
                   [wspec(a) for a in (w0, b0, w1, b1)]

    if scale_idx in (0, 1):
        wk, bk = ("up2_w", "up2_b") if scale_idx == 0 else ("up3_w", "up3_b")
        wu, bu = _prep_upscale(params[wk], params[bk], R)
        inputs = common_in + [wu, bu, wo, bo]
        specs = common_specs + [wspec(a) for a in (wu, bu, wo, bo)]
        pad_rs = (1, R)
        up_flops = 2 * m * K_IM2COL * (R * R * C_FEAT)
    else:
        wua, bua = _prep_upscale(params["up4a_w"], params["up4a_b"], 2)
        wub, bub = _prep_upscale(params["up4b_w"], params["up4b_b"], 2)
        inputs = common_in + [wua, bua, wub, bub, wo, bo]
        specs = common_specs + [wspec(a) for a in (wua, bua, wub, bub, wo, bo)]
        pad_rs = (1, 2, 4)
        up_flops = 2 * m * K_IM2COL * 256 + 2 * 4 * m * K_IM2COL * 256

    scratch = [pad_alloc(r) for r in pad_rs]
    scratch.append(pltpu.VMEM((R * R * m, K_IM2COL), jnp.bfloat16))

    out_shape = jax.ShapeDtypeStruct((N, R * R * m, C_OUT_PAD), jnp.float32)
    out_spec = pl.BlockSpec((1, R * R * m, C_OUT_PAD), lambda n: (n, 0, 0))

    # Advisory cost estimate for XLA's scheduler.
    flops = N * (2 * m * C_IN * C_FEAT + 2 * m * K_IM2COL * C_FEAT + up_flops
                 + 2 * R * R * m * K_IM2COL * C_OUT_PAD)
    weight_bytes = sum(int(a.size) * a.dtype.itemsize for a in inputs[1:])
    bytes_accessed = int(N * m * C_IN * 2 + N * R * R * m * C_OUT_PAD * 4
                         + weight_bytes)
    cost = pl.CostEstimate(flops=flops, transcendentals=0,
                           bytes_accessed=bytes_accessed)

    # Explicit scoped-VMEM budget: double-buffered blocks + scratch + headroom,
    # clamped to v7x's 64 MiB physical VMEM (never below the 32 MiB default).
    block_bytes = m * C_IN * 2 + R * R * m * C_OUT_PAD * 4
    pad_bytes = sum(r * r * (H + 2) * (W + 2) * C_FEAT * 4 for r in pad_rs)
    pscr_bytes = R * R * m * K_IM2COL * 2
    vmem_limit = int(min(max(2 * (block_bytes + weight_bytes)
                             + pad_bytes + pscr_bytes + (8 << 20),
                             32 << 20),
                         64 << 20))

    out = pl.pallas_call(
        _make_kernel(scale_idx, H, W),
        out_shape=out_shape,
        grid=(N,),
        in_specs=specs,
        out_specs=out_spec,
        scratch_shapes=scratch,
        compiler_params=pltpu.CompilerParams(
            dimension_semantics=("parallel",),
            vmem_limit_bytes=vmem_limit),
        cost_estimate=cost,
    )(*inputs)

    # De-planarize the compact slab (tiny XLA epilogue) and drop zero channels.
    out = out.reshape(N, R, R, H, W, C_OUT_PAD)[..., :C_OUT]
    out = out.transpose(0, 3, 1, 4, 2, 5).reshape(N, H * R, W * R, C_OUT)
    return out


# ---------------------------------------------------------------------------
# Deterministic synthetic parameters (weights in (K, K, Cin, Cout) layout;
# real PyTorch checkpoints would need a (Cout,Cin,K,K)->(K,K,Cin,Cout) move).
# ---------------------------------------------------------------------------
def _init_conv(key, k, cin, cout):
    kw, kb = jax.random.split(key)
    std = 1.0 / jnp.sqrt(jnp.float32(k * k * cin))
    w = jax.random.normal(kw, (k, k, cin, cout), jnp.float32) * std
    b = jax.random.normal(kb, (cout,), jnp.float32) * std
    return w, b


def init_params(key):
    keys = jax.random.split(key, 7)
    p = {}
    p["in0_w"], p["in0_b"] = _init_conv(keys[0], 1, 320, 64)
    p["in1_w"], p["in1_b"] = _init_conv(keys[1], 3, 64, 64)
    p["up2_w"], p["up2_b"] = _init_conv(keys[2], 3, 64, 256)
    p["up3_w"], p["up3_b"] = _init_conv(keys[3], 3, 64, 576)
    p["up4a_w"], p["up4a_b"] = _init_conv(keys[4], 3, 64, 256)
    p["up4b_w"], p["up4b_b"] = _init_conv(keys[5], 3, 64, 256)
    p["out_w"], p["out_b"] = _init_conv(keys[6], 3, 64, 3)
    return p


# ---------------------------------------------------------------------------
# Pure-JAX reference (same bf16-input / f32-accumulate numerics as the kernel).
# ---------------------------------------------------------------------------
def _conv_ref(x, w, b):
    y = jax.lax.conv_general_dilated(
        x.astype(jnp.bfloat16), w.astype(jnp.bfloat16),
        window_strides=(1, 1), padding="SAME",
        dimension_numbers=("NHWC", "HWIO", "NHWC"),
        preferred_element_type=jnp.float32)
    return y + b.astype(jnp.float32)


def _pixel_shuffle_ref(x, r):
    n, h, w, crr = x.shape
    c = crr // (r * r)
    x = x.reshape(n, h, w, c, r, r).transpose(0, 1, 4, 2, 5, 3)
    return x.reshape(n, h * r, w * r, c)


def upscale_net_reference(params, x, scale_idx):
    x = _conv_ref(x, params["in0_w"], params["in0_b"])
    x = _conv_ref(x, params["in1_w"], params["in1_b"])
    if scale_idx == 0:
        x = _pixel_shuffle_ref(_conv_ref(x, params["up2_w"], params["up2_b"]), 2)
    elif scale_idx == 1:
        x = _pixel_shuffle_ref(_conv_ref(x, params["up3_w"], params["up3_b"]), 3)
    else:
        x = _pixel_shuffle_ref(_conv_ref(x, params["up4a_w"], params["up4a_b"]), 2)
        x = _pixel_shuffle_ref(_conv_ref(x, params["up4b_w"], params["up4b_b"]), 2)
    return _conv_ref(x, params["out_w"], params["out_b"])


if __name__ == "__main__":
    key = jax.random.PRNGKey(0)
    kx, kp = jax.random.split(key)

    # NCHW input as in the PyTorch module: (N=2, C=320, H=8, W=8)
    x_nchw = jax.random.normal(kx, (2, 320, 8, 8), jnp.float32)
    x_nhwc = jnp.transpose(x_nchw, (0, 2, 3, 1))
    params = init_params(kp)

    for scale_idx, s in {0: 2, 1: 3, 2: 4}.items():
        out = upscale_net_forward(params, x_nhwc, scale_idx)
        out = jax.block_until_ready(out)
        assert out.shape == (2, 8 * s, 8 * s, 3), out.shape
        assert bool(jnp.all(jnp.isfinite(out)))
        ref = upscale_net_reference(params, x_nhwc, scale_idx)
        assert bool(jnp.allclose(out, ref, atol=5e-2, rtol=5e-2)), (
            "mismatch vs reference at scale_idx=%d" % scale_idx)

    print("KERNEL_OK")
</pallas_src>

<mosaic_0001>
module attributes {stable_mosaic.version = 11 : i64} {
  func.func @kernel(%arg0: i32, %arg1: memref<1x64x320xbf16, #tpu.memory_space<vmem>>, %arg2: memref<320x64xbf16, #tpu.memory_space<vmem>>, %arg3: memref<1x64xf32, #tpu.memory_space<vmem>>, %arg4: memref<576x64xbf16, #tpu.memory_space<vmem>>, %arg5: memref<1x64xf32, #tpu.memory_space<vmem>>, %arg6: memref<576x256xbf16, #tpu.memory_space<vmem>>, %arg7: memref<1x256xf32, #tpu.memory_space<vmem>>, %arg8: memref<576x8xbf16, #tpu.memory_space<vmem>>, %arg9: memref<1x8xf32, #tpu.memory_space<vmem>>, %arg10: memref<1x256x8xf32, #tpu.memory_space<vmem>>, %arg11: memref<1x1x10x10x64xf32, #tpu.memory_space<vmem>>, %arg12: memref<2x2x10x10x64xf32, #tpu.memory_space<vmem>>, %arg13: memref<256x576xbf16, #tpu.memory_space<vmem>>) attributes {dimension_semantics = [#tpu.dimension_semantics<parallel>], iteration_bounds = array<i64: 2>, scalar_prefetch = 0 : i64, scratch_operands = 3 : i64, tpu.core_type = #tpu.core_type<tc>, window_params = [{transform_indices = @transform_0, window_bounds = array<i64: 1, 64, 320>}, {pipeline_mode = #tpu.pipeline_mode<synchronous>, transform_indices = @transform_1, window_bounds = array<i64: 320, 64>}, {pipeline_mode = #tpu.pipeline_mode<synchronous>, transform_indices = @transform_2, window_bounds = array<i64: 1, 64>}, {pipeline_mode = #tpu.pipeline_mode<synchronous>, transform_indices = @transform_3, window_bounds = array<i64: 576, 64>}, {pipeline_mode = #tpu.pipeline_mode<synchronous>, transform_indices = @transform_4, window_bounds = array<i64: 1, 64>}, {pipeline_mode = #tpu.pipeline_mode<synchronous>, transform_indices = @transform_5, window_bounds = array<i64: 576, 256>}, {pipeline_mode = #tpu.pipeline_mode<synchronous>, transform_indices = @transform_6, window_bounds = array<i64: 1, 256>}, {pipeline_mode = #tpu.pipeline_mode<synchronous>, transform_indices = @transform_7, window_bounds = array<i64: 576, 8>}, {pipeline_mode = #tpu.pipeline_mode<synchronous>, transform_indices = @transform_8, window_bounds = array<i64: 1, 8>}, {transform_indices = @transform_9, window_bounds = array<i64: 1, 256, 8>}]} {
    %cst = arith.constant 0.000000e+00 : f32
    %0 = vector.broadcast %cst : f32 to vector<1x10x64xf32>
    %cst_0 = arith.constant 0.000000e+00 : f32
    %1 = vector.broadcast %cst_0 : f32 to vector<10x1x64xf32>
    %c0 = arith.constant 0 : index
    %c0_1 = arith.constant 0 : index
    %c0_2 = arith.constant 0 : index
    %c0_3 = arith.constant 0 : index
    %c0_4 = arith.constant 0 : index
    %2 = vector.load %arg11[%c0, %c0_1, %c0_2, %c0_3, %c0_4] : memref<1x1x10x10x64xf32, #tpu.memory_space<vmem>>, vector<1x1x1x10x64xf32>
    %3 = vector.shape_cast %2 : vector<1x1x1x10x64xf32> to vector<1x10x64xf32>
    %4 = vector.shape_cast %0 : vector<1x10x64xf32> to vector<1x1x1x10x64xf32>
    tpu.vector_store %arg11[%c0, %c0_1, %c0_2, %c0_3, %c0_4], %4 {strides = array<i32>} : memref<1x1x10x10x64xf32, #tpu.memory_space<vmem>>, vector<1x1x1x10x64xf32>,
    %c0_5 = arith.constant 0 : index
    %c0_6 = arith.constant 0 : index
    %c9 = arith.constant 9 : index
    %c0_7 = arith.constant 0 : index
    %c0_8 = arith.constant 0 : index
    %5 = vector.load %arg11[%c0_5, %c0_6, %c9, %c0_7, %c0_8] : memref<1x1x10x10x64xf32, #tpu.memory_space<vmem>>, vector<1x1x1x10x64xf32>
    %6 = vector.shape_cast %5 : vector<1x1x1x10x64xf32> to vector<1x10x64xf32>
    %7 = vector.shape_cast %0 : vector<1x10x64xf32> to vector<1x1x1x10x64xf32>
    tpu.vector_store %arg11[%c0_5, %c0_6, %c9, %c0_7, %c0_8], %7 {strides = array<i32>} : memref<1x1x10x10x64xf32, #tpu.memory_space<vmem>>, vector<1x1x1x10x64xf32>,
    %c0_9 = arith.constant 0 : index
    %c0_10 = arith.constant 0 : index
    %c0_11 = arith.constant 0 : index
    %c0_12 = arith.constant 0 : index
    %c0_13 = arith.constant 0 : index
    %8 = vector.load %arg11[%c0_9, %c0_10, %c0_11, %c0_12, %c0_13] : memref<1x1x10x10x64xf32, #tpu.memory_space<vmem>>, vector<1x1x10x1x64xf32>
    %9 = vector.shape_cast %8 : vector<1x1x10x1x64xf32> to vector<10x1x64xf32>
    %10 = vector.shape_cast %1 : vector<10x1x64xf32> to vector<1x1x10x1x64xf32>
    tpu.vector_store %arg11[%c0_9, %c0_10, %c0_11, %c0_12, %c0_13], %10 {strides = array<i32>} : memref<1x1x10x10x64xf32, #tpu.memory_space<vmem>>, vector<1x1x10x1x64xf32>,
    %c0_14 = arith.constant 0 : index
    %c0_15 = arith.constant 0 : index
    %c0_16 = arith.constant 0 : index
    %c9_17 = arith.constant 9 : index
    %c0_18 = arith.constant 0 : index
    %11 = vector.load %arg11[%c0_14, %c0_15, %c0_16, %c9_17, %c0_18] : memref<1x1x10x10x64xf32, #tpu.memory_space<vmem>>, vector<1x1x10x1x64xf32>
    %12 = vector.shape_cast %11 : vector<1x1x10x1x64xf32> to vector<10x1x64xf32>
    %13 = vector.shape_cast %1 : vector<10x1x64xf32> to vector<1x1x10x1x64xf32>
    tpu.vector_store %arg11[%c0_14, %c0_15, %c0_16, %c9_17, %c0_18], %13 {strides = array<i32>} : memref<1x1x10x10x64xf32, #tpu.memory_space<vmem>>, vector<1x1x10x1x64xf32>,
    %cst_19 = arith.constant 0.000000e+00 : f32
    %14 = vector.broadcast %cst_19 : f32 to vector<1x10x64xf32>
    %cst_20 = arith.constant 0.000000e+00 : f32
    %15 = vector.broadcast %cst_20 : f32 to vector<10x1x64xf32>
    %c0_21 = arith.constant 0 : index
    %c0_22 = arith.constant 0 : index
    %c0_23 = arith.constant 0 : index
    %c0_24 = arith.constant 0 : index
    %c0_25 = arith.constant 0 : index
    %16 = vector.load %arg12[%c0_21, %c0_22, %c0_23, %c0_24, %c0_25] : memref<2x2x10x10x64xf32, #tpu.memory_space<vmem>>, vector<1x1x1x10x64xf32>
    %17 = vector.shape_cast %16 : vector<1x1x1x10x64xf32> to vector<1x10x64xf32>
    %18 = vector.shape_cast %14 : vector<1x10x64xf32> to vector<1x1x1x10x64xf32>
    tpu.vector_store %arg12[%c0_21, %c0_22, %c0_23, %c0_24, %c0_25], %18 {strides = array<i32>} : memref<2x2x10x10x64xf32, #tpu.memory_space<vmem>>, vector<1x1x1x10x64xf32>,
    %c0_26 = arith.constant 0 : index
    %c0_27 = arith.constant 0 : index
    %c9_28 = arith.constant 9 : index
    %c0_29 = arith.constant 0 : index
    %c0_30 = arith.constant 0 : index
    %19 = vector.load %arg12[%c0_26, %c0_27, %c9_28, %c0_29, %c0_30] : memref<2x2x10x10x64xf32, #tpu.memory_space<vmem>>, vector<1x1x1x10x64xf32>
    %20 = vector.shape_cast %19 : vector<1x1x1x10x64xf32> to vector<1x10x64xf32>
    %21 = vector.shape_cast %14 : vector<1x10x64xf32> to vector<1x1x1x10x64xf32>
    tpu.vector_store %arg12[%c0_26, %c0_27, %c9_28, %c0_29, %c0_30], %21 {strides = array<i32>} : memref<2x2x10x10x64xf32, #tpu.memory_space<vmem>>, vector<1x1x1x10x64xf32>,
    %c0_31 = arith.constant 0 : index
    %c0_32 = arith.constant 0 : index
    %c0_33 = arith.constant 0 : index
    %c0_34 = arith.constant 0 : index
    %c0_35 = arith.constant 0 : index
    %22 = vector.load %arg12[%c0_31, %c0_32, %c0_33, %c0_34, %c0_35] : memref<2x2x10x10x64xf32, #tpu.memory_space<vmem>>, vector<1x1x10x1x64xf32>
    %23 = vector.shape_cast %22 : vector<1x1x10x1x64xf32> to vector<10x1x64xf32>
    %24 = vector.shape_cast %15 : vector<10x1x64xf32> to vector<1x1x10x1x64xf32>
    tpu.vector_store %arg12[%c0_31, %c0_32, %c0_33, %c0_34, %c0_35], %24 {strides = array<i32>} : memref<2x2x10x10x64xf32, #tpu.memory_space<vmem>>, vector<1x1x10x1x64xf32>,
    %c0_36 = arith.constant 0 : index
    %c0_37 = arith.constant 0 : index
    %c0_38 = arith.constant 0 : index
    %c9_39 = arith.constant 9 : index
    %c0_40 = arith.constant 0 : index
    %25 = vector.load %arg12[%c0_36, %c0_37, %c0_38, %c9_39, %c0_40] : memref<2x2x10x10x64xf32, #tpu.memory_space<vmem>>, vector<1x1x10x1x64xf32>
    %26 = vector.shape_cast %25 : vector<1x1x10x1x64xf32> to vector<10x1x64xf32>
    %27 = vector.shape_cast %15 : vector<10x1x64xf32> to vector<1x1x10x1x64xf32>
    tpu.vector_store %arg12[%c0_36, %c0_37, %c0_38, %c9_39, %c0_40], %27 {strides = array<i32>} : memref<2x2x10x10x64xf32, #tpu.memory_space<vmem>>, vector<1x1x10x1x64xf32>,
    %c0_41 = arith.constant 0 : index
    %c1 = arith.constant 1 : index
    %c0_42 = arith.constant 0 : index
    %c0_43 = arith.constant 0 : index
    %c0_44 = arith.constant 0 : index
    %28 = vector.load %arg12[%c0_41, %c1, %c0_42, %c0_43, %c0_44] : memref<2x2x10x10x64xf32, #tpu.memory_space<vmem>>, vector<1x1x1x10x64xf32>
    %29 = vector.shape_cast %28 : vector<1x1x1x10x64xf32> to vector<1x10x64xf32>
    %30 = vector.shape_cast %14 : vector<1x10x64xf32> to vector<1x1x1x10x64xf32>
    tpu.vector_store %arg12[%c0_41, %c1, %c0_42, %c0_43, %c0_44], %30 {strides = array<i32>} : memref<2x2x10x10x64xf32, #tpu.memory_space<vmem>>, vector<1x1x1x10x64xf32>,
    %c0_45 = arith.constant 0 : index
    %c1_46 = arith.constant 1 : index
    %c9_47 = arith.constant 9 : index
    %c0_48 = arith.constant 0 : index
    %c0_49 = arith.constant 0 : index
    %31 = vector.load %arg12[%c0_45, %c1_46, %c9_47, %c0_48, %c0_49] : memref<2x2x10x10x64xf32, #tpu.memory_space<vmem>>, vector<1x1x1x10x64xf32>
    %32 = vector.shape_cast %31 : vector<1x1x1x10x64xf32> to vector<1x10x64xf32>
    %33 = vector.shape_cast %14 : vector<1x10x64xf32> to vector<1x1x1x10x64xf32>
    tpu.vector_store %arg12[%c0_45, %c1_46, %c9_47, %c0_48, %c0_49], %33 {strides = array<i32>} : memref<2x2x10x10x64xf32, #tpu.memory_space<vmem>>, vector<1x1x1x10x64xf32>,
    %c0_50 = arith.constant 0 : index
    %c1_51 = arith.constant 1 : index
    %c0_52 = arith.constant 0 : index
    %c0_53 = arith.constant 0 : index
    %c0_54 = arith.constant 0 : index
    %34 = vector.load %arg12[%c0_50, %c1_51, %c0_52, %c0_53, %c0_54] : memref<2x2x10x10x64xf32, #tpu.memory_space<vmem>>, vector<1x1x10x1x64xf32>
    %35 = vector.shape_cast %34 : vector<1x1x10x1x64xf32> to vector<10x1x64xf32>
    %36 = vector.shape_cast %15 : vector<10x1x64xf32> to vector<1x1x10x1x64xf32>
    tpu.vector_store %arg12[%c0_50, %c1_51, %c0_52, %c0_53, %c0_54], %36 {strides = array<i32>} : memref<2x2x10x10x64xf32, #tpu.memory_space<vmem>>, vector<1x1x10x1x64xf32>,
    %c0_55 = arith.constant 0 : index
    %c1_56 = arith.constant 1 : index
    %c0_57 = arith.constant 0 : index
    %c9_58 = arith.constant 9 : index
    %c0_59 = arith.constant 0 : index
    %37 = vector.load %arg12[%c0_55, %c1_56, %c0_57, %c9_58, %c0_59] : memref<2x2x10x10x64xf32, #tpu.memory_space<vmem>>, vector<1x1x10x1x64xf32>
    %38 = vector.shape_cast %37 : vector<1x1x10x1x64xf32> to vector<10x1x64xf32>
    %39 = vector.shape_cast %15 : vector<10x1x64xf32> to vector<1x1x10x1x64xf32>
    tpu.vector_store %arg12[%c0_55, %c1_56, %c0_57, %c9_58, %c0_59], %39 {strides = array<i32>} : memref<2x2x10x10x64xf32, #tpu.memory_space<vmem>>, vector<1x1x10x1x64xf32>,
    %c1_60 = arith.constant 1 : index
    %c0_61 = arith.constant 0 : index
    %c0_62 = arith.constant 0 : index
    %c0_63 = arith.constant 0 : index
    %c0_64 = arith.constant 0 : index
    %40 = vector.load %arg12[%c1_60, %c0_61, %c0_62, %c0_63, %c0_64] : memref<2x2x10x10x64xf32, #tpu.memory_space<vmem>>, vector<1x1x1x10x64xf32>
    %41 = vector.shape_cast %40 : vector<1x1x1x10x64xf32> to vector<1x10x64xf32>
    %42 = vector.shape_cast %14 : vector<1x10x64xf32> to vector<1x1x1x10x64xf32>
    tpu.vector_store %arg12[%c1_60, %c0_61, %c0_62, %c0_63, %c0_64], %42 {strides = array<i32>} : memref<2x2x10x10x64xf32, #tpu.memory_space<vmem>>, vector<1x1x1x10x64xf32>,
    %c1_65 = arith.constant 1 : index
    %c0_66 = arith.constant 0 : index
    %c9_67 = arith.constant 9 : index
    %c0_68 = arith.constant 0 : index
    %c0_69 = arith.constant 0 : index
    %43 = vector.load %arg12[%c1_65, %c0_66, %c9_67, %c0_68, %c0_69] : memref<2x2x10x10x64xf32, #tpu.memory_space<vmem>>, vector<1x1x1x10x64xf32>
    %44 = vector.shape_cast %43 : vector<1x1x1x10x64xf32> to vector<1x10x64xf32>
    %45 = vector.shape_cast %14 : vector<1x10x64xf32> to vector<1x1x1x10x64xf32>
    tpu.vector_store %arg12[%c1_65, %c0_66, %c9_67, %c0_68, %c0_69], %45 {strides = array<i32>} : memref<2x2x10x10x64xf32, #tpu.memory_space<vmem>>, vector<1x1x1x10x64xf32>,
    %c1_70 = arith.constant 1 : index
    %c0_71 = arith.constant 0 : index
    %c0_72 = arith.constant 0 : index
    %c0_73 = arith.constant 0 : index
    %c0_74 = arith.constant 0 : index
    %46 = vector.load %arg12[%c1_70, %c0_71, %c0_72, %c0_73, %c0_74] : memref<2x2x10x10x64xf32, #tpu.memory_space<vmem>>, vector<1x1x10x1x64xf32>
    %47 = vector.shape_cast %46 : vector<1x1x10x1x64xf32> to vector<10x1x64xf32>
    %48 = vector.shape_cast %15 : vector<10x1x64xf32> to vector<1x1x10x1x64xf32>
    tpu.vector_store %arg12[%c1_70, %c0_71, %c0_72, %c0_73, %c0_74], %48 {strides = array<i32>} : memref<2x2x10x10x64xf32, #tpu.memory_space<vmem>>, vector<1x1x10x1x64xf32>,
    %c1_75 = arith.constant 1 : index
    %c0_76 = arith.constant 0 : index
    %c0_77 = arith.constant 0 : index
    %c9_78 = arith.constant 9 : index
    %c0_79 = arith.constant 0 : index
    %49 = vector.load %arg12[%c1_75, %c0_76, %c0_77, %c9_78, %c0_79] : memref<2x2x10x10x64xf32, #tpu.memory_space<vmem>>, vector<1x1x10x1x64xf32>
    %50 = vector.shape_cast %49 : vector<1x1x10x1x64xf32> to vector<10x1x64xf32>
    %51 = vector.shape_cast %15 : vector<10x1x64xf32> to vector<1x1x10x1x64xf32>
    tpu.vector_store %arg12[%c1_75, %c0_76, %c0_77, %c9_78, %c0_79], %51 {strides = array<i32>} : memref<2x2x10x10x64xf32, #tpu.memory_space<vmem>>, vector<1x1x10x1x64xf32>,
    %c1_80 = arith.constant 1 : index
    %c1_81 = arith.constant 1 : index
    %c0_82 = arith.constant 0 : index
    %c0_83 = arith.constant 0 : index
    %c0_84 = arith.constant 0 : index
    %52 = vector.load %arg12[%c1_80, %c1_81, %c0_82, %c0_83, %c0_84] : memref<2x2x10x10x64xf32, #tpu.memory_space<vmem>>, vector<1x1x1x10x64xf32>
    %53 = vector.shape_cast %52 : vector<1x1x1x10x64xf32> to vector<1x10x64xf32>
    %54 = vector.shape_cast %14 : vector<1x10x64xf32> to vector<1x1x1x10x64xf32>
    tpu.vector_store %arg12[%c1_80, %c1_81, %c0_82, %c0_83, %c0_84], %54 {strides = array<i32>} : memref<2x2x10x10x64xf32, #tpu.memory_space<vmem>>, vector<1x1x1x10x64xf32>,
    %c1_85 = arith.constant 1 : index
    %c1_86 = arith.constant 1 : index
    %c9_87 = arith.constant 9 : index
    %c0_88 = arith.constant 0 : index
    %c0_89 = arith.constant 0 : index
    %55 = vector.load %arg12[%c1_85, %c1_86, %c9_87, %c0_88, %c0_89] : memref<2x2x10x10x64xf32, #tpu.memory_space<vmem>>, vector<1x1x1x10x64xf32>
    %56 = vector.shape_cast %55 : vector<1x1x1x10x64xf32> to vector<1x10x64xf32>
    %57 = vector.shape_cast %14 : vector<1x10x64xf32> to vector<1x1x1x10x64xf32>
    tpu.vector_store %arg12[%c1_85, %c1_86, %c9_87, %c0_88, %c0_89], %57 {strides = array<i32>} : memref<2x2x10x10x64xf32, #tpu.memory_space<vmem>>, vector<1x1x1x10x64xf32>,
    %c1_90 = arith.constant 1 : index
    %c1_91 = arith.constant 1 : index
    %c0_92 = arith.constant 0 : index
    %c0_93 = arith.constant 0 : index
    %c0_94 = arith.constant 0 : index
    %58 = vector.load %arg12[%c1_90, %c1_91, %c0_92, %c0_93, %c0_94] : memref<2x2x10x10x64xf32, #tpu.memory_space<vmem>>, vector<1x1x10x1x64xf32>
    %59 = vector.shape_cast %58 : vector<1x1x10x1x64xf32> to vector<10x1x64xf32>
    %60 = vector.shape_cast %15 : vector<10x1x64xf32> to vector<1x1x10x1x64xf32>
    tpu.vector_store %arg12[%c1_90, %c1_91, %c0_92, %c0_93, %c0_94], %60 {strides = array<i32>} : memref<2x2x10x10x64xf32, #tpu.memory_space<vmem>>, vector<1x1x10x1x64xf32>,
    %c1_95 = arith.constant 1 : index
    %c1_96 = arith.constant 1 : index
    %c0_97 = arith.constant 0 : index
    %c9_98 = arith.constant 9 : index
    %c0_99 = arith.constant 0 : index
    %61 = vector.load %arg12[%c1_95, %c1_96, %c0_97, %c9_98, %c0_99] : memref<2x2x10x10x64xf32, #tpu.memory_space<vmem>>, vector<1x1x10x1x64xf32>
    %62 = vector.shape_cast %61 : vector<1x1x10x1x64xf32> to vector<10x1x64xf32>
    %63 = vector.shape_cast %15 : vector<10x1x64xf32> to vector<1x1x10x1x64xf32>
    tpu.vector_store %arg12[%c1_95, %c1_96, %c0_97, %c9_98, %c0_99], %63 {strides = array<i32>} : memref<2x2x10x10x64xf32, #tpu.memory_space<vmem>>, vector<1x1x10x1x64xf32>,
    %c0_100 = arith.constant 0 : index
    %c0_101 = arith.constant 0 : index
    %c0_102 = arith.constant 0 : index
    %64 = vector.load %arg1[%c0_100, %c0_101, %c0_102] : memref<1x64x320xbf16, #tpu.memory_space<vmem>>, vector<1x64x320xbf16>
    %65 = vector.shape_cast %64 : vector<1x64x320xbf16> to vector<64x320xbf16>
    %c0_103 = arith.constant 0 : index
    %c0_104 = arith.constant 0 : index
    %66 = vector.load %arg2[%c0_103, %c0_104] : memref<320x64xbf16, #tpu.memory_space<vmem>>, vector<320x64xbf16>
    %cst_105 = arith.constant dense<0.000000e+00> : vector<64x64xf32>
    %67 = tpu.matmul %65, %66, %cst_105 {dimension_numbers = #tpu.dot_dimension_numbers<[1], [0], [0], [1], [0, 0, 1, 1], [], []>} : vector<64x320xbf16>, vector<320x64xbf16>, vector<64x64xf32> -> vector<64x64xf32>
    %c0_106 = arith.constant 0 : index
    %c0_107 = arith.constant 0 : index
    %68 = vector.load %arg3[%c0_106, %c0_107] : memref<1x64xf32, #tpu.memory_space<vmem>>, vector<1x64xf32>
    %69 = vector.broadcast %68 : vector<1x64xf32> to vector<64x64xf32>
    %70 = arith.addf %67, %69 : vector<64x64xf32>
    %71 = vector.shape_cast %70 : vector<64x64xf32> to vector<8x8x64xf32>
    %c0_108 = arith.constant 0 : index
    %c0_109 = arith.constant 0 : index
    %c1_110 = arith.constant 1 : index
    %c1_111 = arith.constant 1 : index
    %c0_112 = arith.constant 0 : index
    %72 = vector.load %arg11[%c0_108, %c0_109, %c1_110, %c1_111, %c0_112] : memref<1x1x10x10x64xf32, #tpu.memory_space<vmem>>, vector<1x1x8x8x64xf32>
    %73 = vector.shape_cast %72 : vector<1x1x8x8x64xf32> to vector<8x8x64xf32>
    %74 = vector.shape_cast %71 : vector<8x8x64xf32> to vector<1x1x8x8x64xf32>
    tpu.vector_store %arg11[%c0_108, %c0_109, %c1_110, %c1_111, %c0_112], %74 {strides = array<i32>} : memref<1x1x10x10x64xf32, #tpu.memory_space<vmem>>, vector<1x1x8x8x64xf32>,
    %c0_113 = arith.constant 0 : index
    %c0_114 = arith.constant 0 : index
    %c0_115 = arith.constant 0 : index
    %c0_116 = arith.constant 0 : index
    %c0_117 = arith.constant 0 : index
    %75 = vector.load %arg11[%c0_113, %c0_114, %c0_115, %c0_116, %c0_117] : memref<1x1x10x10x64xf32, #tpu.memory_space<vmem>>, vector<1x1x8x8x64xf32>
    %76 = vector.shape_cast %75 : vector<1x1x8x8x64xf32> to vector<8x8x64xf32>
    %77 = vector.shape_cast %76 : vector<8x8x64xf32> to vector<64x64xf32>
    %78 = arith.truncf %77 : vector<64x64xf32> to vector<64x64xbf16>
    %c0_118 = arith.constant 0 : index
    %c0_119 = arith.constant 0 : index
    %79 = vector.load %arg13[%c0_118, %c0_119] : memref<256x576xbf16, #tpu.memory_space<vmem>>, vector<64x64xbf16>
    tpu.vector_store %arg13[%c0_118, %c0_119], %78 {strides = array<i32>} : memref<256x576xbf16, #tpu.memory_space<vmem>>, vector<64x64xbf16>,
    %c0_120 = arith.constant 0 : index
    %c0_121 = arith.constant 0 : index
    %c0_122 = arith.constant 0 : index
    %c1_123 = arith.constant 1 : index
    %c0_124 = arith.constant 0 : index
    %80 = vector.load %arg11[%c0_120, %c0_121, %c0_122, %c1_123, %c0_124] : memref<1x1x10x10x64xf32, #tpu.memory_space<vmem>>, vector<1x1x8x8x64xf32>
    %81 = vector.shape_cast %80 : vector<1x1x8x8x64xf32> to vector<8x8x64xf32>
    %82 = vector.shape_cast %81 : vector<8x8x64xf32> to vector<64x64xf32>
    %83 = arith.truncf %82 : vector<64x64xf32> to vector<64x64xbf16>
    %c0_125 = arith.constant 0 : index
    %c64 = arith.constant 64 : index
    %84 = vector.load %arg13[%c0_125, %c64] : memref<256x576xbf16, #tpu.memory_space<vmem>>, vector<64x64xbf16>
    tpu.vector_store %arg13[%c0_125, %c64], %83 {strides = array<i32>} : memref<256x576xbf16, #tpu.memory_space<vmem>>, vector<64x64xbf16>,
    %c0_126 = arith.constant 0 : index
    %c0_127 = arith.constant 0 : index
    %c0_128 = arith.constant 0 : index
    %c2 = arith.constant 2 : index
    %c0_129 = arith.constant 0 : index
    %85 = vector.load %arg11[%c0_126, %c0_127, %c0_128, %c2, %c0_129] : memref<1x1x10x10x64xf32, #tpu.memory_space<vmem>>, vector<1x1x8x8x64xf32>
    %86 = vector.shape_cast %85 : vector<1x1x8x8x64xf32> to vector<8x8x64xf32>
    %87 = vector.shape_cast %86 : vector<8x8x64xf32> to vector<64x64xf32>
    %88 = arith.truncf %87 : vector<64x64xf32> to vector<64x64xbf16>
    %c0_130 = arith.constant 0 : index
    %c128 = arith.constant 128 : index
    %89 = vector.load %arg13[%c0_130, %c128] : memref<256x576xbf16, #tpu.memory_space<vmem>>, vector<64x64xbf16>
    tpu.vector_store %arg13[%c0_130, %c128], %88 {strides = array<i32>} : memref<256x576xbf16, #tpu.memory_space<vmem>>, vector<64x64xbf16>,
    %c0_131 = arith.constant 0 : index
    %c0_132 = arith.constant 0 : index
    %c1_133 = arith.constant 1 : index
    %c0_134 = arith.constant 0 : index
    %c0_135 = arith.constant 0 : index
    %90 = vector.load %arg11[%c0_131, %c0_132, %c1_133, %c0_134, %c0_135] : memref<1x1x10x10x64xf32, #tpu.memory_space<vmem>>, vector<1x1x8x8x64xf32>
    %91 = vector.shape_cast %90 : vector<1x1x8x8x64xf32> to vector<8x8x64xf32>
    %92 = vector.shape_cast %91 : vector<8x8x64xf32> to vector<64x64xf32>
    %93 = arith.truncf %92 : vector<64x64xf32> to vector<64x64xbf16>
    %c0_136 = arith.constant 0 : index
    %c192 = arith.constant 192 : index
    %94 = vector.load %arg13[%c0_136, %c192] : memref<256x576xbf16, #tpu.memory_space<vmem>>, vector<64x64xbf16>
    tpu.vector_store %arg13[%c0_136, %c192], %93 {strides = array<i32>} : memref<256x576xbf16, #tpu.memory_space<vmem>>, vector<64x64xbf16>,
    %c0_137 = arith.constant 0 : index
    %c0_138 = arith.constant 0 : index
    %c1_139 = arith.constant 1 : index
    %c1_140 = arith.constant 1 : index
    %c0_141 = arith.constant 0 : index
    %95 = vector.load %arg11[%c0_137, %c0_138, %c1_139, %c1_140, %c0_141] : memref<1x1x10x10x64xf32, #tpu.memory_space<vmem>>, vector<1x1x8x8x64xf32>
    %96 = vector.shape_cast %95 : vector<1x1x8x8x64xf32> to vector<8x8x64xf32>
    %97 = vector.shape_cast %96 : vector<8x8x64xf32> to vector<64x64xf32>
    %98 = arith.truncf %97 : vector<64x64xf32> to vector<64x64xbf16>
    %c0_142 = arith.constant 0 : index
    %c256 = arith.constant 256 : index
    %99 = vector.load %arg13[%c0_142, %c256] : memref<256x576xbf16, #tpu.memory_space<vmem>>, vector<64x64xbf16>
    tpu.vector_store %arg13[%c0_142, %c256], %98 {strides = array<i32>} : memref<256x576xbf16, #tpu.memory_space<vmem>>, vector<64x64xbf16>,
    %c0_143 = arith.constant 0 : index
    %c0_144 = arith.constant 0 : index
    %c1_145 = arith.constant 1 : index
    %c2_146 = arith.constant 2 : index
    %c0_147 = arith.constant 0 : index
    %100 = vector.load %arg11[%c0_143, %c0_144, %c1_145, %c2_146, %c0_147] : memref<1x1x10x10x64xf32, #tpu.memory_space<vmem>>, vector<1x1x8x8x64xf32>
    %101 = vector.shape_cast %100 : vector<1x1x8x8x64xf32> to vector<8x8x64xf32>
    %102 = vector.shape_cast %101 : vector<8x8x64xf32> to vector<64x64xf32>
    %103 = arith.truncf %102 : vector<64x64xf32> to vector<64x64xbf16>
    %c0_148 = arith.constant 0 : index
    %c320 = arith.constant 320 : index
    %104 = vector.load %arg13[%c0_148, %c320] : memref<256x576xbf16, #tpu.memory_space<vmem>>, vector<64x64xbf16>
    tpu.vector_store %arg13[%c0_148, %c320], %103 {strides = array<i32>} : memref<256x576xbf16, #tpu.memory_space<vmem>>, vector<64x64xbf16>,
    %c0_149 = arith.constant 0 : index
    %c0_150 = arith.constant 0 : index
    %c2_151 = arith.constant 2 : index
    %c0_152 = arith.constant 0 : index
    %c0_153 = arith.constant 0 : index
    %105 = vector.load %arg11[%c0_149, %c0_150, %c2_151, %c0_152, %c0_153] : memref<1x1x10x10x64xf32, #tpu.memory_space<vmem>>, vector<1x1x8x8x64xf32>
    %106 = vector.shape_cast %105 : vector<1x1x8x8x64xf32> to vector<8x8x64xf32>
    %107 = vector.shape_cast %106 : vector<8x8x64xf32> to vector<64x64xf32>
    %108 = arith.truncf %107 : vector<64x64xf32> to vector<64x64xbf16>
    %c0_154 = arith.constant 0 : index
    %c384 = arith.constant 384 : index
    %109 = vector.load %arg13[%c0_154, %c384] : memref<256x576xbf16, #tpu.memory_space<vmem>>, vector<64x64xbf16>
    tpu.vector_store %arg13[%c0_154, %c384], %108 {strides = array<i32>} : memref<256x576xbf16, #tpu.memory_space<vmem>>, vector<64x64xbf16>,
    %c0_155 = arith.constant 0 : index
    %c0_156 = arith.constant 0 : index
    %c2_157 = arith.constant 2 : index
    %c1_158 = arith.constant 1 : index
    %c0_159 = arith.constant 0 : index
    %110 = vector.load %arg11[%c0_155, %c0_156, %c2_157, %c1_158, %c0_159] : memref<1x1x10x10x64xf32, #tpu.memory_space<vmem>>, vector<1x1x8x8x64xf32>
    %111 = vector.shape_cast %110 : vector<1x1x8x8x64xf32> to vector<8x8x64xf32>
    %112 = vector.shape_cast %111 : vector<8x8x64xf32> to vector<64x64xf32>
    %113 = arith.truncf %112 : vector<64x64xf32> to vector<64x64xbf16>
    %c0_160 = arith.constant 0 : index
    %c448 = arith.constant 448 : index
    %114 = vector.load %arg13[%c0_160, %c448] : memref<256x576xbf16, #tpu.memory_space<vmem>>, vector<64x64xbf16>
    tpu.vector_store %arg13[%c0_160, %c448], %113 {strides = array<i32>} : memref<256x576xbf16, #tpu.memory_space<vmem>>, vector<64x64xbf16>,
    %c0_161 = arith.constant 0 : index
    %c0_162 = arith.constant 0 : index
    %c2_163 = arith.constant 2 : index
    %c2_164 = arith.constant 2 : index
    %c0_165 = arith.constant 0 : index
    %115 = vector.load %arg11[%c0_161, %c0_162, %c2_163, %c2_164, %c0_165] : memref<1x1x10x10x64xf32, #tpu.memory_space<vmem>>, vector<1x1x8x8x64xf32>
    %116 = vector.shape_cast %115 : vector<1x1x8x8x64xf32> to vector<8x8x64xf32>
    %117 = vector.shape_cast %116 : vector<8x8x64xf32> to vector<64x64xf32>
    %118 = arith.truncf %117 : vector<64x64xf32> to vector<64x64xbf16>
    %c0_166 = arith.constant 0 : index
    %c512 = arith.constant 512 : index
    %119 = vector.load %arg13[%c0_166, %c512] : memref<256x576xbf16, #tpu.memory_space<vmem>>, vector<64x64xbf16>
    tpu.vector_store %arg13[%c0_166, %c512], %118 {strides = array<i32>} : memref<256x576xbf16, #tpu.memory_space<vmem>>, vector<64x64xbf16>,
    %c0_167 = arith.constant 0 : index
    %c0_168 = arith.constant 0 : index
    %120 = vector.load %arg13[%c0_167, %c0_168] : memref<256x576xbf16, #tpu.memory_space<vmem>>, vector<64x576xbf16>
    %c0_169 = arith.constant 0 : index
    %c0_170 = arith.constant 0 : index
    %121 = vector.load %arg4[%c0_169, %c0_170] : memref<576x64xbf16, #tpu.memory_space<vmem>>, vector<576x64xbf16>
    %cst_171 = arith.constant dense<0.000000e+00> : vector<64x64xf32>
    %122 = tpu.matmul %120, %121, %cst_171 {dimension_numbers = #tpu.dot_dimension_numbers<[1], [0], [0], [1], [0, 0, 1, 1], [], []>} : vector<64x576xbf16>, vector<576x64xbf16>, vector<64x64xf32> -> vector<64x64xf32>
    %c0_172 = arith.constant 0 : index
    %c0_173 = arith.constant 0 : index
    %123 = vector.load %arg5[%c0_172, %c0_173] : memref<1x64xf32, #tpu.memory_space<vmem>>, vector<1x64xf32>
    %124 = vector.broadcast %123 : vector<1x64xf32> to vector<64x64xf32>
    %125 = arith.addf %122, %124 : vector<64x64xf32>
    %126 = vector.shape_cast %125 : vector<64x64xf32> to vector<8x8x64xf32>
    %c0_174 = arith.constant 0 : index
    %c0_175 = arith.constant 0 : index
    %c1_176 = arith.constant 1 : index
    %c1_177 = arith.constant 1 : index
    %c0_178 = arith.constant 0 : index
    %127 = vector.load %arg11[%c0_174, %c0_175, %c1_176, %c1_177, %c0_178] : memref<1x1x10x10x64xf32, #tpu.memory_space<vmem>>, vector<1x1x8x8x64xf32>
    %128 = vector.shape_cast %127 : vector<1x1x8x8x64xf32> to vector<8x8x64xf32>
    %129 = vector.shape_cast %126 : vector<8x8x64xf32> to vector<1x1x8x8x64xf32>
    tpu.vector_store %arg11[%c0_174, %c0_175, %c1_176, %c1_177, %c0_178], %129 {strides = array<i32>} : memref<1x1x10x10x64xf32, #tpu.memory_space<vmem>>, vector<1x1x8x8x64xf32>,
    %c0_179 = arith.constant 0 : index
    %c0_180 = arith.constant 0 : index
    %c0_181 = arith.constant 0 : index
    %c0_182 = arith.constant 0 : index
    %c0_183 = arith.constant 0 : index
    %130 = vector.load %arg11[%c0_179, %c0_180, %c0_181, %c0_182, %c0_183] : memref<1x1x10x10x64xf32, #tpu.memory_space<vmem>>, vector<1x1x8x8x64xf32>
    %131 = vector.shape_cast %130 : vector<1x1x8x8x64xf32> to vector<8x8x64xf32>
    %132 = vector.shape_cast %131 : vector<8x8x64xf32> to vector<64x64xf32>
    %133 = arith.truncf %132 : vector<64x64xf32> to vector<64x64xbf16>
    %c0_184 = arith.constant 0 : index
    %c0_185 = arith.constant 0 : index
    %134 = vector.load %arg13[%c0_184, %c0_185] : memref<256x576xbf16, #tpu.memory_space<vmem>>, vector<64x64xbf16>
    tpu.vector_store %arg13[%c0_184, %c0_185], %133 {strides = array<i32>} : memref<256x576xbf16, #tpu.memory_space<vmem>>, vector<64x64xbf16>,
    %c0_186 = arith.constant 0 : index
    %c0_187 = arith.constant 0 : index
    %c0_188 = arith.constant 0 : index
    %c1_189 = arith.constant 1 : index
    %c0_190 = arith.constant 0 : index
    %135 = vector.load %arg11[%c0_186, %c0_187, %c0_188, %c1_189, %c0_190] : memref<1x1x10x10x64xf32, #tpu.memory_space<vmem>>, vector<1x1x8x8x64xf32>
    %136 = vector.shape_cast %135 : vector<1x1x8x8x64xf32> to vector<8x8x64xf32>
    %137 = vector.shape_cast %136 : vector<8x8x64xf32> to vector<64x64xf32>
    %138 = arith.truncf %137 : vector<64x64xf32> to vector<64x64xbf16>
    %c0_191 = arith.constant 0 : index
    %c64_192 = arith.constant 64 : index
    %139 = vector.load %arg13[%c0_191, %c64_192] : memref<256x576xbf16, #tpu.memory_space<vmem>>, vector<64x64xbf16>
    tpu.vector_store %arg13[%c0_191, %c64_192], %138 {strides = array<i32>} : memref<256x576xbf16, #tpu.memory_space<vmem>>, vector<64x64xbf16>,
    %c0_193 = arith.constant 0 : index
    %c0_194 = arith.constant 0 : index
    %c0_195 = arith.constant 0 : index
    %c2_196 = arith.constant 2 : index
    %c0_197 = arith.constant 0 : index
    %140 = vector.load %arg11[%c0_193, %c0_194, %c0_195, %c2_196, %c0_197] : memref<1x1x10x10x64xf32, #tpu.memory_space<vmem>>, vector<1x1x8x8x64xf32>
    %141 = vector.shape_cast %140 : vector<1x1x8x8x64xf32> to vector<8x8x64xf32>
    %142 = vector.shape_cast %141 : vector<8x8x64xf32> to vector<64x64xf32>
    %143 = arith.truncf %142 : vector<64x64xf32> to vector<64x64xbf16>
    %c0_198 = arith.constant 0 : index
    %c128_199 = arith.constant 128 : index
    %144 = vector.load %arg13[%c0_198, %c128_199] : memref<256x576xbf16, #tpu.memory_space<vmem>>, vector<64x64xbf16>
    tpu.vector_store %arg13[%c0_198, %c128_199], %143 {strides = array<i32>} : memref<256x576xbf16, #tpu.memory_space<vmem>>, vector<64x64xbf16>,
    %c0_200 = arith.constant 0 : index
    %c0_201 = arith.constant 0 : index
    %c1_202 = arith.constant 1 : index
    %c0_203 = arith.constant 0 : index
    %c0_204 = arith.constant 0 : index
    %145 = vector.load %arg11[%c0_200, %c0_201, %c1_202, %c0_203, %c0_204] : memref<1x1x10x10x64xf32, #tpu.memory_space<vmem>>, vector<1x1x8x8x64xf32>
    %146 = vector.shape_cast %145 : vector<1x1x8x8x64xf32> to vector<8x8x64xf32>
    %147 = vector.shape_cast %146 : vector<8x8x64xf32> to vector<64x64xf32>
    %148 = arith.truncf %147 : vector<64x64xf32> to vector<64x64xbf16>
    %c0_205 = arith.constant 0 : index
    %c192_206 = arith.constant 192 : index
    %149 = vector.load %arg13[%c0_205, %c192_206] : memref<256x576xbf16, #tpu.memory_space<vmem>>, vector<64x64xbf16>
    tpu.vector_store %arg13[%c0_205, %c192_206], %148 {strides = array<i32>} : memref<256x576xbf16, #tpu.memory_space<vmem>>, vector<64x64xbf16>,
    %c0_207 = arith.constant 0 : index
    %c0_208 = arith.constant 0 : index
    %c1_209 = arith.constant 1 : index
    %c1_210 = arith.constant 1 : index
    %c0_211 = arith.constant 0 : index
    %150 = vector.load %arg11[%c0_207, %c0_208, %c1_209, %c1_210, %c0_211] : memref<1x1x10x10x64xf32, #tpu.memory_space<vmem>>, vector<1x1x8x8x64xf32>
    %151 = vector.shape_cast %150 : vector<1x1x8x8x64xf32> to vector<8x8x64xf32>
    %152 = vector.shape_cast %151 : vector<8x8x64xf32> to vector<64x64xf32>
    %153 = arith.truncf %152 : vector<64x64xf32> to vector<64x64xbf16>
    %c0_212 = arith.constant 0 : index
    %c256_213 = arith.constant 256 : index
    %154 = vector.load %arg13[%c0_212, %c256_213] : memref<256x576xbf16, #tpu.memory_space<vmem>>, vector<64x64xbf16>
    tpu.vector_store %arg13[%c0_212, %c256_213], %153 {strides = array<i32>} : memref<256x576xbf16, #tpu.memory_space<vmem>>, vector<64x64xbf16>,
    %c0_214 = arith.constant 0 : index
    %c0_215 = arith.constant 0 : index
    %c1_216 = arith.constant 1 : index
    %c2_217 = arith.constant 2 : index
    %c0_218 = arith.constant 0 : index
    %155 = vector.load %arg11[%c0_214, %c0_215, %c1_216, %c2_217, %c0_218] : memref<1x1x10x10x64xf32, #tpu.memory_space<vmem>>, vector<1x1x8x8x64xf32>
    %156 = vector.shape_cast %155 : vector<1x1x8x8x64xf32> to vector<8x8x64xf32>
    %157 = vector.shape_cast %156 : vector<8x8x64xf32> to vector<64x64xf32>
    %158 = arith.truncf %157 : vector<64x64xf32> to vector<64x64xbf16>
    %c0_219 = arith.constant 0 : index
    %c320_220 = arith.constant 320 : index
    %159 = vector.load %arg13[%c0_219, %c320_220] : memref<256x576xbf16, #tpu.memory_space<vmem>>, vector<64x64xbf16>
    tpu.vector_store %arg13[%c0_219, %c320_220], %158 {strides = array<i32>} : memref<256x576xbf16, #tpu.memory_space<vmem>>, vector<64x64xbf16>,
    %c0_221 = arith.constant 0 : index
    %c0_222 = arith.constant 0 : index
    %c2_223 = arith.constant 2 : index
    %c0_224 = arith.constant 0 : index
    %c0_225 = arith.constant 0 : index
    %160 = vector.load %arg11[%c0_221, %c0_222, %c2_223, %c0_224, %c0_225] : memref<1x1x10x10x64xf32, #tpu.memory_space<vmem>>, vector<1x1x8x8x64xf32>
    %161 = vector.shape_cast %160 : vector<1x1x8x8x64xf32> to vector<8x8x64xf32>
    %162 = vector.shape_cast %161 : vector<8x8x64xf32> to vector<64x64xf32>
    %163 = arith.truncf %162 : vector<64x64xf32> to vector<64x64xbf16>
    %c0_226 = arith.constant 0 : index
    %c384_227 = arith.constant 384 : index
    %164 = vector.load %arg13[%c0_226, %c384_227] : memref<256x576xbf16, #tpu.memory_space<vmem>>, vector<64x64xbf16>
    tpu.vector_store %arg13[%c0_226, %c384_227], %163 {strides = array<i32>} : memref<256x576xbf16, #tpu.memory_space<vmem>>, vector<64x64xbf16>,
    %c0_228 = arith.constant 0 : index
    %c0_229 = arith.constant 0 : index
    %c2_230 = arith.constant 2 : index
    %c1_231 = arith.constant 1 : index
    %c0_232 = arith.constant 0 : index
    %165 = vector.load %arg11[%c0_228, %c0_229, %c2_230, %c1_231, %c0_232] : memref<1x1x10x10x64xf32, #tpu.memory_space<vmem>>, vector<1x1x8x8x64xf32>
    %166 = vector.shape_cast %165 : vector<1x1x8x8x64xf32> to vector<8x8x64xf32>
    %167 = vector.shape_cast %166 : vector<8x8x64xf32> to vector<64x64xf32>
    %168 = arith.truncf %167 : vector<64x64xf32> to vector<64x64xbf16>
    %c0_233 = arith.constant 0 : index
    %c448_234 = arith.constant 448 : index
    %169 = vector.load %arg13[%c0_233, %c448_234] : memref<256x576xbf16, #tpu.memory_space<vmem>>, vector<64x64xbf16>
    tpu.vector_store %arg13[%c0_233, %c448_234], %168 {strides = array<i32>} : memref<256x576xbf16, #tpu.memory_space<vmem>>, vector<64x64xbf16>,
    %c0_235 = arith.constant 0 : index
    %c0_236 = arith.constant 0 : index
    %c2_237 = arith.constant 2 : index
    %c2_238 = arith.constant 2 : index
    %c0_239 = arith.constant 0 : index
    %170 = vector.load %arg11[%c0_235, %c0_236, %c2_237, %c2_238, %c0_239] : memref<1x1x10x10x64xf32, #tpu.memory_space<vmem>>, vector<1x1x8x8x64xf32>
    %171 = vector.shape_cast %170 : vector<1x1x8x8x64xf32> to vector<8x8x64xf32>
    %172 = vector.shape_cast %171 : vector<8x8x64xf32> to vector<64x64xf32>
    %173 = arith.truncf %172 : vector<64x64xf32> to vector<64x64xbf16>
    %c0_240 = arith.constant 0 : index
    %c512_241 = arith.constant 512 : index
    %174 = vector.load %arg13[%c0_240, %c512_241] : memref<256x576xbf16, #tpu.memory_space<vmem>>, vector<64x64xbf16>
    tpu.vector_store %arg13[%c0_240, %c512_241], %173 {strides = array<i32>} : memref<256x576xbf16, #tpu.memory_space<vmem>>, vector<64x64xbf16>,
    %c0_242 = arith.constant 0 : index
    %c0_243 = arith.constant 0 : index
    %175 = vector.load %arg13[%c0_242, %c0_243] : memref<256x576xbf16, #tpu.memory_space<vmem>>, vector<64x576xbf16>
    %c0_244 = arith.constant 0 : index
    %c0_245 = arith.constant 0 : index
    %176 = vector.load %arg6[%c0_244, %c0_245] : memref<576x256xbf16, #tpu.memory_space<vmem>>, vector<576x256xbf16>
    %cst_246 = arith.constant dense<0.000000e+00> : vector<64x256xf32>
    %177 = tpu.matmul %175, %176, %cst_246 {dimension_numbers = #tpu.dot_dimension_numbers<[1], [0], [0], [1], [0, 0, 1, 1], [], []>} : vector<64x576xbf16>, vector<576x256xbf16>, vector<64x256xf32> -> vector<64x256xf32>
    %c0_247 = arith.constant 0 : index
    %c0_248 = arith.constant 0 : index
    %178 = vector.load %arg7[%c0_247, %c0_248] : memref<1x256xf32, #tpu.memory_space<vmem>>, vector<1x256xf32>
    %179 = vector.broadcast %178 : vector<1x256xf32> to vector<64x256xf32>
    %180 = arith.addf %177, %179 : vector<64x256xf32>
    %181 = vector.extract_strided_slice %180 {offsets = [0, 0], sizes = [64, 64], strides = [1, 1]} : vector<64x256xf32> to vector<64x64xf32>
    %182 = vector.shape_cast %181 : vector<64x64xf32> to vector<8x8x64xf32>
    %c0_249 = arith.constant 0 : index
    %c0_250 = arith.constant 0 : index
    %c1_251 = arith.constant 1 : index
    %c1_252 = arith.constant 1 : index
    %c0_253 = arith.constant 0 : index
    %183 = vector.load %arg12[%c0_249, %c0_250, %c1_251, %c1_252, %c0_253] : memref<2x2x10x10x64xf32, #tpu.memory_space<vmem>>, vector<1x1x8x8x64xf32>
    %184 = vector.shape_cast %183 : vector<1x1x8x8x64xf32> to vector<8x8x64xf32>
    %185 = vector.shape_cast %182 : vector<8x8x64xf32> to vector<1x1x8x8x64xf32>
    tpu.vector_store %arg12[%c0_249, %c0_250, %c1_251, %c1_252, %c0_253], %185 {strides = array<i32>} : memref<2x2x10x10x64xf32, #tpu.memory_space<vmem>>, vector<1x1x8x8x64xf32>,
    %186 = vector.extract_strided_slice %180 {offsets = [0, 64], sizes = [64, 64], strides = [1, 1]} : vector<64x256xf32> to vector<64x64xf32>
    %187 = vector.shape_cast %186 : vector<64x64xf32> to vector<8x8x64xf32>
    %c0_254 = arith.constant 0 : index
    %c1_255 = arith.constant 1 : index
    %c1_256 = arith.constant 1 : index
    %c1_257 = arith.constant 1 : index
    %c0_258 = arith.constant 0 : index
    %188 = vector.load %arg12[%c0_254, %c1_255, %c1_256, %c1_257, %c0_258] : memref<2x2x10x10x64xf32, #tpu.memory_space<vmem>>, vector<1x1x8x8x64xf32>
    %189 = vector.shape_cast %188 : vector<1x1x8x8x64xf32> to vector<8x8x64xf32>
    %190 = vector.shape_cast %187 : vector<8x8x64xf32> to vector<1x1x8x8x64xf32>
    tpu.vector_store %arg12[%c0_254, %c1_255, %c1_256, %c1_257, %c0_258], %190 {strides = array<i32>} : memref<2x2x10x10x64xf32, #tpu.memory_space<vmem>>, vector<1x1x8x8x64xf32>,
    %191 = vector.extract_strided_slice %180 {offsets = [0, 128], sizes = [64, 64], strides = [1, 1]} : vector<64x256xf32> to vector<64x64xf32>
    %192 = vector.shape_cast %191 : vector<64x64xf32> to vector<8x8x64xf32>
    %c1_259 = arith.constant 1 : index
    %c0_260 = arith.constant 0 : index
    %c1_261 = arith.constant 1 : index
    %c1_262 = arith.constant 1 : index
    %c0_263 = arith.constant 0 : index
    %193 = vector.load %arg12[%c1_259, %c0_260, %c1_261, %c1_262, %c0_263] : memref<2x2x10x10x64xf32, #tpu.memory_space<vmem>>, vector<1x1x8x8x64xf32>
    %194 = vector.shape_cast %193 : vector<1x1x8x8x64xf32> to vector<8x8x64xf32>
    %195 = vector.shape_cast %192 : vector<8x8x64xf32> to vector<1x1x8x8x64xf32>
    tpu.vector_store %arg12[%c1_259, %c0_260, %c1_261, %c1_262, %c0_263], %195 {strides = array<i32>} : memref<2x2x10x10x64xf32, #tpu.memory_space<vmem>>, vector<1x1x8x8x64xf32>,
    %196 = vector.extract_strided_slice %180 {offsets = [0, 192], sizes = [64, 64], strides = [1, 1]} : vector<64x256xf32> to vector<64x64xf32>
    %197 = vector.shape_cast %196 : vector<64x64xf32> to vector<8x8x64xf32>
    %c1_264 = arith.constant 1 : index
    %c1_265 = arith.constant 1 : index
    %c1_266 = arith.constant 1 : index
    %c1_267 = arith.constant 1 : index
    %c0_268 = arith.constant 0 : index
    %198 = vector.load %arg12[%c1_264, %c1_265, %c1_266, %c1_267, %c0_268] : memref<2x2x10x10x64xf32, #tpu.memory_space<vmem>>, vector<1x1x8x8x64xf32>
    %199 = vector.shape_cast %198 : vector<1x1x8x8x64xf32> to vector<8x8x64xf32>
    %200 = vector.shape_cast %197 : vector<8x8x64xf32> to vector<1x1x8x8x64xf32>
    tpu.vector_store %arg12[%c1_264, %c1_265, %c1_266, %c1_267, %c0_268], %200 {strides = array<i32>} : memref<2x2x10x10x64xf32, #tpu.memory_space<vmem>>, vector<1x1x8x8x64xf32>,
    %c1_269 = arith.constant 1 : index
    %c1_270 = arith.constant 1 : index
    %c0_271 = arith.constant 0 : index
    %c0_272 = arith.constant 0 : index
    %c0_273 = arith.constant 0 : index
    %201 = vector.load %arg12[%c1_269, %c1_270, %c0_271, %c0_272, %c0_273] : memref<2x2x10x10x64xf32, #tpu.memory_space<vmem>>, vector<1x1x8x8x64xf32>
    %202 = vector.shape_cast %201 : vector<1x1x8x8x64xf32> to vector<8x8x64xf32>
    %203 = vector.shape_cast %202 : vector<8x8x64xf32> to vector<64x64xf32>
    %204 = arith.truncf %203 : vector<64x64xf32> to vector<64x64xbf16>
    %c0_274 = arith.constant 0 : index
    %c0_275 = arith.constant 0 : index
    %205 = vector.load %arg13[%c0_274, %c0_275] : memref<256x576xbf16, #tpu.memory_space<vmem>>, vector<64x64xbf16>
    tpu.vector_store %arg13[%c0_274, %c0_275], %204 {strides = array<i32>} : memref<256x576xbf16, #tpu.memory_space<vmem>>, vector<64x64xbf16>,
    %c1_276 = arith.constant 1 : index
    %c0_277 = arith.constant 0 : index
    %c0_278 = arith.constant 0 : index
    %c1_279 = arith.constant 1 : index
    %c0_280 = arith.constant 0 : index
    %206 = vector.load %arg12[%c1_276, %c0_277, %c0_278, %c1_279, %c0_280] : memref<2x2x10x10x64xf32, #tpu.memory_space<vmem>>, vector<1x1x8x8x64xf32>
    %207 = vector.shape_cast %206 : vector<1x1x8x8x64xf32> to vector<8x8x64xf32>
    %208 = vector.shape_cast %207 : vector<8x8x64xf32> to vector<64x64xf32>
    %209 = arith.truncf %208 : vector<64x64xf32> to vector<64x64xbf16>
    %c0_281 = arith.constant 0 : index
    %c64_282 = arith.constant 64 : index
    %210 = vector.load %arg13[%c0_281, %c64_282] : memref<256x576xbf16, #tpu.memory_space<vmem>>, vector<64x64xbf16>
    tpu.vector_store %arg13[%c0_281, %c64_282], %209 {strides = array<i32>} : memref<256x576xbf16, #tpu.memory_space<vmem>>, vector<64x64xbf16>,
    %c1_283 = arith.constant 1 : index
    %c1_284 = arith.constant 1 : index
    %c0_285 = arith.constant 0 : index
    %c1_286 = arith.constant 1 : index
    %c0_287 = arith.constant 0 : index
    %211 = vector.load %arg12[%c1_283, %c1_284, %c0_285, %c1_286, %c0_287] : memref<2x2x10x10x64xf32, #tpu.memory_space<vmem>>, vector<1x1x8x8x64xf32>
    %212 = vector.shape_cast %211 : vector<1x1x8x8x64xf32> to vector<8x8x64xf32>
    %213 = vector.shape_cast %212 : vector<8x8x64xf32> to vector<64x64xf32>
    %214 = arith.truncf %213 : vector<64x64xf32> to vector<64x64xbf16>
    %c0_288 = arith.constant 0 : index
    %c128_289 = arith.constant 128 : index
    %215 = vector.load %arg13[%c0_288, %c128_289] : memref<256x576xbf16, #tpu.memory_space<vmem>>, vector<64x64xbf16>
    tpu.vector_store %arg13[%c0_288, %c128_289], %214 {strides = array<i32>} : memref<256x576xbf16, #tpu.memory_space<vmem>>, vector<64x64xbf16>,
    %c0_290 = arith.constant 0 : index
    %c1_291 = arith.constant 1 : index
    %c1_292 = arith.constant 1 : index
    %c0_293 = arith.constant 0 : index
    %c0_294 = arith.constant 0 : index
    %216 = vector.load %arg12[%c0_290, %c1_291, %c1_292, %c0_293, %c0_294] : memref<2x2x10x10x64xf32, #tpu.memory_space<vmem>>, vector<1x1x8x8x64xf32>
    %217 = vector.shape_cast %216 : vector<1x1x8x8x64xf32> to vector<8x8x64xf32>
    %218 = vector.shape_cast %217 : vector<8x8x64xf32> to vector<64x64xf32>
    %219 = arith.truncf %218 : vector<64x64xf32> to vector<64x64xbf16>
    %c0_295 = arith.constant 0 : index
    %c192_296 = arith.constant 192 : index
    %220 = vector.load %arg13[%c0_295, %c192_296] : memref<256x576xbf16, #tpu.memory_space<vmem>>, vector<64x64xbf16>
    tpu.vector_store %arg13[%c0_295, %c192_296], %219 {strides = array<i32>} : memref<256x576xbf16, #tpu.memory_space<vmem>>, vector<64x64xbf16>,
    %c0_297 = arith.constant 0 : index
    %c0_298 = arith.constant 0 : index
    %c1_299 = arith.constant 1 : index
    %c1_300 = arith.constant 1 : index
    %c0_301 = arith.constant 0 : index
    %221 = vector.load %arg12[%c0_297, %c0_298, %c1_299, %c1_300, %c0_301] : memref<2x2x10x10x64xf32, #tpu.memory_space<vmem>>, vector<1x1x8x8x64xf32>
    %222 = vector.shape_cast %221 : vector<1x1x8x8x64xf32> to vector<8x8x64xf32>
    %223 = vector.shape_cast %222 : vector<8x8x64xf32> to vector<64x64xf32>
    %224 = arith.truncf %223 : vector<64x64xf32> to vector<64x64xbf16>
    %c0_302 = arith.constant 0 : index
    %c256_303 = arith.constant 256 : index
    %225 = vector.load %arg13[%c0_302, %c256_303] : memref<256x576xbf16, #tpu.memory_space<vmem>>, vector<64x64xbf16>
    tpu.vector_store %arg13[%c0_302, %c256_303], %224 {strides = array<i32>} : memref<256x576xbf16, #tpu.memory_space<vmem>>, vector<64x64xbf16>,
    %c0_304 = arith.constant 0 : index
    %c1_305 = arith.constant 1 : index
    %c1_306 = arith.constant 1 : index
    %c1_307 = arith.constant 1 : index
    %c0_308 = arith.constant 0 : index
    %226 = vector.load %arg12[%c0_304, %c1_305, %c1_306, %c1_307, %c0_308] : memref<2x2x10x10x64xf32, #tpu.memory_space<vmem>>, vector<1x1x8x8x64xf32>
    %227 = vector.shape_cast %226 : vector<1x1x8x8x64xf32> to vector<8x8x64xf32>
    %228 = vector.shape_cast %227 : vector<8x8x64xf32> to vector<64x64xf32>
    %229 = arith.truncf %228 : vector<64x64xf32> to vector<64x64xbf16>
    %c0_309 = arith.constant 0 : index
    %c320_310 = arith.constant 320 : index
    %230 = vector.load %arg13[%c0_309, %c320_310] : memref<256x576xbf16, #tpu.memory_space<vmem>>, vector<64x64xbf16>
    tpu.vector_store %arg13[%c0_309, %c320_310], %229 {strides = array<i32>} : memref<256x576xbf16, #tpu.memory_space<vmem>>, vector<64x64xbf16>,
    %c1_311 = arith.constant 1 : index
    %c1_312 = arith.constant 1 : index
    %c1_313 = arith.constant 1 : index
    %c0_314 = arith.constant 0 : index
    %c0_315 = arith.constant 0 : index
    %231 = vector.load %arg12[%c1_311, %c1_312, %c1_313, %c0_314, %c0_315] : memref<2x2x10x10x64xf32, #tpu.memory_space<vmem>>, vector<1x1x8x8x64xf32>
    %232 = vector.shape_cast %231 : vector<1x1x8x8x64xf32> to vector<8x8x64xf32>
    %233 = vector.shape_cast %232 : vector<8x8x64xf32> to vector<64x64xf32>
    %234 = arith.truncf %233 : vector<64x64xf32> to vector<64x64xbf16>
    %c0_316 = arith.constant 0 : index
    %c384_317 = arith.constant 384 : index
    %235 = vector.load %arg13[%c0_316, %c384_317] : memref<256x576xbf16, #tpu.memory_space<vmem>>, vector<64x64xbf16>
    tpu.vector_store %arg13[%c0_316, %c384_317], %234 {strides = array<i32>} : memref<256x576xbf16, #tpu.memory_space<vmem>>, vector<64x64xbf16>,
    %c1_318 = arith.constant 1 : index
    %c0_319 = arith.constant 0 : index
    %c1_320 = arith.constant 1 : index
    %c1_321 = arith.constant 1 : index
    %c0_322 = arith.constant 0 : index
    %236 = vector.load %arg12[%c1_318, %c0_319, %c1_320, %c1_321, %c0_322] : memref<2x2x10x10x64xf32, #tpu.memory_space<vmem>>, vector<1x1x8x8x64xf32>
    %237 = vector.shape_cast %236 : vector<1x1x8x8x64xf32> to vector<8x8x64xf32>
    %238 = vector.shape_cast %237 : vector<8x8x64xf32> to vector<64x64xf32>
    %239 = arith.truncf %238 : vector<64x64xf32> to vector<64x64xbf16>
    %c0_323 = arith.constant 0 : index
    %c448_324 = arith.constant 448 : index
    %240 = vector.load %arg13[%c0_323, %c448_324] : memref<256x576xbf16, #tpu.memory_space<vmem>>, vector<64x64xbf16>
    tpu.vector_store %arg13[%c0_323, %c448_324], %239 {strides = array<i32>} : memref<256x576xbf16, #tpu.memory_space<vmem>>, vector<64x64xbf16>,
    %c1_325 = arith.constant 1 : index
    %c1_326 = arith.constant 1 : index
    %c1_327 = arith.constant 1 : index
    %c1_328 = arith.constant 1 : index
    %c0_329 = arith.constant 0 : index
    %241 = vector.load %arg12[%c1_325, %c1_326, %c1_327, %c1_328, %c0_329] : memref<2x2x10x10x64xf32, #tpu.memory_space<vmem>>, vector<1x1x8x8x64xf32>
    %242 = vector.shape_cast %241 : vector<1x1x8x8x64xf32> to vector<8x8x64xf32>
    %243 = vector.shape_cast %242 : vector<8x8x64xf32> to vector<64x64xf32>
    %244 = arith.truncf %243 : vector<64x64xf32> to vector<64x64xbf16>
    %c0_330 = arith.constant 0 : index
    %c512_331 = arith.constant 512 : index
    %245 = vector.load %arg13[%c0_330, %c512_331] : memref<256x576xbf16, #tpu.memory_space<vmem>>, vector<64x64xbf16>
    tpu.vector_store %arg13[%c0_330, %c512_331], %244 {strides = array<i32>} : memref<256x576xbf16, #tpu.memory_space<vmem>>, vector<64x64xbf16>,
    %c1_332 = arith.constant 1 : index
    %c0_333 = arith.constant 0 : index
    %c0_334 = arith.constant 0 : index
    %c1_335 = arith.constant 1 : index
    %c0_336 = arith.constant 0 : index
    %246 = vector.load %arg12[%c1_332, %c0_333, %c0_334, %c1_335, %c0_336] : memref<2x2x10x10x64xf32, #tpu.memory_space<vmem>>, vector<1x1x8x8x64xf32>
    %247 = vector.shape_cast %246 : vector<1x1x8x8x64xf32> to vector<8x8x64xf32>
    %248 = vector.shape_cast %247 : vector<8x8x64xf32> to vector<64x64xf32>
    %249 = arith.truncf %248 : vector<64x64xf32> to vector<64x64xbf16>
    %c64_337 = arith.constant 64 : index
    %c0_338 = arith.constant 0 : index
    %250 = vector.load %arg13[%c64_337, %c0_338] : memref<256x576xbf16, #tpu.memory_space<vmem>>, vector<64x64xbf16>
    tpu.vector_store %arg13[%c64_337, %c0_338], %249 {strides = array<i32>} : memref<256x576xbf16, #tpu.memory_space<vmem>>, vector<64x64xbf16>,
    %c1_339 = arith.constant 1 : index
    %c1_340 = arith.constant 1 : index
    %c0_341 = arith.constant 0 : index
    %c1_342 = arith.constant 1 : index
    %c0_343 = arith.constant 0 : index
    %251 = vector.load %arg12[%c1_339, %c1_340, %c0_341, %c1_342, %c0_343] : memref<2x2x10x10x64xf32, #tpu.memory_space<vmem>>, vector<1x1x8x8x64xf32>
    %252 = vector.shape_cast %251 : vector<1x1x8x8x64xf32> to vector<8x8x64xf32>
    %253 = vector.shape_cast %252 : vector<8x8x64xf32> to vector<64x64xf32>
    %254 = arith.truncf %253 : vector<64x64xf32> to vector<64x64xbf16>
    %c64_344 = arith.constant 64 : index
    %c64_345 = arith.constant 64 : index
    %255 = vector.load %arg13[%c64_344, %c64_345] : memref<256x576xbf16, #tpu.memory_space<vmem>>, vector<64x64xbf16>
    tpu.vector_store %arg13[%c64_344, %c64_345], %254 {strides = array<i32>} : memref<256x576xbf16, #tpu.memory_space<vmem>>, vector<64x64xbf16>,
    %c1_346 = arith.constant 1 : index
    %c0_347 = arith.constant 0 : index
    %c0_348 = arith.constant 0 : index
    %c2_349 = arith.constant 2 : index
    %c0_350 = arith.constant 0 : index
    %256 = vector.load %arg12[%c1_346, %c0_347, %c0_348, %c2_349, %c0_350] : memref<2x2x10x10x64xf32, #tpu.memory_space<vmem>>, vector<1x1x8x8x64xf32>
    %257 = vector.shape_cast %256 : vector<1x1x8x8x64xf32> to vector<8x8x64xf32>
    %258 = vector.shape_cast %257 : vector<8x8x64xf32> to vector<64x64xf32>
    %259 = arith.truncf %258 : vector<64x64xf32> to vector<64x64xbf16>
    %c64_351 = arith.constant 64 : index
    %c128_352 = arith.constant 128 : index
    %260 = vector.load %arg13[%c64_351, %c128_352] : memref<256x576xbf16, #tpu.memory_space<vmem>>, vector<64x64xbf16>
    tpu.vector_store %arg13[%c64_351, %c128_352], %259 {strides = array<i32>} : memref<256x576xbf16, #tpu.memory_space<vmem>>, vector<64x64xbf16>,
    %c0_353 = arith.constant 0 : index
    %c0_354 = arith.constant 0 : index
    %c1_355 = arith.constant 1 : index
    %c1_356 = arith.constant 1 : index
    %c0_357 = arith.constant 0 : index
    %261 = vector.load %arg12[%c0_353, %c0_354, %c1_355, %c1_356, %c0_357] : memref<2x2x10x10x64xf32, #tpu.memory_space<vmem>>, vector<1x1x8x8x64xf32>
    %262 = vector.shape_cast %261 : vector<1x1x8x8x64xf32> to vector<8x8x64xf32>
    %263 = vector.shape_cast %262 : vector<8x8x64xf32> to vector<64x64xf32>
    %264 = arith.truncf %263 : vector<64x64xf32> to vector<64x64xbf16>
    %c64_358 = arith.constant 64 : index
    %c192_359 = arith.constant 192 : index
    %265 = vector.load %arg13[%c64_358, %c192_359] : memref<256x576xbf16, #tpu.memory_space<vmem>>, vector<64x64xbf16>
    tpu.vector_store %arg13[%c64_358, %c192_359], %264 {strides = array<i32>} : memref<256x576xbf16, #tpu.memory_space<vmem>>, vector<64x64xbf16>,
    %c0_360 = arith.constant 0 : index
    %c1_361 = arith.constant 1 : index
    %c1_362 = arith.constant 1 : index
    %c1_363 = arith.constant 1 : index
    %c0_364 = arith.constant 0 : index
    %266 = vector.load %arg12[%c0_360, %c1_361, %c1_362, %c1_363, %c0_364] : memref<2x2x10x10x64xf32, #tpu.memory_space<vmem>>, vector<1x1x8x8x64xf32>
    %267 = vector.shape_cast %266 : vector<1x1x8x8x64xf32> to vector<8x8x64xf32>
    %268 = vector.shape_cast %267 : vector<8x8x64xf32> to vector<64x64xf32>
    %269 = arith.truncf %268 : vector<64x64xf32> to vector<64x64xbf16>
    %c64_365 = arith.constant 64 : index
    %c256_366 = arith.constant 256 : index
    %270 = vector.load %arg13[%c64_365, %c256_366] : memref<256x576xbf16, #tpu.memory_space<vmem>>, vector<64x64xbf16>
    tpu.vector_store %arg13[%c64_365, %c256_366], %269 {strides = array<i32>} : memref<256x576xbf16, #tpu.memory_space<vmem>>, vector<64x64xbf16>,
    %c0_367 = arith.constant 0 : index
    %c0_368 = arith.constant 0 : index
    %c1_369 = arith.constant 1 : index
    %c2_370 = arith.constant 2 : index
    %c0_371 = arith.constant 0 : index
    %271 = vector.load %arg12[%c0_367, %c0_368, %c1_369, %c2_370, %c0_371] : memref<2x2x10x10x64xf32, #tpu.memory_space<vmem>>, vector<1x1x8x8x64xf32>
    %272 = vector.shape_cast %271 : vector<1x1x8x8x64xf32> to vector<8x8x64xf32>
    %273 = vector.shape_cast %272 : vector<8x8x64xf32> to vector<64x64xf32>
    %274 = arith.truncf %273 : vector<64x64xf32> to vector<64x64xbf16>
    %c64_372 = arith.constant 64 : index
    %c320_373 = arith.constant 320 : index
    %275 = vector.load %arg13[%c64_372, %c320_373] : memref<256x576xbf16, #tpu.memory_space<vmem>>, vector<64x64xbf16>
    tpu.vector_store %arg13[%c64_372, %c320_373], %274 {strides = array<i32>} : memref<256x576xbf16, #tpu.memory_space<vmem>>, vector<64x64xbf16>,
    %c1_374 = arith.constant 1 : index
    %c0_375 = arith.constant 0 : index
    %c1_376 = arith.constant 1 : index
    %c1_377 = arith.constant 1 : index
    %c0_378 = arith.constant 0 : index
    %276 = vector.load %arg12[%c1_374, %c0_375, %c1_376, %c1_377, %c0_378] : memref<2x2x10x10x64xf32, #tpu.memory_space<vmem>>, vector<1x1x8x8x64xf32>
    %277 = vector.shape_cast %276 : vector<1x1x8x8x64xf32> to vector<8x8x64xf32>
    %278 = vector.shape_cast %277 : vector<8x8x64xf32> to vector<64x64xf32>
    %279 = arith.truncf %278 : vector<64x64xf32> to vector<64x64xbf16>
    %c64_379 = arith.constant 64 : index
    %c384_380 = arith.constant 384 : index
    %280 = vector.load %arg13[%c64_379, %c384_380] : memref<256x576xbf16, #tpu.memory_space<vmem>>, vector<64x64xbf16>
    tpu.vector_store %arg13[%c64_379, %c384_380], %279 {strides = array<i32>} : memref<256x576xbf16, #tpu.memory_space<vmem>>, vector<64x64xbf16>,
    %c1_381 = arith.constant 1 : index
    %c1_382 = arith.constant 1 : index
    %c1_383 = arith.constant 1 : index
    %c1_384 = arith.constant 1 : index
    %c0_385 = arith.constant 0 : index
    %281 = vector.load %arg12[%c1_381, %c1_382, %c1_383, %c1_384, %c0_385] : memref<2x2x10x10x64xf32, #tpu.memory_space<vmem>>, vector<1x1x8x8x64xf32>
    %282 = vector.shape_cast %281 : vector<1x1x8x8x64xf32> to vector<8x8x64xf32>
    %283 = vector.shape_cast %282 : vector<8x8x64xf32> to vector<64x64xf32>
    %284 = arith.truncf %283 : vector<64x64xf32> to vector<64x64xbf16>
    %c64_386 = arith.constant 64 : index
    %c448_387 = arith.constant 448 : index
    %285 = vector.load %arg13[%c64_386, %c448_387] : memref<256x576xbf16, #tpu.memory_space<vmem>>, vector<64x64xbf16>
    tpu.vector_store %arg13[%c64_386, %c448_387], %284 {strides = array<i32>} : memref<256x576xbf16, #tpu.memory_space<vmem>>, vector<64x64xbf16>,
    %c1_388 = arith.constant 1 : index
    %c0_389 = arith.constant 0 : index
    %c1_390 = arith.constant 1 : index
    %c2_391 = arith.constant 2 : index
    %c0_392 = arith.constant 0 : index
    %286 = vector.load %arg12[%c1_388, %c0_389, %c1_390, %c2_391, %c0_392] : memref<2x2x10x10x64xf32, #tpu.memory_space<vmem>>, vector<1x1x8x8x64xf32>
    %287 = vector.shape_cast %286 : vector<1x1x8x8x64xf32> to vector<8x8x64xf32>
    %288 = vector.shape_cast %287 : vector<8x8x64xf32> to vector<64x64xf32>
    %289 = arith.truncf %288 : vector<64x64xf32> to vector<64x64xbf16>
    %c64_393 = arith.constant 64 : index
    %c512_394 = arith.constant 512 : index
    %290 = vector.load %arg13[%c64_393, %c512_394] : memref<256x576xbf16, #tpu.memory_space<vmem>>, vector<64x64xbf16>
    tpu.vector_store %arg13[%c64_393, %c512_394], %289 {strides = array<i32>} : memref<256x576xbf16, #tpu.memory_space<vmem>>, vector<64x64xbf16>,
    %c0_395 = arith.constant 0 : index
    %c1_396 = arith.constant 1 : index
    %c1_397 = arith.constant 1 : index
    %c0_398 = arith.constant 0 : index
    %c0_399 = arith.constant 0 : index
    %291 = vector.load %arg12[%c0_395, %c1_396, %c1_397, %c0_398, %c0_399] : memref<2x2x10x10x64xf32, #tpu.memory_space<vmem>>, vector<1x1x8x8x64xf32>
    %292 = vector.shape_cast %291 : vector<1x1x8x8x64xf32> to vector<8x8x64xf32>
    %293 = vector.shape_cast %292 : vector<8x8x64xf32> to vector<64x64xf32>
    %294 = arith.truncf %293 : vector<64x64xf32> to vector<64x64xbf16>
    %c128_400 = arith.constant 128 : index
    %c0_401 = arith.constant 0 : index
    %295 = vector.load %arg13[%c128_400, %c0_401] : memref<256x576xbf16, #tpu.memory_space<vmem>>, vector<64x64xbf16>
    tpu.vector_store %arg13[%c128_400, %c0_401], %294 {strides = array<i32>} : memref<256x576xbf16, #tpu.memory_space<vmem>>, vector<64x64xbf16>,
    %c0_402 = arith.constant 0 : index
    %c0_403 = arith.constant 0 : index
    %c1_404 = arith.constant 1 : index
    %c1_405 = arith.constant 1 : index
    %c0_406 = arith.constant 0 : index
    %296 = vector.load %arg12[%c0_402, %c0_403, %c1_404, %c1_405, %c0_406] : memref<2x2x10x10x64xf32, #tpu.memory_space<vmem>>, vector<1x1x8x8x64xf32>
    %297 = vector.shape_cast %296 : vector<1x1x8x8x64xf32> to vector<8x8x64xf32>
    %298 = vector.shape_cast %297 : vector<8x8x64xf32> to vector<64x64xf32>
    %299 = arith.truncf %298 : vector<64x64xf32> to vector<64x64xbf16>
    %c128_407 = arith.constant 128 : index
    %c64_408 = arith.constant 64 : index
    %300 = vector.load %arg13[%c128_407, %c64_408] : memref<256x576xbf16, #tpu.memory_space<vmem>>, vector<64x64xbf16>
    tpu.vector_store %arg13[%c128_407, %c64_408], %299 {strides = array<i32>} : memref<256x576xbf16, #tpu.memory_space<vmem>>, vector<64x64xbf16>,
    %c0_409 = arith.constant 0 : index
    %c1_410 = arith.constant 1 : index
    %c1_411 = arith.constant 1 : index
    %c1_412 = arith.constant 1 : index
    %c0_413 = arith.constant 0 : index
    %301 = vector.load %arg12[%c0_409, %c1_410, %c1_411, %c1_412, %c0_413] : memref<2x2x10x10x64xf32, #tpu.memory_space<vmem>>, vector<1x1x8x8x64xf32>
    %302 = vector.shape_cast %301 : vector<1x1x8x8x64xf32> to vector<8x8x64xf32>
    %303 = vector.shape_cast %302 : vector<8x8x64xf32> to vector<64x64xf32>
    %304 = arith.truncf %303 : vector<64x64xf32> to vector<64x64xbf16>
    %c128_414 = arith.constant 128 : index
    %c128_415 = arith.constant 128 : index
    %305 = vector.load %arg13[%c128_414, %c128_415] : memref<256x576xbf16, #tpu.memory_space<vmem>>, vector<64x64xbf16>
    tpu.vector_store %arg13[%c128_414, %c128_415], %304 {strides = array<i32>} : memref<256x576xbf16, #tpu.memory_space<vmem>>, vector<64x64xbf16>,
    %c1_416 = arith.constant 1 : index
    %c1_417 = arith.constant 1 : index
    %c1_418 = arith.constant 1 : index
    %c0_419 = arith.constant 0 : index
    %c0_420 = arith.constant 0 : index
    %306 = vector.load %arg12[%c1_416, %c1_417, %c1_418, %c0_419, %c0_420] : memref<2x2x10x10x64xf32, #tpu.memory_space<vmem>>, vector<1x1x8x8x64xf32>
    %307 = vector.shape_cast %306 : vector<1x1x8x8x64xf32> to vector<8x8x64xf32>
    %308 = vector.shape_cast %307 : vector<8x8x64xf32> to vector<64x64xf32>
    %309 = arith.truncf %308 : vector<64x64xf32> to vector<64x64xbf16>
    %c128_421 = arith.constant 128 : index
    %c192_422 = arith.constant 192 : index
    %310 = vector.load %arg13[%c128_421, %c192_422] : memref<256x576xbf16, #tpu.memory_space<vmem>>, vector<64x64xbf16>
    tpu.vector_store %arg13[%c128_421, %c192_422], %309 {strides = array<i32>} : memref<256x576xbf16, #tpu.memory_space<vmem>>, vector<64x64xbf16>,
    %c1_423 = arith.constant 1 : index
    %c0_424 = arith.constant 0 : index
    %c1_425 = arith.constant 1 : index
    %c1_426 = arith.constant 1 : index
    %c0_427 = arith.constant 0 : index
    %311 = vector.load %arg12[%c1_423, %c0_424, %c1_425, %c1_426, %c0_427] : memref<2x2x10x10x64xf32, #tpu.memory_space<vmem>>, vector<1x1x8x8x64xf32>
    %312 = vector.shape_cast %311 : vector<1x1x8x8x64xf32> to vector<8x8x64xf32>
    %313 = vector.shape_cast %312 : vector<8x8x64xf32> to vector<64x64xf32>
    %314 = arith.truncf %313 : vector<64x64xf32> to vector<64x64xbf16>
    %c128_428 = arith.constant 128 : index
    %c256_429 = arith.constant 256 : index
    %315 = vector.load %arg13[%c128_428, %c256_429] : memref<256x576xbf16, #tpu.memory_space<vmem>>, vector<64x64xbf16>
    tpu.vector_store %arg13[%c128_428, %c256_429], %314 {strides = array<i32>} : memref<256x576xbf16, #tpu.memory_space<vmem>>, vector<64x64xbf16>,
    %c1_430 = arith.constant 1 : index
    %c1_431 = arith.constant 1 : index
    %c1_432 = arith.constant 1 : index
    %c1_433 = arith.constant 1 : index
    %c0_434 = arith.constant 0 : index
    %316 = vector.load %arg12[%c1_430, %c1_431, %c1_432, %c1_433, %c0_434] : memref<2x2x10x10x64xf32, #tpu.memory_space<vmem>>, vector<1x1x8x8x64xf32>
    %317 = vector.shape_cast %316 : vector<1x1x8x8x64xf32> to vector<8x8x64xf32>
    %318 = vector.shape_cast %317 : vector<8x8x64xf32> to vector<64x64xf32>
    %319 = arith.truncf %318 : vector<64x64xf32> to vector<64x64xbf16>
    %c128_435 = arith.constant 128 : index
    %c320_436 = arith.constant 320 : index
    %320 = vector.load %arg13[%c128_435, %c320_436] : memref<256x576xbf16, #tpu.memory_space<vmem>>, vector<64x64xbf16>
    tpu.vector_store %arg13[%c128_435, %c320_436], %319 {strides = array<i32>} : memref<256x576xbf16, #tpu.memory_space<vmem>>, vector<64x64xbf16>,
    %c0_437 = arith.constant 0 : index
    %c1_438 = arith.constant 1 : index
    %c2_439 = arith.constant 2 : index
    %c0_440 = arith.constant 0 : index
    %c0_441 = arith.constant 0 : index
    %321 = vector.load %arg12[%c0_437, %c1_438, %c2_439, %c0_440, %c0_441] : memref<2x2x10x10x64xf32, #tpu.memory_space<vmem>>, vector<1x1x8x8x64xf32>
    %322 = vector.shape_cast %321 : vector<1x1x8x8x64xf32> to vector<8x8x64xf32>
    %323 = vector.shape_cast %322 : vector<8x8x64xf32> to vector<64x64xf32>
    %324 = arith.truncf %323 : vector<64x64xf32> to vector<64x64xbf16>
    %c128_442 = arith.constant 128 : index
    %c384_443 = arith.constant 384 : index
    %325 = vector.load %arg13[%c128_442, %c384_443] : memref<256x576xbf16, #tpu.memory_space<vmem>>, vector<64x64xbf16>
    tpu.vector_store %arg13[%c128_442, %c384_443], %324 {strides = array<i32>} : memref<256x576xbf16, #tpu.memory_space<vmem>>, vector<64x64xbf16>,
    %c0_444 = arith.constant 0 : index
    %c0_445 = arith.constant 0 : index
    %c2_446 = arith.constant 2 : index
    %c1_447 = arith.constant 1 : index
    %c0_448 = arith.constant 0 : index
    %326 = vector.load %arg12[%c0_444, %c0_445, %c2_446, %c1_447, %c0_448] : memref<2x2x10x10x64xf32, #tpu.memory_space<vmem>>, vector<1x1x8x8x64xf32>
    %327 = vector.shape_cast %326 : vector<1x1x8x8x64xf32> to vector<8x8x64xf32>
    %328 = vector.shape_cast %327 : vector<8x8x64xf32> to vector<64x64xf32>
    %329 = arith.truncf %328 : vector<64x64xf32> to vector<64x64xbf16>
    %c128_449 = arith.constant 128 : index
    %c448_450 = arith.constant 448 : index
    %330 = vector.load %arg13[%c128_449, %c448_450] : memref<256x576xbf16, #tpu.memory_space<vmem>>, vector<64x64xbf16>
    tpu.vector_store %arg13[%c128_449, %c448_450], %329 {strides = array<i32>} : memref<256x576xbf16, #tpu.memory_space<vmem>>, vector<64x64xbf16>,
    %c0_451 = arith.constant 0 : index
    %c1_452 = arith.constant 1 : index
    %c2_453 = arith.constant 2 : index
    %c1_454 = arith.constant 1 : index
    %c0_455 = arith.constant 0 : index
    %331 = vector.load %arg12[%c0_451, %c1_452, %c2_453, %c1_454, %c0_455] : memref<2x2x10x10x64xf32, #tpu.memory_space<vmem>>, vector<1x1x8x8x64xf32>
    %332 = vector.shape_cast %331 : vector<1x1x8x8x64xf32> to vector<8x8x64xf32>
    %333 = vector.shape_cast %332 : vector<8x8x64xf32> to vector<64x64xf32>
    %334 = arith.truncf %333 : vector<64x64xf32> to vector<64x64xbf16>
    %c128_456 = arith.constant 128 : index
    %c512_457 = arith.constant 512 : index
    %335 = vector.load %arg13[%c128_456, %c512_457] : memref<256x576xbf16, #tpu.memory_space<vmem>>, vector<64x64xbf16>
    tpu.vector_store %arg13[%c128_456, %c512_457], %334 {strides = array<i32>} : memref<256x576xbf16, #tpu.memory_space<vmem>>, vector<64x64xbf16>,
    %c0_458 = arith.constant 0 : index
    %c0_459 = arith.constant 0 : index
    %c1_460 = arith.constant 1 : index
    %c1_461 = arith.constant 1 : index
    %c0_462 = arith.constant 0 : index
    %336 = vector.load %arg12[%c0_458, %c0_459, %c1_460, %c1_461, %c0_462] : memref<2x2x10x10x64xf32, #tpu.memory_space<vmem>>, vector<1x1x8x8x64xf32>
    %337 = vector.shape_cast %336 : vector<1x1x8x8x64xf32> to vector<8x8x64xf32>
    %338 = vector.shape_cast %337 : vector<8x8x64xf32> to vector<64x64xf32>
    %339 = arith.truncf %338 : vector<64x64xf32> to vector<64x64xbf16>
    %c192_463 = arith.constant 192 : index
    %c0_464 = arith.constant 0 : index
    %340 = vector.load %arg13[%c192_463, %c0_464] : memref<256x576xbf16, #tpu.memory_space<vmem>>, vector<64x64xbf16>
    tpu.vector_store %arg13[%c192_463, %c0_464], %339 {strides = array<i32>} : memref<256x576xbf16, #tpu.memory_space<vmem>>, vector<64x64xbf16>,
    %c0_465 = arith.constant 0 : index
    %c1_466 = arith.constant 1 : index
    %c1_467 = arith.constant 1 : index
    %c1_468 = arith.constant 1 : index
    %c0_469 = arith.constant 0 : index
    %341 = vector.load %arg12[%c0_465, %c1_466, %c1_467, %c1_468, %c0_469] : memref<2x2x10x10x64xf32, #tpu.memory_space<vmem>>, vector<1x1x8x8x64xf32>
    %342 = vector.shape_cast %341 : vector<1x1x8x8x64xf32> to vector<8x8x64xf32>
    %343 = vector.shape_cast %342 : vector<8x8x64xf32> to vector<64x64xf32>
    %344 = arith.truncf %343 : vector<64x64xf32> to vector<64x64xbf16>
    %c192_470 = arith.constant 192 : index
    %c64_471 = arith.constant 64 : index
    %345 = vector.load %arg13[%c192_470, %c64_471] : memref<256x576xbf16, #tpu.memory_space<vmem>>, vector<64x64xbf16>
    tpu.vector_store %arg13[%c192_470, %c64_471], %344 {strides = array<i32>} : memref<256x576xbf16, #tpu.memory_space<vmem>>, vector<64x64xbf16>,
    %c0_472 = arith.constant 0 : index
    %c0_473 = arith.constant 0 : index
    %c1_474 = arith.constant 1 : index
    %c2_475 = arith.constant 2 : index
    %c0_476 = arith.constant 0 : index
    %346 = vector.load %arg12[%c0_472, %c0_473, %c1_474, %c2_475, %c0_476] : memref<2x2x10x10x64xf32, #tpu.memory_space<vmem>>, vector<1x1x8x8x64xf32>
    %347 = vector.shape_cast %346 : vector<1x1x8x8x64xf32> to vector<8x8x64xf32>
    %348 = vector.shape_cast %347 : vector<8x8x64xf32> to vector<64x64xf32>
    %349 = arith.truncf %348 : vector<64x64xf32> to vector<64x64xbf16>
    %c192_477 = arith.constant 192 : index
    %c128_478 = arith.constant 128 : index
    %350 = vector.load %arg13[%c192_477, %c128_478] : memref<256x576xbf16, #tpu.memory_space<vmem>>, vector<64x64xbf16>
    tpu.vector_store %arg13[%c192_477, %c128_478], %349 {strides = array<i32>} : memref<256x576xbf16, #tpu.memory_space<vmem>>, vector<64x64xbf16>,
    %c1_479 = arith.constant 1 : index
    %c0_480 = arith.constant 0 : index
    %c1_481 = arith.constant 1 : index
    %c1_482 = arith.constant 1 : index
    %c0_483 = arith.constant 0 : index
    %351 = vector.load %arg12[%c1_479, %c0_480, %c1_481, %c1_482, %c0_483] : memref<2x2x10x10x64xf32, #tpu.memory_space<vmem>>, vector<1x1x8x8x64xf32>
    %352 = vector.shape_cast %351 : vector<1x1x8x8x64xf32> to vector<8x8x64xf32>
    %353 = vector.shape_cast %352 : vector<8x8x64xf32> to vector<64x64xf32>
    %354 = arith.truncf %353 : vector<64x64xf32> to vector<64x64xbf16>
    %c192_484 = arith.constant 192 : index
    %c192_485 = arith.constant 192 : index
    %355 = vector.load %arg13[%c192_484, %c192_485] : memref<256x576xbf16, #tpu.memory_space<vmem>>, vector<64x64xbf16>
    tpu.vector_store %arg13[%c192_484, %c192_485], %354 {strides = array<i32>} : memref<256x576xbf16, #tpu.memory_space<vmem>>, vector<64x64xbf16>,
    %c1_486 = arith.constant 1 : index
    %c1_487 = arith.constant 1 : index
    %c1_488 = arith.constant 1 : index
    %c1_489 = arith.constant 1 : index
    %c0_490 = arith.constant 0 : index
    %356 = vector.load %arg12[%c1_486, %c1_487, %c1_488, %c1_489, %c0_490] : memref<2x2x10x10x64xf32, #tpu.memory_space<vmem>>, vector<1x1x8x8x64xf32>
    %357 = vector.shape_cast %356 : vector<1x1x8x8x64xf32> to vector<8x8x64xf32>
    %358 = vector.shape_cast %357 : vector<8x8x64xf32> to vector<64x64xf32>
    %359 = arith.truncf %358 : vector<64x64xf32> to vector<64x64xbf16>
    %c192_491 = arith.constant 192 : index
    %c256_492 = arith.constant 256 : index
    %360 = vector.load %arg13[%c192_491, %c256_492] : memref<256x576xbf16, #tpu.memory_space<vmem>>, vector<64x64xbf16>
    tpu.vector_store %arg13[%c192_491, %c256_492], %359 {strides = array<i32>} : memref<256x576xbf16, #tpu.memory_space<vmem>>, vector<64x64xbf16>,
    %c1_493 = arith.constant 1 : index
    %c0_494 = arith.constant 0 : index
    %c1_495 = arith.constant 1 : index
    %c2_496 = arith.constant 2 : index
    %c0_497 = arith.constant 0 : index
    %361 = vector.load %arg12[%c1_493, %c0_494, %c1_495, %c2_496, %c0_497] : memref<2x2x10x10x64xf32, #tpu.memory_space<vmem>>, vector<1x1x8x8x64xf32>
    %362 = vector.shape_cast %361 : vector<1x1x8x8x64xf32> to vector<8x8x64xf32>
    %363 = vector.shape_cast %362 : vector<8x8x64xf32> to vector<64x64xf32>
    %364 = arith.truncf %363 : vector<64x64xf32> to vector<64x64xbf16>
    %c192_498 = arith.constant 192 : index
    %c320_499 = arith.constant 320 : index
    %365 = vector.load %arg13[%c192_498, %c320_499] : memref<256x576xbf16, #tpu.memory_space<vmem>>, vector<64x64xbf16>
    tpu.vector_store %arg13[%c192_498, %c320_499], %364 {strides = array<i32>} : memref<256x576xbf16, #tpu.memory_space<vmem>>, vector<64x64xbf16>,
    %c0_500 = arith.constant 0 : index
    %c0_501 = arith.constant 0 : index
    %c2_502 = arith.constant 2 : index
    %c1_503 = arith.constant 1 : index
    %c0_504 = arith.constant 0 : index
    %366 = vector.load %arg12[%c0_500, %c0_501, %c2_502, %c1_503, %c0_504] : memref<2x2x10x10x64xf32, #tpu.memory_space<vmem>>, vector<1x1x8x8x64xf32>
    %367 = vector.shape_cast %366 : vector<1x1x8x8x64xf32> to vector<8x8x64xf32>
    %368 = vector.shape_cast %367 : vector<8x8x64xf32> to vector<64x64xf32>
    %369 = arith.truncf %368 : vector<64x64xf32> to vector<64x64xbf16>
    %c192_505 = arith.constant 192 : index
    %c384_506 = arith.constant 384 : index
    %370 = vector.load %arg13[%c192_505, %c384_506] : memref<256x576xbf16, #tpu.memory_space<vmem>>, vector<64x64xbf16>
    tpu.vector_store %arg13[%c192_505, %c384_506], %369 {strides = array<i32>} : memref<256x576xbf16, #tpu.memory_space<vmem>>, vector<64x64xbf16>,
    %c0_507 = arith.constant 0 : index
    %c1_508 = arith.constant 1 : index
    %c2_509 = arith.constant 2 : index
    %c1_510 = arith.constant 1 : index
    %c0_511 = arith.constant 0 : index
    %371 = vector.load %arg12[%c0_507, %c1_508, %c2_509, %c1_510, %c0_511] : memref<2x2x10x10x64xf32, #tpu.memory_space<vmem>>, vector<1x1x8x8x64xf32>
    %372 = vector.shape_cast %371 : vector<1x1x8x8x64xf32> to vector<8x8x64xf32>
    %373 = vector.shape_cast %372 : vector<8x8x64xf32> to vector<64x64xf32>
    %374 = arith.truncf %373 : vector<64x64xf32> to vector<64x64xbf16>
    %c192_512 = arith.constant 192 : index
    %c448_513 = arith.constant 448 : index
    %375 = vector.load %arg13[%c192_512, %c448_513] : memref<256x576xbf16, #tpu.memory_space<vmem>>, vector<64x64xbf16>
    tpu.vector_store %arg13[%c192_512, %c448_513], %374 {strides = array<i32>} : memref<256x576xbf16, #tpu.memory_space<vmem>>, vector<64x64xbf16>,
    %c0_514 = arith.constant 0 : index
    %c0_515 = arith.constant 0 : index
    %c2_516 = arith.constant 2 : index
    %c2_517 = arith.constant 2 : index
    %c0_518 = arith.constant 0 : index
    %376 = vector.load %arg12[%c0_514, %c0_515, %c2_516, %c2_517, %c0_518] : memref<2x2x10x10x64xf32, #tpu.memory_space<vmem>>, vector<1x1x8x8x64xf32>
    %377 = vector.shape_cast %376 : vector<1x1x8x8x64xf32> to vector<8x8x64xf32>
    %378 = vector.shape_cast %377 : vector<8x8x64xf32> to vector<64x64xf32>
    %379 = arith.truncf %378 : vector<64x64xf32> to vector<64x64xbf16>
    %c192_519 = arith.constant 192 : index
    %c512_520 = arith.constant 512 : index
    %380 = vector.load %arg13[%c192_519, %c512_520] : memref<256x576xbf16, #tpu.memory_space<vmem>>, vector<64x64xbf16>
    tpu.vector_store %arg13[%c192_519, %c512_520], %379 {strides = array<i32>} : memref<256x576xbf16, #tpu.memory_space<vmem>>, vector<64x64xbf16>,
    %c0_521 = arith.constant 0 : index
    %c0_522 = arith.constant 0 : index
    %381 = vector.load %arg13[%c0_521, %c0_522] : memref<256x576xbf16, #tpu.memory_space<vmem>>, vector<256x576xbf16>
    %c0_523 = arith.constant 0 : index
    %c0_524 = arith.constant 0 : index
    %382 = vector.load %arg8[%c0_523, %c0_524] : memref<576x8xbf16, #tpu.memory_space<vmem>>, vector<576x8xbf16>
    %cst_525 = arith.constant dense<0.000000e+00> : vector<256x8xf32>
    %383 = tpu.matmul %381, %382, %cst_525 {dimension_numbers = #tpu.dot_dimension_numbers<[1], [0], [0], [1], [0, 0, 1, 1], [], []>} : vector<256x576xbf16>, vector<576x8xbf16>, vector<256x8xf32> -> vector<256x8xf32>
    %c0_526 = arith.constant 0 : index
    %c0_527 = arith.constant 0 : index
    %384 = vector.load %arg9[%c0_526, %c0_527] : memref<1x8xf32, #tpu.memory_space<vmem>>, vector<1x8xf32>
    %385 = vector.broadcast %384 : vector<1x8xf32> to vector<256x8xf32>
    %386 = arith.addf %383, %385 : vector<256x8xf32>
    %c0_528 = arith.constant 0 : index
    %c0_529 = arith.constant 0 : index
    %c0_530 = arith.constant 0 : index
    %387 = vector.load %arg10[%c0_528, %c0_529, %c0_530] : memref<1x256x8xf32, #tpu.memory_space<vmem>>, vector<1x256x8xf32>
    %388 = vector.shape_cast %387 : vector<1x256x8xf32> to vector<256x8xf32>
    %389 = vector.shape_cast %386 : vector<256x8xf32> to vector<1x256x8xf32>
    tpu.vector_store %arg10[%c0_528, %c0_529, %c0_530], %389 {strides = array<i32>} : memref<1x256x8xf32, #tpu.memory_space<vmem>>, vector<1x256x8xf32>,
    return
  }
  func.func @transform_0(%arg0: i32) -> (i32, i32, i32) {
    %c0_i32 = arith.constant 0 : i32
    %c0_i32_0 = arith.constant 0 : i32
    %c0_i32_1 = arith.constant 0 : i32
    return %arg0, %c0_i32, %c0_i32_0 : i32, i32, i32
  }
  func.func @transform_1(%arg0: i32) -> (i32, i32) {
    %c0_i32 = arith.constant 0 : i32
    %c0_i32_0 = arith.constant 0 : i32
    %c0_i32_1 = arith.constant 0 : i32
    return %c0_i32, %c0_i32_0 : i32, i32
  }
  func.func @transform_2(%arg0: i32) -> (i32, i32) {
    %c0_i32 = arith.constant 0 : i32
    %c0_i32_0 = arith.constant 0 : i32
    %c0_i32_1 = arith.constant 0 : i32
    return %c0_i32, %c0_i32_0 : i32, i32
  }
  func.func @transform_3(%arg0: i32) -> (i32, i32) {
    %c0_i32 = arith.constant 0 : i32
    %c0_i32_0 = arith.constant 0 : i32
    %c0_i32_1 = arith.constant 0 : i32
    return %c0_i32, %c0_i32_0 : i32, i32
  }
  func.func @transform_4(%arg0: i32) -> (i32, i32) {
    %c0_i32 = arith.constant 0 : i32
    %c0_i32_0 = arith.constant 0 : i32
    %c0_i32_1 = arith.constant 0 : i32
    return %c0_i32, %c0_i32_0 : i32, i32
  }
  func.func @transform_5(%arg0: i32) -> (i32, i32) {
    %c0_i32 = arith.constant 0 : i32
    %c0_i32_0 = arith.constant 0 : i32
    %c0_i32_1 = arith.constant 0 : i32
    return %c0_i32, %c0_i32_0 : i32, i32
  }
  func.func @transform_6(%arg0: i32) -> (i32, i32) {
    %c0_i32 = arith.constant 0 : i32
    %c0_i32_0 = arith.constant 0 : i32
    %c0_i32_1 = arith.constant 0 : i32
    return %c0_i32, %c0_i32_0 : i32, i32
  }
  func.func @transform_7(%arg0: i32) -> (i32, i32) {
    %c0_i32 = arith.constant 0 : i32
    %c0_i32_0 = arith.constant 0 : i32
    %c0_i32_1 = arith.constant 0 : i32
    return %c0_i32, %c0_i32_0 : i32, i32
  }
  func.func @transform_8(%arg0: i32) -> (i32, i32) {
    %c0_i32 = arith.constant 0 : i32
    %c0_i32_0 = arith.constant 0 : i32
    %c0_i32_1 = arith.constant 0 : i32
    return %c0_i32, %c0_i32_0 : i32, i32
  }
  func.func @transform_9(%arg0: i32) -> (i32, i32, i32) {
    %c0_i32 = arith.constant 0 : i32
    %c0_i32_0 = arith.constant 0 : i32
    %c0_i32_1 = arith.constant 0 : i32
    return %arg0, %c0_i32, %c0_i32_0 : i32, i32, i32
  }
}

</mosaic_0001>

<llo_original>
// kernel: upscale_net_forward.1
$region0: #{upscale_net_forward.1}
  #allocation0 [shape = 'u32[]', space=smem, size = 0x4, offset = 0x4, fixed_abs, tag = 'smem constant byte address 0x4 - core index']
  #allocation1 [shape = 'u32[72,128]{1,0:T(1,128)}', space=vmem, size = 0x9000, scoped, tag = 'internal scratch']
  #allocation2 [shape = 'f32[1,1,10,10,64]{4,3,2,1,0:T(8,128)}', space=vmem, size = 0x14000, scoped, tag = 'scratch operand']
  #allocation3 [shape = 'f32[2,2,10,10,64]{4,3,2,1,0:T(8,128)}', space=vmem, size = 0x50000, scoped, tag = 'scratch operand']
  #allocation4 [shape = 'bf16[256,576]{1,0:T(8,128)(2,1)}', space=vmem, size = 0x50000, scoped, tag = 'scratch operand']
  %s0 = inlined_call_operand.vmem [shape: bf16[2,64,320], index: 0, kind: input, shape index: {}]
  %s1 = inlined_call_operand.vmem [shape: bf16[320,64], index: 1, kind: input, shape index: {}]
  %s2 = inlined_call_operand.vmem [shape: f32[1,64], index: 2, kind: input, shape index: {}]
  %s3 = inlined_call_operand.vmem [shape: bf16[576,64], index: 3, kind: input, shape index: {}]
  %s4 = inlined_call_operand.vmem [shape: f32[1,64], index: 4, kind: input, shape index: {}]
  %s5 = inlined_call_operand.vmem [shape: bf16[576,256], index: 5, kind: input, shape index: {}]
  %s6 = inlined_call_operand.vmem [shape: f32[1,256], index: 6, kind: input, shape index: {}]
  %s7 = inlined_call_operand.vmem [shape: bf16[576,8], index: 7, kind: input, shape index: {}]
  %s8 = inlined_call_operand.vmem [shape: f32[1,8], index: 8, kind: input, shape index: {}]
  %s9 = inlined_call_operand.vmem [shape: f32[2,256,8], index: 9, kind: output, shape index: {}]
  %s10 = sld [smem:[#allocation0]]
  $region69: #{upscale_net_forward.1} parent=0
    _
  %s12 = ssub.s32 1, %s10
  %s13 = scalar_select 0, %s12, %s10
  loop: start=0, step=1, limit=4
  $region2: #{upscale_net_forward.1} parent=0 // loop_pre_header
    _
  $region3: #{upscale_net_forward.1} parent=0 // loop_header
    %s15 = sphi 0, %s19
    %p16 = scmp.ge.s32.totalorder %s15, 4
    %s25 = sphi 0, %s27
    %s28 = sphi 0, %s25
    %s29 = sphi 0, %s28
    %s45 = sphi 0, %s29
    %s49 = sphi 0, %s49
    %s51 = sphi 0, %s49
    %s52 = sphi 0, %s51
    %s66 = sphi 0, %s52
    %s70 = sphi 0, %s70
    %s72 = sphi 0, %s70
    %s73 = sphi 0, %s72
    %s87 = sphi 0, %s73
    %s91 = sphi 0, %s91
    %s93 = sphi 0, %s91
    %s94 = sphi 0, %s93
    %s108 = sphi 0, %s94
    %s112 = sphi 0, %s112
    %s114 = sphi 0, %s112
    %s115 = sphi 0, %s114
    %s129 = sphi 0, %s115
    %s133 = sphi 0, %s133
    %s135 = sphi 0, %s133
    %s136 = sphi 0, %s135
    %s150 = sphi 0, %s136
    %s154 = sphi 0, %s154
    %s156 = sphi 0, %s154
    %s157 = sphi 0, %s156
    %s171 = sphi 0, %s157
    %s175 = sphi 0, %s175
    %s177 = sphi 0, %s175
    %s178 = sphi 0, %s177
    %s192 = sphi 0, %s178
    %s196 = sphi 0, %s196
    %s198 = sphi 0, %s196
    %s199 = sphi 0, %s198
    %s213 = sphi 0, %s199
    %s219 = sphi 0, %s221
    %s222 = sphi 0, %s219
    %s223 = sphi 0, %s222
    %s239 = sphi 0, %s223
  $region4: #{upscale_net_forward.1} parent=0 // loop_header_branch
    %18 = sbr.rel (%p16) target = $region8
  $region5: #{upscale_net_forward.1} parent=0 // loop_body
    %s20 = ssub.s32 %s15, 1
    %s21 = ssub.s32 %s15, 2
    %s22 = sadd.s32 %s15, 1
    %s23 = ssub.s32 %s15, %s22
    %p24 = scmp.eq.s32.totalorder %s23, 0
    %s26 = sadd.s32 %s25, 1
    %s27 = scalar_select %p24, %s25, %s26
    %p30 = pneg %p24
    %p31 = scmp.eq.s32.totalorder %s15, 1
    %p32 = por %p30, %p31
    %p33 = scmp.ne.s32.totalorder %s25, %s28
    %p34 = scmp.eq.s32.totalorder %s15, 0
    %p35 = por %p33, %p34
    %p36 = scmp.ne.s32.totalorder %s25, %s28
    %p37 = scmp.eq.s32.totalorder %s20, 1
    %p38 = por %p36, %p37
    %p39 = scmp.ne.s32.totalorder %s28, %s29
    %p40 = scmp.eq.s32.totalorder %s20, 0
    %p41 = por %p39, %p40
    %p42 = scmp.ne.s32.totalorder %s28, %s29
    %p43 = scmp.eq.s32.totalorder %s21, 1
    %p44 = por %p42, %p43
    %p46 = scmp.ne.s32.totalorder %s29, %s45
    %p47 = scmp.eq.s32.totalorder %s21, 0
    %p48 = por %p46, %p47
    %s50 = sadd.s32 %s49, 1
    %p53 = scmp.eq.s32.totalorder %s15, 1
    %p54 = scmp.ne.s32.totalorder %s49, %s51
    %p55 = scmp.eq.s32.totalorder %s15, 0
    %p56 = por %p54, %p55
    %p57 = scmp.ne.s32.totalorder %s49, %s51
    %p58 = scmp.eq.s32.totalorder %s20, 1
    %p59 = por %p57, %p58
    %p60 = scmp.ne.s32.totalorder %s51, %s52
    %p61 = scmp.eq.s32.totalorder %s20, 0
    %p62 = por %p60, %p61
    %p63 = scmp.ne.s32.totalorder %s51, %s52
    %p64 = scmp.eq.s32.totalorder %s21, 1
    %p65 = por %p63, %p64
    %p67 = scmp.ne.s32.totalorder %s52, %s66
    %p68 = scmp.eq.s32.totalorder %s21, 0
    %p69 = por %p67, %p68
    %s71 = sadd.s32 %s70, 1
    %p74 = scmp.eq.s32.totalorder %s15, 1
    %p75 = scmp.ne.s32.totalorder %s70, %s72
    %p76 = scmp.eq.s32.totalorder %s15, 0
    %p77 = por %p75, %p76
    %p78 = scmp.ne.s32.totalorder %s70, %s72
    %p79 = scmp.eq.s32.totalorder %s20, 1
    %p80 = por %p78, %p79
    %p81 = scmp.ne.s32.totalorder %s72, %s73
    %p82 = scmp.eq.s32.totalorder %s20, 0
    %p83 = por %p81, %p82
    %p84 = scmp.ne.s32.totalorder %s72, %s73
    %p85 = scmp.eq.s32.totalorder %s21, 1
    %p86 = por %p84, %p85
    %p88 = scmp.ne.s32.totalorder %s73, %s87
    %p89 = scmp.eq.s32.totalorder %s21, 0
    %p90 = por %p88, %p89
    %s92 = sadd.s32 %s91, 1
    %p95 = scmp.eq.s32.totalorder %s15, 1
    %p96 = scmp.ne.s32.totalorder %s91, %s93
    %p97 = scmp.eq.s32.totalorder %s15, 0
    %p98 = por %p96, %p97
    %p99 = scmp.ne.s32.totalorder %s91, %s93
    %p100 = scmp.eq.s32.totalorder %s20, 1
    %p101 = por %p99, %p100
    %p102 = scmp.ne.s32.totalorder %s93, %s94
    %p103 = scmp.eq.s32.totalorder %s20, 0
    %p104 = por %p102, %p103
    %p105 = scmp.ne.s32.totalorder %s93, %s94
    %p106 = scmp.eq.s32.totalorder %s21, 1
    %p107 = por %p105, %p106
    %p109 = scmp.ne.s32.totalorder %s94, %s108
    %p110 = scmp.eq.s32.totalorder %s21, 0
    %p111 = por %p109, %p110
    %s113 = sadd.s32 %s112, 1
    %p116 = scmp.eq.s32.totalorder %s15, 1
    %p117 = scmp.ne.s32.totalorder %s112, %s114
    %p118 = scmp.eq.s32.totalorder %s15, 0
    %p119 = por %p117, %p118
    %p120 = scmp.ne.s32.totalorder %s112, %s114
    %p121 = scmp.eq.s32.totalorder %s20, 1
    %p122 = por %p120, %p121
    %p123 = scmp.ne.s32.totalorder %s114, %s115
    %p124 = scmp.eq.s32.totalorder %s20, 0
    %p125 = por %p123, %p124
    %p126 = scmp.ne.s32.totalorder %s114, %s115
    %p127 = scmp.eq.s32.totalorder %s21, 1
    %p128 = por %p126, %p127
    %p130 = scmp.ne.s32.totalorder %s115, %s129
    %p131 = scmp.eq.s32.totalorder %s21, 0
    %p132 = por %p130, %p131
    %s134 = sadd.s32 %s133, 1
    %p137 = scmp.eq.s32.totalorder %s15, 1
    %p138 = scmp.ne.s32.totalorder %s133, %s135
    %p139 = scmp.eq.s32.totalorder %s15, 0
    %p140 = por %p138, %p139
    %p141 = scmp.ne.s32.totalorder %s133, %s135
    %p142 = scmp.eq.s32.totalorder %s20, 1
    %p143 = por %p141, %p142
    %p144 = scmp.ne.s32.totalorder %s135, %s136
    %p145 = scmp.eq.s32.totalorder %s20, 0
    %p146 = por %p144, %p145
    %p147 = scmp.ne.s32.totalorder %s135, %s136
    %p148 = scmp.eq.s32.totalorder %s21, 1
    %p149 = por %p147, %p148
    %p151 = scmp.ne.s32.totalorder %s136, %s150
    %p152 = scmp.eq.s32.totalorder %s21, 0
    %p153 = por %p151, %p152
    %s155 = sadd.s32 %s154, 1
    %p158 = scmp.eq.s32.totalorder %s15, 1
    %p159 = scmp.ne.s32.totalorder %s154, %s156
    %p160 = scmp.eq.s32.totalorder %s15, 0
    %p161 = por %p159, %p160
    %p162 = scmp.ne.s32.totalorder %s154, %s156
    %p163 = scmp.eq.s32.totalorder %s20, 1
    %p164 = por %p162, %p163
    %p165 = scmp.ne.s32.totalorder %s156, %s157
    %p166 = scmp.eq.s32.totalorder %s20, 0
    %p167 = por %p165, %p166
    %p168 = scmp.ne.s32.totalorder %s156, %s157
    %p169 = scmp.eq.s32.totalorder %s21, 1
    %p170 = por %p168, %p169
    %p172 = scmp.ne.s32.totalorder %s157, %s171
    %p173 = scmp.eq.s32.totalorder %s21, 0
    %p174 = por %p172, %p173
    %s176 = sadd.s32 %s175, 1
    %p179 = scmp.eq.s32.totalorder %s15, 1
    %p180 = scmp.ne.s32.totalorder %s175, %s177
    %p181 = scmp.eq.s32.totalorder %s15, 0
    %p182 = por %p180, %p181
    %p183 = scmp.ne.s32.totalorder %s175, %s177
    %p184 = scmp.eq.s32.totalorder %s20, 1
    %p185 = por %p183, %p184
    %p186 = scmp.ne.s32.totalorder %s177, %s178
    %p187 = scmp.eq.s32.totalorder %s20, 0
    %p188 = por %p186, %p187
    %p189 = scmp.ne.s32.totalorder %s177, %s178
    %p190 = scmp.eq.s32.totalorder %s21, 1
    %p191 = por %p189, %p190
    %p193 = scmp.ne.s32.totalorder %s178, %s192
    %p194 = scmp.eq.s32.totalorder %s21, 0
    %p195 = por %p193, %p194
    %s197 = sadd.s32 %s196, 1
    %p200 = scmp.eq.s32.totalorder %s15, 1
    %p201 = scmp.ne.s32.totalorder %s196, %s198
    %p202 = scmp.eq.s32.totalorder %s15, 0
    %p203 = por %p201, %p202
    %p204 = scmp.ne.s32.totalorder %s196, %s198
    %p205 = scmp.eq.s32.totalorder %s20, 1
    %p206 = por %p204, %p205
    %p207 = scmp.ne.s32.totalorder %s198, %s199
    %p208 = scmp.eq.s32.totalorder %s20, 0
    %p209 = por %p207, %p208
    %p210 = scmp.ne.s32.totalorder %s198, %s199
    %p211 = scmp.eq.s32.totalorder %s21, 1
    %p212 = por %p210, %p211
    %p214 = scmp.ne.s32.totalorder %s199, %s213
    %p215 = scmp.eq.s32.totalorder %s21, 0
    %p216 = por %p214, %p215
    %s217 = ssub.s32 %s15, %s22
    %p218 = scmp.eq.s32.totalorder %s217, 0
    %s220 = sadd.s32 %s219, 1
    %s221 = scalar_select %p218, %s219, %s220
    %p224 = pneg %p218
    %p225 = scmp.eq.s32.totalorder %s15, 1
    %p226 = por %p224, %p225
    %p227 = scmp.ne.s32.totalorder %s219, %s222
    %p228 = scmp.eq.s32.totalorder %s15, 0
    %p229 = por %p227, %p228
    %p230 = scmp.ne.s32.totalorder %s219, %s222
    %p231 = scmp.eq.s32.totalorder %s20, 1
    %p232 = por %p230, %p231
    %p233 = scmp.ne.s32.totalorder %s222, %s223
    %p234 = scmp.eq.s32.totalorder %s20, 0
    %p235 = por %p233, %p234
    %p236 = scmp.ne.s32.totalorder %s222, %s223
    %p237 = scmp.eq.s32.totalorder %s21, 1
    %p238 = por %p236, %p237
    %p240 = scmp.ne.s32.totalorder %s223, %s239
    %p241 = scmp.eq.s32.totalorder %s21, 0
    %p242 = por %p240, %p241
    %p243 = scmp.le.s32.totalorder 1, %s15
    %p244 = scmp.lt.s32.totalorder %s15, 3
    %p245 = pnand %p243, %p244
    %p246 = pneg %p245
    // Predicated region
    $region9: #{upscale_net_forward.1} parent=5 // pred_check
      _
    $region10: #{upscale_net_forward.1} parent=5 // pred_check_branch
      %248 = sbr.rel (%p245) target = $region12
    $region11: #{upscale_net_forward.1} parent=5 // pred_region
      %s249 = ssub.s32 %s15, 1
      // Predicated region
      $region13: #{upscale_net_forward.1} parent=11 // pred_check
        %p250 = pneg %p62
      $region14: #{upscale_net_forward.1} parent=11 // pred_check_branch
        %252 = sbr.rel (%p250) target = $region16
      $region15: #{upscale_net_forward.1} parent=11 // pred_region
        _
      $region16: #{upscale_net_forward.1} parent=11 // pred_fallthru
        _
      // Predicated region
      $region17: #{upscale_net_forward.1} parent=11 // pred_check
        %p253 = pneg %p83
      $region18: #{upscale_net_forward.1} parent=11 // pred_check_branch
        %255 = sbr.rel (%p253) target = $region20
      $region19: #{upscale_net_forward.1} parent=11 // pred_region
        _
      $region20: #{upscale_net_forward.1} parent=11 // pred_fallthru
        _
      // Predicated region
      $region21: #{upscale_net_forward.1} parent=11 // pred_check
        %p256 = pneg %p104
      $region22: #{upscale_net_forward.1} parent=11 // pred_check_branch
        %258 = sbr.rel (%p256) target = $region24
      $region23: #{upscale_net_forward.1} parent=11 // pred_region
        _
      $region24: #{upscale_net_forward.1} parent=11 // pred_fallthru
        _
      // Predicated region
      $region25: #{upscale_net_forward.1} parent=11 // pred_check
        %p259 = pneg %p125
      $region26: #{upscale_net_forward.1} parent=11 // pred_check_branch
        %261 = sbr.rel (%p259) target = $region28
      $region27: #{upscale_net_forward.1} parent=11 // pred_region
        _
      $region28: #{upscale_net_forward.1} parent=11 // pred_fallthru
        _
      // Predicated region
      $region29: #{upscale_net_forward.1} parent=11 // pred_check
        %p262 = pneg %p146
      $region30: #{upscale_net_forward.1} parent=11 // pred_check_branch
        %264 = sbr.rel (%p262) target = $region32
      $region31: #{upscale_net_forward.1} parent=11 // pred_region
        _
      $region32: #{upscale_net_forward.1} parent=11 // pred_fallthru
        _
      // Predicated region
      $region33: #{upscale_net_forward.1} parent=11 // pred_check
        %p265 = pneg %p167
      $region34: #{upscale_net_forward.1} parent=11 // pred_check_branch
        %267 = sbr.rel (%p265) target = $region36
      $region35: #{upscale_net_forward.1} parent=11 // pred_region
        _
      $region36: #{upscale_net_forward.1} parent=11 // pred_fallthru
        _
      // Predicated region
      $region37: #{upscale_net_forward.1} parent=11 // pred_check
        %p268 = pneg %p188
      $region38: #{upscale_net_forward.1} parent=11 // pred_check_branch
        %270 = sbr.rel (%p268) target = $region40
      $region39: #{upscale_net_forward.1} parent=11 // pred_region
        _
      $region40: #{upscale_net_forward.1} parent=11 // pred_fallthru
        _
      // Predicated region
      $region41: #{upscale_net_forward.1} parent=11 // pred_check
        %p271 = pneg %p209
      $region42: #{upscale_net_forward.1} parent=11 // pred_check_branch
        %273 = sbr.rel (%p271) target = $region44
      $region43: #{upscale_net_forward.1} parent=11 // pred_region
        _
      $region44: #{upscale_net_forward.1} parent=11 // pred_fallthru
        _
    $region12: #{upscale_net_forward.1} parent=5 // pred_fallthru
      _
    %p274 = scmp.lt.s32.totalorder %s15, 2
    // Predicated region
    $region45: #{upscale_net_forward.1} parent=5 // pred_check
      %p275 = pneg %p274
    $region46: #{upscale_net_forward.1} parent=5 // pred_check_branch
      %277 = sbr.rel (%p275) target = $region48
    $region47: #{upscale_net_forward.1} parent=5 // pred_region
      // Predicated region
      $region49: #{upscale_net_forward.1} parent=47 // pred_check
        %p278 = pneg %p35
      $region50: #{upscale_net_forward.1} parent=47 // pred_check_branch
        %280 = sbr.rel (%p278) target = $region52
      $region51: #{upscale_net_forward.1} parent=47 // pred_region
        %p281 = scmp.lt.s32.totalorder %s15, 1
        %s282 = scalar_select %p281, %s15, 1
        %s283 = smul.addr %s282, 24
        %s284 = smul.addr %s283, 4
        %s285 = scalar_lea.vmem %s0, %s284
      $region52: #{upscale_net_forward.1} parent=47 // pred_fallthru
        _
    $region48: #{upscale_net_forward.1} parent=5 // pred_fallthru
      _
    %p286 = scmp.le.s32.totalorder 1, %s15
    %p287 = scmp.lt.s32.totalorder %s15, 3
    %p288 = pnand %p286, %p287
    %p289 = pneg %p288
    // Predicated region
    $region53: #{upscale_net_forward.1} parent=5 // pred_check
      _
    $region54: #{upscale_net_forward.1} parent=5 // pred_check_branch
      %291 = sbr.rel (%p288) target = $region56
    $region55: #{upscale_net_forward.1} parent=5 // pred_region
      %s292 = ssub.s32 %s15, 1
      %p293 = scmp.lt.s32.totalorder %s20, 1
      %s294 = scalar_select %p293, %s20, 1
      %s295 = smul.addr %s294, 24
      %s296 = smul.addr %s295, 4
      %s297 = scalar_lea.vmem %s0, %s296
      %p298 = pneg %p41
      %p299 = pneg %p38
      %p300 = pneg %p62
      %p301 = pneg %p59
      %p302 = pneg %p83
      %p303 = pneg %p80
      %p304 = pneg %p104
      %p305 = pneg %p101
      %p306 = pneg %p125
      %p307 = pneg %p122
      %p308 = pneg %p146
      %p309 = pneg %p143
      %p310 = pneg %p167
      %p311 = pneg %p164
      %p312 = pneg %p188
      %p313 = pneg %p185
      %p314 = pneg %p209
      %p315 = pneg %p206
      %p316 = pneg %p235
      %p317 = pneg %p232
      %p318 = scmp.lt.s32.totalorder %s20, 1
      %s319 = scalar_select %p318, %s20, 1
      %s320 = smul.addr %s319, 32
      %s321 = smul.addr %s320, 8
      %s322 = scalar_lea.vmem %s9, %s321
      %p323 = scmp.lt.s32.totalorder %s20, 1
      %s324 = scalar_select %p323, %s20, 1
      %s325 = smul.addr %s324, 24
      %s326 = smul.addr %s325, 4
      %s327 = scalar_lea.vmem %s0, %s326
      %p328 = scmp.lt.s32.totalorder %s20, 1
      %s329 = scalar_select %p328, %s20, 1
      %s330 = smul.addr %s329, 32
      %s331 = smul.addr %s330, 8
      %s332 = scalar_lea.vmem %s9, %s331
      %vm334 = vcmask 523264
      %335 = vst.msk [vmem:[#allocation2] sm:$0xff] %vm334, 0.0
      %vm336 = vcmask 517120
      %337 = vst.msk [vmem:[#allocation2 + $0x8] sm:$0x3] %vm336, 0.0
      %s338 = scalar_lea.vmem [#allocation2], 144
      %339 = vst.msk [vmem:[%s338] sm:$0xff] %vm334, 0.0
      %340 = vst.msk [vmem:[%s338 + $0x8] sm:$0x3] %vm336, 0.0
      %vm341 = vcmask 516096
      %342 = vst.msk [vmem:[#allocation2] sm:$0x1] %vm341, 0.0
      %343 = vst.msk [vmem:[#allocation2 + $0x10] sm:$0x1] %vm341, 0.0
      %344 = vst.msk [vmem:[#allocation2 + $0x20] sm:$0x1] %vm341, 0.0
      %345 = vst.msk [vmem:[#allocation2 + $0x30] sm:$0x1] %vm341, 0.0
      %346 = vst.msk [vmem:[#allocation2 + $0x40] sm:$0x1] %vm341, 0.0
      %347 = vst.msk [vmem:[#allocation2 + $0x50] sm:$0x1] %vm341, 0.0
      %348 = vst.msk [vmem:[#allocation2 + $0x60] sm:$0x1] %vm341, 0.0
      %349 = vst.msk [vmem:[#allocation2 + $0x70] sm:$0x1] %vm341, 0.0
      %350 = vst.msk [vmem:[#allocation2 + $0x80] sm:$0x1] %vm341, 0.0
      %351 = vst.msk [vmem:[#allocation2 + $0x90] sm:$0x1] %vm341, 0.0
      %352 = vst.msk [vmem:[#allocation2 + $0x9] sm:$0x1] %vm341, 0.0
      %353 = vst.msk [vmem:[#allocation2 + $0x19] sm:$0x1] %vm341, 0.0
      %354 = vst.msk [vmem:[#allocation2 + $0x29] sm:$0x1] %vm341, 0.0
      %355 = vst.msk [vmem:[#allocation2 + $0x39] sm:$0x1] %vm341, 0.0
      %356 = vst.msk [vmem:[#allocation2 + $0x49] sm:$0x1] %vm341, 0.0
      %357 = vst.msk [vmem:[#allocation2 + $0x59] sm:$0x1] %vm341, 0.0
      %358 = vst.msk [vmem:[#allocation2 + $0x69] sm:$0x1] %vm341, 0.0
      %359 = vst.msk [vmem:[#allocation2 + $0x79] sm:$0x1] %vm341, 0.0
      %360 = vst.msk [vmem:[#allocation2 + $0x89] sm:$0x1] %vm341, 0.0
      %361 = vst.msk [vmem:[#allocation2 + $0x99] sm:$0x1] %vm341, 0.0
      %362 = vst.msk [vmem:[#allocation3] sm:$0xff] %vm334, 0.0
      %363 = vst.msk [vmem:[#allocation3 + $0x8] sm:$0x3] %vm336, 0.0
      %s364 = scalar_lea.vmem [#allocation3], 144
      %365 = vst.msk [vmem:[%s364] sm:$0xff] %vm334, 0.0
      %366 = vst.msk [vmem:[%s364 + $0x8] sm:$0x3] %vm336, 0.0
      %367 = vst.msk [vmem:[#allocation3] sm:$0x1] %vm341, 0.0
      %368 = vst.msk [vmem:[#allocation3 + $0x10] sm:$0x1] %vm341, 0.0
      %369 = vst.msk [vmem:[#allocation3 + $0x20] sm:$0x1] %vm341, 0.0
      %370 = vst.msk [vmem:[#allocation3 + $0x30] sm:$0x1] %vm341, 0.0
      %371 = vst.msk [vmem:[#allocation3 + $0x40] sm:$0x1] %vm341, 0.0
      %372 = vst.msk [vmem:[#allocation3 + $0x50] sm:$0x1] %vm341, 0.0
      %373 = vst.msk [vmem:[#allocation3 + $0x60] sm:$0x1] %vm341, 0.0
      %374 = vst.msk [vmem:[#allocation3 + $0x70] sm:$0x1] %vm341, 0.0
      %375 = vst.msk [vmem:[#allocation3 + $0x80] sm:$0x1] %vm341, 0.0
      %376 = vst.msk [vmem:[#allocation3 + $0x90] sm:$0x1] %vm341, 0.0
      %377 = vst.msk [vmem:[#allocation3 + $0x9] sm:$0x1] %vm341, 0.0
      %378 = vst.msk [vmem:[#allocation3 + $0x19] sm:$0x1] %vm341, 0.0
      %379 = vst.msk [vmem:[#allocation3 + $0x29] sm:$0x1] %vm341, 0.0
      %380 = vst.msk [vmem:[#allocation3 + $0x39] sm:$0x1] %vm341, 0.0
      %381 = vst.msk [vmem:[#allocation3 + $0x49] sm:$0x1] %vm341, 0.0
      %382 = vst.msk [vmem:[#allocation3 + $0x59] sm:$0x1] %vm341, 0.0
      %383 = vst.msk [vmem:[#allocation3 + $0x69] sm:$0x1] %vm341, 0.0
      %384 = vst.msk [vmem:[#allocation3 + $0x79] sm:$0x1] %vm341, 0.0
      %385 = vst.msk [vmem:[#allocation3 + $0x89] sm:$0x1] %vm341, 0.0
      %386 = vst.msk [vmem:[#allocation3 + $0x99] sm:$0x1] %vm341, 0.0
      %s387 = scalar_lea.vmem [#allocation3], 160
      %388 = vst.msk [vmem:[%s387] sm:$0xff] %vm334, 0.0
      %389 = vst.msk [vmem:[%s387 + $0x8] sm:$0x3] %vm336, 0.0
      %s390 = scalar_lea.vmem [#allocation3], 304
      %391 = vst.msk [vmem:[%s390] sm:$0xff] %vm334, 0.0
      %392 = vst.msk [vmem:[%s390 + $0x8] sm:$0x3] %vm336, 0.0
      %393 = vst.msk [vmem:[%s387] sm:$0x1] %vm341, 0.0
      %394 = vst.msk [vmem:[%s387 + $0x10] sm:$0x1] %vm341, 0.0
      %395 = vst.msk [vmem:[%s387 + $0x20] sm:$0x1] %vm341, 0.0
      %396 = vst.msk [vmem:[%s387 + $0x30] sm:$0x1] %vm341, 0.0
      %397 = vst.msk [vmem:[%s387 + $0x40] sm:$0x1] %vm341, 0.0
      %398 = vst.msk [vmem:[%s387 + $0x50] sm:$0x1] %vm341, 0.0
      %399 = vst.msk [vmem:[%s387 + $0x60] sm:$0x1] %vm341, 0.0
      %400 = vst.msk [vmem:[%s387 + $0x70] sm:$0x1] %vm341, 0.0
      %401 = vst.msk [vmem:[%s387 + $0x80] sm:$0x1] %vm341, 0.0
      %402 = vst.msk [vmem:[%s387 + $0x90] sm:$0x1] %vm341, 0.0
      %403 = vst.msk [vmem:[%s387 + $0x9] sm:$0x1] %vm341, 0.0
      %404 = vst.msk [vmem:[%s387 + $0x19] sm:$0x1] %vm341, 0.0
      %405 = vst.msk [vmem:[%s387 + $0x29] sm:$0x1] %vm341, 0.0
      %406 = vst.msk [vmem:[%s387 + $0x39] sm:$0x1] %vm341, 0.0
      %407 = vst.msk [vmem:[%s387 + $0x49] sm:$0x1] %vm341, 0.0
      %408 = vst.msk [vmem:[%s387 + $0x59] sm:$0x1] %vm341, 0.0
      %409 = vst.msk [vmem:[%s387 + $0x69] sm:$0x1] %vm341, 0.0
      %410 = vst.msk [vmem:[%s387 + $0x79] sm:$0x1] %vm341, 0.0
      %411 = vst.msk [vmem:[%s387 + $0x89] sm:$0x1] %vm341, 0.0
      %412 = vst.msk [vmem:[%s387 + $0x99] sm:$0x1] %vm341, 0.0
      %s413 = scalar_lea.vmem [#allocation3], 320
      %414 = vst.msk [vmem:[%s413] sm:$0xff] %vm334, 0.0
      %415 = vst.msk [vmem:[%s413 + $0x8] sm:$0x3] %vm336, 0.0
      %s416 = scalar_lea.vmem [#allocation3], 464
      %417 = vst.msk [vmem:[%s416] sm:$0xff] %vm334, 0.0
      %418 = vst.msk [vmem:[%s416 + $0x8] sm:$0x3] %vm336, 0.0
      %419 = vst.msk [vmem:[%s413] sm:$0x1] %vm341, 0.0
      %420 = vst.msk [vmem:[%s413 + $0x10] sm:$0x1] %vm341, 0.0
      %421 = vst.msk [vmem:[%s413 + $0x20] sm:$0x1] %vm341, 0.0
      %422 = vst.msk [vmem:[%s413 + $0x30] sm:$0x1] %vm341, 0.0
      %423 = vst.msk [vmem:[%s413 + $0x40] sm:$0x1] %vm341, 0.0
      %424 = vst.msk [vmem:[%s413 + $0x50] sm:$0x1] %vm341, 0.0
      %425 = vst.msk [vmem:[%s413 + $0x60] sm:$0x1] %vm341, 0.0
      %426 = vst.msk [vmem:[%s413 + $0x70] sm:$0x1] %vm341, 0.0
      %427 = vst.msk [vmem:[%s413 + $0x80] sm:$0x1] %vm341, 0.0
      %428 = vst.msk [vmem:[%s413 + $0x90] sm:$0x1] %vm341, 0.0
      %429 = vst.msk [vmem:[%s413 + $0x9] sm:$0x1] %vm341, 0.0
      %430 = vst.msk [vmem:[%s413 + $0x19] sm:$0x1] %vm341, 0.0
      %431 = vst.msk [vmem:[%s413 + $0x29] sm:$0x1] %vm341, 0.0
      %432 = vst.msk [vmem:[%s413 + $0x39] sm:$0x1] %vm341, 0.0
      %433 = vst.msk [vmem:[%s413 + $0x49] sm:$0x1] %vm341, 0.0
      %434 = vst.msk [vmem:[%s413 + $0x59] sm:$0x1] %vm341, 0.0
      %435 = vst.msk [vmem:[%s413 + $0x69] sm:$0x1] %vm341, 0.0
      %436 = vst.msk [vmem:[%s413 + $0x79] sm:$0x1] %vm341, 0.0
      %437 = vst.msk [vmem:[%s413 + $0x89] sm:$0x1] %vm341, 0.0
      %438 = vst.msk [vmem:[%s413 + $0x99] sm:$0x1] %vm341, 0.0
      %s439 = scalar_lea.vmem [#allocation3], 480
      %440 = vst.msk [vmem:[%s439] sm:$0xff] %vm334, 0.0
      %441 = vst.msk [vmem:[%s439 + $0x8] sm:$0x3] %vm336, 0.0
      %s442 = scalar_lea.vmem [#allocation3], 624
      %443 = vst.msk [vmem:[%s442] sm:$0xff] %vm334, 0.0
      %444 = vst.msk [vmem:[%s442 + $0x8] sm:$0x3] %vm336, 0.0
      %445 = vst.msk [vmem:[%s439] sm:$0x1] %vm341, 0.0
      %446 = vst.msk [vmem:[%s439 + $0x10] sm:$0x1] %vm341, 0.0
      %447 = vst.msk [vmem:[%s439 + $0x20] sm:$0x1] %vm341, 0.0
      %448 = vst.msk [vmem:[%s439 + $0x30] sm:$0x1] %vm341, 0.0
      %449 = vst.msk [vmem:[%s439 + $0x40] sm:$0x1] %vm341, 0.0
      %450 = vst.msk [vmem:[%s439 + $0x50] sm:$0x1] %vm341, 0.0
      %451 = vst.msk [vmem:[%s439 + $0x60] sm:$0x1] %vm341, 0.0
      %452 = vst.msk [vmem:[%s439 + $0x70] sm:$0x1] %vm341, 0.0
      %453 = vst.msk [vmem:[%s439 + $0x80] sm:$0x1] %vm341, 0.0
      %454 = vst.msk [vmem:[%s439 + $0x90] sm:$0x1] %vm341, 0.0
      %455 = vst.msk [vmem:[%s439 + $0x9] sm:$0x1] %vm341, 0.0
      %456 = vst.msk [vmem:[%s439 + $0x19] sm:$0x1] %vm341, 0.0
      %457 = vst.msk [vmem:[%s439 + $0x29] sm:$0x1] %vm341, 0.0
      %458 = vst.msk [vmem:[%s439 + $0x39] sm:$0x1] %vm341, 0.0
      %459 = vst.msk [vmem:[%s439 + $0x49] sm:$0x1] %vm341, 0.0
      %460 = vst.msk [vmem:[%s439 + $0x59] sm:$0x1] %vm341, 0.0
      %461 = vst.msk [vmem:[%s439 + $0x69] sm:$0x1] %vm341, 0.0
      %462 = vst.msk [vmem:[%s439 + $0x79] sm:$0x1] %vm341, 0.0
      %463 = vst.msk [vmem:[%s439 + $0x89] sm:$0x1] %vm341, 0.0
      %464 = vst.msk [vmem:[%s439 + $0x99] sm:$0x1] %vm341, 0.0
      %v465 = vld [vmem:[%s327] sm:$0xff]
      %v466 = vld [vmem:[%s327 + $0x8] sm:$0xf]
      %v467 = vld [vmem:[%s327 + $0xc] sm:$0xff]
      %v468 = vld [vmem:[%s327 + $0x14] sm:$0xf]
      %v469 = vld [vmem:[%s327 + $0x18] sm:$0xff]
      %v470 = vld [vmem:[%s327 + $0x20] sm:$0xf]
      %v471 = vld [vmem:[%s327 + $0x24] sm:$0xff]
      %v472 = vld [vmem:[%s327 + $0x2c] sm:$0xf]
      %v473 = vld [vmem:[%s327 + $0x30] sm:$0xff]
      %v474 = vld [vmem:[%s327 + $0x38] sm:$0xf]
      %v475 = vld [vmem:[%s327 + $0x3c] sm:$0xff]
      %v476 = vld [vmem:[%s327 + $0x44] sm:$0xf]
      %v477 = vld [vmem:[%s327 + $0x48] sm:$0xff]
      %v478 = vld [vmem:[%s327 + $0x50] sm:$0xf]
      %v479 = vld [vmem:[%s327 + $0x54] sm:$0xff]
      %v480 = vld [vmem:[%s327 + $0x5c] sm:$0xf]
      %v481 = vld [vmem:[%s1] sm:$0xf]
      %v482 = vld [vmem:[%s1 + $0x4] sm:$0xf]
      %v483 = vld [vmem:[%s1 + $0x8] sm:$0xf]
      %v484 = vld [vmem:[%s1 + $0xc] sm:$0xf]
      %v485 = vld [vmem:[%s1 + $0x10] sm:$0xf]
      %v486 = vld [vmem:[%s1 + $0x14] sm:$0xf]
      %v487 = vld [vmem:[%s1 + $0x18] sm:$0xf]
      %v488 = vld [vmem:[%s1 + $0x1c] sm:$0xf]
      %v489 = vld [vmem:[%s1 + $0x20] sm:$0xf]
      %v490 = vld [vmem:[%s1 + $0x24] sm:$0xf]
      %v491 = vld [vmem:[%s1 + $0x28] sm:$0xf]
      %v492 = vld [vmem:[%s1 + $0x2c] sm:$0xf]
      %v493 = vld [vmem:[%s1 + $0x30] sm:$0xf]
      %v494 = vld [vmem:[%s1 + $0x34] sm:$0xf]
      %v495 = vld [vmem:[%s1 + $0x38] sm:$0xf]
      %v496 = vld [vmem:[%s1 + $0x3c] sm:$0xf]
      %v497 = vld [vmem:[%s1 + $0x40] sm:$0xf]
      %v498 = vld [vmem:[%s1 + $0x44] sm:$0xf]
      %v499 = vld [vmem:[%s1 + $0x48] sm:$0xf]
      %v500 = vld [vmem:[%s1 + $0x4c] sm:$0xf]
      %v501 = vld [vmem:[%s1 + $0x50] sm:$0xf]
      %v502 = vld [vmem:[%s1 + $0x54] sm:$0xf]
      %v503 = vld [vmem:[%s1 + $0x58] sm:$0xf]
      %v504 = vld [vmem:[%s1 + $0x5c] sm:$0xf]
      %v505 = vld [vmem:[%s1 + $0x60] sm:$0xf]
      %v506 = vld [vmem:[%s1 + $0x64] sm:$0xf]
      %v507 = vld [vmem:[%s1 + $0x68] sm:$0xf]
      %v508 = vld [vmem:[%s1 + $0x6c] sm:$0xf]
      %v509 = vld [vmem:[%s1 + $0x70] sm:$0xf]
      %v510 = vld [vmem:[%s1 + $0x74] sm:$0xf]
      %v511 = vld [vmem:[%s1 + $0x78] sm:$0xf]
      %v512 = vld [vmem:[%s1 + $0x7c] sm:$0xf]
      %v513 = vld [vmem:[%s1 + $0x80] sm:$0xf]
      %v514 = vld [vmem:[%s1 + $0x84] sm:$0xf]
      %v515 = vld [vmem:[%s1 + $0x88] sm:$0xf]
      %v516 = vld [vmem:[%s1 + $0x8c] sm:$0xf]
      %v517 = vld [vmem:[%s1 + $0x90] sm:$0xf]
      %v518 = vld [vmem:[%s1 + $0x94] sm:$0xf]
      %v519 = vld [vmem:[%s1 + $0x98] sm:$0xf]
      %v520 = vld [vmem:[%s1 + $0x9c] sm:$0xf]
      %v521 = vld [vmem:[%s2] sm:$0x1]
      %v523 = vperm.slane %v521, 0
      %v541 = vunpack.c.l.b16 %v465
      %v542 = vunpack.c.h.b16 %v465
      %v543 = vunpack.c.l.b16 %v466
      %v544 = vunpack.c.l.b16 %v467
      %v545 = vunpack.c.h.b16 %v467
      %v546 = vunpack.c.l.b16 %v468
      %v547 = vunpack.c.l.b16 %v469
      %v548 = vunpack.c.h.b16 %v469
      %v549 = vunpack.c.l.b16 %v470
      %v550 = vunpack.c.l.b16 %v471
      %v551 = vunpack.c.h.b16 %v471
      %v552 = vunpack.c.l.b16 %v472
      %v553 = vunpack.c.l.b16 %v473
      %v554 = vunpack.c.h.b16 %v473
      %v555 = vunpack.c.l.b16 %v474
      %v556 = vunpack.c.l.b16 %v475
      %v557 = vunpack.c.h.b16 %v475
      %v558 = vunpack.c.l.b16 %v476
      %v559 = vunpack.c.l.b16 %v477
      %v560 = vunpack.c.h.b16 %v477
      %v561 = vunpack.c.l.b16 %v478
      %v562 = vunpack.c.l.b16 %v479
      %v563 = vunpack.c.h.b16 %v479
      %v564 = vunpack.c.l.b16 %v480
      %v565 = vpack.c.b16 %v544, %v541
      %v566 = vpack.c.b16 %v545, %v542
      %v567 = vpack.c.b16 %v546, %v543
      %v568 = vpack.c.b16 %v550, %v547
      %v569 = vpack.c.b16 %v551, %v548
      %v570 = vpack.c.b16 %v552, %v549
      %v571 = vpack.c.b16 %v556, %v553
      %v572 = vpack.c.b16 %v557, %v554
      %v573 = vpack.c.b16 %v558, %v555
      %v574 = vpack.c.b16 %v562, %v559
      %v575 = vpack.c.b16 %v563, %v560
      %v576 = vpack.c.b16 %v564, %v561
      %v625 = vunpack.c.l.b16 %v481
      %v626 = vunpack.c.l.b16 %v482
      %v627 = vunpack.c.l.b16 %v483
      %v628 = vunpack.c.l.b16 %v484
      %v629 = vunpack.c.l.b16 %v485
      %v630 = vunpack.c.l.b16 %v486
      %v631 = vunpack.c.l.b16 %v487
      %v632 = vunpack.c.l.b16 %v488
      %v633 = vunpack.c.l.b16 %v489
      %v634 = vunpack.c.l.b16 %v490
      %v635 = vunpack.c.l.b16 %v491
      %v636 = vunpack.c.l.b16 %v492
      %v637 = vunpack.c.l.b16 %v493
      %v638 = vunpack.c.l.b16 %v494
      %v639 = vunpack.c.l.b16 %v495
      %v640 = vunpack.c.l.b16 %v496
      %v641 = vunpack.c.l.b16 %v497
      %v642 = vunpack.c.l.b16 %v498
      %v643 = vunpack.c.l.b16 %v499
      %v644 = vunpack.c.l.b16 %v500
      %v645 = vunpack.c.l.b16 %v501
      %v646 = vunpack.c.l.b16 %v502
      %v647 = vunpack.c.l.b16 %v503
      %v648 = vunpack.c.l.b16 %v504
      %v649 = vunpack.c.l.b16 %v505
      %v650 = vunpack.c.l.b16 %v506
      %v651 = vunpack.c.l.b16 %v507
      %v652 = vunpack.c.l.b16 %v508
      %v653 = vunpack.c.l.b16 %v509
      %v654 = vunpack.c.l.b16 %v510
      %v655 = vunpack.c.l.b16 %v511
      %v656 = vunpack.c.l.b16 %v512
      %v657 = vunpack.c.l.b16 %v513
      %v658 = vunpack.c.l.b16 %v514
      %v659 = vunpack.c.l.b16 %v515
      %v660 = vunpack.c.l.b16 %v516
      %v661 = vunpack.c.l.b16 %v517
      %v662 = vunpack.c.l.b16 %v518
      %v663 = vunpack.c.l.b16 %v519
      %v664 = vunpack.c.l.b16 %v520
      %v665 = vpack.c.b16 %v626, %v625
      %v666 = vpack.c.b16 %v628, %v627
      %v667 = vpack.c.b16 %v630, %v629
      %v668 = vpack.c.b16 %v632, %v631
      %v669 = vpack.c.b16 %v634, %v633
      %v670 = vpack.c.b16 %v636, %v635
      %v671 = vpack.c.b16 %v638, %v637
      %v672 = vpack.c.b16 %v640, %v639
      %v673 = vpack.c.b16 %v642, %v641
      %v674 = vpack.c.b16 %v644, %v643
      %v675 = vpack.c.b16 %v646, %v645
      %v676 = vpack.c.b16 %v648, %v647
      %v677 = vpack.c.b16 %v650, %v649
      %v678 = vpack.c.b16 %v652, %v651
      %v679 = vpack.c.b16 %v654, %v653
      %v680 = vpack.c.b16 %v656, %v655
      %v681 = vpack.c.b16 %v658, %v657
      %v682 = vpack.c.b16 %v660, %v659
      %v683 = vpack.c.b16 %v662, %v661
      %v684 = vpack.c.b16 %v664, %v663
      %v706 = vsel %vm334, %v567, 0
      %v709 = vsel %vm334, %v570, 0
      %v712 = vsel %vm334, %v573, 0
      %v715 = vsel %vm334, %v576, 0
      %717 = vmatpush.bf16.msra.mxu0 %v672
      %718 = vmatpush.bf16.msra.mxu0 %v671
      %719 = vmatpush.bf16.msra.mxu0 %v670
      %720 = vmatpush.bf16.msra.mxu0 %v669
      %721 = vmatpush.bf16.msra.mxu0 %v668
      %722 = vmatpush.bf16.msra.mxu0 %v667
      %723 = vmatpush.bf16.msra.mxu0 %v666
      %724 = vmatpush.bf16.msra.mxu0 %v665
      %725 = vmatmul.bf16.gmra.mxu0 %v565
      %v726 = vpop.f32.mrf.mxu0
      %v727 = vadd.f32 %v523, %v726
      %v728 = vpop.f32.mrf.mxu0
      %v729 = vadd.f32 %v523, %v728
      %730 = vmatmul.bf16.gmra.mxu0 %v568
      %v731 = vpop.f32.mrf.mxu0
      %v732 = vadd.f32 %v523, %v731
      %v733 = vpop.f32.mrf.mxu0
      %v734 = vadd.f32 %v523, %v733
      %735 = vmatmul.bf16.gmra.mxu0 %v571
      %v736 = vpop.f32.mrf.mxu0
      %v737 = vadd.f32 %v523, %v736
      %v738 = vpop.f32.mrf.mxu0
      %v739 = vadd.f32 %v523, %v738
      %740 = vmatmul.bf16.gmra.mxu0 %v574
      %v741 = vpop.f32.mrf.mxu0
      %v742 = vadd.f32 %v523, %v741
      %v743 = vpop.f32.mrf.mxu0
      %v744 = vadd.f32 %v523, %v743
      %745 = vdwg.mxu0
      %746 = vmatpush.bf16.msra.mxu0 %v680
      %747 = vmatpush.bf16.msra.mxu0 %v679
      %748 = vmatpush.bf16.msra.mxu0 %v678
      %749 = vmatpush.bf16.msra.mxu0 %v677
      %750 = vmatpush.bf16.msra.mxu0 %v676
      %751 = vmatpush.bf16.msra.mxu0 %v675
      %752 = vmatpush.bf16.msra.mxu0 %v674
      %753 = vmatpush.bf16.msra.mxu0 %v673
      %754 = vmatmul.bf16.gmra.mxu0 %v566
      %v755 = vpop.f32.mrf.mxu0
      %v756 = vadd.f32 %v727, %v755
      %v757 = vpop.f32.mrf.mxu0
      %v758 = vadd.f32 %v729, %v757
      %759 = vmatmul.bf16.gmra.mxu0 %v569
      %v760 = vpop.f32.mrf.mxu0
      %v761 = vadd.f32 %v732, %v760
      %v762 = vpop.f32.mrf.mxu0
      %v763 = vadd.f32 %v734, %v762
      %764 = vmatmul.bf16.gmra.mxu0 %v572
      %v765 = vpop.f32.mrf.mxu0
      %v766 = vadd.f32 %v737, %v765
      %v767 = vpop.f32.mrf.mxu0
      %v768 = vadd.f32 %v739, %v767
      %769 = vmatmul.bf16.gmra.mxu0 %v575
      %v770 = vpop.f32.mrf.mxu0
      %v771 = vadd.f32 %v742, %v770
      %v772 = vpop.f32.mrf.mxu0
      %v773 = vadd.f32 %v744, %v772
      %774 = vdwg.mxu0
      %775 = vmatpush.bf16.msra.mxu0 0
      %776 = vmatpush.bf16.msra.mxu0 0
      %777 = vmatpush.bf16.msra.mxu0 0
      %778 = vmatpush.bf16.msra.mxu0 0
      %779 = vmatpush.bf16.msra.mxu0 %v684
      %780 = vmatpush.bf16.msra.mxu0 %v683
      %781 = vmatpush.bf16.msra.mxu0 %v682
      %782 = vmatpush.bf16.msra.mxu0 %v681
      %783 = vmatmul.bf16.gmra.mxu0 %v706
      %v784 = vpop.f32.mrf.mxu0
      %v785 = vadd.f32 %v756, %v784
      %v786 = vpop.f32.mrf.mxu0
      %v787 = vadd.f32 %v758, %v786
      %788 = vmatmul.bf16.gmra.mxu0 %v709
      %v789 = vpop.f32.mrf.mxu0
      %v790 = vadd.f32 %v761, %v789
      %v791 = vpop.f32.mrf.mxu0
      %v792 = vadd.f32 %v763, %v791
      %793 = vmatmul.bf16.gmra.mxu0 %v712
      %v794 = vpop.f32.mrf.mxu0
      %v795 = vadd.f32 %v766, %v794
      %v796 = vpop.f32.mrf.mxu0
      %v797 = vadd.f32 %v768, %v796
      %798 = vmatmul.bf16.gmra.mxu0 %v715
      %v799 = vpop.f32.mrf.mxu0
      %v800 = vadd.f32 %v771, %v799
      %v801 = vpop.f32.mrf.mxu0
      %v802 = vadd.f32 %v773, %v801
      %803 = vdwg.mxu0
      %s804 = scalar_lea.vmem [#allocation2], 16
      %805 = vst.msk [vmem:[%s804 + $0x1] sm:$0xff] %vm334, %v785
      %806 = vst.msk [vmem:[%s804 + $0x11] sm:$0xff] %vm334, %v787
      %807 = vst.msk [vmem:[%s804 + $0x21] sm:$0xff] %vm334, %v790
      %808 = vst.msk [vmem:[%s804 + $0x31] sm:$0xff] %vm334, %v792
      %809 = vst.msk [vmem:[%s804 + $0x41] sm:$0xff] %vm334, %v795
      %810 = vst.msk [vmem:[%s804 + $0x51] sm:$0xff] %vm334, %v797
      %811 = vst.msk [vmem:[%s804 + $0x61] sm:$0xff] %vm334, %v800
      %812 = vst.msk [vmem:[%s804 + $0x71] sm:$0xff] %vm334, %v802
      %v813 = vld [vmem:[#allocation2] sm:$0xff]
      %v814 = vld [vmem:[#allocation2 + $0x10] sm:$0xff]
      %v815 = vld [vmem:[#allocation2 + $0x20] sm:$0xff]
      %v816 = vld [vmem:[#allocation2 + $0x30] sm:$0xff]
      %v817 = vld [vmem:[#allocation2 + $0x40] sm:$0xff]
      %v818 = vld [vmem:[#allocation2 + $0x50] sm:$0xff]
      %v819 = vld [vmem:[#allocation2 + $0x60] sm:$0xff]
      %v820 = vld [vmem:[#allocation2 + $0x70] sm:$0xff]
      %v821 = vpack.c.bf16 %v813, %v813
      %v822 = vpack.c.bf16 %v814, %v814
      %v823 = vpack.c.bf16 %v815, %v815
      %v824 = vpack.c.bf16 %v816, %v816
      %v825 = vpack.c.bf16 %v817, %v817
      %v826 = vpack.c.bf16 %v818, %v818
      %v827 = vpack.c.bf16 %v819, %v819
      %v828 = vpack.c.bf16 %v820, %v820
      %vm829 = vcmask 519168
      %830 = vst.msk [vmem:[#allocation4] sm:$0xf] %vm829, %v821
      %831 = vst.msk [vmem:[#allocation4 + $0x14] sm:$0xf] %vm829, %v822
      %832 = vst.msk [vmem:[#allocation4 + $0x28] sm:$0xf] %vm829, %v823
      %833 = vst.msk [vmem:[#allocation4 + $0x3c] sm:$0xf] %vm829, %v824
      %834 = vst.msk [vmem:[#allocation4 + $0x50] sm:$0xf] %vm829, %v825
      %835 = vst.msk [vmem:[#allocation4 + $0x64] sm:$0xf] %vm829, %v826
      %836 = vst.msk [vmem:[#allocation4 + $0x78] sm:$0xf] %vm829, %v827
      %837 = vst.msk [vmem:[#allocation4 + $0x8c] sm:$0xf] %vm829, %v828
      %v838 = vld [vmem:[#allocation2 + $0x1] sm:$0xff]
      %v839 = vld [vmem:[#allocation2 + $0x11] sm:$0xff]
      %v840 = vld [vmem:[#allocation2 + $0x21] sm:$0xff]
      %v841 = vld [vmem:[#allocation2 + $0x31] sm:$0xff]
      %v842 = vld [vmem:[#allocation2 + $0x41] sm:$0xff]
      %v843 = vld [vmem:[#allocation2 + $0x51] sm:$0xff]
      %v844 = vld [vmem:[#allocation2 + $0x61] sm:$0xff]
      %v845 = vld [vmem:[#allocation2 + $0x71] sm:$0xff]
      %v846 = vpack.c.bf16 %v838, %v838
      %v847 = vpack.c.bf16 %v839, %v839
      %v848 = vpack.c.bf16 %v840, %v840
      %v849 = vpack.c.bf16 %v841, %v841
      %v850 = vpack.c.bf16 %v842, %v842
      %v851 = vpack.c.bf16 %v843, %v843
      %v852 = vpack.c.bf16 %v844, %v844
      %v853 = vpack.c.bf16 %v845, %v845
      %862 = vrot.lane.b32.xlu0 %v846, 64
      %v863 = vpop.permute.xlu0 %862
      %864 = vrot.lane.b32.xlu0 %v847, 64
      %v865 = vpop.permute.xlu0 %864
      %866 = vrot.lane.b32.xlu0 %v848, 64
      %v867 = vpop.permute.xlu0 %866
      %868 = vrot.lane.b32.xlu0 %v849, 64
      %v869 = vpop.permute.xlu0 %868
      %870 = vrot.lane.b32.xlu0 %v850, 64
      %v871 = vpop.permute.xlu0 %870
      %872 = vrot.lane.b32.xlu0 %v851, 64
      %v873 = vpop.permute.xlu0 %872
      %874 = vrot.lane.b32.xlu0 %v852, 64
      %v875 = vpop.permute.xlu0 %874
      %876 = vrot.lane.b32.xlu0 %v853, 64
      %v877 = vpop.permute.xlu0 %876
      %vm886 = vcmask 1043968
      %887 = vst.msk [vmem:[#allocation4] sm:$0xf] %vm886, %v863
      %888 = vst.msk [vmem:[#allocation4 + $0x14] sm:$0xf] %vm886, %v865
      %889 = vst.msk [vmem:[#allocation4 + $0x28] sm:$0xf] %vm886, %v867
      %890 = vst.msk [vmem:[#allocation4 + $0x3c] sm:$0xf] %vm886, %v869
      %891 = vst.msk [vmem:[#allocation4 + $0x50] sm:$0xf] %vm886, %v871
      %892 = vst.msk [vmem:[#allocation4 + $0x64] sm:$0xf] %vm886, %v873
      %893 = vst.msk [vmem:[#allocation4 + $0x78] sm:$0xf] %vm886, %v875
      %894 = vst.msk [vmem:[#allocation4 + $0x8c] sm:$0xf] %vm886, %v877
      %v895 = vld [vmem:[#allocation2 + $0x2] sm:$0xff]
      %v896 = vld [vmem:[#allocation2 + $0x12] sm:$0xff]
      %v897 = vld [vmem:[#allocation2 + $0x22] sm:$0xff]
      %v898 = vld [vmem:[#allocation2 + $0x32] sm:$0xff]
      %v899 = vld [vmem:[#allocation2 + $0x42] sm:$0xff]
      %v900 = vld [vmem:[#allocation2 + $0x52] sm:$0xff]
      %v901 = vld [vmem:[#allocation2 + $0x62] sm:$0xff]
      %v902 = vld [vmem:[#allocation2 + $0x72] sm:$0xff]
      %v903 = vpack.c.bf16 %v895, %v895
      %v904 = vpack.c.bf16 %v896, %v896
      %v905 = vpack.c.bf16 %v897, %v897
      %v906 = vpack.c.bf16 %v898, %v898
      %v907 = vpack.c.bf16 %v899, %v899
      %v908 = vpack.c.bf16 %v900, %v900
      %v909 = vpack.c.bf16 %v901, %v901
      %v910 = vpack.c.bf16 %v902, %v902
      %911 = vst.msk [vmem:[#allocation4 + $0x4] sm:$0xf] %vm829, %v903
      %912 = vst.msk [vmem:[#allocation4 + $0x18] sm:$0xf] %vm829, %v904
      %913 = vst.msk [vmem:[#allocation4 + $0x2c] sm:$0xf] %vm829, %v905
      %914 = vst.msk [vmem:[#allocation4 + $0x40] sm:$0xf] %vm829, %v906
      %915 = vst.msk [vmem:[#allocation4 + $0x54] sm:$0xf] %vm829, %v907
      %916 = vst.msk [vmem:[#allocation4 + $0x68] sm:$0xf] %vm829, %v908
      %917 = vst.msk [vmem:[#allocation4 + $0x7c] sm:$0xf] %vm829, %v909
      %918 = vst.msk [vmem:[#allocation4 + $0x90] sm:$0xf] %vm829, %v910
      %v919 = vld [vmem:[%s804] sm:$0xff]
      %v920 = vld [vmem:[%s804 + $0x10] sm:$0xff]
      %v921 = vld [vmem:[%s804 + $0x20] sm:$0xff]
      %v922 = vld [vmem:[%s804 + $0x30] sm:$0xff]
      %v923 = vld [vmem:[%s804 + $0x40] sm:$0xff]
      %v924 = vld [vmem:[%s804 + $0x50] sm:$0xff]
      %v925 = vld [vmem:[%s804 + $0x60] sm:$0xff]
      %v926 = vld [vmem:[%s804 + $0x70] sm:$0xff]
      %v927 = vpack.c.bf16 %v919, %v919
      %v928 = vpack.c.bf16 %v920, %v920
      %v929 = vpack.c.bf16 %v921, %v921
      %v930 = vpack.c.bf16 %v922, %v922
      %v931 = vpack.c.bf16 %v923, %v923
      %v932 = vpack.c.bf16 %v924, %v924
      %v933 = vpack.c.bf16 %v925, %v925
      %v934 = vpack.c.bf16 %v926, %v926
      %943 = vrot.lane.b32.xlu0 %v927, 64
      %v944 = vpop.permute.xlu0 %943
      %945 = vrot.lane.b32.xlu0 %v928, 64
      %v946 = vpop.permute.xlu0 %945
      %947 = vrot.lane.b32.xlu0 %v929, 64
      %v948 = vpop.permute.xlu0 %947
      %949 = vrot.lane.b32.xlu0 %v930, 64
      %v950 = vpop.permute.xlu0 %949
      %951 = vrot.lane.b32.xlu0 %v931, 64
      %v952 = vpop.permute.xlu0 %951
      %953 = vrot.lane.b32.xlu0 %v932, 64
      %v954 = vpop.permute.xlu0 %953
      %955 = vrot.lane.b32.xlu0 %v933, 64
      %v956 = vpop.permute.xlu0 %955
      %957 = vrot.lane.b32.xlu0 %v934, 64
      %v958 = vpop.permute.xlu0 %957
      %967 = vst.msk [vmem:[#allocation4 + $0x4] sm:$0xf] %vm886, %v944
      %968 = vst.msk [vmem:[#allocation4 + $0x18] sm:$0xf] %vm886, %v946
      %969 = vst.msk [vmem:[#allocation4 + $0x2c] sm:$0xf] %vm886, %v948
      %970 = vst.msk [vmem:[#allocation4 + $0x40] sm:$0xf] %vm886, %v950
      %971 = vst.msk [vmem:[#allocation4 + $0x54] sm:$0xf] %vm886, %v952
      %972 = vst.msk [vmem:[#allocation4 + $0x68] sm:$0xf] %vm886, %v954
      %973 = vst.msk [vmem:[#allocation4 + $0x7c] sm:$0xf] %vm886, %v956
      %974 = vst.msk [vmem:[#allocation4 + $0x90] sm:$0xf] %vm886, %v958
      %v975 = vld [vmem:[%s804 + $0x1] sm:$0xff]
      %v976 = vld [vmem:[%s804 + $0x11] sm:$0xff]
      %v977 = vld [vmem:[%s804 + $0x21] sm:$0xff]
      %v978 = vld [vmem:[%s804 + $0x31] sm:$0xff]
      %v979 = vld [vmem:[%s804 + $0x41] sm:$0xff]
      %v980 = vld [vmem:[%s804 + $0x51] sm:$0xff]
      %v981 = vld [vmem:[%s804 + $0x61] sm:$0xff]
      %v982 = vld [vmem:[%s804 + $0x71] sm:$0xff]
      %v983 = vpack.c.bf16 %v975, %v975
      %v984 = vpack.c.bf16 %v976, %v976
      %v985 = vpack.c.bf16 %v977, %v977
      %v986 = vpack.c.bf16 %v978, %v978
      %v987 = vpack.c.bf16 %v979, %v979
      %v988 = vpack.c.bf16 %v980, %v980
      %v989 = vpack.c.bf16 %v981, %v981
      %v990 = vpack.c.bf16 %v982, %v982
      %991 = vst.msk [vmem:[#allocation4 + $0x8] sm:$0xf] %vm829, %v983
      %992 = vst.msk [vmem:[#allocation4 + $0x1c] sm:$0xf] %vm829, %v984
      %993 = vst.msk [vmem:[#allocation4 + $0x30] sm:$0xf] %vm829, %v985
      %994 = vst.msk [vmem:[#allocation4 + $0x44] sm:$0xf] %vm829, %v986
      %995 = vst.msk [vmem:[#allocation4 + $0x58] sm:$0xf] %vm829, %v987
      %996 = vst.msk [vmem:[#allocation4 + $0x6c] sm:$0xf] %vm829, %v988
      %997 = vst.msk [vmem:[#allocation4 + $0x80] sm:$0xf] %vm829, %v989
      %998 = vst.msk [vmem:[#allocation4 + $0x94] sm:$0xf] %vm829, %v990
      %v999 = vld [vmem:[%s804 + $0x2] sm:$0xff]
      %v1000 = vld [vmem:[%s804 + $0x12] sm:$0xff]
      %v1001 = vld [vmem:[%s804 + $0x22] sm:$0xff]
      %v1002 = vld [vmem:[%s804 + $0x32] sm:$0xff]
      %v1003 = vld [vmem:[%s804 + $0x42] sm:$0xff]
      %v1004 = vld [vmem:[%s804 + $0x52] sm:$0xff]
      %v1005 = vld [vmem:[%s804 + $0x62] sm:$0xff]
      %v1006 = vld [vmem:[%s804 + $0x72] sm:$0xff]
      %v1007 = vpack.c.bf16 %v999, %v999
      %v1008 = vpack.c.bf16 %v1000, %v1000
      %v1009 = vpack.c.bf16 %v1001, %v1001
      %v1010 = vpack.c.bf16 %v1002, %v1002
      %v1011 = vpack.c.bf16 %v1003, %v1003
      %v1012 = vpack.c.bf16 %v1004, %v1004
      %v1013 = vpack.c.bf16 %v1005, %v1005
      %v1014 = vpack.c.bf16 %v1006, %v1006
      %1023 = vrot.lane.b32.xlu0 %v1007, 64
      %v1024 = vpop.permute.xlu0 %1023
      %1025 = vrot.lane.b32.xlu0 %v1008, 64
      %v1026 = vpop.permute.xlu0 %1025
      %1027 = vrot.lane.b32.xlu0 %v1009, 64
      %v1028 = vpop.permute.xlu0 %1027
      %1029 = vrot.lane.b32.xlu0 %v1010, 64
      %v1030 = vpop.permute.xlu0 %1029
      %1031 = vrot.lane.b32.xlu0 %v1011, 64
      %v1032 = vpop.permute.xlu0 %1031
      %1033 = vrot.lane.b32.xlu0 %v1012, 64
      %v1034 = vpop.permute.xlu0 %1033
      %1035 = vrot.lane.b32.xlu0 %v1013, 64
      %v1036 = vpop.permute.xlu0 %1035
      %1037 = vrot.lane.b32.xlu0 %v1014, 64
      %v1038 = vpop.permute.xlu0 %1037
      %1047 = vst.msk [vmem:[#allocation4 + $0x8] sm:$0xf] %vm886, %v1024
      %1048 = vst.msk [vmem:[#allocation4 + $0x1c] sm:$0xf] %vm886, %v1026
      %1049 = vst.msk [vmem:[#allocation4 + $0x30] sm:$0xf] %vm886, %v1028
      %1050 = vst.msk [vmem:[#allocation4 + $0x44] sm:$0xf] %vm886, %v1030
      %1051 = vst.msk [vmem:[#allocation4 + $0x58] sm:$0xf] %vm886, %v1032
      %1052 = vst.msk [vmem:[#allocation4 + $0x6c] sm:$0xf] %vm886, %v1034
      %1053 = vst.msk [vmem:[#allocation4 + $0x80] sm:$0xf] %vm886, %v1036
      %1054 = vst.msk [vmem:[#allocation4 + $0x94] sm:$0xf] %vm886, %v1038
      %s1055 = scalar_lea.vmem [#allocation2], 32
      %v1056 = vld [vmem:[%s1055] sm:$0xff]
      %v1057 = vld [vmem:[%s1055 + $0x10] sm:$0xff]
      %v1058 = vld [vmem:[%s1055 + $0x20] sm:$0xff]
      %v1059 = vld [vmem:[%s1055 + $0x30] sm:$0xff]
      %v1060 = vld [vmem:[%s1055 + $0x40] sm:$0xff]
      %v1061 = vld [vmem:[%s1055 + $0x50] sm:$0xff]
      %v1062 = vld [vmem:[%s1055 + $0x60] sm:$0xff]
      %v1063 = vld [vmem:[%s1055 + $0x70] sm:$0xff]
      %v1064 = vpack.c.bf16 %v1056, %v1056
      %v1065 = vpack.c.bf16 %v1057, %v1057
      %v1066 = vpack.c.bf16 %v1058, %v1058
      %v1067 = vpack.c.bf16 %v1059, %v1059
      %v1068 = vpack.c.bf16 %v1060, %v1060
      %v1069 = vpack.c.bf16 %v1061, %v1061
      %v1070 = vpack.c.bf16 %v1062, %v1062
      %v1071 = vpack.c.bf16 %v1063, %v1063
      %1072 = vst.msk [vmem:[#allocation4 + $0xc] sm:$0xf] %vm829, %v1064
      %1073 = vst.msk [vmem:[#allocation4 + $0x20] sm:$0xf] %vm829, %v1065
      %1074 = vst.msk [vmem:[#allocation4 + $0x34] sm:$0xf] %vm829, %v1066
      %1075 = vst.msk [vmem:[#allocation4 + $0x48] sm:$0xf] %vm829, %v1067
      %1076 = vst.msk [vmem:[#allocation4 + $0x5c] sm:$0xf] %vm829, %v1068
      %1077 = vst.msk [vmem:[#allocation4 + $0x70] sm:$0xf] %vm829, %v1069
      %1078 = vst.msk [vmem:[#allocation4 + $0x84] sm:$0xf] %vm829, %v1070
      %1079 = vst.msk [vmem:[#allocation4 + $0x98] sm:$0xf] %vm829, %v1071
      %v1080 = vld [vmem:[%s1055 + $0x1] sm:$0xff]
      %v1081 = vld [vmem:[%s1055 + $0x11] sm:$0xff]
      %v1082 = vld [vmem:[%s1055 + $0x21] sm:$0xff]
      %v1083 = vld [vmem:[%s1055 + $0x31] sm:$0xff]
      %v1084 = vld [vmem:[%s1055 + $0x41] sm:$0xff]
      %v1085 = vld [vmem:[%s1055 + $0x51] sm:$0xff]
      %v1086 = vld [vmem:[%s1055 + $0x61] sm:$0xff]
      %v1087 = vld [vmem:[%s1055 + $0x71] sm:$0xff]
      %v1088 = vpack.c.bf16 %v1080, %v1080
      %v1089 = vpack.c.bf16 %v1081, %v1081
      %v1090 = vpack.c.bf16 %v1082, %v1082
      %v1091 = vpack.c.bf16 %v1083, %v1083
      %v1092 = vpack.c.bf16 %v1084, %v1084
      %v1093 = vpack.c.bf16 %v1085, %v1085
      %v1094 = vpack.c.bf16 %v1086, %v1086
      %v1095 = vpack.c.bf16 %v1087, %v1087
      %1104 = vrot.lane.b32.xlu0 %v1088, 64
      %v1105 = vpop.permute.xlu0 %1104
      %1106 = vrot.lane.b32.xlu0 %v1089, 64
      %v1107 = vpop.permute.xlu0 %1106
      %1108 = vrot.lane.b32.xlu0 %v1090, 64
      %v1109 = vpop.permute.xlu0 %1108
      %1110 = vrot.lane.b32.xlu0 %v1091, 64
      %v1111 = vpop.permute.xlu0 %1110
      %1112 = vrot.lane.b32.xlu0 %v1092, 64
      %v1113 = vpop.permute.xlu0 %1112
      %1114 = vrot.lane.b32.xlu0 %v1093, 64
      %v1115 = vpop.permute.xlu0 %1114
      %1116 = vrot.lane.b32.xlu0 %v1094, 64
      %v1117 = vpop.permute.xlu0 %1116
      %1118 = vrot.lane.b32.xlu0 %v1095, 64
      %v1119 = vpop.permute.xlu0 %1118
      %1128 = vst.msk [vmem:[#allocation4 + $0xc] sm:$0xf] %vm886, %v1105
      %1129 = vst.msk [vmem:[#allocation4 + $0x20] sm:$0xf] %vm886, %v1107
      %1130 = vst.msk [vmem:[#allocation4 + $0x34] sm:$0xf] %vm886, %v1109
      %1131 = vst.msk [vmem:[#allocation4 + $0x48] sm:$0xf] %vm886, %v1111
      %1132 = vst.msk [vmem:[#allocation4 + $0x5c] sm:$0xf] %vm886, %v1113
      %1133 = vst.msk [vmem:[#allocation4 + $0x70] sm:$0xf] %vm886, %v1115
      %1134 = vst.msk [vmem:[#allocation4 + $0x84] sm:$0xf] %vm886, %v1117
      %1135 = vst.msk [vmem:[#allocation4 + $0x98] sm:$0xf] %vm886, %v1119
      %v1136 = vld [vmem:[%s1055 + $0x2] sm:$0xff]
      %v1137 = vld [vmem:[%s1055 + $0x12] sm:$0xff]
      %v1138 = vld [vmem:[%s1055 + $0x22] sm:$0xff]
      %v1139 = vld [vmem:[%s1055 + $0x32] sm:$0xff]
      %v1140 = vld [vmem:[%s1055 + $0x42] sm:$0xff]
      %v1141 = vld [vmem:[%s1055 + $0x52] sm:$0xff]
      %v1142 = vld [vmem:[%s1055 + $0x62] sm:$0xff]
      %v1143 = vld [vmem:[%s1055 + $0x72] sm:$0xff]
      %v1144 = vpack.c.bf16 %v1136, %v1136
      %v1145 = vpack.c.bf16 %v1137, %v1137
      %v1146 = vpack.c.bf16 %v1138, %v1138
      %v1147 = vpack.c.bf16 %v1139, %v1139
      %v1148 = vpack.c.bf16 %v1140, %v1140
      %v1149 = vpack.c.bf16 %v1141, %v1141
      %v1150 = vpack.c.bf16 %v1142, %v1142
      %v1151 = vpack.c.bf16 %v1143, %v1143
      %1152 = vst.msk [vmem:[#allocation4 + $0x10] sm:$0xf] %vm829, %v1144
      %1153 = vst.msk [vmem:[#allocation4 + $0x24] sm:$0xf] %vm829, %v1145
      %1154 = vst.msk [vmem:[#allocation4 + $0x38] sm:$0xf] %vm829, %v1146
      %1155 = vst.msk [vmem:[#allocation4 + $0x4c] sm:$0xf] %vm829, %v1147
      %1156 = vst.msk [vmem:[#allocation4 + $0x60] sm:$0xf] %vm829, %v1148
      %1157 = vst.msk [vmem:[#allocation4 + $0x74] sm:$0xf] %vm829, %v1149
      %1158 = vst.msk [vmem:[#allocation4 + $0x88] sm:$0xf] %vm829, %v1150
      %1159 = vst.msk [vmem:[#allocation4 + $0x9c] sm:$0xf] %vm829, %v1151
      %v1160 = vld [vmem:[#allocation4] sm:$0xff]
      %v1161 = vld [vmem:[#allocation4 + $0x8] sm:$0xff]
      %v1162 = vld [vmem:[#allocation4 + $0x10] sm:$0xf]
      %v1163 = vld [vmem:[#allocation4 + $0x14] sm:$0xff]
      %v1164 = vld [vmem:[#allocation4 + $0x1c] sm:$0xff]
      %v1165 = vld [vmem:[#allocation4 + $0x24] sm:$0xf]
      %v1166 = vld [vmem:[#allocation4 + $0x28] sm:$0xff]
      %v1167 = vld [vmem:[#allocation4 + $0x30] sm:$0xff]
      %v1168 = vld [vmem:[#allocation4 + $0x38] sm:$0xf]
      %v1169 = vld [vmem:[#allocation4 + $0x3c] sm:$0xff]
      %v1170 = vld [vmem:[#allocation4 + $0x44] sm:$0xff]
      %v1171 = vld [vmem:[#allocation4 + $0x4c] sm:$0xf]
      %v1172 = vld [vmem:[#allocation4 + $0x50] sm:$0xff]
      %v1173 = vld [vmem:[#allocation4 + $0x58] sm:$0xff]
      %v1174 = vld [vmem:[#allocation4 + $0x60] sm:$0xf]
      %v1175 = vld [vmem:[#allocation4 + $0x64] sm:$0xff]
      %v1176 = vld [vmem:[#allocation4 + $0x6c] sm:$0xff]
      %v1177 = vld [vmem:[#allocation4 + $0x74] sm:$0xf]
      %v1178 = vld [vmem:[#allocation4 + $0x78] sm:$0xff]
      %v1179 = vld [vmem:[#allocation4 + $0x80] sm:$0xff]
      %v1180 = vld [vmem:[#allocation4 + $0x88] sm:$0xf]
      %v1181 = vld [vmem:[#allocation4 + $0x8c] sm:$0xff]
      %v1182 = vld [vmem:[#allocation4 + $0x94] sm:$0xff]
      %v1183 = vld [vmem:[#allocation4 + $0x9c] sm:$0xf]
      %v1184 = vld [vmem:[%s3] sm:$0xf]
      %v1185 = vld [vmem:[%s3 + $0x4] sm:$0xf]
      %v1186 = vld [vmem:[%s3 + $0x8] sm:$0xf]
      %v1187 = vld [vmem:[%s3 + $0xc] sm:$0xf]
      %v1188 = vld [vmem:[%s3 + $0x10] sm:$0xf]
      %v1189 = vld [vmem:[%s3 + $0x14] sm:$0xf]
      %v1190 = vld [vmem:[%s3 + $0x18] sm:$0xf]
      %v1191 = vld [vmem:[%s3 + $0x1c] sm:$0xf]
      %v1192 = vld [vmem:[%s3 + $0x20] sm:$0xf]
      %v1193 = vld [vmem:[%s3 + $0x24] sm:$0xf]
      %v1194 = vld [vmem:[%s3 + $0x28] sm:$0xf]
      %v1195 = vld [vmem:[%s3 + $0x2c] sm:$0xf]
      %v1196 = vld [vmem:[%s3 + $0x30] sm:$0xf]
      %v1197 = vld [vmem:[%s3 + $0x34] sm:$0xf]
      %v1198 = vld [vmem:[%s3 + $0x38] sm:$0xf]
      %v1199 = vld [vmem:[%s3 + $0x3c] sm:$0xf]
      %v1200 = vld [vmem:[%s3 + $0x40] sm:$0xf]
      %v1201 = vld [vmem:[%s3 + $0x44] sm:$0xf]
      %v1202 = vld [vmem:[%s3 + $0x48] sm:$0xf]
      %v1203 = vld [vmem:[%s3 + $0x4c] sm:$0xf]
      %v1204 = vld [vmem:[%s3 + $0x50] sm:$0xf]
      %v1205 = vld [vmem:[%s3 + $0x54] sm:$0xf]
      %v1206 = vld [vmem:[%s3 + $0x58] sm:$0xf]
      %v1207 = vld [vmem:[%s3 + $0x5c] sm:$0xf]
      %v1208 = vld [vmem:[%s3 + $0x60] sm:$0xf]
      %v1209 = vld [vmem:[%s3 + $0x64] sm:$0xf]
      %v1210 = vld [vmem:[%s3 + $0x68] sm:$0xf]
      %v1211 = vld [vmem:[%s3 + $0x6c] sm:$0xf]
      %v1212 = vld [vmem:[%s3 + $0x70] sm:$0xf]
      %v1213 = vld [vmem:[%s3 + $0x74] sm:$0xf]
      %v1214 = vld [vmem:[%s3 + $0x78] sm:$0xf]
      %v1215 = vld [vmem:[%s3 + $0x7c] sm:$0xf]
      %v1216 = vld [vmem:[%s3 + $0x80] sm:$0xf]
      %v1217 = vld [vmem:[%s3 + $0x84] sm:$0xf]
      %v1218 = vld [vmem:[%s3 + $0x88] sm:$0xf]
      %v1219 = vld [vmem:[%s3 + $0x8c] sm:$0xf]
      %v1220 = vld [vmem:[%s3 + $0x90] sm:$0xf]
      %v1221 = vld [vmem:[%s3 + $0x94] sm:$0xf]
      %v1222 = vld [vmem:[%s3 + $0x98] sm:$0xf]
      %v1223 = vld [vmem:[%s3 + $0x9c] sm:$0xf]
      %v1224 = vld [vmem:[%s3 + $0xa0] sm:$0xf]
      %v1225 = vld [vmem:[%s3 + $0xa4] sm:$0xf]
      %v1226 = vld [vmem:[%s3 + $0xa8] sm:$0xf]
      %v1227 = vld [vmem:[%s3 + $0xac] sm:$0xf]
      %v1228 = vld [vmem:[%s3 + $0xb0] sm:$0xf]
      %v1229 = vld [vmem:[%s3 + $0xb4] sm:$0xf]
      %v1230 = vld [vmem:[%s3 + $0xb8] sm:$0xf]
      %v1231 = vld [vmem:[%s3 + $0xbc] sm:$0xf]
      %v1232 = vld [vmem:[%s3 + $0xc0] sm:$0xf]
      %v1233 = vld [vmem:[%s3 + $0xc4] sm:$0xf]
      %v1234 = vld [vmem:[%s3 + $0xc8] sm:$0xf]
      %v1235 = vld [vmem:[%s3 + $0xcc] sm:$0xf]
      %v1236 = vld [vmem:[%s3 + $0xd0] sm:$0xf]
      %v1237 = vld [vmem:[%s3 + $0xd4] sm:$0xf]
      %v1238 = vld [vmem:[%s3 + $0xd8] sm:$0xf]
      %v1239 = vld [vmem:[%s3 + $0xdc] sm:$0xf]
      %v1240 = vld [vmem:[%s3 + $0xe0] sm:$0xf]
      %v1241 = vld [vmem:[%s3 + $0xe4] sm:$0xf]
      %v1242 = vld [vmem:[%s3 + $0xe8] sm:$0xf]
      %v1243 = vld [vmem:[%s3 + $0xec] sm:$0xf]
      %v1244 = vld [vmem:[%s3 + $0xf0] sm:$0xf]
      %v1245 = vld [vmem:[%s3 + $0xf4] sm:$0xf]
      %v1246 = vld [vmem:[%s3 + $0xf8] sm:$0xf]
      %v1247 = vld [vmem:[%s3 + $0xfc] sm:$0xf]
      %v1248 = vld [vmem:[%s3 + $0x100] sm:$0xf]
      %v1249 = vld [vmem:[%s3 + $0x104] sm:$0xf]
      %v1250 = vld [vmem:[%s3 + $0x108] sm:$0xf]
      %v1251 = vld [vmem:[%s3 + $0x10c] sm:$0xf]
      %v1252 = vld [vmem:[%s3 + $0x110] sm:$0xf]
      %v1253 = vld [vmem:[%s3 + $0x114] sm:$0xf]
      %v1254 = vld [vmem:[%s3 + $0x118] sm:$0xf]
      %v1255 = vld [vmem:[%s3 + $0x11c] sm:$0xf]
      %v1256 = vld [vmem:[%s4] sm:$0x1]
      %v1258 = vperm.slane %v1256, 0
      %v1284 = vunpack.c.l.b16 %v1160
      %v1285 = vunpack.c.h.b16 %v1160
      %v1286 = vunpack.c.l.b16 %v1161
      %v1287 = vunpack.c.h.b16 %v1161
      %v1288 = vunpack.c.l.b16 %v1162
      %v1289 = vunpack.c.l.b16 %v1163
      %v1290 = vunpack.c.h.b16 %v1163
      %v1291 = vunpack.c.l.b16 %v1164
      %v1292 = vunpack.c.h.b16 %v1164
      %v1293 = vunpack.c.l.b16 %v1165
      %v1294 = vunpack.c.l.b16 %v1166
      %v1295 = vunpack.c.h.b16 %v1166
      %v1296 = vunpack.c.l.b16 %v1167
      %v1297 = vunpack.c.h.b16 %v1167
      %v1298 = vunpack.c.l.b16 %v1168
      %v1299 = vunpack.c.l.b16 %v1169
      %v1300 = vunpack.c.h.b16 %v1169
      %v1301 = vunpack.c.l.b16 %v1170
      %v1302 = vunpack.c.h.b16 %v1170
      %v1303 = vunpack.c.l.b16 %v1171
      %v1304 = vunpack.c.l.b16 %v1172
      %v1305 = vunpack.c.h.b16 %v1172
      %v1306 = vunpack.c.l.b16 %v1173
      %v1307 = vunpack.c.h.b16 %v1173
      %v1308 = vunpack.c.l.b16 %v1174
      %v1309 = vunpack.c.l.b16 %v1175
      %v1310 = vunpack.c.h.b16 %v1175
      %v1311 = vunpack.c.l.b16 %v1176
      %v1312 = vunpack.c.h.b16 %v1176
      %v1313 = vunpack.c.l.b16 %v1177
      %v1314 = vunpack.c.l.b16 %v1178
      %v1315 = vunpack.c.h.b16 %v1178
      %v1316 = vunpack.c.l.b16 %v1179
      %v1317 = vunpack.c.h.b16 %v1179
      %v1318 = vunpack.c.l.b16 %v1180
      %v1319 = vunpack.c.l.b16 %v1181
      %v1320 = vunpack.c.h.b16 %v1181
      %v1321 = vunpack.c.l.b16 %v1182
      %v1322 = vunpack.c.h.b16 %v1182
      %v1323 = vunpack.c.l.b16 %v1183
      %v1324 = vpack.c.b16 %v1289, %v1284
      %v1325 = vpack.c.b16 %v1290, %v1285
      %v1326 = vpack.c.b16 %v1291, %v1286
      %v1327 = vpack.c.b16 %v1292, %v1287
      %v1328 = vpack.c.b16 %v1293, %v1288
      %v1329 = vpack.c.b16 %v1299, %v1294
      %v1330 = vpack.c.b16 %v1300, %v1295
      %v1331 = vpack.c.b16 %v1301, %v1296
      %v1332 = vpack.c.b16 %v1302, %v1297
      %v1333 = vpack.c.b16 %v1303, %v1298
      %v1334 = vpack.c.b16 %v1309, %v1304
      %v1335 = vpack.c.b16 %v1310, %v1305
      %v1336 = vpack.c.b16 %v1311, %v1306
      %v1337 = vpack.c.b16 %v1312, %v1307
      %v1338 = vpack.c.b16 %v1313, %v1308
      %v1339 = vpack.c.b16 %v1319, %v1314
      %v1340 = vpack.c.b16 %v1320, %v1315
      %v1341 = vpack.c.b16 %v1321, %v1316
      %v1342 = vpack.c.b16 %v1322, %v1317
      %v1343 = vpack.c.b16 %v1323, %v1318
      %v1432 = vunpack.c.l.b16 %v1184
      %v1433 = vunpack.c.l.b16 %v1185
      %v1434 = vunpack.c.l.b16 %v1186
      %v1435 = vunpack.c.l.b16 %v1187
      %v1436 = vunpack.c.l.b16 %v1188
      %v1437 = vunpack.c.l.b16 %v1189
      %v1438 = vunpack.c.l.b16 %v1190
      %v1439 = vunpack.c.l.b16 %v1191
      %v1440 = vunpack.c.l.b16 %v1192
      %v1441 = vunpack.c.l.b16 %v1193
      %v1442 = vunpack.c.l.b16 %v1194
      %v1443 = vunpack.c.l.b16 %v1195
      %v1444 = vunpack.c.l.b16 %v1196
      %v1445 = vunpack.c.l.b16 %v1197
      %v1446 = vunpack.c.l.b16 %v1198
      %v1447 = vunpack.c.l.b16 %v1199
      %v1448 = vunpack.c.l.b16 %v1200
      %v1449 = vunpack.c.l.b16 %v1201
      %v1450 = vunpack.c.l.b16 %v1202
      %v1451 = vunpack.c.l.b16 %v1203
      %v1452 = vunpack.c.l.b16 %v1204
      %v1453 = vunpack.c.l.b16 %v1205
      %v1454 = vunpack.c.l.b16 %v1206
      %v1455 = vunpack.c.l.b16 %v1207
      %v1456 = vunpack.c.l.b16 %v1208
      %v1457 = vunpack.c.l.b16 %v1209
      %v1458 = vunpack.c.l.b16 %v1210
      %v1459 = vunpack.c.l.b16 %v1211
      %v1460 = vunpack.c.l.b16 %v1212
      %v1461 = vunpack.c.l.b16 %v1213
      %v1462 = vunpack.c.l.b16 %v1214
      %v1463 = vunpack.c.l.b16 %v1215
      %v1464 = vunpack.c.l.b16 %v1216
      %v1465 = vunpack.c.l.b16 %v1217
      %v1466 = vunpack.c.l.b16 %v1218
      %v1467 = vunpack.c.l.b16 %v1219
      %v1468 = vunpack.c.l.b16 %v1220
      %v1469 = vunpack.c.l.b16 %v1221
      %v1470 = vunpack.c.l.b16 %v1222
      %v1471 = vunpack.c.l.b16 %v1223
      %v1472 = vunpack.c.l.b16 %v1224
      %v1473 = vunpack.c.l.b16 %v1225
      %v1474 = vunpack.c.l.b16 %v1226
      %v1475 = vunpack.c.l.b16 %v1227
      %v1476 = vunpack.c.l.b16 %v1228
      %v1477 = vunpack.c.l.b16 %v1229
      %v1478 = vunpack.c.l.b16 %v1230
      %v1479 = vunpack.c.l.b16 %v1231
      %v1480 = vunpack.c.l.b16 %v1232
      %v1481 = vunpack.c.l.b16 %v1233
      %v1482 = vunpack.c.l.b16 %v1234
      %v1483 = vunpack.c.l.b16 %v1235
      %v1484 = vunpack.c.l.b16 %v1236
      %v1485 = vunpack.c.l.b16 %v1237
      %v1486 = vunpack.c.l.b16 %v1238
      %v1487 = vunpack.c.l.b16 %v1239
      %v1488 = vunpack.c.l.b16 %v1240
      %v1489 = vunpack.c.l.b16 %v1241
      %v1490 = vunpack.c.l.b16 %v1242
      %v1491 = vunpack.c.l.b16 %v1243
      %v1492 = vunpack.c.l.b16 %v1244
      %v1493 = vunpack.c.l.b16 %v1245
      %v1494 = vunpack.c.l.b16 %v1246
      %v1495 = vunpack.c.l.b16 %v1247
      %v1496 = vunpack.c.l.b16 %v1248
      %v1497 = vunpack.c.l.b16 %v1249
      %v1498 = vunpack.c.l.b16 %v1250
      %v1499 = vunpack.c.l.b16 %v1251
      %v1500 = vunpack.c.l.b16 %v1252
      %v1501 = vunpack.c.l.b16 %v1253
      %v1502 = vunpack.c.l.b16 %v1254
      %v1503 = vunpack.c.l.b16 %v1255
      %v1504 = vpack.c.b16 %v1433, %v1432
      %v1505 = vpack.c.b16 %v1435, %v1434
      %v1506 = vpack.c.b16 %v1437, %v1436
      %v1507 = vpack.c.b16 %v1439, %v1438
      %v1508 = vpack.c.b16 %v1441, %v1440
      %v1509 = vpack.c.b16 %v1443, %v1442
      %v1510 = vpack.c.b16 %v1445, %v1444
      %v1511 = vpack.c.b16 %v1447, %v1446
      %v1512 = vpack.c.b16 %v1449, %v1448
      %v1513 = vpack.c.b16 %v1451, %v1450
      %v1514 = vpack.c.b16 %v1453, %v1452
      %v1515 = vpack.c.b16 %v1455, %v1454
      %v1516 = vpack.c.b16 %v1457, %v1456
      %v1517 = vpack.c.b16 %v1459, %v1458
      %v1518 = vpack.c.b16 %v1461, %v1460
      %v1519 = vpack.c.b16 %v1463, %v1462
      %v1520 = vpack.c.b16 %v1465, %v1464
      %v1521 = vpack.c.b16 %v1467, %v1466
      %v1522 = vpack.c.b16 %v1469, %v1468
      %v1523 = vpack.c.b16 %v1471, %v1470
      %v1524 = vpack.c.b16 %v1473, %v1472
      %v1525 = vpack.c.b16 %v1475, %v1474
      %v1526 = vpack.c.b16 %v1477, %v1476
      %v1527 = vpack.c.b16 %v1479, %v1478
      %v1528 = vpack.c.b16 %v1481, %v1480
      %v1529 = vpack.c.b16 %v1483, %v1482
      %v1530 = vpack.c.b16 %v1485, %v1484
      %v1531 = vpack.c.b16 %v1487, %v1486
      %v1532 = vpack.c.b16 %v1489, %v1488
      %v1533 = vpack.c.b16 %v1491, %v1490
      %v1534 = vpack.c.b16 %v1493, %v1492
      %v1535 = vpack.c.b16 %v1495, %v1494
      %v1536 = vpack.c.b16 %v1497, %v1496
      %v1537 = vpack.c.b16 %v1499, %v1498
      %v1538 = vpack.c.b16 %v1501, %v1500
      %v1539 = vpack.c.b16 %v1503, %v1502
      %v1577 = vsel %vm334, %v1328, 0
      %v1580 = vsel %vm334, %v1333, 0
      %v1583 = vsel %vm334, %v1338, 0
      %v1586 = vsel %vm334, %v1343, 0
      %1588 = vmatpush.bf16.msra.mxu0 %v1511
      %1589 = vmatpush.bf16.msra.mxu0 %v1510
      %1590 = vmatpush.bf16.msra.mxu0 %v1509
      %1591 = vmatpush.bf16.msra.mxu0 %v1508
      %1592 = vmatpush.bf16.msra.mxu0 %v1507
      %1593 = vmatpush.bf16.msra.mxu0 %v1506
      %1594 = vmatpush.bf16.msra.mxu0 %v1505
      %1595 = vmatpush.bf16.msra.mxu0 %v1504
      %1596 = vmatmul.bf16.gmra.mxu0 %v1324
      %v1597 = vpop.f32.mrf.mxu0
      %v1598 = vadd.f32 %v1258, %v1597
      %v1599 = vpop.f32.mrf.mxu0
      %v1600 = vadd.f32 %v1258, %v1599
      %1601 = vmatmul.bf16.gmra.mxu0 %v1329
      %v1602 = vpop.f32.mrf.mxu0
      %v1603 = vadd.f32 %v1258, %v1602
      %v1604 = vpop.f32.mrf.mxu0
      %v1605 = vadd.f32 %v1258, %v1604
      %1606 = vmatmul.bf16.gmra.mxu0 %v1334
      %v1607 = vpop.f32.mrf.mxu0
      %v1608 = vadd.f32 %v1258, %v1607
      %v1609 = vpop.f32.mrf.mxu0
      %v1610 = vadd.f32 %v1258, %v1609
      %1611 = vmatmul.bf16.gmra.mxu0 %v1339
      %v1612 = vpop.f32.mrf.mxu0
      %v1613 = vadd.f32 %v1258, %v1612
      %v1614 = vpop.f32.mrf.mxu0
      %v1615 = vadd.f32 %v1258, %v1614
      %1616 = vdwg.mxu0
      %1617 = vmatpush.bf16.msra.mxu0 %v1519
      %1618 = vmatpush.bf16.msra.mxu0 %v1518
      %1619 = vmatpush.bf16.msra.mxu0 %v1517
      %1620 = vmatpush.bf16.msra.mxu0 %v1516
      %1621 = vmatpush.bf16.msra.mxu0 %v1515
      %1622 = vmatpush.bf16.msra.mxu0 %v1514
      %1623 = vmatpush.bf16.msra.mxu0 %v1513
      %1624 = vmatpush.bf16.msra.mxu0 %v1512
      %1625 = vmatmul.bf16.gmra.mxu0 %v1325
      %v1626 = vpop.f32.mrf.mxu0
      %v1627 = vadd.f32 %v1598, %v1626
      %v1628 = vpop.f32.mrf.mxu0
      %v1629 = vadd.f32 %v1600, %v1628
      %1630 = vmatmul.bf16.gmra.mxu0 %v1330
      %v1631 = vpop.f32.mrf.mxu0
      %v1632 = vadd.f32 %v1603, %v1631
      %v1633 = vpop.f32.mrf.mxu0
      %v1634 = vadd.f32 %v1605, %v1633
      %1635 = vmatmul.bf16.gmra.mxu0 %v1335
      %v1636 = vpop.f32.mrf.mxu0
      %v1637 = vadd.f32 %v1608, %v1636
      %v1638 = vpop.f32.mrf.mxu0
      %v1639 = vadd.f32 %v1610, %v1638
      %1640 = vmatmul.bf16.gmra.mxu0 %v1340
      %v1641 = vpop.f32.mrf.mxu0
      %v1642 = vadd.f32 %v1613, %v1641
      %v1643 = vpop.f32.mrf.mxu0
      %v1644 = vadd.f32 %v1615, %v1643
      %1645 = vdwg.mxu0
      %1646 = vmatpush.bf16.msra.mxu0 %v1527
      %1647 = vmatpush.bf16.msra.mxu0 %v1526
      %1648 = vmatpush.bf16.msra.mxu0 %v1525
      %1649 = vmatpush.bf16.msra.mxu0 %v1524
      %1650 = vmatpush.bf16.msra.mxu0 %v1523
      %1651 = vmatpush.bf16.msra.mxu0 %v1522
      %1652 = vmatpush.bf16.msra.mxu0 %v1521
      %1653 = vmatpush.bf16.msra.mxu0 %v1520
      %1654 = vmatmul.bf16.gmra.mxu0 %v1326
      %v1655 = vpop.f32.mrf.mxu0
      %v1656 = vadd.f32 %v1627, %v1655
      %v1657 = vpop.f32.mrf.mxu0
      %v1658 = vadd.f32 %v1629, %v1657
      %1659 = vmatmul.bf16.gmra.mxu0 %v1331
      %v1660 = vpop.f32.mrf.mxu0
      %v1661 = vadd.f32 %v1632, %v1660
      %v1662 = vpop.f32.mrf.mxu0
      %v1663 = vadd.f32 %v1634, %v1662
      %1664 = vmatmul.bf16.gmra.mxu0 %v1336
      %v1665 = vpop.f32.mrf.mxu0
      %v1666 = vadd.f32 %v1637, %v1665
      %v1667 = vpop.f32.mrf.mxu0
      %v1668 = vadd.f32 %v1639, %v1667
      %1669 = vmatmul.bf16.gmra.mxu0 %v1341
      %v1670 = vpop.f32.mrf.mxu0
      %v1671 = vadd.f32 %v1642, %v1670
      %v1672 = vpop.f32.mrf.mxu0
      %v1673 = vadd.f32 %v1644, %v1672
      %1674 = vdwg.mxu0
      %1675 = vmatpush.bf16.msra.mxu0 %v1535
      %1676 = vmatpush.bf16.msra.mxu0 %v1534
      %1677 = vmatpush.bf16.msra.mxu0 %v1533
      %1678 = vmatpush.bf16.msra.mxu0 %v1532
      %1679 = vmatpush.bf16.msra.mxu0 %v1531
      %1680 = vmatpush.bf16.msra.mxu0 %v1530
      %1681 = vmatpush.bf16.msra.mxu0 %v1529
      %1682 = vmatpush.bf16.msra.mxu0 %v1528
      %1683 = vmatmul.bf16.gmra.mxu0 %v1327
      %v1684 = vpop.f32.mrf.mxu0
      %v1685 = vadd.f32 %v1656, %v1684
      %v1686 = vpop.f32.mrf.mxu0
      %v1687 = vadd.f32 %v1658, %v1686
      %1688 = vmatmul.bf16.gmra.mxu0 %v1332
      %v1689 = vpop.f32.mrf.mxu0
      %v1690 = vadd.f32 %v1661, %v1689
      %v1691 = vpop.f32.mrf.mxu0
      %v1692 = vadd.f32 %v1663, %v1691
      %1693 = vmatmul.bf16.gmra.mxu0 %v1337
      %v1694 = vpop.f32.mrf.mxu0
      %v1695 = vadd.f32 %v1666, %v1694
      %v1696 = vpop.f32.mrf.mxu0
      %v1697 = vadd.f32 %v1668, %v1696
      %1698 = vmatmul.bf16.gmra.mxu0 %v1342
      %v1699 = vpop.f32.mrf.mxu0
      %v1700 = vadd.f32 %v1671, %v1699
      %v1701 = vpop.f32.mrf.mxu0
      %v1702 = vadd.f32 %v1673, %v1701
      %1703 = vdwg.mxu0
      %1704 = vmatpush.bf16.msra.mxu0 0
      %1705 = vmatpush.bf16.msra.mxu0 0
      %1706 = vmatpush.bf16.msra.mxu0 0
      %1707 = vmatpush.bf16.msra.mxu0 0
      %1708 = vmatpush.bf16.msra.mxu0 %v1539
      %1709 = vmatpush.bf16.msra.mxu0 %v1538
      %1710 = vmatpush.bf16.msra.mxu0 %v1537
      %1711 = vmatpush.bf16.msra.mxu0 %v1536
      %1712 = vmatmul.bf16.gmra.mxu0 %v1577
      %v1713 = vpop.f32.mrf.mxu0
      %v1714 = vadd.f32 %v1685, %v1713
      %v1715 = vpop.f32.mrf.mxu0
      %v1716 = vadd.f32 %v1687, %v1715
      %1717 = vmatmul.bf16.gmra.mxu0 %v1580
      %v1718 = vpop.f32.mrf.mxu0
      %v1719 = vadd.f32 %v1690, %v1718
      %v1720 = vpop.f32.mrf.mxu0
      %v1721 = vadd.f32 %v1692, %v1720
      %1722 = vmatmul.bf16.gmra.mxu0 %v1583
      %v1723 = vpop.f32.mrf.mxu0
      %v1724 = vadd.f32 %v1695, %v1723
      %v1725 = vpop.f32.mrf.mxu0
      %v1726 = vadd.f32 %v1697, %v1725
      %1727 = vmatmul.bf16.gmra.mxu0 %v1586
      %v1728 = vpop.f32.mrf.mxu0
      %v1729 = vadd.f32 %v1700, %v1728
      %v1730 = vpop.f32.mrf.mxu0
      %v1731 = vadd.f32 %v1702, %v1730
      %1732 = vdwg.mxu0
      %1733 = vst.msk [vmem:[%s804 + $0x1] sm:$0xff] %vm334, %v1714
      %1734 = vst.msk [vmem:[%s804 + $0x11] sm:$0xff] %vm334, %v1716
      %1735 = vst.msk [vmem:[%s804 + $0x21] sm:$0xff] %vm334, %v1719
      %1736 = vst.msk [vmem:[%s804 + $0x31] sm:$0xff] %vm334, %v1721
      %1737 = vst.msk [vmem:[%s804 + $0x41] sm:$0xff] %vm334, %v1724
      %1738 = vst.msk [vmem:[%s804 + $0x51] sm:$0xff] %vm334, %v1726
      %1739 = vst.msk [vmem:[%s804 + $0x61] sm:$0xff] %vm334, %v1729
      %1740 = vst.msk [vmem:[%s804 + $0x71] sm:$0xff] %vm334, %v1731
      %v1741 = vld [vmem:[#allocation2] sm:$0xff]
      %v1742 = vld [vmem:[#allocation2 + $0x10] sm:$0xff]
      %v1743 = vld [vmem:[#allocation2 + $0x20] sm:$0xff]
      %v1744 = vld [vmem:[#allocation2 + $0x30] sm:$0xff]
      %v1745 = vld [vmem:[#allocation2 + $0x40] sm:$0xff]
      %v1746 = vld [vmem:[#allocation2 + $0x50] sm:$0xff]
      %v1747 = vld [vmem:[#allocation2 + $0x60] sm:$0xff]
      %v1748 = vld [vmem:[#allocation2 + $0x70] sm:$0xff]
      %v1749 = vpack.c.bf16 %v1741, %v1741
      %v1750 = vpack.c.bf16 %v1742, %v1742
      %v1751 = vpack.c.bf16 %v1743, %v1743
      %v1752 = vpack.c.bf16 %v1744, %v1744
      %v1753 = vpack.c.bf16 %v1745, %v1745
      %v1754 = vpack.c.bf16 %v1746, %v1746
      %v1755 = vpack.c.bf16 %v1747, %v1747
      %v1756 = vpack.c.bf16 %v1748, %v1748
      %1757 = vst.msk [vmem:[#allocation4] sm:$0xf] %vm829, %v1749
      %1758 = vst.msk [vmem:[#allocation4 + $0x14] sm:$0xf] %vm829, %v1750
      %1759 = vst.msk [vmem:[#allocation4 + $0x28] sm:$0xf] %vm829, %v1751
      %1760 = vst.msk [vmem:[#allocation4 + $0x3c] sm:$0xf] %vm829, %v1752
      %1761 = vst.msk [vmem:[#allocation4 + $0x50] sm:$0xf] %vm829, %v1753
      %1762 = vst.msk [vmem:[#allocation4 + $0x64] sm:$0xf] %vm829, %v1754
      %1763 = vst.msk [vmem:[#allocation4 + $0x78] sm:$0xf] %vm829, %v1755
      %1764 = vst.msk [vmem:[#allocation4 + $0x8c] sm:$0xf] %vm829, %v1756
      %v1765 = vld [vmem:[#allocation2 + $0x1] sm:$0xff]
      %v1766 = vld [vmem:[#allocation2 + $0x11] sm:$0xff]
      %v1767 = vld [vmem:[#allocation2 + $0x21] sm:$0xff]
      %v1768 = vld [vmem:[#allocation2 + $0x31] sm:$0xff]
      %v1769 = vld [vmem:[#allocation2 + $0x41] sm:$0xff]
      %v1770 = vld [vmem:[#allocation2 + $0x51] sm:$0xff]
      %v1771 = vld [vmem:[#allocation2 + $0x61] sm:$0xff]
      %v1772 = vld [vmem:[#allocation2 + $0x71] sm:$0xff]
      %v1773 = vpack.c.bf16 %v1765, %v1765
      %v1774 = vpack.c.bf16 %v1766, %v1766
      %v1775 = vpack.c.bf16 %v1767, %v1767
      %v1776 = vpack.c.bf16 %v1768, %v1768
      %v1777 = vpack.c.bf16 %v1769, %v1769
      %v1778 = vpack.c.bf16 %v1770, %v1770
      %v1779 = vpack.c.bf16 %v1771, %v1771
      %v1780 = vpack.c.bf16 %v1772, %v1772
      %1789 = vrot.lane.b32.xlu0 %v1773, 64
      %v1790 = vpop.permute.xlu0 %1789
      %1791 = vrot.lane.b32.xlu0 %v1774, 64
      %v1792 = vpop.permute.xlu0 %1791
      %1793 = vrot.lane.b32.xlu0 %v1775, 64
      %v1794 = vpop.permute.xlu0 %1793
      %1795 = vrot.lane.b32.xlu0 %v1776, 64
      %v1796 = vpop.permute.xlu0 %1795
      %1797 = vrot.lane.b32.xlu0 %v1777, 64
      %v1798 = vpop.permute.xlu0 %1797
      %1799 = vrot.lane.b32.xlu0 %v1778, 64
      %v1800 = vpop.permute.xlu0 %1799
      %1801 = vrot.lane.b32.xlu0 %v1779, 64
      %v1802 = vpop.permute.xlu0 %1801
      %1803 = vrot.lane.b32.xlu0 %v1780, 64
      %v1804 = vpop.permute.xlu0 %1803
      %1813 = vst.msk [vmem:[#allocation4] sm:$0xf] %vm886, %v1790
      %1814 = vst.msk [vmem:[#allocation4 + $0x14] sm:$0xf] %vm886, %v1792
      %1815 = vst.msk [vmem:[#allocation4 + $0x28] sm:$0xf] %vm886, %v1794
      %1816 = vst.msk [vmem:[#allocation4 + $0x3c] sm:$0xf] %vm886, %v1796
      %1817 = vst.msk [vmem:[#allocation4 + $0x50] sm:$0xf] %vm886, %v1798
      %1818 = vst.msk [vmem:[#allocation4 + $0x64] sm:$0xf] %vm886, %v1800
      %1819 = vst.msk [vmem:[#allocation4 + $0x78] sm:$0xf] %vm886, %v1802
      %1820 = vst.msk [vmem:[#allocation4 + $0x8c] sm:$0xf] %vm886, %v1804
      %v1821 = vld [vmem:[#allocation2 + $0x2] sm:$0xff]
      %v1822 = vld [vmem:[#allocation2 + $0x12] sm:$0xff]
      %v1823 = vld [vmem:[#allocation2 + $0x22] sm:$0xff]
      %v1824 = vld [vmem:[#allocation2 + $0x32] sm:$0xff]
      %v1825 = vld [vmem:[#allocation2 + $0x42] sm:$0xff]
      %v1826 = vld [vmem:[#allocation2 + $0x52] sm:$0xff]
      %v1827 = vld [vmem:[#allocation2 + $0x62] sm:$0xff]
      %v1828 = vld [vmem:[#allocation2 + $0x72] sm:$0xff]
      %v1829 = vpack.c.bf16 %v1821, %v1821
      %v1830 = vpack.c.bf16 %v1822, %v1822
      %v1831 = vpack.c.bf16 %v1823, %v1823
      %v1832 = vpack.c.bf16 %v1824, %v1824
      %v1833 = vpack.c.bf16 %v1825, %v1825
      %v1834 = vpack.c.bf16 %v1826, %v1826
      %v1835 = vpack.c.bf16 %v1827, %v1827
      %v1836 = vpack.c.bf16 %v1828, %v1828
      %1837 = vst.msk [vmem:[#allocation4 + $0x4] sm:$0xf] %vm829, %v1829
      %1838 = vst.msk [vmem:[#allocation4 + $0x18] sm:$0xf] %vm829, %v1830
      %1839 = vst.msk [vmem:[#allocation4 + $0x2c] sm:$0xf] %vm829, %v1831
      %1840 = vst.msk [vmem:[#allocation4 + $0x40] sm:$0xf] %vm829, %v1832
      %1841 = vst.msk [vmem:[#allocation4 + $0x54] sm:$0xf] %vm829, %v1833
      %1842 = vst.msk [vmem:[#allocation4 + $0x68] sm:$0xf] %vm829, %v1834
      %1843 = vst.msk [vmem:[#allocation4 + $0x7c] sm:$0xf] %vm829, %v1835
      %1844 = vst.msk [vmem:[#allocation4 + $0x90] sm:$0xf] %vm829, %v1836
      %v1845 = vld [vmem:[%s804] sm:$0xff]
      %v1846 = vld [vmem:[%s804 + $0x10] sm:$0xff]
      %v1847 = vld [vmem:[%s804 + $0x20] sm:$0xff]
      %v1848 = vld [vmem:[%s804 + $0x30] sm:$0xff]
      %v1849 = vld [vmem:[%s804 + $0x40] sm:$0xff]
      %v1850 = vld [vmem:[%s804 + $0x50] sm:$0xff]
      %v1851 = vld [vmem:[%s804 + $0x60] sm:$0xff]
      %v1852 = vld [vmem:[%s804 + $0x70] sm:$0xff]
      %v1853 = vpack.c.bf16 %v1845, %v1845
      %v1854 = vpack.c.bf16 %v1846, %v1846
      %v1855 = vpack.c.bf16 %v1847, %v1847
      %v1856 = vpack.c.bf16 %v1848, %v1848
      %v1857 = vpack.c.bf16 %v1849, %v1849
      %v1858 = vpack.c.bf16 %v1850, %v1850
      %v1859 = vpack.c.bf16 %v1851, %v1851
      %v1860 = vpack.c.bf16 %v1852, %v1852
      %1869 = vrot.lane.b32.xlu0 %v1853, 64
      %v1870 = vpop.permute.xlu0 %1869
      %1871 = vrot.lane.b32.xlu0 %v1854, 64
      %v1872 = vpop.permute.xlu0 %1871
      %1873 = vrot.lane.b32.xlu0 %v1855, 64
      %v1874 = vpop.permute.xlu0 %1873
      %1875 = vrot.lane.b32.xlu0 %v1856, 64
      %v1876 = vpop.permute.xlu0 %1875
      %1877 = vrot.lane.b32.xlu0 %v1857, 64
      %v1878 = vpop.permute.xlu0 %1877
      %1879 = vrot.lane.b32.xlu0 %v1858, 64
      %v1880 = vpop.permute.xlu0 %1879
      %1881 = vrot.lane.b32.xlu0 %v1859, 64
      %v1882 = vpop.permute.xlu0 %1881
      %1883 = vrot.lane.b32.xlu0 %v1860, 64
      %v1884 = vpop.permute.xlu0 %1883
      %1893 = vst.msk [vmem:[#allocation4 + $0x4] sm:$0xf] %vm886, %v1870
      %1894 = vst.msk [vmem:[#allocation4 + $0x18] sm:$0xf] %vm886, %v1872
      %1895 = vst.msk [vmem:[#allocation4 + $0x2c] sm:$0xf] %vm886, %v1874
      %1896 = vst.msk [vmem:[#allocation4 + $0x40] sm:$0xf] %vm886, %v1876
      %1897 = vst.msk [vmem:[#allocation4 + $0x54] sm:$0xf] %vm886, %v1878
      %1898 = vst.msk [vmem:[#allocation4 + $0x68] sm:$0xf] %vm886, %v1880
      %1899 = vst.msk [vmem:[#allocation4 + $0x7c] sm:$0xf] %vm886, %v1882
      %1900 = vst.msk [vmem:[#allocation4 + $0x90] sm:$0xf] %vm886, %v1884
      %v1901 = vld [vmem:[%s804 + $0x1] sm:$0xff]
      %v1902 = vld [vmem:[%s804 + $0x11] sm:$0xff]
      %v1903 = vld [vmem:[%s804 + $0x21] sm:$0xff]
      %v1904 = vld [vmem:[%s804 + $0x31] sm:$0xff]
      %v1905 = vld [vmem:[%s804 + $0x41] sm:$0xff]
      %v1906 = vld [vmem:[%s804 + $0x51] sm:$0xff]
      %v1907 = vld [vmem:[%s804 + $0x61] sm:$0xff]
      %v1908 = vld [vmem:[%s804 + $0x71] sm:$0xff]
      %v1909 = vpack.c.bf16 %v1901, %v1901
      %v1910 = vpack.c.bf16 %v1902, %v1902
      %v1911 = vpack.c.bf16 %v1903, %v1903
      %v1912 = vpack.c.bf16 %v1904, %v1904
      %v1913 = vpack.c.bf16 %v1905, %v1905
      %v1914 = vpack.c.bf16 %v1906, %v1906
      %v1915 = vpack.c.bf16 %v1907, %v1907
      %v1916 = vpack.c.bf16 %v1908, %v1908
      %1917 = vst.msk [vmem:[#allocation4 + $0x8] sm:$0xf] %vm829, %v1909
      %1918 = vst.msk [vmem:[#allocation4 + $0x1c] sm:$0xf] %vm829, %v1910
      %1919 = vst.msk [vmem:[#allocation4 + $0x30] sm:$0xf] %vm829, %v1911
      %1920 = vst.msk [vmem:[#allocation4 + $0x44] sm:$0xf] %vm829, %v1912
      %1921 = vst.msk [vmem:[#allocation4 + $0x58] sm:$0xf] %vm829, %v1913
      %1922 = vst.msk [vmem:[#allocation4 + $0x6c] sm:$0xf] %vm829, %v1914
      %1923 = vst.msk [vmem:[#allocation4 + $0x80] sm:$0xf] %vm829, %v1915
      %1924 = vst.msk [vmem:[#allocation4 + $0x94] sm:$0xf] %vm829, %v1916
      %v1925 = vld [vmem:[%s804 + $0x2] sm:$0xff]
      %v1926 = vld [vmem:[%s804 + $0x12] sm:$0xff]
      %v1927 = vld [vmem:[%s804 + $0x22] sm:$0xff]
      %v1928 = vld [vmem:[%s804 + $0x32] sm:$0xff]
      %v1929 = vld [vmem:[%s804 + $0x42] sm:$0xff]
      %v1930 = vld [vmem:[%s804 + $0x52] sm:$0xff]
      %v1931 = vld [vmem:[%s804 + $0x62] sm:$0xff]
      %v1932 = vld [vmem:[%s804 + $0x72] sm:$0xff]
      %v1933 = vpack.c.bf16 %v1925, %v1925
      %v1934 = vpack.c.bf16 %v1926, %v1926
      %v1935 = vpack.c.bf16 %v1927, %v1927
      %v1936 = vpack.c.bf16 %v1928, %v1928
      %v1937 = vpack.c.bf16 %v1929, %v1929
      %v1938 = vpack.c.bf16 %v1930, %v1930
      %v1939 = vpack.c.bf16 %v1931, %v1931
      %v1940 = vpack.c.bf16 %v1932, %v1932
      %1949 = vrot.lane.b32.xlu0 %v1933, 64
      %v1950 = vpop.permute.xlu0 %1949
      %1951 = vrot.lane.b32.xlu0 %v1934, 64
      %v1952 = vpop.permute.xlu0 %1951
      %1953 = vrot.lane.b32.xlu0 %v1935, 64
      %v1954 = vpop.permute.xlu0 %1953
      %1955 = vrot.lane.b32.xlu0 %v1936, 64
      %v1956 = vpop.permute.xlu0 %1955
      %1957 = vrot.lane.b32.xlu0 %v1937, 64
      %v1958 = vpop.permute.xlu0 %1957
      %1959 = vrot.lane.b32.xlu0 %v1938, 64
      %v1960 = vpop.permute.xlu0 %1959
      %1961 = vrot.lane.b32.xlu0 %v1939, 64
      %v1962 = vpop.permute.xlu0 %1961
      %1963 = vrot.lane.b32.xlu0 %v1940, 64
      %v1964 = vpop.permute.xlu0 %1963
      %1973 = vst.msk [vmem:[#allocation4 + $0x8] sm:$0xf] %vm886, %v1950
      %1974 = vst.msk [vmem:[#allocation4 + $0x1c] sm:$0xf] %vm886, %v1952
      %1975 = vst.msk [vmem:[#allocation4 + $0x30] sm:$0xf] %vm886, %v1954
      %1976 = vst.msk [vmem:[#allocation4 + $0x44] sm:$0xf] %vm886, %v1956
      %1977 = vst.msk [vmem:[#allocation4 + $0x58] sm:$0xf] %vm886, %v1958
      %1978 = vst.msk [vmem:[#allocation4 + $0x6c] sm:$0xf] %vm886, %v1960
      %1979 = vst.msk [vmem:[#allocation4 + $0x80] sm:$0xf] %vm886, %v1962
      %1980 = vst.msk [vmem:[#allocation4 + $0x94] sm:$0xf] %vm886, %v1964
      %v1981 = vld [vmem:[%s1055] sm:$0xff]
      %v1982 = vld [vmem:[%s1055 + $0x10] sm:$0xff]
      %v1983 = vld [vmem:[%s1055 + $0x20] sm:$0xff]
      %v1984 = vld [vmem:[%s1055 + $0x30] sm:$0xff]
      %v1985 = vld [vmem:[%s1055 + $0x40] sm:$0xff]
      %v1986 = vld [vmem:[%s1055 + $0x50] sm:$0xff]
      %v1987 = vld [vmem:[%s1055 + $0x60] sm:$0xff]
      %v1988 = vld [vmem:[%s1055 + $0x70] sm:$0xff]
      %v1989 = vpack.c.bf16 %v1981, %v1981
      %v1990 = vpack.c.bf16 %v1982, %v1982
      %v1991 = vpack.c.bf16 %v1983, %v1983
      %v1992 = vpack.c.bf16 %v1984, %v1984
      %v1993 = vpack.c.bf16 %v1985, %v1985
      %v1994 = vpack.c.bf16 %v1986, %v1986
      %v1995 = vpack.c.bf16 %v1987, %v1987
      %v1996 = vpack.c.bf16 %v1988, %v1988
      %1997 = vst.msk [vmem:[#allocation4 + $0xc] sm:$0xf] %vm829, %v1989
      %1998 = vst.msk [vmem:[#allocation4 + $0x20] sm:$0xf] %vm829, %v1990
      %1999 = vst.msk [vmem:[#allocation4 + $0x34] sm:$0xf] %vm829, %v1991
      %2000 = vst.msk [vmem:[#allocation4 + $0x48] sm:$0xf] %vm829, %v1992
      %2001 = vst.msk [vmem:[#allocation4 + $0x5c] sm:$0xf] %vm829, %v1993
      %2002 = vst.msk [vmem:[#allocation4 + $0x70] sm:$0xf] %vm829, %v1994
      %2003 = vst.msk [vmem:[#allocation4 + $0x84] sm:$0xf] %vm829, %v1995
      %2004 = vst.msk [vmem:[#allocation4 + $0x98] sm:$0xf] %vm829, %v1996
      %v2005 = vld [vmem:[%s1055 + $0x1] sm:$0xff]
      %v2006 = vld [vmem:[%s1055 + $0x11] sm:$0xff]
      %v2007 = vld [vmem:[%s1055 + $0x21] sm:$0xff]
      %v2008 = vld [vmem:[%s1055 + $0x31] sm:$0xff]
      %v2009 = vld [vmem:[%s1055 + $0x41] sm:$0xff]
      %v2010 = vld [vmem:[%s1055 + $0x51] sm:$0xff]
      %v2011 = vld [vmem:[%s1055 + $0x61] sm:$0xff]
      %v2012 = vld [vmem:[%s1055 + $0x71] sm:$0xff]
      %v2013 = vpack.c.bf16 %v2005, %v2005
      %v2014 = vpack.c.bf16 %v2006, %v2006
      %v2015 = vpack.c.bf16 %v2007, %v2007
      %v2016 = vpack.c.bf16 %v2008, %v2008
      %v2017 = vpack.c.bf16 %v2009, %v2009
      %v2018 = vpack.c.bf16 %v2010, %v2010
      %v2019 = vpack.c.bf16 %v2011, %v2011
      %v2020 = vpack.c.bf16 %v2012, %v2012
      %2029 = vrot.lane.b32.xlu0 %v2013, 64
      %v2030 = vpop.permute.xlu0 %2029
      %2031 = vrot.lane.b32.xlu0 %v2014, 64
      %v2032 = vpop.permute.xlu0 %2031
      %2033 = vrot.lane.b32.xlu0 %v2015, 64
      %v2034 = vpop.permute.xlu0 %2033
      %2035 = vrot.lane.b32.xlu0 %v2016, 64
      %v2036 = vpop.permute.xlu0 %2035
      %2037 = vrot.lane.b32.xlu0 %v2017, 64
      %v2038 = vpop.permute.xlu0 %2037
      %2039 = vrot.lane.b32.xlu0 %v2018, 64
      %v2040 = vpop.permute.xlu0 %2039
      %2041 = vrot.lane.b32.xlu0 %v2019, 64
      %v2042 = vpop.permute.xlu0 %2041
      %2043 = vrot.lane.b32.xlu0 %v2020, 64
      %v2044 = vpop.permute.xlu0 %2043
      %2053 = vst.msk [vmem:[#allocation4 + $0xc] sm:$0xf] %vm886, %v2030
      %2054 = vst.msk [vmem:[#allocation4 + $0x20] sm:$0xf] %vm886, %v2032
      %2055 = vst.msk [vmem:[#allocation4 + $0x34] sm:$0xf] %vm886, %v2034
      %2056 = vst.msk [vmem:[#allocation4 + $0x48] sm:$0xf] %vm886, %v2036
      %2057 = vst.msk [vmem:[#allocation4 + $0x5c] sm:$0xf] %vm886, %v2038
      %2058 = vst.msk [vmem:[#allocation4 + $0x70] sm:$0xf] %vm886, %v2040
      %2059 = vst.msk [vmem:[#allocation4 + $0x84] sm:$0xf] %vm886, %v2042
      %2060 = vst.msk [vmem:[#allocation4 + $0x98] sm:$0xf] %vm886, %v2044
      %v2061 = vld [vmem:[%s1055 + $0x2] sm:$0xff]
      %v2062 = vld [vmem:[%s1055 + $0x12] sm:$0xff]
      %v2063 = vld [vmem:[%s1055 + $0x22] sm:$0xff]
      %v2064 = vld [vmem:[%s1055 + $0x32] sm:$0xff]
      %v2065 = vld [vmem:[%s1055 + $0x42] sm:$0xff]
      %v2066 = vld [vmem:[%s1055 + $0x52] sm:$0xff]
      %v2067 = vld [vmem:[%s1055 + $0x62] sm:$0xff]
      %v2068 = vld [vmem:[%s1055 + $0x72] sm:$0xff]
      %v2069 = vpack.c.bf16 %v2061, %v2061
      %v2070 = vpack.c.bf16 %v2062, %v2062
      %v2071 = vpack.c.bf16 %v2063, %v2063
      %v2072 = vpack.c.bf16 %v2064, %v2064
      %v2073 = vpack.c.bf16 %v2065, %v2065
      %v2074 = vpack.c.bf16 %v2066, %v2066
      %v2075 = vpack.c.bf16 %v2067, %v2067
      %v2076 = vpack.c.bf16 %v2068, %v2068
      %2077 = vst.msk [vmem:[#allocation4 + $0x10] sm:$0xf] %vm829, %v2069
      %2078 = vst.msk [vmem:[#allocation4 + $0x24] sm:$0xf] %vm829, %v2070
      %2079 = vst.msk [vmem:[#allocation4 + $0x38] sm:$0xf] %vm829, %v2071
      %2080 = vst.msk [vmem:[#allocation4 + $0x4c] sm:$0xf] %vm829, %v2072
      %2081 = vst.msk [vmem:[#allocation4 + $0x60] sm:$0xf] %vm829, %v2073
      %2082 = vst.msk [vmem:[#allocation4 + $0x74] sm:$0xf] %vm829, %v2074
      %2083 = vst.msk [vmem:[#allocation4 + $0x88] sm:$0xf] %vm829, %v2075
      %2084 = vst.msk [vmem:[#allocation4 + $0x9c] sm:$0xf] %vm829, %v2076
      %v2085 = vld [vmem:[#allocation4] sm:$0xff]
      %v2086 = vld [vmem:[#allocation4 + $0x8] sm:$0xff]
      %v2087 = vld [vmem:[#allocation4 + $0x10] sm:$0xf]
      %v2088 = vld [vmem:[#allocation4 + $0x14] sm:$0xff]
      %v2089 = vld [vmem:[#allocation4 + $0x1c] sm:$0xff]
      %v2090 = vld [vmem:[#allocation4 + $0x24] sm:$0xf]
      %v2091 = vld [vmem:[#allocation4 + $0x28] sm:$0xff]
      %v2092 = vld [vmem:[#allocation4 + $0x30] sm:$0xff]
      %v2093 = vld [vmem:[#allocation4 + $0x38] sm:$0xf]
      %v2094 = vld [vmem:[#allocation4 + $0x3c] sm:$0xff]
      %v2095 = vld [vmem:[#allocation4 + $0x44] sm:$0xff]
      %v2096 = vld [vmem:[#allocation4 + $0x4c] sm:$0xf]
      %v2097 = vld [vmem:[#allocation4 + $0x50] sm:$0xff]
      %v2098 = vld [vmem:[#allocation4 + $0x58] sm:$0xff]
      %v2099 = vld [vmem:[#allocation4 + $0x60] sm:$0xf]
      %v2100 = vld [vmem:[#allocation4 + $0x64] sm:$0xff]
      %v2101 = vld [vmem:[#allocation4 + $0x6c] sm:$0xff]
      %v2102 = vld [vmem:[#allocation4 + $0x74] sm:$0xf]
      %v2103 = vld [vmem:[#allocation4 + $0x78] sm:$0xff]
      %v2104 = vld [vmem:[#allocation4 + $0x80] sm:$0xff]
      %v2105 = vld [vmem:[#allocation4 + $0x88] sm:$0xf]
      %v2106 = vld [vmem:[#allocation4 + $0x8c] sm:$0xff]
      %v2107 = vld [vmem:[#allocation4 + $0x94] sm:$0xff]
      %v2108 = vld [vmem:[#allocation4 + $0x9c] sm:$0xf]
      %v2109 = vld [vmem:[%s5] sm:$0xff]
      %v2110 = vld [vmem:[%s5 + $0x8] sm:$0xff]
      %v2111 = vld [vmem:[%s5 + $0x10] sm:$0xff]
      %v2112 = vld [vmem:[%s5 + $0x18] sm:$0xff]
      %v2113 = vld [vmem:[%s5 + $0x20] sm:$0xff]
      %v2114 = vld [vmem:[%s5 + $0x28] sm:$0xff]
      %v2115 = vld [vmem:[%s5 + $0x30] sm:$0xff]
      %v2116 = vld [vmem:[%s5 + $0x38] sm:$0xff]
      %v2117 = vld [vmem:[%s5 + $0x40] sm:$0xff]
      %v2118 = vld [vmem:[%s5 + $0x48] sm:$0xff]
      %v2119 = vld [vmem:[%s5 + $0x50] sm:$0xff]
      %v2120 = vld [vmem:[%s5 + $0x58] sm:$0xff]
      %v2121 = vld [vmem:[%s5 + $0x60] sm:$0xff]
      %v2122 = vld [vmem:[%s5 + $0x68] sm:$0xff]
      %v2123 = vld [vmem:[%s5 + $0x70] sm:$0xff]
      %v2124 = vld [vmem:[%s5 + $0x78] sm:$0xff]
      %v2125 = vld [vmem:[%s5 + $0x80] sm:$0xff]
      %v2126 = vld [vmem:[%s5 + $0x88] sm:$0xff]
      %v2127 = vld [vmem:[%s5 + $0x90] sm:$0xff]
      %v2128 = vld [vmem:[%s5 + $0x98] sm:$0xff]
      %v2129 = vld [vmem:[%s5 + $0xa0] sm:$0xff]
      %v2130 = vld [vmem:[%s5 + $0xa8] sm:$0xff]
      %v2131 = vld [vmem:[%s5 + $0xb0] sm:$0xff]
      %v2132 = vld [vmem:[%s5 + $0xb8] sm:$0xff]
      %v2133 = vld [vmem:[%s5 + $0xc0] sm:$0xff]
      %v2134 = vld [vmem:[%s5 + $0xc8] sm:$0xff]
      %v2135 = vld [vmem:[%s5 + $0xd0] sm:$0xff]
      %v2136 = vld [vmem:[%s5 + $0xd8] sm:$0xff]
      %v2137 = vld [vmem:[%s5 + $0xe0] sm:$0xff]
      %v2138 = vld [vmem:[%s5 + $0xe8] sm:$0xff]
      %v2139 = vld [vmem:[%s5 + $0xf0] sm:$0xff]
      %v2140 = vld [vmem:[%s5 + $0xf8] sm:$0xff]
      %v2141 = vld [vmem:[%s5 + $0x100] sm:$0xff]
      %v2142 = vld [vmem:[%s5 + $0x108] sm:$0xff]
      %v2143 = vld [vmem:[%s5 + $0x110] sm:$0xff]
      %v2144 = vld [vmem:[%s5 + $0x118] sm:$0xff]
      %v2145 = vld [vmem:[%s5 + $0x120] sm:$0xff]
      %v2146 = vld [vmem:[%s5 + $0x128] sm:$0xff]
      %v2147 = vld [vmem:[%s5 + $0x130] sm:$0xff]
      %v2148 = vld [vmem:[%s5 + $0x138] sm:$0xff]
      %v2149 = vld [vmem:[%s5 + $0x140] sm:$0xff]
      %v2150 = vld [vmem:[%s5 + $0x148] sm:$0xff]
      %v2151 = vld [vmem:[%s5 + $0x150] sm:$0xff]
      %v2152 = vld [vmem:[%s5 + $0x158] sm:$0xff]
      %v2153 = vld [vmem:[%s5 + $0x160] sm:$0xff]
      %v2154 = vld [vmem:[%s5 + $0x168] sm:$0xff]
      %v2155 = vld [vmem:[%s5 + $0x170] sm:$0xff]
      %v2156 = vld [vmem:[%s5 + $0x178] sm:$0xff]
      %v2157 = vld [vmem:[%s5 + $0x180] sm:$0xff]
      %v2158 = vld [vmem:[%s5 + $0x188] sm:$0xff]
      %v2159 = vld [vmem:[%s5 + $0x190] sm:$0xff]
      %v2160 = vld [vmem:[%s5 + $0x198] sm:$0xff]
      %v2161 = vld [vmem:[%s5 + $0x1a0] sm:$0xff]
      %v2162 = vld [vmem:[%s5 + $0x1a8] sm:$0xff]
      %v2163 = vld [vmem:[%s5 + $0x1b0] sm:$0xff]
      %v2164 = vld [vmem:[%s5 + $0x1b8] sm:$0xff]
      %v2165 = vld [vmem:[%s5 + $0x1c0] sm:$0xff]
      %v2166 = vld [vmem:[%s5 + $0x1c8] sm:$0xff]
      %v2167 = vld [vmem:[%s5 + $0x1d0] sm:$0xff]
      %v2168 = vld [vmem:[%s5 + $0x1d8] sm:$0xff]
      %v2169 = vld [vmem:[%s5 + $0x1e0] sm:$0xff]
      %v2170 = vld [vmem:[%s5 + $0x1e8] sm:$0xff]
      %v2171 = vld [vmem:[%s5 + $0x1f0] sm:$0xff]
      %v2172 = vld [vmem:[%s5 + $0x1f8] sm:$0xff]
      %v2173 = vld [vmem:[%s5 + $0x200] sm:$0xff]
      %v2174 = vld [vmem:[%s5 + $0x208] sm:$0xff]
      %v2175 = vld [vmem:[%s5 + $0x210] sm:$0xff]
      %v2176 = vld [vmem:[%s5 + $0x218] sm:$0xff]
      %v2177 = vld [vmem:[%s5 + $0x220] sm:$0xff]
      %v2178 = vld [vmem:[%s5 + $0x228] sm:$0xff]
      %v2179 = vld [vmem:[%s5 + $0x230] sm:$0xff]
      %v2180 = vld [vmem:[%s5 + $0x238] sm:$0xff]
      %v2181 = vld [vmem:[%s6] sm:$0x3]
      %v2183 = vperm.slane %v2181, 0
      %v2184 = vperm.slane %v2181, 1
      %v2211 = vunpack.c.l.b16 %v2085
      %v2212 = vunpack.c.h.b16 %v2085
      %v2213 = vunpack.c.l.b16 %v2086
      %v2214 = vunpack.c.h.b16 %v2086
      %v2215 = vunpack.c.l.b16 %v2087
      %v2216 = vunpack.c.l.b16 %v2088
      %v2217 = vunpack.c.h.b16 %v2088
      %v2218 = vunpack.c.l.b16 %v2089
      %v2219 = vunpack.c.h.b16 %v2089
      %v2220 = vunpack.c.l.b16 %v2090
      %v2221 = vunpack.c.l.b16 %v2091
      %v2222 = vunpack.c.h.b16 %v2091
      %v2223 = vunpack.c.l.b16 %v2092
      %v2224 = vunpack.c.h.b16 %v2092
      %v2225 = vunpack.c.l.b16 %v2093
      %v2226 = vunpack.c.l.b16 %v2094
      %v2227 = vunpack.c.h.b16 %v2094
      %v2228 = vunpack.c.l.b16 %v2095
      %v2229 = vunpack.c.h.b16 %v2095
      %v2230 = vunpack.c.l.b16 %v2096
      %v2231 = vunpack.c.l.b16 %v2097
      %v2232 = vunpack.c.h.b16 %v2097
      %v2233 = vunpack.c.l.b16 %v2098
      %v2234 = vunpack.c.h.b16 %v2098
      %v2235 = vunpack.c.l.b16 %v2099
      %v2236 = vunpack.c.l.b16 %v2100
      %v2237 = vunpack.c.h.b16 %v2100
      %v2238 = vunpack.c.l.b16 %v2101
      %v2239 = vunpack.c.h.b16 %v2101
      %v2240 = vunpack.c.l.b16 %v2102
      %v2241 = vunpack.c.l.b16 %v2103
      %v2242 = vunpack.c.h.b16 %v2103
      %v2243 = vunpack.c.l.b16 %v2104
      %v2244 = vunpack.c.h.b16 %v2104
      %v2245 = vunpack.c.l.b16 %v2105
      %v2246 = vunpack.c.l.b16 %v2106
      %v2247 = vunpack.c.h.b16 %v2106
      %v2248 = vunpack.c.l.b16 %v2107
      %v2249 = vunpack.c.h.b16 %v2107
      %v2250 = vunpack.c.l.b16 %v2108
      %v2251 = vpack.c.b16 %v2216, %v2211
      %v2252 = vpack.c.b16 %v2217, %v2212
      %v2253 = vpack.c.b16 %v2218, %v2213
      %v2254 = vpack.c.b16 %v2219, %v2214
      %v2255 = vpack.c.b16 %v2220, %v2215
      %v2256 = vpack.c.b16 %v2226, %v2221
      %v2257 = vpack.c.b16 %v2227, %v2222
      %v2258 = vpack.c.b16 %v2228, %v2223
      %v2259 = vpack.c.b16 %v2229, %v2224
      %v2260 = vpack.c.b16 %v2230, %v2225
      %v2261 = vpack.c.b16 %v2236, %v2231
      %v2262 = vpack.c.b16 %v2237, %v2232
      %v2263 = vpack.c.b16 %v2238, %v2233
      %v2264 = vpack.c.b16 %v2239, %v2234
      %v2265 = vpack.c.b16 %v2240, %v2235
      %v2266 = vpack.c.b16 %v2246, %v2241
      %v2267 = vpack.c.b16 %v2247, %v2242
      %v2268 = vpack.c.b16 %v2248, %v2243
      %v2269 = vpack.c.b16 %v2249, %v2244
      %v2270 = vpack.c.b16 %v2250, %v2245
      %v2359 = vunpack.c.l.b16 %v2109
      %v2360 = vunpack.c.h.b16 %v2109
      %v2361 = vunpack.c.l.b16 %v2110
      %v2362 = vunpack.c.h.b16 %v2110
      %v2363 = vunpack.c.l.b16 %v2111
      %v2364 = vunpack.c.h.b16 %v2111
      %v2365 = vunpack.c.l.b16 %v2112
      %v2366 = vunpack.c.h.b16 %v2112
      %v2367 = vunpack.c.l.b16 %v2113
      %v2368 = vunpack.c.h.b16 %v2113
      %v2369 = vunpack.c.l.b16 %v2114
      %v2370 = vunpack.c.h.b16 %v2114
      %v2371 = vunpack.c.l.b16 %v2115
      %v2372 = vunpack.c.h.b16 %v2115
      %v2373 = vunpack.c.l.b16 %v2116
      %v2374 = vunpack.c.h.b16 %v2116
      %v2375 = vunpack.c.l.b16 %v2117
      %v2376 = vunpack.c.h.b16 %v2117
      %v2377 = vunpack.c.l.b16 %v2118
      %v2378 = vunpack.c.h.b16 %v2118
      %v2379 = vunpack.c.l.b16 %v2119
      %v2380 = vunpack.c.h.b16 %v2119
      %v2381 = vunpack.c.l.b16 %v2120
      %v2382 = vunpack.c.h.b16 %v2120
      %v2383 = vunpack.c.l.b16 %v2121
      %v2384 = vunpack.c.h.b16 %v2121
      %v2385 = vunpack.c.l.b16 %v2122
      %v2386 = vunpack.c.h.b16 %v2122
      %v2387 = vunpack.c.l.b16 %v2123
      %v2388 = vunpack.c.h.b16 %v2123
      %v2389 = vunpack.c.l.b16 %v2124
      %v2390 = vunpack.c.h.b16 %v2124
      %v2391 = vunpack.c.l.b16 %v2125
      %v2392 = vunpack.c.h.b16 %v2125
      %v2393 = vunpack.c.l.b16 %v2126
      %v2394 = vunpack.c.h.b16 %v2126
      %v2395 = vunpack.c.l.b16 %v2127
      %v2396 = vunpack.c.h.b16 %v2127
      %v2397 = vunpack.c.l.b16 %v2128
      %v2398 = vunpack.c.h.b16 %v2128
      %v2399 = vunpack.c.l.b16 %v2129
      %v2400 = vunpack.c.h.b16 %v2129
      %v2401 = vunpack.c.l.b16 %v2130
      %v2402 = vunpack.c.h.b16 %v2130
      %v2403 = vunpack.c.l.b16 %v2131
      %v2404 = vunpack.c.h.b16 %v2131
      %v2405 = vunpack.c.l.b16 %v2132
      %v2406 = vunpack.c.h.b16 %v2132
      %v2407 = vunpack.c.l.b16 %v2133
      %v2408 = vunpack.c.h.b16 %v2133
      %v2409 = vunpack.c.l.b16 %v2134
      %v2410 = vunpack.c.h.b16 %v2134
      %v2411 = vunpack.c.l.b16 %v2135
      %v2412 = vunpack.c.h.b16 %v2135
      %v2413 = vunpack.c.l.b16 %v2136
      %v2414 = vunpack.c.h.b16 %v2136
      %v2415 = vunpack.c.l.b16 %v2137
      %v2416 = vunpack.c.h.b16 %v2137
      %v2417 = vunpack.c.l.b16 %v2138
      %v2418 = vunpack.c.h.b16 %v2138
      %v2419 = vunpack.c.l.b16 %v2139
      %v2420 = vunpack.c.h.b16 %v2139
      %v2421 = vunpack.c.l.b16 %v2140
      %v2422 = vunpack.c.h.b16 %v2140
      %v2423 = vunpack.c.l.b16 %v2141
      %v2424 = vunpack.c.h.b16 %v2141
      %v2425 = vunpack.c.l.b16 %v2142
      %v2426 = vunpack.c.h.b16 %v2142
      %v2427 = vunpack.c.l.b16 %v2143
      %v2428 = vunpack.c.h.b16 %v2143
      %v2429 = vunpack.c.l.b16 %v2144
      %v2430 = vunpack.c.h.b16 %v2144
      %v2431 = vunpack.c.l.b16 %v2145
      %v2432 = vunpack.c.h.b16 %v2145
      %v2433 = vunpack.c.l.b16 %v2146
      %v2434 = vunpack.c.h.b16 %v2146
      %v2435 = vunpack.c.l.b16 %v2147
      %v2436 = vunpack.c.h.b16 %v2147
      %v2437 = vunpack.c.l.b16 %v2148
      %v2438 = vunpack.c.h.b16 %v2148
      %v2439 = vunpack.c.l.b16 %v2149
      %v2440 = vunpack.c.h.b16 %v2149
      %v2441 = vunpack.c.l.b16 %v2150
      %v2442 = vunpack.c.h.b16 %v2150
      %v2443 = vunpack.c.l.b16 %v2151
      %v2444 = vunpack.c.h.b16 %v2151
      %v2445 = vunpack.c.l.b16 %v2152
      %v2446 = vunpack.c.h.b16 %v2152
      %v2447 = vunpack.c.l.b16 %v2153
      %v2448 = vunpack.c.h.b16 %v2153
      %v2449 = vunpack.c.l.b16 %v2154
      %v2450 = vunpack.c.h.b16 %v2154
      %v2451 = vunpack.c.l.b16 %v2155
      %v2452 = vunpack.c.h.b16 %v2155
      %v2453 = vunpack.c.l.b16 %v2156
      %v2454 = vunpack.c.h.b16 %v2156
      %v2455 = vunpack.c.l.b16 %v2157
      %v2456 = vunpack.c.h.b16 %v2157
      %v2457 = vunpack.c.l.b16 %v2158
      %v2458 = vunpack.c.h.b16 %v2158
      %v2459 = vunpack.c.l.b16 %v2159
      %v2460 = vunpack.c.h.b16 %v2159
      %v2461 = vunpack.c.l.b16 %v2160
      %v2462 = vunpack.c.h.b16 %v2160
      %v2463 = vunpack.c.l.b16 %v2161
      %v2464 = vunpack.c.h.b16 %v2161
      %v2465 = vunpack.c.l.b16 %v2162
      %v2466 = vunpack.c.h.b16 %v2162
      %v2467 = vunpack.c.l.b16 %v2163
      %v2468 = vunpack.c.h.b16 %v2163
      %v2469 = vunpack.c.l.b16 %v2164
      %v2470 = vunpack.c.h.b16 %v2164
      %v2471 = vunpack.c.l.b16 %v2165
      %v2472 = vunpack.c.h.b16 %v2165
      %v2473 = vunpack.c.l.b16 %v2166
      %v2474 = vunpack.c.h.b16 %v2166
      %v2475 = vunpack.c.l.b16 %v2167
      %v2476 = vunpack.c.h.b16 %v2167
      %v2477 = vunpack.c.l.b16 %v2168
      %v2478 = vunpack.c.h.b16 %v2168
      %v2479 = vunpack.c.l.b16 %v2169
      %v2480 = vunpack.c.h.b16 %v2169
      %v2481 = vunpack.c.l.b16 %v2170
      %v2482 = vunpack.c.h.b16 %v2170
      %v2483 = vunpack.c.l.b16 %v2171
      %v2484 = vunpack.c.h.b16 %v2171
      %v2485 = vunpack.c.l.b16 %v2172
      %v2486 = vunpack.c.h.b16 %v2172
      %v2487 = vunpack.c.l.b16 %v2173
      %v2488 = vunpack.c.h.b16 %v2173
      %v2489 = vunpack.c.l.b16 %v2174
      %v2490 = vunpack.c.h.b16 %v2174
      %v2491 = vunpack.c.l.b16 %v2175
      %v2492 = vunpack.c.h.b16 %v2175
      %v2493 = vunpack.c.l.b16 %v2176
      %v2494 = vunpack.c.h.b16 %v2176
      %v2495 = vunpack.c.l.b16 %v2177
      %v2496 = vunpack.c.h.b16 %v2177
      %v2497 = vunpack.c.l.b16 %v2178
      %v2498 = vunpack.c.h.b16 %v2178
      %v2499 = vunpack.c.l.b16 %v2179
      %v2500 = vunpack.c.h.b16 %v2179
      %v2501 = vunpack.c.l.b16 %v2180
      %v2502 = vunpack.c.h.b16 %v2180
      %v2503 = vpack.c.b16 %v2361, %v2359
      %v2504 = vpack.c.b16 %v2362, %v2360
      %v2505 = vpack.c.b16 %v2365, %v2363
      %v2506 = vpack.c.b16 %v2366, %v2364
      %v2507 = vpack.c.b16 %v2369, %v2367
      %v2508 = vpack.c.b16 %v2370, %v2368
      %v2509 = vpack.c.b16 %v2373, %v2371
      %v2510 = vpack.c.b16 %v2374, %v2372
      %v2511 = vpack.c.b16 %v2377, %v2375
      %v2512 = vpack.c.b16 %v2378, %v2376
      %v2513 = vpack.c.b16 %v2381, %v2379
      %v2514 = vpack.c.b16 %v2382, %v2380
      %v2515 = vpack.c.b16 %v2385, %v2383
      %v2516 = vpack.c.b16 %v2386, %v2384
      %v2517 = vpack.c.b16 %v2389, %v2387
      %v2518 = vpack.c.b16 %v2390, %v2388
      %v2519 = vpack.c.b16 %v2393, %v2391
      %v2520 = vpack.c.b16 %v2394, %v2392
      %v2521 = vpack.c.b16 %v2397, %v2395
      %v2522 = vpack.c.b16 %v2398, %v2396
      %v2523 = vpack.c.b16 %v2401, %v2399
      %v2524 = vpack.c.b16 %v2402, %v2400
      %v2525 = vpack.c.b16 %v2405, %v2403
      %v2526 = vpack.c.b16 %v2406, %v2404
      %v2527 = vpack.c.b16 %v2409, %v2407
      %v2528 = vpack.c.b16 %v2410, %v2408
      %v2529 = vpack.c.b16 %v2413, %v2411
      %v2530 = vpack.c.b16 %v2414, %v2412
      %v2531 = vpack.c.b16 %v2417, %v2415
      %v2532 = vpack.c.b16 %v2418, %v2416
      %v2533 = vpack.c.b16 %v2421, %v2419
      %v2534 = vpack.c.b16 %v2422, %v2420
      %v2535 = vpack.c.b16 %v2425, %v2423
      %v2536 = vpack.c.b16 %v2426, %v2424
      %v2537 = vpack.c.b16 %v2429, %v2427
      %v2538 = vpack.c.b16 %v2430, %v2428
      %v2539 = vpack.c.b16 %v2433, %v2431
      %v2540 = vpack.c.b16 %v2434, %v2432
      %v2541 = vpack.c.b16 %v2437, %v2435
      %v2542 = vpack.c.b16 %v2438, %v2436
      %v2543 = vpack.c.b16 %v2441, %v2439
      %v2544 = vpack.c.b16 %v2442, %v2440
      %v2545 = vpack.c.b16 %v2445, %v2443
      %v2546 = vpack.c.b16 %v2446, %v2444
      %v2547 = vpack.c.b16 %v2449, %v2447
      %v2548 = vpack.c.b16 %v2450, %v2448
      %v2549 = vpack.c.b16 %v2453, %v2451
      %v2550 = vpack.c.b16 %v2454, %v2452
      %v2551 = vpack.c.b16 %v2457, %v2455
      %v2552 = vpack.c.b16 %v2458, %v2456
      %v2553 = vpack.c.b16 %v2461, %v2459
      %v2554 = vpack.c.b16 %v2462, %v2460
      %v2555 = vpack.c.b16 %v2465, %v2463
      %v2556 = vpack.c.b16 %v2466, %v2464
      %v2557 = vpack.c.b16 %v2469, %v2467
      %v2558 = vpack.c.b16 %v2470, %v2468
      %v2559 = vpack.c.b16 %v2473, %v2471
      %v2560 = vpack.c.b16 %v2474, %v2472
      %v2561 = vpack.c.b16 %v2477, %v2475
      %v2562 = vpack.c.b16 %v2478, %v2476
      %v2563 = vpack.c.b16 %v2481, %v2479
      %v2564 = vpack.c.b16 %v2482, %v2480
      %v2565 = vpack.c.b16 %v2485, %v2483
      %v2566 = vpack.c.b16 %v2486, %v2484
      %v2567 = vpack.c.b16 %v2489, %v2487
      %v2568 = vpack.c.b16 %v2490, %v2488
      %v2569 = vpack.c.b16 %v2493, %v2491
      %v2570 = vpack.c.b16 %v2494, %v2492
      %v2571 = vpack.c.b16 %v2497, %v2495
      %v2572 = vpack.c.b16 %v2498, %v2496
      %v2573 = vpack.c.b16 %v2501, %v2499
      %v2574 = vpack.c.b16 %v2502, %v2500
      %v2648 = vsel %vm334, %v2255, 0
      %v2651 = vsel %vm334, %v2260, 0
      %v2654 = vsel %vm334, %v2265, 0
      %v2657 = vsel %vm334, %v2270, 0
      %2659 = vmatpush.bf16.msra.mxu0 %v2517
      %2660 = vmatpush.bf16.msra.mxu0 %v2515
      %2661 = vmatpush.bf16.msra.mxu0 %v2513
      %2662 = vmatpush.bf16.msra.mxu0 %v2511
      %2663 = vmatpush.bf16.msra.mxu0 %v2509
      %2664 = vmatpush.bf16.msra.mxu0 %v2507
      %2665 = vmatpush.bf16.msra.mxu0 %v2505
      %2666 = vmatpush.bf16.msra.mxu0 %v2503
      %2667 = vmatmul.bf16.gmra.mxu0 %v2251
      %v2668 = vpop.f32.mrf.mxu0
      %v2669 = vadd.f32 %v2183, %v2668
      %v2670 = vpop.f32.mrf.mxu0
      %v2671 = vadd.f32 %v2183, %v2670
      %2672 = vmatmul.bf16.gmra.mxu0 %v2256
      %v2673 = vpop.f32.mrf.mxu0
      %v2674 = vadd.f32 %v2183, %v2673
      %v2675 = vpop.f32.mrf.mxu0
      %v2676 = vadd.f32 %v2183, %v2675
      %2677 = vmatmul.bf16.gmra.mxu0 %v2261
      %v2678 = vpop.f32.mrf.mxu0
      %v2679 = vadd.f32 %v2183, %v2678
      %v2680 = vpop.f32.mrf.mxu0
      %v2681 = vadd.f32 %v2183, %v2680
      %2682 = vmatmul.bf16.gmra.mxu0 %v2266
      %v2683 = vpop.f32.mrf.mxu0
      %v2684 = vadd.f32 %v2183, %v2683
      %v2685 = vpop.f32.mrf.mxu0
      %v2686 = vadd.f32 %v2183, %v2685
      %2687 = vdwg.mxu0
      %2688 = vmatpush.bf16.msra.mxu0 %v2533
      %2689 = vmatpush.bf16.msra.mxu0 %v2531
      %2690 = vmatpush.bf16.msra.mxu0 %v2529
      %2691 = vmatpush.bf16.msra.mxu0 %v2527
      %2692 = vmatpush.bf16.msra.mxu0 %v2525
      %2693 = vmatpush.bf16.msra.mxu0 %v2523
      %2694 = vmatpush.bf16.msra.mxu0 %v2521
      %2695 = vmatpush.bf16.msra.mxu0 %v2519
      %2696 = vmatmul.bf16.gmra.mxu0 %v2252
      %v2697 = vpop.f32.mrf.mxu0
      %v2698 = vadd.f32 %v2669, %v2697
      %v2699 = vpop.f32.mrf.mxu0
      %v2700 = vadd.f32 %v2671, %v2699
      %2701 = vmatmul.bf16.gmra.mxu0 %v2257
      %v2702 = vpop.f32.mrf.mxu0
      %v2703 = vadd.f32 %v2674, %v2702
      %v2704 = vpop.f32.mrf.mxu0
      %v2705 = vadd.f32 %v2676, %v2704
      %2706 = vmatmul.bf16.gmra.mxu0 %v2262
      %v2707 = vpop.f32.mrf.mxu0
      %v2708 = vadd.f32 %v2679, %v2707
      %v2709 = vpop.f32.mrf.mxu0
      %v2710 = vadd.f32 %v2681, %v2709
      %2711 = vmatmul.bf16.gmra.mxu0 %v2267
      %v2712 = vpop.f32.mrf.mxu0
      %v2713 = vadd.f32 %v2684, %v2712
      %v2714 = vpop.f32.mrf.mxu0
      %v2715 = vadd.f32 %v2686, %v2714
      %2716 = vdwg.mxu0
      %2717 = vmatpush.bf16.msra.mxu0 %v2549
      %2718 = vmatpush.bf16.msra.mxu0 %v2547
      %2719 = vmatpush.bf16.msra.mxu0 %v2545
      %2720 = vmatpush.bf16.msra.mxu0 %v2543
      %2721 = vmatpush.bf16.msra.mxu0 %v2541
      %2722 = vmatpush.bf16.msra.mxu0 %v2539
      %2723 = vmatpush.bf16.msra.mxu0 %v2537
      %2724 = vmatpush.bf16.msra.mxu0 %v2535
      %2725 = vmatmul.bf16.gmra.mxu0 %v2253
      %v2726 = vpop.f32.mrf.mxu0
      %v2727 = vadd.f32 %v2698, %v2726
      %v2728 = vpop.f32.mrf.mxu0
      %v2729 = vadd.f32 %v2700, %v2728
      %2730 = vmatmul.bf16.gmra.mxu0 %v2258
      %v2731 = vpop.f32.mrf.mxu0
      %v2732 = vadd.f32 %v2703, %v2731
      %v2733 = vpop.f32.mrf.mxu0
      %v2734 = vadd.f32 %v2705, %v2733
      %2735 = vmatmul.bf16.gmra.mxu0 %v2263
      %v2736 = vpop.f32.mrf.mxu0
      %v2737 = vadd.f32 %v2708, %v2736
      %v2738 = vpop.f32.mrf.mxu0
      %v2739 = vadd.f32 %v2710, %v2738
      %2740 = vmatmul.bf16.gmra.mxu0 %v2268
      %v2741 = vpop.f32.mrf.mxu0
      %v2742 = vadd.f32 %v2713, %v2741
      %v2743 = vpop.f32.mrf.mxu0
      %v2744 = vadd.f32 %v2715, %v2743
      %2745 = vdwg.mxu0
      %2746 = vmatpush.bf16.msra.mxu0 %v2565
      %2747 = vmatpush.bf16.msra.mxu0 %v2563
      %2748 = vmatpush.bf16.msra.mxu0 %v2561
      %2749 = vmatpush.bf16.msra.mxu0 %v2559
      %2750 = vmatpush.bf16.msra.mxu0 %v2557
      %2751 = vmatpush.bf16.msra.mxu0 %v2555
      %2752 = vmatpush.bf16.msra.mxu0 %v2553
      %2753 = vmatpush.bf16.msra.mxu0 %v2551
      %2754 = vmatmul.bf16.gmra.mxu0 %v2254
      %v2755 = vpop.f32.mrf.mxu0
      %v2756 = vadd.f32 %v2727, %v2755
      %v2757 = vpop.f32.mrf.mxu0
      %v2758 = vadd.f32 %v2729, %v2757
      %2759 = vmatmul.bf16.gmra.mxu0 %v2259
      %v2760 = vpop.f32.mrf.mxu0
      %v2761 = vadd.f32 %v2732, %v2760
      %v2762 = vpop.f32.mrf.mxu0
      %v2763 = vadd.f32 %v2734, %v2762
      %2764 = vmatmul.bf16.gmra.mxu0 %v2264
      %v2765 = vpop.f32.mrf.mxu0
      %v2766 = vadd.f32 %v2737, %v2765
      %v2767 = vpop.f32.mrf.mxu0
      %v2768 = vadd.f32 %v2739, %v2767
      %2769 = vmatmul.bf16.gmra.mxu0 %v2269
      %v2770 = vpop.f32.mrf.mxu0
      %v2771 = vadd.f32 %v2742, %v2770
      %v2772 = vpop.f32.mrf.mxu0
      %v2773 = vadd.f32 %v2744, %v2772
      %2774 = vdwg.mxu0
      %2775 = vmatpush.bf16.msra.mxu0 0
      %2776 = vmatpush.bf16.msra.mxu0 0
      %2777 = vmatpush.bf16.msra.mxu0 0
      %2778 = vmatpush.bf16.msra.mxu0 0
      %2779 = vmatpush.bf16.msra.mxu0 %v2573
      %2780 = vmatpush.bf16.msra.mxu0 %v2571
      %2781 = vmatpush.bf16.msra.mxu0 %v2569
      %2782 = vmatpush.bf16.msra.mxu0 %v2567
      %2783 = vmatmul.bf16.gmra.mxu0 %v2648
      %v2784 = vpop.f32.mrf.mxu0
      %v2785 = vadd.f32 %v2756, %v2784
      %v2786 = vpop.f32.mrf.mxu0
      %v2787 = vadd.f32 %v2758, %v2786
      %2788 = vmatmul.bf16.gmra.mxu0 %v2651
      %v2789 = vpop.f32.mrf.mxu0
      %v2790 = vadd.f32 %v2761, %v2789
      %v2791 = vpop.f32.mrf.mxu0
      %v2792 = vadd.f32 %v2763, %v2791
      %2793 = vmatmul.bf16.gmra.mxu0 %v2654
      %v2794 = vpop.f32.mrf.mxu0
      %v2795 = vadd.f32 %v2766, %v2794
      %v2796 = vpop.f32.mrf.mxu0
      %v2797 = vadd.f32 %v2768, %v2796
      %2798 = vmatmul.bf16.gmra.mxu0 %v2657
      %v2799 = vpop.f32.mrf.mxu0
      %v2800 = vadd.f32 %v2771, %v2799
      %v2801 = vpop.f32.mrf.mxu0
      %v2802 = vadd.f32 %v2773, %v2801
      %2803 = vdwg.mxu0
      %2804 = vmatpush.bf16.msra.mxu0 %v2518
      %2805 = vmatpush.bf16.msra.mxu0 %v2516
      %2806 = vmatpush.bf16.msra.mxu0 %v2514
      %2807 = vmatpush.bf16.msra.mxu0 %v2512
      %2808 = vmatpush.bf16.msra.mxu0 %v2510
      %2809 = vmatpush.bf16.msra.mxu0 %v2508
      %2810 = vmatpush.bf16.msra.mxu0 %v2506
      %2811 = vmatpush.bf16.msra.mxu0 %v2504
      %2812 = vmatmul.bf16.gmra.mxu0 %v2251
      %v2813 = vpop.f32.mrf.mxu0
      %v2814 = vadd.f32 %v2184, %v2813
      %v2815 = vpop.f32.mrf.mxu0
      %v2816 = vadd.f32 %v2184, %v2815
      %2817 = vmatmul.bf16.gmra.mxu0 %v2256
      %v2818 = vpop.f32.mrf.mxu0
      %v2819 = vadd.f32 %v2184, %v2818
      %v2820 = vpop.f32.mrf.mxu0
      %v2821 = vadd.f32 %v2184, %v2820
      %2822 = vmatmul.bf16.gmra.mxu0 %v2261
      %v2823 = vpop.f32.mrf.mxu0
      %v2824 = vadd.f32 %v2184, %v2823
      %v2825 = vpop.f32.mrf.mxu0
      %v2826 = vadd.f32 %v2184, %v2825
      %2827 = vmatmul.bf16.gmra.mxu0 %v2266
      %v2828 = vpop.f32.mrf.mxu0
      %v2829 = vadd.f32 %v2184, %v2828
      %v2830 = vpop.f32.mrf.mxu0
      %v2831 = vadd.f32 %v2184, %v2830
      %2832 = vdwg.mxu0
      %2833 = vmatpush.bf16.msra.mxu0 %v2534
      %2834 = vmatpush.bf16.msra.mxu0 %v2532
      %2835 = vmatpush.bf16.msra.mxu0 %v2530
      %2836 = vmatpush.bf16.msra.mxu0 %v2528
      %2837 = vmatpush.bf16.msra.mxu0 %v2526
      %2838 = vmatpush.bf16.msra.mxu0 %v2524
      %2839 = vmatpush.bf16.msra.mxu0 %v2522
      %2840 = vmatpush.bf16.msra.mxu0 %v2520
      %2841 = vmatmul.bf16.gmra.mxu0 %v2252
      %v2842 = vpop.f32.mrf.mxu0
      %v2843 = vadd.f32 %v2814, %v2842
      %v2844 = vpop.f32.mrf.mxu0
      %v2845 = vadd.f32 %v2816, %v2844
      %2846 = vmatmul.bf16.gmra.mxu0 %v2257
      %v2847 = vpop.f32.mrf.mxu0
      %v2848 = vadd.f32 %v2819, %v2847
      %v2849 = vpop.f32.mrf.mxu0
      %v2850 = vadd.f32 %v2821, %v2849
      %2851 = vmatmul.bf16.gmra.mxu0 %v2262
      %v2852 = vpop.f32.mrf.mxu0
      %v2853 = vadd.f32 %v2824, %v2852
      %v2854 = vpop.f32.mrf.mxu0
      %v2855 = vadd.f32 %v2826, %v2854
      %2856 = vmatmul.bf16.gmra.mxu0 %v2267
      %v2857 = vpop.f32.mrf.mxu0
      %v2858 = vadd.f32 %v2829, %v2857
      %v2859 = vpop.f32.mrf.mxu0
      %v2860 = vadd.f32 %v2831, %v2859
      %2861 = vdwg.mxu0
      %2862 = vmatpush.bf16.msra.mxu0 %v2550
      %2863 = vmatpush.bf16.msra.mxu0 %v2548
      %2864 = vmatpush.bf16.msra.mxu0 %v2546
      %2865 = vmatpush.bf16.msra.mxu0 %v2544
      %2866 = vmatpush.bf16.msra.mxu0 %v2542
      %2867 = vmatpush.bf16.msra.mxu0 %v2540
      %2868 = vmatpush.bf16.msra.mxu0 %v2538
      %2869 = vmatpush.bf16.msra.mxu0 %v2536
      %2870 = vmatmul.bf16.gmra.mxu0 %v2253
      %v2871 = vpop.f32.mrf.mxu0
      %v2872 = vadd.f32 %v2843, %v2871
      %v2873 = vpop.f32.mrf.mxu0
      %v2874 = vadd.f32 %v2845, %v2873
      %2875 = vmatmul.bf16.gmra.mxu0 %v2258
      %v2876 = vpop.f32.mrf.mxu0
      %v2877 = vadd.f32 %v2848, %v2876
      %v2878 = vpop.f32.mrf.mxu0
      %v2879 = vadd.f32 %v2850, %v2878
      %2880 = vmatmul.bf16.gmra.mxu0 %v2263
      %v2881 = vpop.f32.mrf.mxu0
      %v2882 = vadd.f32 %v2853, %v2881
      %v2883 = vpop.f32.mrf.mxu0
      %v2884 = vadd.f32 %v2855, %v2883
      %2885 = vmatmul.bf16.gmra.mxu0 %v2268
      %v2886 = vpop.f32.mrf.mxu0
      %v2887 = vadd.f32 %v2858, %v2886
      %v2888 = vpop.f32.mrf.mxu0
      %v2889 = vadd.f32 %v2860, %v2888
      %2890 = vdwg.mxu0
      %2891 = vmatpush.bf16.msra.mxu0 %v2566
      %2892 = vmatpush.bf16.msra.mxu0 %v2564
      %2893 = vmatpush.bf16.msra.mxu0 %v2562
      %2894 = vmatpush.bf16.msra.mxu0 %v2560
      %2895 = vmatpush.bf16.msra.mxu0 %v2558
      %2896 = vmatpush.bf16.msra.mxu0 %v2556
      %2897 = vmatpush.bf16.msra.mxu0 %v2554
      %2898 = vmatpush.bf16.msra.mxu0 %v2552
      %2899 = vmatmul.bf16.gmra.mxu0 %v2254
      %v2900 = vpop.f32.mrf.mxu0
      %v2901 = vadd.f32 %v2872, %v2900
      %v2902 = vpop.f32.mrf.mxu0
      %v2903 = vadd.f32 %v2874, %v2902
      %2904 = vmatmul.bf16.gmra.mxu0 %v2259
      %v2905 = vpop.f32.mrf.mxu0
      %v2906 = vadd.f32 %v2877, %v2905
      %v2907 = vpop.f32.mrf.mxu0
      %v2908 = vadd.f32 %v2879, %v2907
      %2909 = vmatmul.bf16.gmra.mxu0 %v2264
      %v2910 = vpop.f32.mrf.mxu0
      %v2911 = vadd.f32 %v2882, %v2910
      %v2912 = vpop.f32.mrf.mxu0
      %v2913 = vadd.f32 %v2884, %v2912
      %2914 = vmatmul.bf16.gmra.mxu0 %v2269
      %v2915 = vpop.f32.mrf.mxu0
      %v2916 = vadd.f32 %v2887, %v2915
      %v2917 = vpop.f32.mrf.mxu0
      %v2918 = vadd.f32 %v2889, %v2917
      %2919 = vdwg.mxu0
      %2920 = vmatpush.bf16.msra.mxu0 0
      %2921 = vmatpush.bf16.msra.mxu0 0
      %2922 = vmatpush.bf16.msra.mxu0 0
      %2923 = vmatpush.bf16.msra.mxu0 0
      %2924 = vmatpush.bf16.msra.mxu0 %v2574
      %2925 = vmatpush.bf16.msra.mxu0 %v2572
      %2926 = vmatpush.bf16.msra.mxu0 %v2570
      %2927 = vmatpush.bf16.msra.mxu0 %v2568
      %2928 = vmatmul.bf16.gmra.mxu0 %v2648
      %v2929 = vpop.f32.mrf.mxu0
      %v2930 = vadd.f32 %v2901, %v2929
      %v2931 = vpop.f32.mrf.mxu0
      %v2932 = vadd.f32 %v2903, %v2931
      %2933 = vmatmul.bf16.gmra.mxu0 %v2651
      %v2934 = vpop.f32.mrf.mxu0
      %v2935 = vadd.f32 %v2906, %v2934
      %v2936 = vpop.f32.mrf.mxu0
      %v2937 = vadd.f32 %v2908, %v2936
      %2938 = vmatmul.bf16.gmra.mxu0 %v2654
      %v2939 = vpop.f32.mrf.mxu0
      %v2940 = vadd.f32 %v2911, %v2939
      %v2941 = vpop.f32.mrf.mxu0
      %v2942 = vadd.f32 %v2913, %v2941
      %2943 = vmatmul.bf16.gmra.mxu0 %v2657
      %v2944 = vpop.f32.mrf.mxu0
      %v2945 = vadd.f32 %v2916, %v2944
      %v2946 = vpop.f32.mrf.mxu0
      %v2947 = vadd.f32 %v2918, %v2946
      %2948 = vdwg.mxu0
      %s2949 = scalar_lea.vmem [#allocation3], 16
      %2950 = vst.msk [vmem:[%s2949 + $0x1] sm:$0xff] %vm334, %v2785
      %2951 = vst.msk [vmem:[%s2949 + $0x11] sm:$0xff] %vm334, %v2787
      %2952 = vst.msk [vmem:[%s2949 + $0x21] sm:$0xff] %vm334, %v2790
      %2953 = vst.msk [vmem:[%s2949 + $0x31] sm:$0xff] %vm334, %v2792
      %2954 = vst.msk [vmem:[%s2949 + $0x41] sm:$0xff] %vm334, %v2795
      %2955 = vst.msk [vmem:[%s2949 + $0x51] sm:$0xff] %vm334, %v2797
      %2956 = vst.msk [vmem:[%s2949 + $0x61] sm:$0xff] %vm334, %v2800
      %2957 = vst.msk [vmem:[%s2949 + $0x71] sm:$0xff] %vm334, %v2802
      %2966 = vrot.lane.b32.xlu0 %v2785, 64
      %v2967 = vpop.permute.xlu0 %2966
      %2968 = vrot.lane.b32.xlu0 %v2787, 64
      %v2969 = vpop.permute.xlu0 %2968
      %2970 = vrot.lane.b32.xlu0 %v2790, 64
      %v2971 = vpop.permute.xlu0 %2970
      %2972 = vrot.lane.b32.xlu0 %v2792, 64
      %v2973 = vpop.permute.xlu0 %2972
      %2974 = vrot.lane.b32.xlu0 %v2795, 64
      %v2975 = vpop.permute.xlu0 %2974
      %2976 = vrot.lane.b32.xlu0 %v2797, 64
      %v2977 = vpop.permute.xlu0 %2976
      %2978 = vrot.lane.b32.xlu0 %v2800, 64
      %v2979 = vpop.permute.xlu0 %2978
      %2980 = vrot.lane.b32.xlu0 %v2802, 64
      %v2981 = vpop.permute.xlu0 %2980
      %s2990 = scalar_lea.vmem [#allocation3], 176
      %2991 = vst.msk [vmem:[%s2990 + $0x1] sm:$0xff] %vm334, %v2967
      %2992 = vst.msk [vmem:[%s2990 + $0x11] sm:$0xff] %vm334, %v2969
      %2993 = vst.msk [vmem:[%s2990 + $0x21] sm:$0xff] %vm334, %v2971
      %2994 = vst.msk [vmem:[%s2990 + $0x31] sm:$0xff] %vm334, %v2973
      %2995 = vst.msk [vmem:[%s2990 + $0x41] sm:$0xff] %vm334, %v2975
      %2996 = vst.msk [vmem:[%s2990 + $0x51] sm:$0xff] %vm334, %v2977
      %2997 = vst.msk [vmem:[%s2990 + $0x61] sm:$0xff] %vm334, %v2979
      %2998 = vst.msk [vmem:[%s2990 + $0x71] sm:$0xff] %vm334, %v2981
      %s2999 = scalar_lea.vmem [#allocation3], 336
      %3000 = vst.msk [vmem:[%s2999 + $0x1] sm:$0xff] %vm334, %v2930
      %3001 = vst.msk [vmem:[%s2999 + $0x11] sm:$0xff] %vm334, %v2932
      %3002 = vst.msk [vmem:[%s2999 + $0x21] sm:$0xff] %vm334, %v2935
      %3003 = vst.msk [vmem:[%s2999 + $0x31] sm:$0xff] %vm334, %v2937
      %3004 = vst.msk [vmem:[%s2999 + $0x41] sm:$0xff] %vm334, %v2940
      %3005 = vst.msk [vmem:[%s2999 + $0x51] sm:$0xff] %vm334, %v2942
      %3006 = vst.msk [vmem:[%s2999 + $0x61] sm:$0xff] %vm334, %v2945
      %3007 = vst.msk [vmem:[%s2999 + $0x71] sm:$0xff] %vm334, %v2947
      %3016 = vrot.lane.b32.xlu0 %v2930, 64
      %v3017 = vpop.permute.xlu0 %3016
      %3018 = vrot.lane.b32.xlu0 %v2932, 64
      %v3019 = vpop.permute.xlu0 %3018
      %3020 = vrot.lane.b32.xlu0 %v2935, 64
      %v3021 = vpop.permute.xlu0 %3020
      %3022 = vrot.lane.b32.xlu0 %v2937, 64
      %v3023 = vpop.permute.xlu0 %3022
      %3024 = vrot.lane.b32.xlu0 %v2940, 64
      %v3025 = vpop.permute.xlu0 %3024
      %3026 = vrot.lane.b32.xlu0 %v2942, 64
      %v3027 = vpop.permute.xlu0 %3026
      %3028 = vrot.lane.b32.xlu0 %v2945, 64
      %v3029 = vpop.permute.xlu0 %3028
      %3030 = vrot.lane.b32.xlu0 %v2947, 64
      %v3031 = vpop.permute.xlu0 %3030
      %s3040 = scalar_lea.vmem [#allocation3], 496
      %3041 = vst.msk [vmem:[%s3040 + $0x1] sm:$0xff] %vm334, %v3017
      %3042 = vst.msk [vmem:[%s3040 + $0x11] sm:$0xff] %vm334, %v3019
      %3043 = vst.msk [vmem:[%s3040 + $0x21] sm:$0xff] %vm334, %v3021
      %3044 = vst.msk [vmem:[%s3040 + $0x31] sm:$0xff] %vm334, %v3023
      %3045 = vst.msk [vmem:[%s3040 + $0x41] sm:$0xff] %vm334, %v3025
      %3046 = vst.msk [vmem:[%s3040 + $0x51] sm:$0xff] %vm334, %v3027
      %3047 = vst.msk [vmem:[%s3040 + $0x61] sm:$0xff] %vm334, %v3029
      %3048 = vst.msk [vmem:[%s3040 + $0x71] sm:$0xff] %vm334, %v3031
      %v3049 = vld [vmem:[%s439] sm:$0xff]
      %v3050 = vld [vmem:[%s439 + $0x10] sm:$0xff]
      %v3051 = vld [vmem:[%s439 + $0x20] sm:$0xff]
      %v3052 = vld [vmem:[%s439 + $0x30] sm:$0xff]
      %v3053 = vld [vmem:[%s439 + $0x40] sm:$0xff]
      %v3054 = vld [vmem:[%s439 + $0x50] sm:$0xff]
      %v3055 = vld [vmem:[%s439 + $0x60] sm:$0xff]
      %v3056 = vld [vmem:[%s439 + $0x70] sm:$0xff]
      %v3057 = vpack.c.bf16 %v3049, %v3049
      %v3058 = vpack.c.bf16 %v3050, %v3050
      %v3059 = vpack.c.bf16 %v3051, %v3051
      %v3060 = vpack.c.bf16 %v3052, %v3052
      %v3061 = vpack.c.bf16 %v3053, %v3053
      %v3062 = vpack.c.bf16 %v3054, %v3054
      %v3063 = vpack.c.bf16 %v3055, %v3055
      %v3064 = vpack.c.bf16 %v3056, %v3056
      %3065 = vst.msk [vmem:[#allocation4] sm:$0xf] %vm829, %v3057
      %3066 = vst.msk [vmem:[#allocation4 + $0x14] sm:$0xf] %vm829, %v3058
      %3067 = vst.msk [vmem:[#allocation4 + $0x28] sm:$0xf] %vm829, %v3059
      %3068 = vst.msk [vmem:[#allocation4 + $0x3c] sm:$0xf] %vm829, %v3060
      %3069 = vst.msk [vmem:[#allocation4 + $0x50] sm:$0xf] %vm829, %v3061
      %3070 = vst.msk [vmem:[#allocation4 + $0x64] sm:$0xf] %vm829, %v3062
      %3071 = vst.msk [vmem:[#allocation4 + $0x78] sm:$0xf] %vm829, %v3063
      %3072 = vst.msk [vmem:[#allocation4 + $0x8c] sm:$0xf] %vm829, %v3064
      %v3073 = vld [vmem:[%s413 + $0x1] sm:$0xff]
      %v3074 = vld [vmem:[%s413 + $0x11] sm:$0xff]
      %v3075 = vld [vmem:[%s413 + $0x21] sm:$0xff]
      %v3076 = vld [vmem:[%s413 + $0x31] sm:$0xff]
      %v3077 = vld [vmem:[%s413 + $0x41] sm:$0xff]
      %v3078 = vld [vmem:[%s413 + $0x51] sm:$0xff]
      %v3079 = vld [vmem:[%s413 + $0x61] sm:$0xff]
      %v3080 = vld [vmem:[%s413 + $0x71] sm:$0xff]
      %v3081 = vpack.c.bf16 %v3073, %v3073
      %v3082 = vpack.c.bf16 %v3074, %v3074
      %v3083 = vpack.c.bf16 %v3075, %v3075
      %v3084 = vpack.c.bf16 %v3076, %v3076
      %v3085 = vpack.c.bf16 %v3077, %v3077
      %v3086 = vpack.c.bf16 %v3078, %v3078
      %v3087 = vpack.c.bf16 %v3079, %v3079
      %v3088 = vpack.c.bf16 %v3080, %v3080
      %3097 = vrot.lane.b32.xlu0 %v3081, 64
      %v3098 = vpop.permute.xlu0 %3097
      %3099 = vrot.lane.b32.xlu0 %v3082, 64
      %v3100 = vpop.permute.xlu0 %3099
      %3101 = vrot.lane.b32.xlu0 %v3083, 64
      %v3102 = vpop.permute.xlu0 %3101
      %3103 = vrot.lane.b32.xlu0 %v3084, 64
      %v3104 = vpop.permute.xlu0 %3103
      %3105 = vrot.lane.b32.xlu0 %v3085, 64
      %v3106 = vpop.permute.xlu0 %3105
      %3107 = vrot.lane.b32.xlu0 %v3086, 64
      %v3108 = vpop.permute.xlu0 %3107
      %3109 = vrot.lane.b32.xlu0 %v3087, 64
      %v3110 = vpop.permute.xlu0 %3109
      %3111 = vrot.lane.b32.xlu0 %v3088, 64
      %v3112 = vpop.permute.xlu0 %3111
      %3121 = vst.msk [vmem:[#allocation4] sm:$0xf] %vm886, %v3098
      %3122 = vst.msk [vmem:[#allocation4 + $0x14] sm:$0xf] %vm886, %v3100
      %3123 = vst.msk [vmem:[#allocation4 + $0x28] sm:$0xf] %vm886, %v3102
      %3124 = vst.msk [vmem:[#allocation4 + $0x3c] sm:$0xf] %vm886, %v3104
      %3125 = vst.msk [vmem:[#allocation4 + $0x50] sm:$0xf] %vm886, %v3106
      %3126 = vst.msk [vmem:[#allocation4 + $0x64] sm:$0xf] %vm886, %v3108
      %3127 = vst.msk [vmem:[#allocation4 + $0x78] sm:$0xf] %vm886, %v3110
      %3128 = vst.msk [vmem:[#allocation4 + $0x8c] sm:$0xf] %vm886, %v3112
      %v3129 = vld [vmem:[%s439 + $0x1] sm:$0xff]
      %v3130 = vld [vmem:[%s439 + $0x11] sm:$0xff]
      %v3131 = vld [vmem:[%s439 + $0x21] sm:$0xff]
      %v3132 = vld [vmem:[%s439 + $0x31] sm:$0xff]
      %v3133 = vld [vmem:[%s439 + $0x41] sm:$0xff]
      %v3134 = vld [vmem:[%s439 + $0x51] sm:$0xff]
      %v3135 = vld [vmem:[%s439 + $0x61] sm:$0xff]
      %v3136 = vld [vmem:[%s439 + $0x71] sm:$0xff]
      %v3137 = vpack.c.bf16 %v3129, %v3129
      %v3138 = vpack.c.bf16 %v3130, %v3130
      %v3139 = vpack.c.bf16 %v3131, %v3131
      %v3140 = vpack.c.bf16 %v3132, %v3132
      %v3141 = vpack.c.bf16 %v3133, %v3133
      %v3142 = vpack.c.bf16 %v3134, %v3134
      %v3143 = vpack.c.bf16 %v3135, %v3135
      %v3144 = vpack.c.bf16 %v3136, %v3136
      %3145 = vst.msk [vmem:[#allocation4 + $0x4] sm:$0xf] %vm829, %v3137
      %3146 = vst.msk [vmem:[#allocation4 + $0x18] sm:$0xf] %vm829, %v3138
      %3147 = vst.msk [vmem:[#allocation4 + $0x2c] sm:$0xf] %vm829, %v3139
      %3148 = vst.msk [vmem:[#allocation4 + $0x40] sm:$0xf] %vm829, %v3140
      %3149 = vst.msk [vmem:[#allocation4 + $0x54] sm:$0xf] %vm829, %v3141
      %3150 = vst.msk [vmem:[#allocation4 + $0x68] sm:$0xf] %vm829, %v3142
      %3151 = vst.msk [vmem:[#allocation4 + $0x7c] sm:$0xf] %vm829, %v3143
      %3152 = vst.msk [vmem:[#allocation4 + $0x90] sm:$0xf] %vm829, %v3144
      %v3153 = vld [vmem:[%s2990] sm:$0xff]
      %v3154 = vld [vmem:[%s2990 + $0x10] sm:$0xff]
      %v3155 = vld [vmem:[%s2990 + $0x20] sm:$0xff]
      %v3156 = vld [vmem:[%s2990 + $0x30] sm:$0xff]
      %v3157 = vld [vmem:[%s2990 + $0x40] sm:$0xff]
      %v3158 = vld [vmem:[%s2990 + $0x50] sm:$0xff]
      %v3159 = vld [vmem:[%s2990 + $0x60] sm:$0xff]
      %v3160 = vld [vmem:[%s2990 + $0x70] sm:$0xff]
      %v3161 = vpack.c.bf16 %v3153, %v3153
      %v3162 = vpack.c.bf16 %v3154, %v3154
      %v3163 = vpack.c.bf16 %v3155, %v3155
      %v3164 = vpack.c.bf16 %v3156, %v3156
      %v3165 = vpack.c.bf16 %v3157, %v3157
      %v3166 = vpack.c.bf16 %v3158, %v3158
      %v3167 = vpack.c.bf16 %v3159, %v3159
      %v3168 = vpack.c.bf16 %v3160, %v3160
      %3177 = vrot.lane.b32.xlu0 %v3161, 64
      %v3178 = vpop.permute.xlu0 %3177
      %3179 = vrot.lane.b32.xlu0 %v3162, 64
      %v3180 = vpop.permute.xlu0 %3179
      %3181 = vrot.lane.b32.xlu0 %v3163, 64
      %v3182 = vpop.permute.xlu0 %3181
      %3183 = vrot.lane.b32.xlu0 %v3164, 64
      %v3184 = vpop.permute.xlu0 %3183
      %3185 = vrot.lane.b32.xlu0 %v3165, 64
      %v3186 = vpop.permute.xlu0 %3185
      %3187 = vrot.lane.b32.xlu0 %v3166, 64
      %v3188 = vpop.permute.xlu0 %3187
      %3189 = vrot.lane.b32.xlu0 %v3167, 64
      %v3190 = vpop.permute.xlu0 %3189
      %3191 = vrot.lane.b32.xlu0 %v3168, 64
      %v3192 = vpop.permute.xlu0 %3191
      %3201 = vst.msk [vmem:[#allocation4 + $0x4] sm:$0xf] %vm886, %v3178
      %3202 = vst.msk [vmem:[#allocation4 + $0x18] sm:$0xf] %vm886, %v3180
      %3203 = vst.msk [vmem:[#allocation4 + $0x2c] sm:$0xf] %vm886, %v3182
      %3204 = vst.msk [vmem:[#allocation4 + $0x40] sm:$0xf] %vm886, %v3184
      %3205 = vst.msk [vmem:[#allocation4 + $0x54] sm:$0xf] %vm886, %v3186
      %3206 = vst.msk [vmem:[#allocation4 + $0x68] sm:$0xf] %vm886, %v3188
      %3207 = vst.msk [vmem:[#allocation4 + $0x7c] sm:$0xf] %vm886, %v3190
      %3208 = vst.msk [vmem:[#allocation4 + $0x90] sm:$0xf] %vm886, %v3192
      %v3209 = vld [vmem:[%s2949 + $0x1] sm:$0xff]
      %v3210 = vld [vmem:[%s2949 + $0x11] sm:$0xff]
      %v3211 = vld [vmem:[%s2949 + $0x21] sm:$0xff]
      %v3212 = vld [vmem:[%s2949 + $0x31] sm:$0xff]
      %v3213 = vld [vmem:[%s2949 + $0x41] sm:$0xff]
      %v3214 = vld [vmem:[%s2949 + $0x51] sm:$0xff]
      %v3215 = vld [vmem:[%s2949 + $0x61] sm:$0xff]
      %v3216 = vld [vmem:[%s2949 + $0x71] sm:$0xff]
      %v3217 = vpack.c.bf16 %v3209, %v3209
      %v3218 = vpack.c.bf16 %v3210, %v3210
      %v3219 = vpack.c.bf16 %v3211, %v3211
      %v3220 = vpack.c.bf16 %v3212, %v3212
      %v3221 = vpack.c.bf16 %v3213, %v3213
      %v3222 = vpack.c.bf16 %v3214, %v3214
      %v3223 = vpack.c.bf16 %v3215, %v3215
      %v3224 = vpack.c.bf16 %v3216, %v3216
      %3225 = vst.msk [vmem:[#allocation4 + $0x8] sm:$0xf] %vm829, %v3217
      %3226 = vst.msk [vmem:[#allocation4 + $0x1c] sm:$0xf] %vm829, %v3218
      %3227 = vst.msk [vmem:[#allocation4 + $0x30] sm:$0xf] %vm829, %v3219
      %3228 = vst.msk [vmem:[#allocation4 + $0x44] sm:$0xf] %vm829, %v3220
      %3229 = vst.msk [vmem:[#allocation4 + $0x58] sm:$0xf] %vm829, %v3221
      %3230 = vst.msk [vmem:[#allocation4 + $0x6c] sm:$0xf] %vm829, %v3222
      %3231 = vst.msk [vmem:[#allocation4 + $0x80] sm:$0xf] %vm829, %v3223
      %3232 = vst.msk [vmem:[#allocation4 + $0x94] sm:$0xf] %vm829, %v3224
      %v3233 = vld [vmem:[%s2990 + $0x1] sm:$0xff]
      %v3234 = vld [vmem:[%s2990 + $0x11] sm:$0xff]
      %v3235 = vld [vmem:[%s2990 + $0x21] sm:$0xff]
      %v3236 = vld [vmem:[%s2990 + $0x31] sm:$0xff]
      %v3237 = vld [vmem:[%s2990 + $0x41] sm:$0xff]
      %v3238 = vld [vmem:[%s2990 + $0x51] sm:$0xff]
      %v3239 = vld [vmem:[%s2990 + $0x61] sm:$0xff]
      %v3240 = vld [vmem:[%s2990 + $0x71] sm:$0xff]
      %v3241 = vpack.c.bf16 %v3233, %v3233
      %v3242 = vpack.c.bf16 %v3234, %v3234
      %v3243 = vpack.c.bf16 %v3235, %v3235
      %v3244 = vpack.c.bf16 %v3236, %v3236
      %v3245 = vpack.c.bf16 %v3237, %v3237
      %v3246 = vpack.c.bf16 %v3238, %v3238
      %v3247 = vpack.c.bf16 %v3239, %v3239
      %v3248 = vpack.c.bf16 %v3240, %v3240
      %3257 = vrot.lane.b32.xlu0 %v3241, 64
      %v3258 = vpop.permute.xlu0 %3257
      %3259 = vrot.lane.b32.xlu0 %v3242, 64
      %v3260 = vpop.permute.xlu0 %3259
      %3261 = vrot.lane.b32.xlu0 %v3243, 64
      %v3262 = vpop.permute.xlu0 %3261
      %3263 = vrot.lane.b32.xlu0 %v3244, 64
      %v3264 = vpop.permute.xlu0 %3263
      %3265 = vrot.lane.b32.xlu0 %v3245, 64
      %v3266 = vpop.permute.xlu0 %3265
      %3267 = vrot.lane.b32.xlu0 %v3246, 64
      %v3268 = vpop.permute.xlu0 %3267
      %3269 = vrot.lane.b32.xlu0 %v3247, 64
      %v3270 = vpop.permute.xlu0 %3269
      %3271 = vrot.lane.b32.xlu0 %v3248, 64
      %v3272 = vpop.permute.xlu0 %3271
      %3281 = vst.msk [vmem:[#allocation4 + $0x8] sm:$0xf] %vm886, %v3258
      %3282 = vst.msk [vmem:[#allocation4 + $0x1c] sm:$0xf] %vm886, %v3260
      %3283 = vst.msk [vmem:[#allocation4 + $0x30] sm:$0xf] %vm886, %v3262
      %3284 = vst.msk [vmem:[#allocation4 + $0x44] sm:$0xf] %vm886, %v3264
      %3285 = vst.msk [vmem:[#allocation4 + $0x58] sm:$0xf] %vm886, %v3266
      %3286 = vst.msk [vmem:[#allocation4 + $0x6c] sm:$0xf] %vm886, %v3268
      %3287 = vst.msk [vmem:[#allocation4 + $0x80] sm:$0xf] %vm886, %v3270
      %3288 = vst.msk [vmem:[#allocation4 + $0x94] sm:$0xf] %vm886, %v3272
      %v3289 = vld [vmem:[%s3040] sm:$0xff]
      %v3290 = vld [vmem:[%s3040 + $0x10] sm:$0xff]
      %v3291 = vld [vmem:[%s3040 + $0x20] sm:$0xff]
      %v3292 = vld [vmem:[%s3040 + $0x30] sm:$0xff]
      %v3293 = vld [vmem:[%s3040 + $0x40] sm:$0xff]
      %v3294 = vld [vmem:[%s3040 + $0x50] sm:$0xff]
      %v3295 = vld [vmem:[%s3040 + $0x60] sm:$0xff]
      %v3296 = vld [vmem:[%s3040 + $0x70] sm:$0xff]
      %v3297 = vpack.c.bf16 %v3289, %v3289
      %v3298 = vpack.c.bf16 %v3290, %v3290
      %v3299 = vpack.c.bf16 %v3291, %v3291
      %v3300 = vpack.c.bf16 %v3292, %v3292
      %v3301 = vpack.c.bf16 %v3293, %v3293
      %v3302 = vpack.c.bf16 %v3294, %v3294
      %v3303 = vpack.c.bf16 %v3295, %v3295
      %v3304 = vpack.c.bf16 %v3296, %v3296
      %3305 = vst.msk [vmem:[#allocation4 + $0xc] sm:$0xf] %vm829, %v3297
      %3306 = vst.msk [vmem:[#allocation4 + $0x20] sm:$0xf] %vm829, %v3298
      %3307 = vst.msk [vmem:[#allocation4 + $0x34] sm:$0xf] %vm829, %v3299
      %3308 = vst.msk [vmem:[#allocation4 + $0x48] sm:$0xf] %vm829, %v3300
      %3309 = vst.msk [vmem:[#allocation4 + $0x5c] sm:$0xf] %vm829, %v3301
      %3310 = vst.msk [vmem:[#allocation4 + $0x70] sm:$0xf] %vm829, %v3302
      %3311 = vst.msk [vmem:[#allocation4 + $0x84] sm:$0xf] %vm829, %v3303
      %3312 = vst.msk [vmem:[#allocation4 + $0x98] sm:$0xf] %vm829, %v3304
      %v3313 = vld [vmem:[%s2999 + $0x1] sm:$0xff]
      %v3314 = vld [vmem:[%s2999 + $0x11] sm:$0xff]
      %v3315 = vld [vmem:[%s2999 + $0x21] sm:$0xff]
      %v3316 = vld [vmem:[%s2999 + $0x31] sm:$0xff]
      %v3317 = vld [vmem:[%s2999 + $0x41] sm:$0xff]
      %v3318 = vld [vmem:[%s2999 + $0x51] sm:$0xff]
      %v3319 = vld [vmem:[%s2999 + $0x61] sm:$0xff]
      %v3320 = vld [vmem:[%s2999 + $0x71] sm:$0xff]
      %v3321 = vpack.c.bf16 %v3313, %v3313
      %v3322 = vpack.c.bf16 %v3314, %v3314
      %v3323 = vpack.c.bf16 %v3315, %v3315
      %v3324 = vpack.c.bf16 %v3316, %v3316
      %v3325 = vpack.c.bf16 %v3317, %v3317
      %v3326 = vpack.c.bf16 %v3318, %v3318
      %v3327 = vpack.c.bf16 %v3319, %v3319
      %v3328 = vpack.c.bf16 %v3320, %v3320
      %3337 = vrot.lane.b32.xlu0 %v3321, 64
      %v3338 = vpop.permute.xlu0 %3337
      %3339 = vrot.lane.b32.xlu0 %v3322, 64
      %v3340 = vpop.permute.xlu0 %3339
      %3341 = vrot.lane.b32.xlu0 %v3323, 64
      %v3342 = vpop.permute.xlu0 %3341
      %3343 = vrot.lane.b32.xlu0 %v3324, 64
      %v3344 = vpop.permute.xlu0 %3343
      %3345 = vrot.lane.b32.xlu0 %v3325, 64
      %v3346 = vpop.permute.xlu0 %3345
      %3347 = vrot.lane.b32.xlu0 %v3326, 64
      %v3348 = vpop.permute.xlu0 %3347
      %3349 = vrot.lane.b32.xlu0 %v3327, 64
      %v3350 = vpop.permute.xlu0 %3349
      %3351 = vrot.lane.b32.xlu0 %v3328, 64
      %v3352 = vpop.permute.xlu0 %3351
      %3361 = vst.msk [vmem:[#allocation4 + $0xc] sm:$0xf] %vm886, %v3338
      %3362 = vst.msk [vmem:[#allocation4 + $0x20] sm:$0xf] %vm886, %v3340
      %3363 = vst.msk [vmem:[#allocation4 + $0x34] sm:$0xf] %vm886, %v3342
      %3364 = vst.msk [vmem:[#allocation4 + $0x48] sm:$0xf] %vm886, %v3344
      %3365 = vst.msk [vmem:[#allocation4 + $0x5c] sm:$0xf] %vm886, %v3346
      %3366 = vst.msk [vmem:[#allocation4 + $0x70] sm:$0xf] %vm886, %v3348
      %3367 = vst.msk [vmem:[#allocation4 + $0x84] sm:$0xf] %vm886, %v3350
      %3368 = vst.msk [vmem:[#allocation4 + $0x98] sm:$0xf] %vm886, %v3352
      %v3369 = vld [vmem:[%s3040 + $0x1] sm:$0xff]
      %v3370 = vld [vmem:[%s3040 + $0x11] sm:$0xff]
      %v3371 = vld [vmem:[%s3040 + $0x21] sm:$0xff]
      %v3372 = vld [vmem:[%s3040 + $0x31] sm:$0xff]
      %v3373 = vld [vmem:[%s3040 + $0x41] sm:$0xff]
      %v3374 = vld [vmem:[%s3040 + $0x51] sm:$0xff]
      %v3375 = vld [vmem:[%s3040 + $0x61] sm:$0xff]
      %v3376 = vld [vmem:[%s3040 + $0x71] sm:$0xff]
      %v3377 = vpack.c.bf16 %v3369, %v3369
      %v3378 = vpack.c.bf16 %v3370, %v3370
      %v3379 = vpack.c.bf16 %v3371, %v3371
      %v3380 = vpack.c.bf16 %v3372, %v3372
      %v3381 = vpack.c.bf16 %v3373, %v3373
      %v3382 = vpack.c.bf16 %v3374, %v3374
      %v3383 = vpack.c.bf16 %v3375, %v3375
      %v3384 = vpack.c.bf16 %v3376, %v3376
      %3385 = vst.msk [vmem:[#allocation4 + $0x10] sm:$0xf] %vm829, %v3377
      %3386 = vst.msk [vmem:[#allocation4 + $0x24] sm:$0xf] %vm829, %v3378
      %3387 = vst.msk [vmem:[#allocation4 + $0x38] sm:$0xf] %vm829, %v3379
      %3388 = vst.msk [vmem:[#allocation4 + $0x4c] sm:$0xf] %vm829, %v3380
      %3389 = vst.msk [vmem:[#allocation4 + $0x60] sm:$0xf] %vm829, %v3381
      %3390 = vst.msk [vmem:[#allocation4 + $0x74] sm:$0xf] %vm829, %v3382
      %3391 = vst.msk [vmem:[#allocation4 + $0x88] sm:$0xf] %vm829, %v3383
      %3392 = vst.msk [vmem:[#allocation4 + $0x9c] sm:$0xf] %vm829, %v3384
      %v3393 = vld [vmem:[%s413 + $0x1] sm:$0xff]
      %v3394 = vld [vmem:[%s413 + $0x11] sm:$0xff]
      %v3395 = vld [vmem:[%s413 + $0x21] sm:$0xff]
      %v3396 = vld [vmem:[%s413 + $0x31] sm:$0xff]
      %v3397 = vld [vmem:[%s413 + $0x41] sm:$0xff]
      %v3398 = vld [vmem:[%s413 + $0x51] sm:$0xff]
      %v3399 = vld [vmem:[%s413 + $0x61] sm:$0xff]
      %v3400 = vld [vmem:[%s413 + $0x71] sm:$0xff]
      %v3401 = vpack.c.bf16 %v3393, %v3393
      %v3402 = vpack.c.bf16 %v3394, %v3394
      %v3403 = vpack.c.bf16 %v3395, %v3395
      %v3404 = vpack.c.bf16 %v3396, %v3396
      %v3405 = vpack.c.bf16 %v3397, %v3397
      %v3406 = vpack.c.bf16 %v3398, %v3398
      %v3407 = vpack.c.bf16 %v3399, %v3399
      %v3408 = vpack.c.bf16 %v3400, %v3400
      %3409 = vst.msk [vmem:[#allocation4 + $0xa0] sm:$0xf] %vm829, %v3401
      %3410 = vst.msk [vmem:[#allocation4 + $0xb4] sm:$0xf] %vm829, %v3402
      %3411 = vst.msk [vmem:[#allocation4 + $0xc8] sm:$0xf] %vm829, %v3403
      %3412 = vst.msk [vmem:[#allocation4 + $0xdc] sm:$0xf] %vm829, %v3404
      %3413 = vst.msk [vmem:[#allocation4 + $0xf0] sm:$0xf] %vm829, %v3405
      %3414 = vst.msk [vmem:[#allocation4 + $0x104] sm:$0xf] %vm829, %v3406
      %3415 = vst.msk [vmem:[#allocation4 + $0x118] sm:$0xf] %vm829, %v3407
      %3416 = vst.msk [vmem:[#allocation4 + $0x12c] sm:$0xf] %vm829, %v3408
      %v3417 = vld [vmem:[%s439 + $0x1] sm:$0xff]
      %v3418 = vld [vmem:[%s439 + $0x11] sm:$0xff]
      %v3419 = vld [vmem:[%s439 + $0x21] sm:$0xff]
      %v3420 = vld [vmem:[%s439 + $0x31] sm:$0xff]
      %v3421 = vld [vmem:[%s439 + $0x41] sm:$0xff]
      %v3422 = vld [vmem:[%s439 + $0x51] sm:$0xff]
      %v3423 = vld [vmem:[%s439 + $0x61] sm:$0xff]
      %v3424 = vld [vmem:[%s439 + $0x71] sm:$0xff]
      %v3425 = vpack.c.bf16 %v3417, %v3417
      %v3426 = vpack.c.bf16 %v3418, %v3418
      %v3427 = vpack.c.bf16 %v3419, %v3419
      %v3428 = vpack.c.bf16 %v3420, %v3420
      %v3429 = vpack.c.bf16 %v3421, %v3421
      %v3430 = vpack.c.bf16 %v3422, %v3422
      %v3431 = vpack.c.bf16 %v3423, %v3423
      %v3432 = vpack.c.bf16 %v3424, %v3424
      %3441 = vrot.lane.b32.xlu0 %v3425, 64
      %v3442 = vpop.permute.xlu0 %3441
      %3443 = vrot.lane.b32.xlu0 %v3426, 64
      %v3444 = vpop.permute.xlu0 %3443
      %3445 = vrot.lane.b32.xlu0 %v3427, 64
      %v3446 = vpop.permute.xlu0 %3445
      %3447 = vrot.lane.b32.xlu0 %v3428, 64
      %v3448 = vpop.permute.xlu0 %3447
      %3449 = vrot.lane.b32.xlu0 %v3429, 64
      %v3450 = vpop.permute.xlu0 %3449
      %3451 = vrot.lane.b32.xlu0 %v3430, 64
      %v3452 = vpop.permute.xlu0 %3451
      %3453 = vrot.lane.b32.xlu0 %v3431, 64
      %v3454 = vpop.permute.xlu0 %3453
      %3455 = vrot.lane.b32.xlu0 %v3432, 64
      %v3456 = vpop.permute.xlu0 %3455
      %3465 = vst.msk [vmem:[#allocation4 + $0xa0] sm:$0xf] %vm886, %v3442
      %3466 = vst.msk [vmem:[#allocation4 + $0xb4] sm:$0xf] %vm886, %v3444
      %3467 = vst.msk [vmem:[#allocation4 + $0xc8] sm:$0xf] %vm886, %v3446
      %3468 = vst.msk [vmem:[#allocation4 + $0xdc] sm:$0xf] %vm886, %v3448
      %3469 = vst.msk [vmem:[#allocation4 + $0xf0] sm:$0xf] %vm886, %v3450
      %3470 = vst.msk [vmem:[#allocation4 + $0x104] sm:$0xf] %vm886, %v3452
      %3471 = vst.msk [vmem:[#allocation4 + $0x118] sm:$0xf] %vm886, %v3454
      %3472 = vst.msk [vmem:[#allocation4 + $0x12c] sm:$0xf] %vm886, %v3456
      %v3473 = vld [vmem:[%s413 + $0x2] sm:$0xff]
      %v3474 = vld [vmem:[%s413 + $0x12] sm:$0xff]
      %v3475 = vld [vmem:[%s413 + $0x22] sm:$0xff]
      %v3476 = vld [vmem:[%s413 + $0x32] sm:$0xff]
      %v3477 = vld [vmem:[%s413 + $0x42] sm:$0xff]
      %v3478 = vld [vmem:[%s413 + $0x52] sm:$0xff]
      %v3479 = vld [vmem:[%s413 + $0x62] sm:$0xff]
      %v3480 = vld [vmem:[%s413 + $0x72] sm:$0xff]
      %v3481 = vpack.c.bf16 %v3473, %v3473
      %v3482 = vpack.c.bf16 %v3474, %v3474
      %v3483 = vpack.c.bf16 %v3475, %v3475
      %v3484 = vpack.c.bf16 %v3476, %v3476
      %v3485 = vpack.c.bf16 %v3477, %v3477
      %v3486 = vpack.c.bf16 %v3478, %v3478
      %v3487 = vpack.c.bf16 %v3479, %v3479
      %v3488 = vpack.c.bf16 %v3480, %v3480
      %3489 = vst.msk [vmem:[#allocation4 + $0xa4] sm:$0xf] %vm829, %v3481
      %3490 = vst.msk [vmem:[#allocation4 + $0xb8] sm:$0xf] %vm829, %v3482
      %3491 = vst.msk [vmem:[#allocation4 + $0xcc] sm:$0xf] %vm829, %v3483
      %3492 = vst.msk [vmem:[#allocation4 + $0xe0] sm:$0xf] %vm829, %v3484
      %3493 = vst.msk [vmem:[#allocation4 + $0xf4] sm:$0xf] %vm829, %v3485
      %3494 = vst.msk [vmem:[#allocation4 + $0x108] sm:$0xf] %vm829, %v3486
      %3495 = vst.msk [vmem:[#allocation4 + $0x11c] sm:$0xf] %vm829, %v3487
      %3496 = vst.msk [vmem:[#allocation4 + $0x130] sm:$0xf] %vm829, %v3488
      %v3497 = vld [vmem:[%s2949 + $0x1] sm:$0xff]
      %v3498 = vld [vmem:[%s2949 + $0x11] sm:$0xff]
      %v3499 = vld [vmem:[%s2949 + $0x21] sm:$0xff]
      %v3500 = vld [vmem:[%s2949 + $0x31] sm:$0xff]
      %v3501 = vld [vmem:[%s2949 + $0x41] sm:$0xff]
      %v3502 = vld [vmem:[%s2949 + $0x51] sm:$0xff]
      %v3503 = vld [vmem:[%s2949 + $0x61] sm:$0xff]
      %v3504 = vld [vmem:[%s2949 + $0x71] sm:$0xff]
      %v3505 = vpack.c.bf16 %v3497, %v3497
      %v3506 = vpack.c.bf16 %v3498, %v3498
      %v3507 = vpack.c.bf16 %v3499, %v3499
      %v3508 = vpack.c.bf16 %v3500, %v3500
      %v3509 = vpack.c.bf16 %v3501, %v3501
      %v3510 = vpack.c.bf16 %v3502, %v3502
      %v3511 = vpack.c.bf16 %v3503, %v3503
      %v3512 = vpack.c.bf16 %v3504, %v3504
      %3521 = vrot.lane.b32.xlu0 %v3505, 64
      %v3522 = vpop.permute.xlu0 %3521
      %3523 = vrot.lane.b32.xlu0 %v3506, 64
      %v3524 = vpop.permute.xlu0 %3523
      %3525 = vrot.lane.b32.xlu0 %v3507, 64
      %v3526 = vpop.permute.xlu0 %3525
      %3527 = vrot.lane.b32.xlu0 %v3508, 64
      %v3528 = vpop.permute.xlu0 %3527
      %3529 = vrot.lane.b32.xlu0 %v3509, 64
      %v3530 = vpop.permute.xlu0 %3529
      %3531 = vrot.lane.b32.xlu0 %v3510, 64
      %v3532 = vpop.permute.xlu0 %3531
      %3533 = vrot.lane.b32.xlu0 %v3511, 64
      %v3534 = vpop.permute.xlu0 %3533
      %3535 = vrot.lane.b32.xlu0 %v3512, 64
      %v3536 = vpop.permute.xlu0 %3535
      %3545 = vst.msk [vmem:[#allocation4 + $0xa4] sm:$0xf] %vm886, %v3522
      %3546 = vst.msk [vmem:[#allocation4 + $0xb8] sm:$0xf] %vm886, %v3524
      %3547 = vst.msk [vmem:[#allocation4 + $0xcc] sm:$0xf] %vm886, %v3526
      %3548 = vst.msk [vmem:[#allocation4 + $0xe0] sm:$0xf] %vm886, %v3528
      %3549 = vst.msk [vmem:[#allocation4 + $0xf4] sm:$0xf] %vm886, %v3530
      %3550 = vst.msk [vmem:[#allocation4 + $0x108] sm:$0xf] %vm886, %v3532
      %3551 = vst.msk [vmem:[#allocation4 + $0x11c] sm:$0xf] %vm886, %v3534
      %3552 = vst.msk [vmem:[#allocation4 + $0x130] sm:$0xf] %vm886, %v3536
      %v3553 = vld [vmem:[%s2990 + $0x1] sm:$0xff]
      %v3554 = vld [vmem:[%s2990 + $0x11] sm:$0xff]
      %v3555 = vld [vmem:[%s2990 + $0x21] sm:$0xff]
      %v3556 = vld [vmem:[%s2990 + $0x31] sm:$0xff]
      %v3557 = vld [vmem:[%s2990 + $0x41] sm:$0xff]
      %v3558 = vld [vmem:[%s2990 + $0x51] sm:$0xff]
      %v3559 = vld [vmem:[%s2990 + $0x61] sm:$0xff]
      %v3560 = vld [vmem:[%s2990 + $0x71] sm:$0xff]
      %v3561 = vpack.c.bf16 %v3553, %v3553
      %v3562 = vpack.c.bf16 %v3554, %v3554
      %v3563 = vpack.c.bf16 %v3555, %v3555
      %v3564 = vpack.c.bf16 %v3556, %v3556
      %v3565 = vpack.c.bf16 %v3557, %v3557
      %v3566 = vpack.c.bf16 %v3558, %v3558
      %v3567 = vpack.c.bf16 %v3559, %v3559
      %v3568 = vpack.c.bf16 %v3560, %v3560
      %3569 = vst.msk [vmem:[#allocation4 + $0xa8] sm:$0xf] %vm829, %v3561
      %3570 = vst.msk [vmem:[#allocation4 + $0xbc] sm:$0xf] %vm829, %v3562
      %3571 = vst.msk [vmem:[#allocation4 + $0xd0] sm:$0xf] %vm829, %v3563
      %3572 = vst.msk [vmem:[#allocation4 + $0xe4] sm:$0xf] %vm829, %v3564
      %3573 = vst.msk [vmem:[#allocation4 + $0xf8] sm:$0xf] %vm829, %v3565
      %3574 = vst.msk [vmem:[#allocation4 + $0x10c] sm:$0xf] %vm829, %v3566
      %3575 = vst.msk [vmem:[#allocation4 + $0x120] sm:$0xf] %vm829, %v3567
      %3576 = vst.msk [vmem:[#allocation4 + $0x134] sm:$0xf] %vm829, %v3568
      %v3577 = vld [vmem:[%s2949 + $0x2] sm:$0xff]
      %v3578 = vld [vmem:[%s2949 + $0x12] sm:$0xff]
      %v3579 = vld [vmem:[%s2949 + $0x22] sm:$0xff]
      %v3580 = vld [vmem:[%s2949 + $0x32] sm:$0xff]
      %v3581 = vld [vmem:[%s2949 + $0x42] sm:$0xff]
      %v3582 = vld [vmem:[%s2949 + $0x52] sm:$0xff]
      %v3583 = vld [vmem:[%s2949 + $0x62] sm:$0xff]
      %v3584 = vld [vmem:[%s2949 + $0x72] sm:$0xff]
      %v3585 = vpack.c.bf16 %v3577, %v3577
      %v3586 = vpack.c.bf16 %v3578, %v3578
      %v3587 = vpack.c.bf16 %v3579, %v3579
      %v3588 = vpack.c.bf16 %v3580, %v3580
      %v3589 = vpack.c.bf16 %v3581, %v3581
      %v3590 = vpack.c.bf16 %v3582, %v3582
      %v3591 = vpack.c.bf16 %v3583, %v3583
      %v3592 = vpack.c.bf16 %v3584, %v3584
      %3601 = vrot.lane.b32.xlu0 %v3585, 64
      %v3602 = vpop.permute.xlu0 %3601
      %3603 = vrot.lane.b32.xlu0 %v3586, 64
      %v3604 = vpop.permute.xlu0 %3603
      %3605 = vrot.lane.b32.xlu0 %v3587, 64
      %v3606 = vpop.permute.xlu0 %3605
      %3607 = vrot.lane.b32.xlu0 %v3588, 64
      %v3608 = vpop.permute.xlu0 %3607
      %3609 = vrot.lane.b32.xlu0 %v3589, 64
      %v3610 = vpop.permute.xlu0 %3609
      %3611 = vrot.lane.b32.xlu0 %v3590, 64
      %v3612 = vpop.permute.xlu0 %3611
      %3613 = vrot.lane.b32.xlu0 %v3591, 64
      %v3614 = vpop.permute.xlu0 %3613
      %3615 = vrot.lane.b32.xlu0 %v3592, 64
      %v3616 = vpop.permute.xlu0 %3615
      %3625 = vst.msk [vmem:[#allocation4 + $0xa8] sm:$0xf] %vm886, %v3602
      %3626 = vst.msk [vmem:[#allocation4 + $0xbc] sm:$0xf] %vm886, %v3604
      %3627 = vst.msk [vmem:[#allocation4 + $0xd0] sm:$0xf] %vm886, %v3606
      %3628 = vst.msk [vmem:[#allocation4 + $0xe4] sm:$0xf] %vm886, %v3608
      %3629 = vst.msk [vmem:[#allocation4 + $0xf8] sm:$0xf] %vm886, %v3610
      %3630 = vst.msk [vmem:[#allocation4 + $0x10c] sm:$0xf] %vm886, %v3612
      %3631 = vst.msk [vmem:[#allocation4 + $0x120] sm:$0xf] %vm886, %v3614
      %3632 = vst.msk [vmem:[#allocation4 + $0x134] sm:$0xf] %vm886, %v3616
      %v3633 = vld [vmem:[%s2999 + $0x1] sm:$0xff]
      %v3634 = vld [vmem:[%s2999 + $0x11] sm:$0xff]
      %v3635 = vld [vmem:[%s2999 + $0x21] sm:$0xff]
      %v3636 = vld [vmem:[%s2999 + $0x31] sm:$0xff]
      %v3637 = vld [vmem:[%s2999 + $0x41] sm:$0xff]
      %v3638 = vld [vmem:[%s2999 + $0x51] sm:$0xff]
      %v3639 = vld [vmem:[%s2999 + $0x61] sm:$0xff]
      %v3640 = vld [vmem:[%s2999 + $0x71] sm:$0xff]
      %v3641 = vpack.c.bf16 %v3633, %v3633
      %v3642 = vpack.c.bf16 %v3634, %v3634
      %v3643 = vpack.c.bf16 %v3635, %v3635
      %v3644 = vpack.c.bf16 %v3636, %v3636
      %v3645 = vpack.c.bf16 %v3637, %v3637
      %v3646 = vpack.c.bf16 %v3638, %v3638
      %v3647 = vpack.c.bf16 %v3639, %v3639
      %v3648 = vpack.c.bf16 %v3640, %v3640
      %3649 = vst.msk [vmem:[#allocation4 + $0xac] sm:$0xf] %vm829, %v3641
      %3650 = vst.msk [vmem:[#allocation4 + $0xc0] sm:$0xf] %vm829, %v3642
      %3651 = vst.msk [vmem:[#allocation4 + $0xd4] sm:$0xf] %vm829, %v3643
      %3652 = vst.msk [vmem:[#allocation4 + $0xe8] sm:$0xf] %vm829, %v3644
      %3653 = vst.msk [vmem:[#allocation4 + $0xfc] sm:$0xf] %vm829, %v3645
      %3654 = vst.msk [vmem:[#allocation4 + $0x110] sm:$0xf] %vm829, %v3646
      %3655 = vst.msk [vmem:[#allocation4 + $0x124] sm:$0xf] %vm829, %v3647
      %3656 = vst.msk [vmem:[#allocation4 + $0x138] sm:$0xf] %vm829, %v3648
      %v3657 = vld [vmem:[%s3040 + $0x1] sm:$0xff]
      %v3658 = vld [vmem:[%s3040 + $0x11] sm:$0xff]
      %v3659 = vld [vmem:[%s3040 + $0x21] sm:$0xff]
      %v3660 = vld [vmem:[%s3040 + $0x31] sm:$0xff]
      %v3661 = vld [vmem:[%s3040 + $0x41] sm:$0xff]
      %v3662 = vld [vmem:[%s3040 + $0x51] sm:$0xff]
      %v3663 = vld [vmem:[%s3040 + $0x61] sm:$0xff]
      %v3664 = vld [vmem:[%s3040 + $0x71] sm:$0xff]
      %v3665 = vpack.c.bf16 %v3657, %v3657
      %v3666 = vpack.c.bf16 %v3658, %v3658
      %v3667 = vpack.c.bf16 %v3659, %v3659
      %v3668 = vpack.c.bf16 %v3660, %v3660
      %v3669 = vpack.c.bf16 %v3661, %v3661
      %v3670 = vpack.c.bf16 %v3662, %v3662
      %v3671 = vpack.c.bf16 %v3663, %v3663
      %v3672 = vpack.c.bf16 %v3664, %v3664
      %3681 = vrot.lane.b32.xlu0 %v3665, 64
      %v3682 = vpop.permute.xlu0 %3681
      %3683 = vrot.lane.b32.xlu0 %v3666, 64
      %v3684 = vpop.permute.xlu0 %3683
      %3685 = vrot.lane.b32.xlu0 %v3667, 64
      %v3686 = vpop.permute.xlu0 %3685
      %3687 = vrot.lane.b32.xlu0 %v3668, 64
      %v3688 = vpop.permute.xlu0 %3687
      %3689 = vrot.lane.b32.xlu0 %v3669, 64
      %v3690 = vpop.permute.xlu0 %3689
      %3691 = vrot.lane.b32.xlu0 %v3670, 64
      %v3692 = vpop.permute.xlu0 %3691
      %3693 = vrot.lane.b32.xlu0 %v3671, 64
      %v3694 = vpop.permute.xlu0 %3693
      %3695 = vrot.lane.b32.xlu0 %v3672, 64
      %v3696 = vpop.permute.xlu0 %3695
      %3705 = vst.msk [vmem:[#allocation4 + $0xac] sm:$0xf] %vm886, %v3682
      %3706 = vst.msk [vmem:[#allocation4 + $0xc0] sm:$0xf] %vm886, %v3684
      %3707 = vst.msk [vmem:[#allocation4 + $0xd4] sm:$0xf] %vm886, %v3686
      %3708 = vst.msk [vmem:[#allocation4 + $0xe8] sm:$0xf] %vm886, %v3688
      %3709 = vst.msk [vmem:[#allocation4 + $0xfc] sm:$0xf] %vm886, %v3690
      %3710 = vst.msk [vmem:[#allocation4 + $0x110] sm:$0xf] %vm886, %v3692
      %3711 = vst.msk [vmem:[#allocation4 + $0x124] sm:$0xf] %vm886, %v3694
      %3712 = vst.msk [vmem:[#allocation4 + $0x138] sm:$0xf] %vm886, %v3696
      %v3713 = vld [vmem:[%s2999 + $0x2] sm:$0xff]
      %v3714 = vld [vmem:[%s2999 + $0x12] sm:$0xff]
      %v3715 = vld [vmem:[%s2999 + $0x22] sm:$0xff]
      %v3716 = vld [vmem:[%s2999 + $0x32] sm:$0xff]
      %v3717 = vld [vmem:[%s2999 + $0x42] sm:$0xff]
      %v3718 = vld [vmem:[%s2999 + $0x52] sm:$0xff]
      %v3719 = vld [vmem:[%s2999 + $0x62] sm:$0xff]
      %v3720 = vld [vmem:[%s2999 + $0x72] sm:$0xff]
      %v3721 = vpack.c.bf16 %v3713, %v3713
      %v3722 = vpack.c.bf16 %v3714, %v3714
      %v3723 = vpack.c.bf16 %v3715, %v3715
      %v3724 = vpack.c.bf16 %v3716, %v3716
      %v3725 = vpack.c.bf16 %v3717, %v3717
      %v3726 = vpack.c.bf16 %v3718, %v3718
      %v3727 = vpack.c.bf16 %v3719, %v3719
      %v3728 = vpack.c.bf16 %v3720, %v3720
      %3729 = vst.msk [vmem:[#allocation4 + $0xb0] sm:$0xf] %vm829, %v3721
      %3730 = vst.msk [vmem:[#allocation4 + $0xc4] sm:$0xf] %vm829, %v3722
      %3731 = vst.msk [vmem:[#allocation4 + $0xd8] sm:$0xf] %vm829, %v3723
      %3732 = vst.msk [vmem:[#allocation4 + $0xec] sm:$0xf] %vm829, %v3724
      %3733 = vst.msk [vmem:[#allocation4 + $0x100] sm:$0xf] %vm829, %v3725
      %3734 = vst.msk [vmem:[#allocation4 + $0x114] sm:$0xf] %vm829, %v3726
      %3735 = vst.msk [vmem:[#allocation4 + $0x128] sm:$0xf] %vm829, %v3727
      %3736 = vst.msk [vmem:[#allocation4 + $0x13c] sm:$0xf] %vm829, %v3728
      %v3737 = vld [vmem:[%s2990] sm:$0xff]
      %v3738 = vld [vmem:[%s2990 + $0x10] sm:$0xff]
      %v3739 = vld [vmem:[%s2990 + $0x20] sm:$0xff]
      %v3740 = vld [vmem:[%s2990 + $0x30] sm:$0xff]
      %v3741 = vld [vmem:[%s2990 + $0x40] sm:$0xff]
      %v3742 = vld [vmem:[%s2990 + $0x50] sm:$0xff]
      %v3743 = vld [vmem:[%s2990 + $0x60] sm:$0xff]
      %v3744 = vld [vmem:[%s2990 + $0x70] sm:$0xff]
      %v3745 = vpack.c.bf16 %v3737, %v3737
      %v3746 = vpack.c.bf16 %v3738, %v3738
      %v3747 = vpack.c.bf16 %v3739, %v3739
      %v3748 = vpack.c.bf16 %v3740, %v3740
      %v3749 = vpack.c.bf16 %v3741, %v3741
      %v3750 = vpack.c.bf16 %v3742, %v3742
      %v3751 = vpack.c.bf16 %v3743, %v3743
      %v3752 = vpack.c.bf16 %v3744, %v3744
      %3753 = vst.msk [vmem:[#allocation4 + $0x140] sm:$0xf] %vm829, %v3745
      %3754 = vst.msk [vmem:[#allocation4 + $0x154] sm:$0xf] %vm829, %v3746
      %3755 = vst.msk [vmem:[#allocation4 + $0x168] sm:$0xf] %vm829, %v3747
      %3756 = vst.msk [vmem:[#allocation4 + $0x17c] sm:$0xf] %vm829, %v3748
      %3757 = vst.msk [vmem:[#allocation4 + $0x190] sm:$0xf] %vm829, %v3749
      %3758 = vst.msk [vmem:[#allocation4 + $0x1a4] sm:$0xf] %vm829, %v3750
      %3759 = vst.msk [vmem:[#allocation4 + $0x1b8] sm:$0xf] %vm829, %v3751
      %3760 = vst.msk [vmem:[#allocation4 + $0x1cc] sm:$0xf] %vm829, %v3752
      %v3761 = vld [vmem:[%s2949 + $0x1] sm:$0xff]
      %v3762 = vld [vmem:[%s2949 + $0x11] sm:$0xff]
      %v3763 = vld [vmem:[%s2949 + $0x21] sm:$0xff]
      %v3764 = vld [vmem:[%s2949 + $0x31] sm:$0xff]
      %v3765 = vld [vmem:[%s2949 + $0x41] sm:$0xff]
      %v3766 = vld [vmem:[%s2949 + $0x51] sm:$0xff]
      %v3767 = vld [vmem:[%s2949 + $0x61] sm:$0xff]
      %v3768 = vld [vmem:[%s2949 + $0x71] sm:$0xff]
      %v3769 = vpack.c.bf16 %v3761, %v3761
      %v3770 = vpack.c.bf16 %v3762, %v3762
      %v3771 = vpack.c.bf16 %v3763, %v3763
      %v3772 = vpack.c.bf16 %v3764, %v3764
      %v3773 = vpack.c.bf16 %v3765, %v3765
      %v3774 = vpack.c.bf16 %v3766, %v3766
      %v3775 = vpack.c.bf16 %v3767, %v3767
      %v3776 = vpack.c.bf16 %v3768, %v3768
      %3785 = vrot.lane.b32.xlu0 %v3769, 64
      %v3786 = vpop.permute.xlu0 %3785
      %3787 = vrot.lane.b32.xlu0 %v3770, 64
      %v3788 = vpop.permute.xlu0 %3787
      %3789 = vrot.lane.b32.xlu0 %v3771, 64
      %v3790 = vpop.permute.xlu0 %3789
      %3791 = vrot.lane.b32.xlu0 %v3772, 64
      %v3792 = vpop.permute.xlu0 %3791
      %3793 = vrot.lane.b32.xlu0 %v3773, 64
      %v3794 = vpop.permute.xlu0 %3793
      %3795 = vrot.lane.b32.xlu0 %v3774, 64
      %v3796 = vpop.permute.xlu0 %3795
      %3797 = vrot.lane.b32.xlu0 %v3775, 64
      %v3798 = vpop.permute.xlu0 %3797
      %3799 = vrot.lane.b32.xlu0 %v3776, 64
      %v3800 = vpop.permute.xlu0 %3799
      %3809 = vst.msk [vmem:[#allocation4 + $0x140] sm:$0xf] %vm886, %v3786
      %3810 = vst.msk [vmem:[#allocation4 + $0x154] sm:$0xf] %vm886, %v3788
      %3811 = vst.msk [vmem:[#allocation4 + $0x168] sm:$0xf] %vm886, %v3790
      %3812 = vst.msk [vmem:[#allocation4 + $0x17c] sm:$0xf] %vm886, %v3792
      %3813 = vst.msk [vmem:[#allocation4 + $0x190] sm:$0xf] %vm886, %v3794
      %3814 = vst.msk [vmem:[#allocation4 + $0x1a4] sm:$0xf] %vm886, %v3796
      %3815 = vst.msk [vmem:[#allocation4 + $0x1b8] sm:$0xf] %vm886, %v3798
      %3816 = vst.msk [vmem:[#allocation4 + $0x1cc] sm:$0xf] %vm886, %v3800
      %v3817 = vld [vmem:[%s2990 + $0x1] sm:$0xff]
      %v3818 = vld [vmem:[%s2990 + $0x11] sm:$0xff]
      %v3819 = vld [vmem:[%s2990 + $0x21] sm:$0xff]
      %v3820 = vld [vmem:[%s2990 + $0x31] sm:$0xff]
      %v3821 = vld [vmem:[%s2990 + $0x41] sm:$0xff]
      %v3822 = vld [vmem:[%s2990 + $0x51] sm:$0xff]
      %v3823 = vld [vmem:[%s2990 + $0x61] sm:$0xff]
      %v3824 = vld [vmem:[%s2990 + $0x71] sm:$0xff]
      %v3825 = vpack.c.bf16 %v3817, %v3817
      %v3826 = vpack.c.bf16 %v3818, %v3818
      %v3827 = vpack.c.bf16 %v3819, %v3819
      %v3828 = vpack.c.bf16 %v3820, %v3820
      %v3829 = vpack.c.bf16 %v3821, %v3821
      %v3830 = vpack.c.bf16 %v3822, %v3822
      %v3831 = vpack.c.bf16 %v3823, %v3823
      %v3832 = vpack.c.bf16 %v3824, %v3824
      %3833 = vst.msk [vmem:[#allocation4 + $0x144] sm:$0xf] %vm829, %v3825
      %3834 = vst.msk [vmem:[#allocation4 + $0x158] sm:$0xf] %vm829, %v3826
      %3835 = vst.msk [vmem:[#allocation4 + $0x16c] sm:$0xf] %vm829, %v3827
      %3836 = vst.msk [vmem:[#allocation4 + $0x180] sm:$0xf] %vm829, %v3828
      %3837 = vst.msk [vmem:[#allocation4 + $0x194] sm:$0xf] %vm829, %v3829
      %3838 = vst.msk [vmem:[#allocation4 + $0x1a8] sm:$0xf] %vm829, %v3830
      %3839 = vst.msk [vmem:[#allocation4 + $0x1bc] sm:$0xf] %vm829, %v3831
      %3840 = vst.msk [vmem:[#allocation4 + $0x1d0] sm:$0xf] %vm829, %v3832
      %v3841 = vld [vmem:[%s3040] sm:$0xff]
      %v3842 = vld [vmem:[%s3040 + $0x10] sm:$0xff]
      %v3843 = vld [vmem:[%s3040 + $0x20] sm:$0xff]
      %v3844 = vld [vmem:[%s3040 + $0x30] sm:$0xff]
      %v3845 = vld [vmem:[%s3040 + $0x40] sm:$0xff]
      %v3846 = vld [vmem:[%s3040 + $0x50] sm:$0xff]
      %v3847 = vld [vmem:[%s3040 + $0x60] sm:$0xff]
      %v3848 = vld [vmem:[%s3040 + $0x70] sm:$0xff]
      %v3849 = vpack.c.bf16 %v3841, %v3841
      %v3850 = vpack.c.bf16 %v3842, %v3842
      %v3851 = vpack.c.bf16 %v3843, %v3843
      %v3852 = vpack.c.bf16 %v3844, %v3844
      %v3853 = vpack.c.bf16 %v3845, %v3845
      %v3854 = vpack.c.bf16 %v3846, %v3846
      %v3855 = vpack.c.bf16 %v3847, %v3847
      %v3856 = vpack.c.bf16 %v3848, %v3848
      %3865 = vrot.lane.b32.xlu0 %v3849, 64
      %v3866 = vpop.permute.xlu0 %3865
      %3867 = vrot.lane.b32.xlu0 %v3850, 64
      %v3868 = vpop.permute.xlu0 %3867
      %3869 = vrot.lane.b32.xlu0 %v3851, 64
      %v3870 = vpop.permute.xlu0 %3869
      %3871 = vrot.lane.b32.xlu0 %v3852, 64
      %v3872 = vpop.permute.xlu0 %3871
      %3873 = vrot.lane.b32.xlu0 %v3853, 64
      %v3874 = vpop.permute.xlu0 %3873
      %3875 = vrot.lane.b32.xlu0 %v3854, 64
      %v3876 = vpop.permute.xlu0 %3875
      %3877 = vrot.lane.b32.xlu0 %v3855, 64
      %v3878 = vpop.permute.xlu0 %3877
      %3879 = vrot.lane.b32.xlu0 %v3856, 64
      %v3880 = vpop.permute.xlu0 %3879
      %3889 = vst.msk [vmem:[#allocation4 + $0x144] sm:$0xf] %vm886, %v3866
      %3890 = vst.msk [vmem:[#allocation4 + $0x158] sm:$0xf] %vm886, %v3868
      %3891 = vst.msk [vmem:[#allocation4 + $0x16c] sm:$0xf] %vm886, %v3870
      %3892 = vst.msk [vmem:[#allocation4 + $0x180] sm:$0xf] %vm886, %v3872
      %3893 = vst.msk [vmem:[#allocation4 + $0x194] sm:$0xf] %vm886, %v3874
      %3894 = vst.msk [vmem:[#allocation4 + $0x1a8] sm:$0xf] %vm886, %v3876
      %3895 = vst.msk [vmem:[#allocation4 + $0x1bc] sm:$0xf] %vm886, %v3878
      %3896 = vst.msk [vmem:[#allocation4 + $0x1d0] sm:$0xf] %vm886, %v3880
      %v3897 = vld [vmem:[%s2999 + $0x1] sm:$0xff]
      %v3898 = vld [vmem:[%s2999 + $0x11] sm:$0xff]
      %v3899 = vld [vmem:[%s2999 + $0x21] sm:$0xff]
      %v3900 = vld [vmem:[%s2999 + $0x31] sm:$0xff]
      %v3901 = vld [vmem:[%s2999 + $0x41] sm:$0xff]
      %v3902 = vld [vmem:[%s2999 + $0x51] sm:$0xff]
      %v3903 = vld [vmem:[%s2999 + $0x61] sm:$0xff]
      %v3904 = vld [vmem:[%s2999 + $0x71] sm:$0xff]
      %v3905 = vpack.c.bf16 %v3897, %v3897
      %v3906 = vpack.c.bf16 %v3898, %v3898
      %v3907 = vpack.c.bf16 %v3899, %v3899
      %v3908 = vpack.c.bf16 %v3900, %v3900
      %v3909 = vpack.c.bf16 %v3901, %v3901
      %v3910 = vpack.c.bf16 %v3902, %v3902
      %v3911 = vpack.c.bf16 %v3903, %v3903
      %v3912 = vpack.c.bf16 %v3904, %v3904
      %3913 = vst.msk [vmem:[#allocation4 + $0x148] sm:$0xf] %vm829, %v3905
      %3914 = vst.msk [vmem:[#allocation4 + $0x15c] sm:$0xf] %vm829, %v3906
      %3915 = vst.msk [vmem:[#allocation4 + $0x170] sm:$0xf] %vm829, %v3907
      %3916 = vst.msk [vmem:[#allocation4 + $0x184] sm:$0xf] %vm829, %v3908
      %3917 = vst.msk [vmem:[#allocation4 + $0x198] sm:$0xf] %vm829, %v3909
      %3918 = vst.msk [vmem:[#allocation4 + $0x1ac] sm:$0xf] %vm829, %v3910
      %3919 = vst.msk [vmem:[#allocation4 + $0x1c0] sm:$0xf] %vm829, %v3911
      %3920 = vst.msk [vmem:[#allocation4 + $0x1d4] sm:$0xf] %vm829, %v3912
      %v3921 = vld [vmem:[%s3040 + $0x1] sm:$0xff]
      %v3922 = vld [vmem:[%s3040 + $0x11] sm:$0xff]
      %v3923 = vld [vmem:[%s3040 + $0x21] sm:$0xff]
      %v3924 = vld [vmem:[%s3040 + $0x31] sm:$0xff]
      %v3925 = vld [vmem:[%s3040 + $0x41] sm:$0xff]
      %v3926 = vld [vmem:[%s3040 + $0x51] sm:$0xff]
      %v3927 = vld [vmem:[%s3040 + $0x61] sm:$0xff]
      %v3928 = vld [vmem:[%s3040 + $0x71] sm:$0xff]
      %v3929 = vpack.c.bf16 %v3921, %v3921
      %v3930 = vpack.c.bf16 %v3922, %v3922
      %v3931 = vpack.c.bf16 %v3923, %v3923
      %v3932 = vpack.c.bf16 %v3924, %v3924
      %v3933 = vpack.c.bf16 %v3925, %v3925
      %v3934 = vpack.c.bf16 %v3926, %v3926
      %v3935 = vpack.c.bf16 %v3927, %v3927
      %v3936 = vpack.c.bf16 %v3928, %v3928
      %3945 = vrot.lane.b32.xlu0 %v3929, 64
      %v3946 = vpop.permute.xlu0 %3945
      %3947 = vrot.lane.b32.xlu0 %v3930, 64
      %v3948 = vpop.permute.xlu0 %3947
      %3949 = vrot.lane.b32.xlu0 %v3931, 64
      %v3950 = vpop.permute.xlu0 %3949
      %3951 = vrot.lane.b32.xlu0 %v3932, 64
      %v3952 = vpop.permute.xlu0 %3951
      %3953 = vrot.lane.b32.xlu0 %v3933, 64
      %v3954 = vpop.permute.xlu0 %3953
      %3955 = vrot.lane.b32.xlu0 %v3934, 64
      %v3956 = vpop.permute.xlu0 %3955
      %3957 = vrot.lane.b32.xlu0 %v3935, 64
      %v3958 = vpop.permute.xlu0 %3957
      %3959 = vrot.lane.b32.xlu0 %v3936, 64
      %v3960 = vpop.permute.xlu0 %3959
      %3969 = vst.msk [vmem:[#allocation4 + $0x148] sm:$0xf] %vm886, %v3946
      %3970 = vst.msk [vmem:[#allocation4 + $0x15c] sm:$0xf] %vm886, %v3948
      %3971 = vst.msk [vmem:[#allocation4 + $0x170] sm:$0xf] %vm886, %v3950
      %3972 = vst.msk [vmem:[#allocation4 + $0x184] sm:$0xf] %vm886, %v3952
      %3973 = vst.msk [vmem:[#allocation4 + $0x198] sm:$0xf] %vm886, %v3954
      %3974 = vst.msk [vmem:[#allocation4 + $0x1ac] sm:$0xf] %vm886, %v3956
      %3975 = vst.msk [vmem:[#allocation4 + $0x1c0] sm:$0xf] %vm886, %v3958
      %3976 = vst.msk [vmem:[#allocation4 + $0x1d4] sm:$0xf] %vm886, %v3960
      %s3977 = scalar_lea.vmem [#allocation3], 192
      %v3978 = vld [vmem:[%s3977] sm:$0xff]
      %v3979 = vld [vmem:[%s3977 + $0x10] sm:$0xff]
      %v3980 = vld [vmem:[%s3977 + $0x20] sm:$0xff]
      %v3981 = vld [vmem:[%s3977 + $0x30] sm:$0xff]
      %v3982 = vld [vmem:[%s3977 + $0x40] sm:$0xff]
      %v3983 = vld [vmem:[%s3977 + $0x50] sm:$0xff]
      %v3984 = vld [vmem:[%s3977 + $0x60] sm:$0xff]
      %v3985 = vld [vmem:[%s3977 + $0x70] sm:$0xff]
      %v3986 = vpack.c.bf16 %v3978, %v3978
      %v3987 = vpack.c.bf16 %v3979, %v3979
      %v3988 = vpack.c.bf16 %v3980, %v3980
      %v3989 = vpack.c.bf16 %v3981, %v3981
      %v3990 = vpack.c.bf16 %v3982, %v3982
      %v3991 = vpack.c.bf16 %v3983, %v3983
      %v3992 = vpack.c.bf16 %v3984, %v3984
      %v3993 = vpack.c.bf16 %v3985, %v3985
      %3994 = vst.msk [vmem:[#allocation4 + $0x14c] sm:$0xf] %vm829, %v3986
      %3995 = vst.msk [vmem:[#allocation4 + $0x160] sm:$0xf] %vm829, %v3987
      %3996 = vst.msk [vmem:[#allocation4 + $0x174] sm:$0xf] %vm829, %v3988
      %3997 = vst.msk [vmem:[#allocation4 + $0x188] sm:$0xf] %vm829, %v3989
      %3998 = vst.msk [vmem:[#allocation4 + $0x19c] sm:$0xf] %vm829, %v3990
      %3999 = vst.msk [vmem:[#allocation4 + $0x1b0] sm:$0xf] %vm829, %v3991
      %4000 = vst.msk [vmem:[#allocation4 + $0x1c4] sm:$0xf] %vm829, %v3992
      %4001 = vst.msk [vmem:[#allocation4 + $0x1d8] sm:$0xf] %vm829, %v3993
      %s4002 = scalar_lea.vmem [#allocation3], 32
      %v4003 = vld [vmem:[%s4002 + $0x1] sm:$0xff]
      %v4004 = vld [vmem:[%s4002 + $0x11] sm:$0xff]
      %v4005 = vld [vmem:[%s4002 + $0x21] sm:$0xff]
      %v4006 = vld [vmem:[%s4002 + $0x31] sm:$0xff]
      %v4007 = vld [vmem:[%s4002 + $0x41] sm:$0xff]
      %v4008 = vld [vmem:[%s4002 + $0x51] sm:$0xff]
      %v4009 = vld [vmem:[%s4002 + $0x61] sm:$0xff]
      %v4010 = vld [vmem:[%s4002 + $0x71] sm:$0xff]
      %v4011 = vpack.c.bf16 %v4003, %v4003
      %v4012 = vpack.c.bf16 %v4004, %v4004
      %v4013 = vpack.c.bf16 %v4005, %v4005
      %v4014 = vpack.c.bf16 %v4006, %v4006
      %v4015 = vpack.c.bf16 %v4007, %v4007
      %v4016 = vpack.c.bf16 %v4008, %v4008
      %v4017 = vpack.c.bf16 %v4009, %v4009
      %v4018 = vpack.c.bf16 %v4010, %v4010
      %4027 = vrot.lane.b32.xlu0 %v4011, 64
      %v4028 = vpop.permute.xlu0 %4027
      %4029 = vrot.lane.b32.xlu0 %v4012, 64
      %v4030 = vpop.permute.xlu0 %4029
      %4031 = vrot.lane.b32.xlu0 %v4013, 64
      %v4032 = vpop.permute.xlu0 %4031
      %4033 = vrot.lane.b32.xlu0 %v4014, 64
      %v4034 = vpop.permute.xlu0 %4033
      %4035 = vrot.lane.b32.xlu0 %v4015, 64
      %v4036 = vpop.permute.xlu0 %4035
      %4037 = vrot.lane.b32.xlu0 %v4016, 64
      %v4038 = vpop.permute.xlu0 %4037
      %4039 = vrot.lane.b32.xlu0 %v4017, 64
      %v4040 = vpop.permute.xlu0 %4039
      %4041 = vrot.lane.b32.xlu0 %v4018, 64
      %v4042 = vpop.permute.xlu0 %4041
      %4051 = vst.msk [vmem:[#allocation4 + $0x14c] sm:$0xf] %vm886, %v4028
      %4052 = vst.msk [vmem:[#allocation4 + $0x160] sm:$0xf] %vm886, %v4030
      %4053 = vst.msk [vmem:[#allocation4 + $0x174] sm:$0xf] %vm886, %v4032
      %4054 = vst.msk [vmem:[#allocation4 + $0x188] sm:$0xf] %vm886, %v4034
      %4055 = vst.msk [vmem:[#allocation4 + $0x19c] sm:$0xf] %vm886, %v4036
      %4056 = vst.msk [vmem:[#allocation4 + $0x1b0] sm:$0xf] %vm886, %v4038
      %4057 = vst.msk [vmem:[#allocation4 + $0x1c4] sm:$0xf] %vm886, %v4040
      %4058 = vst.msk [vmem:[#allocation4 + $0x1d8] sm:$0xf] %vm886, %v4042
      %v4059 = vld [vmem:[%s3977 + $0x1] sm:$0xff]
      %v4060 = vld [vmem:[%s3977 + $0x11] sm:$0xff]
      %v4061 = vld [vmem:[%s3977 + $0x21] sm:$0xff]
      %v4062 = vld [vmem:[%s3977 + $0x31] sm:$0xff]
      %v4063 = vld [vmem:[%s3977 + $0x41] sm:$0xff]
      %v4064 = vld [vmem:[%s3977 + $0x51] sm:$0xff]
      %v4065 = vld [vmem:[%s3977 + $0x61] sm:$0xff]
      %v4066 = vld [vmem:[%s3977 + $0x71] sm:$0xff]
      %v4067 = vpack.c.bf16 %v4059, %v4059
      %v4068 = vpack.c.bf16 %v4060, %v4060
      %v4069 = vpack.c.bf16 %v4061, %v4061
      %v4070 = vpack.c.bf16 %v4062, %v4062
      %v4071 = vpack.c.bf16 %v4063, %v4063
      %v4072 = vpack.c.bf16 %v4064, %v4064
      %v4073 = vpack.c.bf16 %v4065, %v4065
      %v4074 = vpack.c.bf16 %v4066, %v4066
      %4075 = vst.msk [vmem:[#allocation4 + $0x150] sm:$0xf] %vm829, %v4067
      %4076 = vst.msk [vmem:[#allocation4 + $0x164] sm:$0xf] %vm829, %v4068
      %4077 = vst.msk [vmem:[#allocation4 + $0x178] sm:$0xf] %vm829, %v4069
      %4078 = vst.msk [vmem:[#allocation4 + $0x18c] sm:$0xf] %vm829, %v4070
      %4079 = vst.msk [vmem:[#allocation4 + $0x1a0] sm:$0xf] %vm829, %v4071
      %4080 = vst.msk [vmem:[#allocation4 + $0x1b4] sm:$0xf] %vm829, %v4072
      %4081 = vst.msk [vmem:[#allocation4 + $0x1c8] sm:$0xf] %vm829, %v4073
      %4082 = vst.msk [vmem:[#allocation4 + $0x1dc] sm:$0xf] %vm829, %v4074
      %v4083 = vld [vmem:[%s2949 + $0x1] sm:$0xff]
      %v4084 = vld [vmem:[%s2949 + $0x11] sm:$0xff]
      %v4085 = vld [vmem:[%s2949 + $0x21] sm:$0xff]
      %v4086 = vld [vmem:[%s2949 + $0x31] sm:$0xff]
      %v4087 = vld [vmem:[%s2949 + $0x41] sm:$0xff]
      %v4088 = vld [vmem:[%s2949 + $0x51] sm:$0xff]
      %v4089 = vld [vmem:[%s2949 + $0x61] sm:$0xff]
      %v4090 = vld [vmem:[%s2949 + $0x71] sm:$0xff]
      %v4091 = vpack.c.bf16 %v4083, %v4083
      %v4092 = vpack.c.bf16 %v4084, %v4084
      %v4093 = vpack.c.bf16 %v4085, %v4085
      %v4094 = vpack.c.bf16 %v4086, %v4086
      %v4095 = vpack.c.bf16 %v4087, %v4087
      %v4096 = vpack.c.bf16 %v4088, %v4088
      %v4097 = vpack.c.bf16 %v4089, %v4089
      %v4098 = vpack.c.bf16 %v4090, %v4090
      %4099 = vst.msk [vmem:[#allocation4 + $0x1e0] sm:$0xf] %vm829, %v4091
      %4100 = vst.msk [vmem:[#allocation4 + $0x1f4] sm:$0xf] %vm829, %v4092
      %4101 = vst.msk [vmem:[#allocation4 + $0x208] sm:$0xf] %vm829, %v4093
      %4102 = vst.msk [vmem:[#allocation4 + $0x21c] sm:$0xf] %vm829, %v4094
      %4103 = vst.msk [vmem:[#allocation4 + $0x230] sm:$0xf] %vm829, %v4095
      %4104 = vst.msk [vmem:[#allocation4 + $0x244] sm:$0xf] %vm829, %v4096
      %4105 = vst.msk [vmem:[#allocation4 + $0x258] sm:$0xf] %vm829, %v4097
      %4106 = vst.msk [vmem:[#allocation4 + $0x26c] sm:$0xf] %vm829, %v4098
      %v4107 = vld [vmem:[%s2990 + $0x1] sm:$0xff]
      %v4108 = vld [vmem:[%s2990 + $0x11] sm:$0xff]
      %v4109 = vld [vmem:[%s2990 + $0x21] sm:$0xff]
      %v4110 = vld [vmem:[%s2990 + $0x31] sm:$0xff]
      %v4111 = vld [vmem:[%s2990 + $0x41] sm:$0xff]
      %v4112 = vld [vmem:[%s2990 + $0x51] sm:$0xff]
      %v4113 = vld [vmem:[%s2990 + $0x61] sm:$0xff]
      %v4114 = vld [vmem:[%s2990 + $0x71] sm:$0xff]
      %v4115 = vpack.c.bf16 %v4107, %v4107
      %v4116 = vpack.c.bf16 %v4108, %v4108
      %v4117 = vpack.c.bf16 %v4109, %v4109
      %v4118 = vpack.c.bf16 %v4110, %v4110
      %v4119 = vpack.c.bf16 %v4111, %v4111
      %v4120 = vpack.c.bf16 %v4112, %v4112
      %v4121 = vpack.c.bf16 %v4113, %v4113
      %v4122 = vpack.c.bf16 %v4114, %v4114
      %4131 = vrot.lane.b32.xlu0 %v4115, 64
      %v4132 = vpop.permute.xlu0 %4131
      %4133 = vrot.lane.b32.xlu0 %v4116, 64
      %v4134 = vpop.permute.xlu0 %4133
      %4135 = vrot.lane.b32.xlu0 %v4117, 64
      %v4136 = vpop.permute.xlu0 %4135
      %4137 = vrot.lane.b32.xlu0 %v4118, 64
      %v4138 = vpop.permute.xlu0 %4137
      %4139 = vrot.lane.b32.xlu0 %v4119, 64
      %v4140 = vpop.permute.xlu0 %4139
      %4141 = vrot.lane.b32.xlu0 %v4120, 64
      %v4142 = vpop.permute.xlu0 %4141
      %4143 = vrot.lane.b32.xlu0 %v4121, 64
      %v4144 = vpop.permute.xlu0 %4143
      %4145 = vrot.lane.b32.xlu0 %v4122, 64
      %v4146 = vpop.permute.xlu0 %4145
      %4155 = vst.msk [vmem:[#allocation4 + $0x1e0] sm:$0xf] %vm886, %v4132
      %4156 = vst.msk [vmem:[#allocation4 + $0x1f4] sm:$0xf] %vm886, %v4134
      %4157 = vst.msk [vmem:[#allocation4 + $0x208] sm:$0xf] %vm886, %v4136
      %4158 = vst.msk [vmem:[#allocation4 + $0x21c] sm:$0xf] %vm886, %v4138
      %4159 = vst.msk [vmem:[#allocation4 + $0x230] sm:$0xf] %vm886, %v4140
      %4160 = vst.msk [vmem:[#allocation4 + $0x244] sm:$0xf] %vm886, %v4142
      %4161 = vst.msk [vmem:[#allocation4 + $0x258] sm:$0xf] %vm886, %v4144
      %4162 = vst.msk [vmem:[#allocation4 + $0x26c] sm:$0xf] %vm886, %v4146
      %v4163 = vld [vmem:[%s2949 + $0x2] sm:$0xff]
      %v4164 = vld [vmem:[%s2949 + $0x12] sm:$0xff]
      %v4165 = vld [vmem:[%s2949 + $0x22] sm:$0xff]
      %v4166 = vld [vmem:[%s2949 + $0x32] sm:$0xff]
      %v4167 = vld [vmem:[%s2949 + $0x42] sm:$0xff]
      %v4168 = vld [vmem:[%s2949 + $0x52] sm:$0xff]
      %v4169 = vld [vmem:[%s2949 + $0x62] sm:$0xff]
      %v4170 = vld [vmem:[%s2949 + $0x72] sm:$0xff]
      %v4171 = vpack.c.bf16 %v4163, %v4163
      %v4172 = vpack.c.bf16 %v4164, %v4164
      %v4173 = vpack.c.bf16 %v4165, %v4165
      %v4174 = vpack.c.bf16 %v4166, %v4166
      %v4175 = vpack.c.bf16 %v4167, %v4167
      %v4176 = vpack.c.bf16 %v4168, %v4168
      %v4177 = vpack.c.bf16 %v4169, %v4169
      %v4178 = vpack.c.bf16 %v4170, %v4170
      %4179 = vst.msk [vmem:[#allocation4 + $0x1e4] sm:$0xf] %vm829, %v4171
      %4180 = vst.msk [vmem:[#allocation4 + $0x1f8] sm:$0xf] %vm829, %v4172
      %4181 = vst.msk [vmem:[#allocation4 + $0x20c] sm:$0xf] %vm829, %v4173
      %4182 = vst.msk [vmem:[#allocation4 + $0x220] sm:$0xf] %vm829, %v4174
      %4183 = vst.msk [vmem:[#allocation4 + $0x234] sm:$0xf] %vm829, %v4175
      %4184 = vst.msk [vmem:[#allocation4 + $0x248] sm:$0xf] %vm829, %v4176
      %4185 = vst.msk [vmem:[#allocation4 + $0x25c] sm:$0xf] %vm829, %v4177
      %4186 = vst.msk [vmem:[#allocation4 + $0x270] sm:$0xf] %vm829, %v4178
      %v4187 = vld [vmem:[%s2999 + $0x1] sm:$0xff]
      %v4188 = vld [vmem:[%s2999 + $0x11] sm:$0xff]
      %v4189 = vld [vmem:[%s2999 + $0x21] sm:$0xff]
      %v4190 = vld [vmem:[%s2999 + $0x31] sm:$0xff]
      %v4191 = vld [vmem:[%s2999 + $0x41] sm:$0xff]
      %v4192 = vld [vmem:[%s2999 + $0x51] sm:$0xff]
      %v4193 = vld [vmem:[%s2999 + $0x61] sm:$0xff]
      %v4194 = vld [vmem:[%s2999 + $0x71] sm:$0xff]
      %v4195 = vpack.c.bf16 %v4187, %v4187
      %v4196 = vpack.c.bf16 %v4188, %v4188
      %v4197 = vpack.c.bf16 %v4189, %v4189
      %v4198 = vpack.c.bf16 %v4190, %v4190
      %v4199 = vpack.c.bf16 %v4191, %v4191
      %v4200 = vpack.c.bf16 %v4192, %v4192
      %v4201 = vpack.c.bf16 %v4193, %v4193
      %v4202 = vpack.c.bf16 %v4194, %v4194
      %4211 = vrot.lane.b32.xlu0 %v4195, 64
      %v4212 = vpop.permute.xlu0 %4211
      %4213 = vrot.lane.b32.xlu0 %v4196, 64
      %v4214 = vpop.permute.xlu0 %4213
      %4215 = vrot.lane.b32.xlu0 %v4197, 64
      %v4216 = vpop.permute.xlu0 %4215
      %4217 = vrot.lane.b32.xlu0 %v4198, 64
      %v4218 = vpop.permute.xlu0 %4217
      %4219 = vrot.lane.b32.xlu0 %v4199, 64
      %v4220 = vpop.permute.xlu0 %4219
      %4221 = vrot.lane.b32.xlu0 %v4200, 64
      %v4222 = vpop.permute.xlu0 %4221
      %4223 = vrot.lane.b32.xlu0 %v4201, 64
      %v4224 = vpop.permute.xlu0 %4223
      %4225 = vrot.lane.b32.xlu0 %v4202, 64
      %v4226 = vpop.permute.xlu0 %4225
      %4235 = vst.msk [vmem:[#allocation4 + $0x1e4] sm:$0xf] %vm886, %v4212
      %4236 = vst.msk [vmem:[#allocation4 + $0x1f8] sm:$0xf] %vm886, %v4214
      %4237 = vst.msk [vmem:[#allocation4 + $0x20c] sm:$0xf] %vm886, %v4216
      %4238 = vst.msk [vmem:[#allocation4 + $0x220] sm:$0xf] %vm886, %v4218
      %4239 = vst.msk [vmem:[#allocation4 + $0x234] sm:$0xf] %vm886, %v4220
      %4240 = vst.msk [vmem:[#allocation4 + $0x248] sm:$0xf] %vm886, %v4222
      %4241 = vst.msk [vmem:[#allocation4 + $0x25c] sm:$0xf] %vm886, %v4224
      %4242 = vst.msk [vmem:[#allocation4 + $0x270] sm:$0xf] %vm886, %v4226
      %v4243 = vld [vmem:[%s3040 + $0x1] sm:$0xff]
      %v4244 = vld [vmem:[%s3040 + $0x11] sm:$0xff]
      %v4245 = vld [vmem:[%s3040 + $0x21] sm:$0xff]
      %v4246 = vld [vmem:[%s3040 + $0x31] sm:$0xff]
      %v4247 = vld [vmem:[%s3040 + $0x41] sm:$0xff]
      %v4248 = vld [vmem:[%s3040 + $0x51] sm:$0xff]
      %v4249 = vld [vmem:[%s3040 + $0x61] sm:$0xff]
      %v4250 = vld [vmem:[%s3040 + $0x71] sm:$0xff]
      %v4251 = vpack.c.bf16 %v4243, %v4243
      %v4252 = vpack.c.bf16 %v4244, %v4244
      %v4253 = vpack.c.bf16 %v4245, %v4245
      %v4254 = vpack.c.bf16 %v4246, %v4246
      %v4255 = vpack.c.bf16 %v4247, %v4247
      %v4256 = vpack.c.bf16 %v4248, %v4248
      %v4257 = vpack.c.bf16 %v4249, %v4249
      %v4258 = vpack.c.bf16 %v4250, %v4250
      %4259 = vst.msk [vmem:[#allocation4 + $0x1e8] sm:$0xf] %vm829, %v4251
      %4260 = vst.msk [vmem:[#allocation4 + $0x1fc] sm:$0xf] %vm829, %v4252
      %4261 = vst.msk [vmem:[#allocation4 + $0x210] sm:$0xf] %vm829, %v4253
      %4262 = vst.msk [vmem:[#allocation4 + $0x224] sm:$0xf] %vm829, %v4254
      %4263 = vst.msk [vmem:[#allocation4 + $0x238] sm:$0xf] %vm829, %v4255
      %4264 = vst.msk [vmem:[#allocation4 + $0x24c] sm:$0xf] %vm829, %v4256
      %4265 = vst.msk [vmem:[#allocation4 + $0x260] sm:$0xf] %vm829, %v4257
      %4266 = vst.msk [vmem:[#allocation4 + $0x274] sm:$0xf] %vm829, %v4258
      %v4267 = vld [vmem:[%s2999 + $0x2] sm:$0xff]
      %v4268 = vld [vmem:[%s2999 + $0x12] sm:$0xff]
      %v4269 = vld [vmem:[%s2999 + $0x22] sm:$0xff]
      %v4270 = vld [vmem:[%s2999 + $0x32] sm:$0xff]
      %v4271 = vld [vmem:[%s2999 + $0x42] sm:$0xff]
      %v4272 = vld [vmem:[%s2999 + $0x52] sm:$0xff]
      %v4273 = vld [vmem:[%s2999 + $0x62] sm:$0xff]
      %v4274 = vld [vmem:[%s2999 + $0x72] sm:$0xff]
      %v4275 = vpack.c.bf16 %v4267, %v4267
      %v4276 = vpack.c.bf16 %v4268, %v4268
      %v4277 = vpack.c.bf16 %v4269, %v4269
      %v4278 = vpack.c.bf16 %v4270, %v4270
      %v4279 = vpack.c.bf16 %v4271, %v4271
      %v4280 = vpack.c.bf16 %v4272, %v4272
      %v4281 = vpack.c.bf16 %v4273, %v4273
      %v4282 = vpack.c.bf16 %v4274, %v4274
      %4291 = vrot.lane.b32.xlu0 %v4275, 64
      %v4292 = vpop.permute.xlu0 %4291
      %4293 = vrot.lane.b32.xlu0 %v4276, 64
      %v4294 = vpop.permute.xlu0 %4293
      %4295 = vrot.lane.b32.xlu0 %v4277, 64
      %v4296 = vpop.permute.xlu0 %4295
      %4297 = vrot.lane.b32.xlu0 %v4278, 64
      %v4298 = vpop.permute.xlu0 %4297
      %4299 = vrot.lane.b32.xlu0 %v4279, 64
      %v4300 = vpop.permute.xlu0 %4299
      %4301 = vrot.lane.b32.xlu0 %v4280, 64
      %v4302 = vpop.permute.xlu0 %4301
      %4303 = vrot.lane.b32.xlu0 %v4281, 64
      %v4304 = vpop.permute.xlu0 %4303
      %4305 = vrot.lane.b32.xlu0 %v4282, 64
      %v4306 = vpop.permute.xlu0 %4305
      %4315 = vst.msk [vmem:[#allocation4 + $0x1e8] sm:$0xf] %vm886, %v4292
      %4316 = vst.msk [vmem:[#allocation4 + $0x1fc] sm:$0xf] %vm886, %v4294
      %4317 = vst.msk [vmem:[#allocation4 + $0x210] sm:$0xf] %vm886, %v4296
      %4318 = vst.msk [vmem:[#allocation4 + $0x224] sm:$0xf] %vm886, %v4298
      %4319 = vst.msk [vmem:[#allocation4 + $0x238] sm:$0xf] %vm886, %v4300
      %4320 = vst.msk [vmem:[#allocation4 + $0x24c] sm:$0xf] %vm886, %v4302
      %4321 = vst.msk [vmem:[#allocation4 + $0x260] sm:$0xf] %vm886, %v4304
      %4322 = vst.msk [vmem:[#allocation4 + $0x274] sm:$0xf] %vm886, %v4306
      %v4323 = vld [vmem:[%s4002 + $0x1] sm:$0xff]
      %v4324 = vld [vmem:[%s4002 + $0x11] sm:$0xff]
      %v4325 = vld [vmem:[%s4002 + $0x21] sm:$0xff]
      %v4326 = vld [vmem:[%s4002 + $0x31] sm:$0xff]
      %v4327 = vld [vmem:[%s4002 + $0x41] sm:$0xff]
      %v4328 = vld [vmem:[%s4002 + $0x51] sm:$0xff]
      %v4329 = vld [vmem:[%s4002 + $0x61] sm:$0xff]
      %v4330 = vld [vmem:[%s4002 + $0x71] sm:$0xff]
      %v4331 = vpack.c.bf16 %v4323, %v4323
      %v4332 = vpack.c.bf16 %v4324, %v4324
      %v4333 = vpack.c.bf16 %v4325, %v4325
      %v4334 = vpack.c.bf16 %v4326, %v4326
      %v4335 = vpack.c.bf16 %v4327, %v4327
      %v4336 = vpack.c.bf16 %v4328, %v4328
      %v4337 = vpack.c.bf16 %v4329, %v4329
      %v4338 = vpack.c.bf16 %v4330, %v4330
      %4339 = vst.msk [vmem:[#allocation4 + $0x1ec] sm:$0xf] %vm829, %v4331
      %4340 = vst.msk [vmem:[#allocation4 + $0x200] sm:$0xf] %vm829, %v4332
      %4341 = vst.msk [vmem:[#allocation4 + $0x214] sm:$0xf] %vm829, %v4333
      %4342 = vst.msk [vmem:[#allocation4 + $0x228] sm:$0xf] %vm829, %v4334
      %4343 = vst.msk [vmem:[#allocation4 + $0x23c] sm:$0xf] %vm829, %v4335
      %4344 = vst.msk [vmem:[#allocation4 + $0x250] sm:$0xf] %vm829, %v4336
      %4345 = vst.msk [vmem:[#allocation4 + $0x264] sm:$0xf] %vm829, %v4337
      %4346 = vst.msk [vmem:[#allocation4 + $0x278] sm:$0xf] %vm829, %v4338
      %v4347 = vld [vmem:[%s3977 + $0x1] sm:$0xff]
      %v4348 = vld [vmem:[%s3977 + $0x11] sm:$0xff]
      %v4349 = vld [vmem:[%s3977 + $0x21] sm:$0xff]
      %v4350 = vld [vmem:[%s3977 + $0x31] sm:$0xff]
      %v4351 = vld [vmem:[%s3977 + $0x41] sm:$0xff]
      %v4352 = vld [vmem:[%s3977 + $0x51] sm:$0xff]
      %v4353 = vld [vmem:[%s3977 + $0x61] sm:$0xff]
      %v4354 = vld [vmem:[%s3977 + $0x71] sm:$0xff]
      %v4355 = vpack.c.bf16 %v4347, %v4347
      %v4356 = vpack.c.bf16 %v4348, %v4348
      %v4357 = vpack.c.bf16 %v4349, %v4349
      %v4358 = vpack.c.bf16 %v4350, %v4350
      %v4359 = vpack.c.bf16 %v4351, %v4351
      %v4360 = vpack.c.bf16 %v4352, %v4352
      %v4361 = vpack.c.bf16 %v4353, %v4353
      %v4362 = vpack.c.bf16 %v4354, %v4354
      %4371 = vrot.lane.b32.xlu0 %v4355, 64
      %v4372 = vpop.permute.xlu0 %4371
      %4373 = vrot.lane.b32.xlu0 %v4356, 64
      %v4374 = vpop.permute.xlu0 %4373
      %4375 = vrot.lane.b32.xlu0 %v4357, 64
      %v4376 = vpop.permute.xlu0 %4375
      %4377 = vrot.lane.b32.xlu0 %v4358, 64
      %v4378 = vpop.permute.xlu0 %4377
      %4379 = vrot.lane.b32.xlu0 %v4359, 64
      %v4380 = vpop.permute.xlu0 %4379
      %4381 = vrot.lane.b32.xlu0 %v4360, 64
      %v4382 = vpop.permute.xlu0 %4381
      %4383 = vrot.lane.b32.xlu0 %v4361, 64
      %v4384 = vpop.permute.xlu0 %4383
      %4385 = vrot.lane.b32.xlu0 %v4362, 64
      %v4386 = vpop.permute.xlu0 %4385
      %4395 = vst.msk [vmem:[#allocation4 + $0x1ec] sm:$0xf] %vm886, %v4372
      %4396 = vst.msk [vmem:[#allocation4 + $0x200] sm:$0xf] %vm886, %v4374
      %4397 = vst.msk [vmem:[#allocation4 + $0x214] sm:$0xf] %vm886, %v4376
      %4398 = vst.msk [vmem:[#allocation4 + $0x228] sm:$0xf] %vm886, %v4378
      %4399 = vst.msk [vmem:[#allocation4 + $0x23c] sm:$0xf] %vm886, %v4380
      %4400 = vst.msk [vmem:[#allocation4 + $0x250] sm:$0xf] %vm886, %v4382
      %4401 = vst.msk [vmem:[#allocation4 + $0x264] sm:$0xf] %vm886, %v4384
      %4402 = vst.msk [vmem:[#allocation4 + $0x278] sm:$0xf] %vm886, %v4386
      %v4403 = vld [vmem:[%s4002 + $0x2] sm:$0xff]
      %v4404 = vld [vmem:[%s4002 + $0x12] sm:$0xff]
      %v4405 = vld [vmem:[%s4002 + $0x22] sm:$0xff]
      %v4406 = vld [vmem:[%s4002 + $0x32] sm:$0xff]
      %v4407 = vld [vmem:[%s4002 + $0x42] sm:$0xff]
      %v4408 = vld [vmem:[%s4002 + $0x52] sm:$0xff]
      %v4409 = vld [vmem:[%s4002 + $0x62] sm:$0xff]
      %v4410 = vld [vmem:[%s4002 + $0x72] sm:$0xff]
      %v4411 = vpack.c.bf16 %v4403, %v4403
      %v4412 = vpack.c.bf16 %v4404, %v4404
      %v4413 = vpack.c.bf16 %v4405, %v4405
      %v4414 = vpack.c.bf16 %v4406, %v4406
      %v4415 = vpack.c.bf16 %v4407, %v4407
      %v4416 = vpack.c.bf16 %v4408, %v4408
      %v4417 = vpack.c.bf16 %v4409, %v4409
      %v4418 = vpack.c.bf16 %v4410, %v4410
      %4419 = vst.msk [vmem:[#allocation4 + $0x1f0] sm:$0xf] %vm829, %v4411
      %4420 = vst.msk [vmem:[#allocation4 + $0x204] sm:$0xf] %vm829, %v4412
      %4421 = vst.msk [vmem:[#allocation4 + $0x218] sm:$0xf] %vm829, %v4413
      %4422 = vst.msk [vmem:[#allocation4 + $0x22c] sm:$0xf] %vm829, %v4414
      %4423 = vst.msk [vmem:[#allocation4 + $0x240] sm:$0xf] %vm829, %v4415
      %4424 = vst.msk [vmem:[#allocation4 + $0x254] sm:$0xf] %vm829, %v4416
      %4425 = vst.msk [vmem:[#allocation4 + $0x268] sm:$0xf] %vm829, %v4417
      %4426 = vst.msk [vmem:[#allocation4 + $0x27c] sm:$0xf] %vm829, %v4418
      %v4427 = vld [vmem:[#allocation4] sm:$0xff]
      %v4428 = vld [vmem:[#allocation4 + $0x8] sm:$0xff]
      %v4429 = vld [vmem:[#allocation4 + $0x10] sm:$0xf]
      %v4430 = vld [vmem:[#allocation4 + $0x14] sm:$0xff]
      %v4431 = vld [vmem:[#allocation4 + $0x1c] sm:$0xff]
      %v4432 = vld [vmem:[#allocation4 + $0x24] sm:$0xf]
      %v4433 = vld [vmem:[#allocation4 + $0x28] sm:$0xff]
      %v4434 = vld [vmem:[#allocation4 + $0x30] sm:$0xff]
      %v4435 = vld [vmem:[#allocation4 + $0x38] sm:$0xf]
      %v4436 = vld [vmem:[#allocation4 + $0x3c] sm:$0xff]
      %v4437 = vld [vmem:[#allocation4 + $0x44] sm:$0xff]
      %v4438 = vld [vmem:[#allocation4 + $0x4c] sm:$0xf]
      %v4439 = vld [vmem:[#allocation4 + $0x50] sm:$0xff]
      %v4440 = vld [vmem:[#allocation4 + $0x58] sm:$0xff]
      %v4441 = vld [vmem:[#allocation4 + $0x60] sm:$0xf]
      %v4442 = vld [vmem:[#allocation4 + $0x64] sm:$0xff]
      %v4443 = vld [vmem:[#allocation4 + $0x6c] sm:$0xff]
      %v4444 = vld [vmem:[#allocation4 + $0x74] sm:$0xf]
      %v4445 = vld [vmem:[#allocation4 + $0x78] sm:$0xff]
      %v4446 = vld [vmem:[#allocation4 + $0x80] sm:$0xff]
      %v4447 = vld [vmem:[#allocation4 + $0x88] sm:$0xf]
      %v4448 = vld [vmem:[#allocation4 + $0x8c] sm:$0xff]
      %v4449 = vld [vmem:[#allocation4 + $0x94] sm:$0xff]
      %v4450 = vld [vmem:[#allocation4 + $0x9c] sm:$0xf]
      %v4451 = vld [vmem:[#allocation4 + $0xa0] sm:$0xff]
      %v4452 = vld [vmem:[#allocation4 + $0xa8] sm:$0xff]
      %v4453 = vld [vmem:[#allocation4 + $0xb0] sm:$0xf]
      %v4454 = vld [vmem:[#allocation4 + $0xb4] sm:$0xff]
      %v4455 = vld [vmem:[#allocation4 + $0xbc] sm:$0xff]
      %v4456 = vld [vmem:[#allocation4 + $0xc4] sm:$0xf]
      %v4457 = vld [vmem:[#allocation4 + $0xc8] sm:$0xff]
      %v4458 = vld [vmem:[#allocation4 + $0xd0] sm:$0xff]
      %v4459 = vld [vmem:[#allocation4 + $0xd8] sm:$0xf]
      %v4460 = vld [vmem:[#allocation4 + $0xdc] sm:$0xff]
      %v4461 = vld [vmem:[#allocation4 + $0xe4] sm:$0xff]
      %v4462 = vld [vmem:[#allocation4 + $0xec] sm:$0xf]
      %v4463 = vld [vmem:[#allocation4 + $0xf0] sm:$0xff]
      %v4464 = vld [vmem:[#allocation4 + $0xf8] sm:$0xff]
      %v4465 = vld [vmem:[#allocation4 + $0x100] sm:$0xf]
      %v4466 = vld [vmem:[#allocation4 + $0x104] sm:$0xff]
      %v4467 = vld [vmem:[#allocation4 + $0x10c] sm:$0xff]
      %v4468 = vld [vmem:[#allocation4 + $0x114] sm:$0xf]
      %v4469 = vld [vmem:[#allocation4 + $0x118] sm:$0xff]
      %v4470 = vld [vmem:[#allocation4 + $0x120] sm:$0xff]
      %v4471 = vld [vmem:[#allocation4 + $0x128] sm:$0xf]
      %v4472 = vld [vmem:[#allocation4 + $0x12c] sm:$0xff]
      %v4473 = vld [vmem:[#allocation4 + $0x134] sm:$0xff]
      %v4474 = vld [vmem:[#allocation4 + $0x13c] sm:$0xf]
      %v4475 = vld [vmem:[#allocation4 + $0x140] sm:$0xff]
      %v4476 = vld [vmem:[#allocation4 + $0x148] sm:$0xff]
      %v4477 = vld [vmem:[#allocation4 + $0x150] sm:$0xf]
      %v4478 = vld [vmem:[#allocation4 + $0x154] sm:$0xff]
      %v4479 = vld [vmem:[#allocation4 + $0x15c] sm:$0xff]
      %v4480 = vld [vmem:[#allocation4 + $0x164] sm:$0xf]
      %v4481 = vld [vmem:[#allocation4 + $0x168] sm:$0xff]
      %v4482 = vld [vmem:[#allocation4 + $0x170] sm:$0xff]
      %v4483 = vld [vmem:[#allocation4 + $0x178] sm:$0xf]
      %v4484 = vld [vmem:[#allocation4 + $0x17c] sm:$0xff]
      %v4485 = vld [vmem:[#allocation4 + $0x184] sm:$0xff]
      %v4486 = vld [vmem:[#allocation4 + $0x18c] sm:$0xf]
      %v4487 = vld [vmem:[#allocation4 + $0x190] sm:$0xff]
      %v4488 = vld [vmem:[#allocation4 + $0x198] sm:$0xff]
      %v4489 = vld [vmem:[#allocation4 + $0x1a0] sm:$0xf]
      %v4490 = vld [vmem:[#allocation4 + $0x1a4] sm:$0xff]
      %v4491 = vld [vmem:[#allocation4 + $0x1ac] sm:$0xff]
      %v4492 = vld [vmem:[#allocation4 + $0x1b4] sm:$0xf]
      %v4493 = vld [vmem:[#allocation4 + $0x1b8] sm:$0xff]
      %v4494 = vld [vmem:[#allocation4 + $0x1c0] sm:$0xff]
      %v4495 = vld [vmem:[#allocation4 + $0x1c8] sm:$0xf]
      %v4496 = vld [vmem:[#allocation4 + $0x1cc] sm:$0xff]
      %v4497 = vld [vmem:[#allocation4 + $0x1d4] sm:$0xff]
      %v4498 = vld [vmem:[#allocation4 + $0x1dc] sm:$0xf]
      %v4499 = vld [vmem:[#allocation4 + $0x1e0] sm:$0xff]
      %v4500 = vld [vmem:[#allocation4 + $0x1e8] sm:$0xff]
      %v4501 = vld [vmem:[#allocation4 + $0x1f0] sm:$0xf]
      %v4502 = vld [vmem:[#allocation4 + $0x1f4] sm:$0xff]
      %v4503 = vld [vmem:[#allocation4 + $0x1fc] sm:$0xff]
      %v4504 = vld [vmem:[#allocation4 + $0x204] sm:$0xf]
      %v4505 = vld [vmem:[#allocation4 + $0x208] sm:$0xff]
      %v4506 = vld [vmem:[#allocation4 + $0x210] sm:$0xff]
      %v4507 = vld [vmem:[#allocation4 + $0x218] sm:$0xf]
      %v4508 = vld [vmem:[#allocation4 + $0x21c] sm:$0xff]
      %v4509 = vld [vmem:[#allocation4 + $0x224] sm:$0xff]
      %v4510 = vld [vmem:[#allocation4 + $0x22c] sm:$0xf]
      %v4511 = vld [vmem:[#allocation4 + $0x230] sm:$0xff]
      %v4512 = vld [vmem:[#allocation4 + $0x238] sm:$0xff]
      %v4513 = vld [vmem:[#allocation4 + $0x240] sm:$0xf]
      %v4514 = vld [vmem:[#allocation4 + $0x244] sm:$0xff]
      %v4515 = vld [vmem:[#allocation4 + $0x24c] sm:$0xff]
      %v4516 = vld [vmem:[#allocation4 + $0x254] sm:$0xf]
      %v4517 = vld [vmem:[#allocation4 + $0x258] sm:$0xff]
      %v4518 = vld [vmem:[#allocation4 + $0x260] sm:$0xff]
      %v4519 = vld [vmem:[#allocation4 + $0x268] sm:$0xf]
      %v4520 = vld [vmem:[#allocation4 + $0x26c] sm:$0xff]
      %v4521 = vld [vmem:[#allocation4 + $0x274] sm:$0xff]
      %v4522 = vld [vmem:[#allocation4 + $0x27c] sm:$0xf]
      %v4523 = vld [vmem:[%s7] sm:$0xf]
      %v4524 = vld [vmem:[%s7 + $0x4] sm:$0xf]
      %v4525 = vld [vmem:[%s7 + $0x8] sm:$0xf]
      %v4526 = vld [vmem:[%s7 + $0xc] sm:$0xf]
      %v4527 = vld [vmem:[%s7 + $0x10] sm:$0xf]
      %v4528 = vld [vmem:[%s7 + $0x14] sm:$0xf]
      %v4529 = vld [vmem:[%s7 + $0x18] sm:$0xf]
      %v4530 = vld [vmem:[%s7 + $0x1c] sm:$0xf]
      %v4531 = vld [vmem:[%s7 + $0x20] sm:$0xf]
      %v4532 = vld [vmem:[%s7 + $0x24] sm:$0xf]
      %v4533 = vld [vmem:[%s7 + $0x28] sm:$0xf]
      %v4534 = vld [vmem:[%s7 + $0x2c] sm:$0xf]
      %v4535 = vld [vmem:[%s7 + $0x30] sm:$0xf]
      %v4536 = vld [vmem:[%s7 + $0x34] sm:$0xf]
      %v4537 = vld [vmem:[%s7 + $0x38] sm:$0xf]
      %v4538 = vld [vmem:[%s7 + $0x3c] sm:$0xf]
      %v4539 = vld [vmem:[%s7 + $0x40] sm:$0xf]
      %v4540 = vld [vmem:[%s7 + $0x44] sm:$0xf]
      %v4541 = vld [vmem:[%s7 + $0x48] sm:$0xf]
      %v4542 = vld [vmem:[%s7 + $0x4c] sm:$0xf]
      %v4543 = vld [vmem:[%s7 + $0x50] sm:$0xf]
      %v4544 = vld [vmem:[%s7 + $0x54] sm:$0xf]
      %v4545 = vld [vmem:[%s7 + $0x58] sm:$0xf]
      %v4546 = vld [vmem:[%s7 + $0x5c] sm:$0xf]
      %v4547 = vld [vmem:[%s7 + $0x60] sm:$0xf]
      %v4548 = vld [vmem:[%s7 + $0x64] sm:$0xf]
      %v4549 = vld [vmem:[%s7 + $0x68] sm:$0xf]
      %v4550 = vld [vmem:[%s7 + $0x6c] sm:$0xf]
      %v4551 = vld [vmem:[%s7 + $0x70] sm:$0xf]
      %v4552 = vld [vmem:[%s7 + $0x74] sm:$0xf]
      %v4553 = vld [vmem:[%s7 + $0x78] sm:$0xf]
      %v4554 = vld [vmem:[%s7 + $0x7c] sm:$0xf]
      %v4555 = vld [vmem:[%s7 + $0x80] sm:$0xf]
      %v4556 = vld [vmem:[%s7 + $0x84] sm:$0xf]
      %v4557 = vld [vmem:[%s7 + $0x88] sm:$0xf]
      %v4558 = vld [vmem:[%s7 + $0x8c] sm:$0xf]
      %v4559 = vld [vmem:[%s7 + $0x90] sm:$0xf]
      %v4560 = vld [vmem:[%s7 + $0x94] sm:$0xf]
      %v4561 = vld [vmem:[%s7 + $0x98] sm:$0xf]
      %v4562 = vld [vmem:[%s7 + $0x9c] sm:$0xf]
      %v4563 = vld [vmem:[%s7 + $0xa0] sm:$0xf]
      %v4564 = vld [vmem:[%s7 + $0xa4] sm:$0xf]
      %v4565 = vld [vmem:[%s7 + $0xa8] sm:$0xf]
      %v4566 = vld [vmem:[%s7 + $0xac] sm:$0xf]
      %v4567 = vld [vmem:[%s7 + $0xb0] sm:$0xf]
      %v4568 = vld [vmem:[%s7 + $0xb4] sm:$0xf]
      %v4569 = vld [vmem:[%s7 + $0xb8] sm:$0xf]
      %v4570 = vld [vmem:[%s7 + $0xbc] sm:$0xf]
      %v4571 = vld [vmem:[%s7 + $0xc0] sm:$0xf]
      %v4572 = vld [vmem:[%s7 + $0xc4] sm:$0xf]
      %v4573 = vld [vmem:[%s7 + $0xc8] sm:$0xf]
      %v4574 = vld [vmem:[%s7 + $0xcc] sm:$0xf]
      %v4575 = vld [vmem:[%s7 + $0xd0] sm:$0xf]
      %v4576 = vld [vmem:[%s7 + $0xd4] sm:$0xf]
      %v4577 = vld [vmem:[%s7 + $0xd8] sm:$0xf]
      %v4578 = vld [vmem:[%s7 + $0xdc] sm:$0xf]
      %v4579 = vld [vmem:[%s7 + $0xe0] sm:$0xf]
      %v4580 = vld [vmem:[%s7 + $0xe4] sm:$0xf]
      %v4581 = vld [vmem:[%s7 + $0xe8] sm:$0xf]
      %v4582 = vld [vmem:[%s7 + $0xec] sm:$0xf]
      %v4583 = vld [vmem:[%s7 + $0xf0] sm:$0xf]
      %v4584 = vld [vmem:[%s7 + $0xf4] sm:$0xf]
      %v4585 = vld [vmem:[%s7 + $0xf8] sm:$0xf]
      %v4586 = vld [vmem:[%s7 + $0xfc] sm:$0xf]
      %v4587 = vld [vmem:[%s7 + $0x100] sm:$0xf]
      %v4588 = vld [vmem:[%s7 + $0x104] sm:$0xf]
      %v4589 = vld [vmem:[%s7 + $0x108] sm:$0xf]
      %v4590 = vld [vmem:[%s7 + $0x10c] sm:$0xf]
      %v4591 = vld [vmem:[%s7 + $0x110] sm:$0xf]
      %v4592 = vld [vmem:[%s7 + $0x114] sm:$0xf]
      %v4593 = vld [vmem:[%s7 + $0x118] sm:$0xf]
      %v4594 = vld [vmem:[%s7 + $0x11c] sm:$0xf]
      %v4595 = vld [vmem:[%s8] sm:$0x1]
      %v4597 = vperm.slane %v4595, 0
      %v4695 = vunpack.c.l.b16 %v4427
      %v4696 = vunpack.c.h.b16 %v4427
      %v4697 = vunpack.c.l.b16 %v4428
      %v4698 = vunpack.c.h.b16 %v4428
      %v4699 = vunpack.c.l.b16 %v4429
      %v4700 = vunpack.c.l.b16 %v4430
      %v4701 = vunpack.c.h.b16 %v4430
      %v4702 = vunpack.c.l.b16 %v4431
      %v4703 = vunpack.c.h.b16 %v4431
      %v4704 = vunpack.c.l.b16 %v4432
      %v4705 = vunpack.c.l.b16 %v4433
      %v4706 = vunpack.c.h.b16 %v4433
      %v4707 = vunpack.c.l.b16 %v4434
      %v4708 = vunpack.c.h.b16 %v4434
      %v4709 = vunpack.c.l.b16 %v4435
      %v4710 = vunpack.c.l.b16 %v4436
      %v4711 = vunpack.c.h.b16 %v4436
      %v4712 = vunpack.c.l.b16 %v4437
      %v4713 = vunpack.c.h.b16 %v4437
      %v4714 = vunpack.c.l.b16 %v4438
      %v4715 = vunpack.c.l.b16 %v4439
      %v4716 = vunpack.c.h.b16 %v4439
      %v4717 = vunpack.c.l.b16 %v4440
      %v4718 = vunpack.c.h.b16 %v4440
      %v4719 = vunpack.c.l.b16 %v4441
      %v4720 = vunpack.c.l.b16 %v4442
      %v4721 = vunpack.c.h.b16 %v4442
      %v4722 = vunpack.c.l.b16 %v4443
      %v4723 = vunpack.c.h.b16 %v4443
      %v4724 = vunpack.c.l.b16 %v4444
      %v4725 = vunpack.c.l.b16 %v4445
      %v4726 = vunpack.c.h.b16 %v4445
      %v4727 = vunpack.c.l.b16 %v4446
      %v4728 = vunpack.c.h.b16 %v4446
      %v4729 = vunpack.c.l.b16 %v4447
      %v4730 = vunpack.c.l.b16 %v4448
      %v4731 = vunpack.c.h.b16 %v4448
      %v4732 = vunpack.c.l.b16 %v4449
      %v4733 = vunpack.c.h.b16 %v4449
      %v4734 = vunpack.c.l.b16 %v4450
      %v4735 = vunpack.c.l.b16 %v4451
      %v4736 = vunpack.c.h.b16 %v4451
      %v4737 = vunpack.c.l.b16 %v4452
      %v4738 = vunpack.c.h.b16 %v4452
      %v4739 = vunpack.c.l.b16 %v4453
      %v4740 = vunpack.c.l.b16 %v4454
      %v4741 = vunpack.c.h.b16 %v4454
      %v4742 = vunpack.c.l.b16 %v4455
      %v4743 = vunpack.c.h.b16 %v4455
      %v4744 = vunpack.c.l.b16 %v4456
      %v4745 = vunpack.c.l.b16 %v4457
      %v4746 = vunpack.c.h.b16 %v4457
      %v4747 = vunpack.c.l.b16 %v4458
      %v4748 = vunpack.c.h.b16 %v4458
      %v4749 = vunpack.c.l.b16 %v4459
      %v4750 = vunpack.c.l.b16 %v4460
      %v4751 = vunpack.c.h.b16 %v4460
      %v4752 = vunpack.c.l.b16 %v4461
      %v4753 = vunpack.c.h.b16 %v4461
      %v4754 = vunpack.c.l.b16 %v4462
      %v4755 = vunpack.c.l.b16 %v4463
      %v4756 = vunpack.c.h.b16 %v4463
      %v4757 = vunpack.c.l.b16 %v4464
      %v4758 = vunpack.c.h.b16 %v4464
      %v4759 = vunpack.c.l.b16 %v4465
      %v4760 = vunpack.c.l.b16 %v4466
      %v4761 = vunpack.c.h.b16 %v4466
      %v4762 = vunpack.c.l.b16 %v4467
      %v4763 = vunpack.c.h.b16 %v4467
      %v4764 = vunpack.c.l.b16 %v4468
      %v4765 = vunpack.c.l.b16 %v4469
      %v4766 = vunpack.c.h.b16 %v4469
      %v4767 = vunpack.c.l.b16 %v4470
      %v4768 = vunpack.c.h.b16 %v4470
      %v4769 = vunpack.c.l.b16 %v4471
      %v4770 = vunpack.c.l.b16 %v4472
      %v4771 = vunpack.c.h.b16 %v4472
      %v4772 = vunpack.c.l.b16 %v4473
      %v4773 = vunpack.c.h.b16 %v4473
      %v4774 = vunpack.c.l.b16 %v4474
      %v4775 = vunpack.c.l.b16 %v4475
      %v4776 = vunpack.c.h.b16 %v4475
      %v4777 = vunpack.c.l.b16 %v4476
      %v4778 = vunpack.c.h.b16 %v4476
      %v4779 = vunpack.c.l.b16 %v4477
      %v4780 = vunpack.c.l.b16 %v4478
      %v4781 = vunpack.c.h.b16 %v4478
      %v4782 = vunpack.c.l.b16 %v4479
      %v4783 = vunpack.c.h.b16 %v4479
      %v4784 = vunpack.c.l.b16 %v4480
      %v4785 = vunpack.c.l.b16 %v4481
      %v4786 = vunpack.c.h.b16 %v4481
      %v4787 = vunpack.c.l.b16 %v4482
      %v4788 = vunpack.c.h.b16 %v4482
      %v4789 = vunpack.c.l.b16 %v4483
      %v4790 = vunpack.c.l.b16 %v4484
      %v4791 = vunpack.c.h.b16 %v4484
      %v4792 = vunpack.c.l.b16 %v4485
      %v4793 = vunpack.c.h.b16 %v4485
      %v4794 = vunpack.c.l.b16 %v4486
      %v4795 = vunpack.c.l.b16 %v4487
      %v4796 = vunpack.c.h.b16 %v4487
      %v4797 = vunpack.c.l.b16 %v4488
      %v4798 = vunpack.c.h.b16 %v4488
      %v4799 = vunpack.c.l.b16 %v4489
      %v4800 = vunpack.c.l.b16 %v4490
      %v4801 = vunpack.c.h.b16 %v4490
      %v4802 = vunpack.c.l.b16 %v4491
      %v4803 = vunpack.c.h.b16 %v4491
      %v4804 = vunpack.c.l.b16 %v4492
      %v4805 = vunpack.c.l.b16 %v4493
      %v4806 = vunpack.c.h.b16 %v4493
      %v4807 = vunpack.c.l.b16 %v4494
      %v4808 = vunpack.c.h.b16 %v4494
      %v4809 = vunpack.c.l.b16 %v4495
      %v4810 = vunpack.c.l.b16 %v4496
      %v4811 = vunpack.c.h.b16 %v4496
      %v4812 = vunpack.c.l.b16 %v4497
      %v4813 = vunpack.c.h.b16 %v4497
      %v4814 = vunpack.c.l.b16 %v4498
      %v4815 = vunpack.c.l.b16 %v4499
      %v4816 = vunpack.c.h.b16 %v4499
      %v4817 = vunpack.c.l.b16 %v4500
      %v4818 = vunpack.c.h.b16 %v4500
      %v4819 = vunpack.c.l.b16 %v4501
      %v4820 = vunpack.c.l.b16 %v4502
      %v4821 = vunpack.c.h.b16 %v4502
      %v4822 = vunpack.c.l.b16 %v4503
      %v4823 = vunpack.c.h.b16 %v4503
      %v4824 = vunpack.c.l.b16 %v4504
      %v4825 = vunpack.c.l.b16 %v4505
      %v4826 = vunpack.c.h.b16 %v4505
      %v4827 = vunpack.c.l.b16 %v4506
      %v4828 = vunpack.c.h.b16 %v4506
      %v4829 = vunpack.c.l.b16 %v4507
      %v4830 = vunpack.c.l.b16 %v4508
      %v4831 = vunpack.c.h.b16 %v4508
      %v4832 = vunpack.c.l.b16 %v4509
      %v4833 = vunpack.c.h.b16 %v4509
      %v4834 = vunpack.c.l.b16 %v4510
      %v4835 = vunpack.c.l.b16 %v4511
      %v4836 = vunpack.c.h.b16 %v4511
      %v4837 = vunpack.c.l.b16 %v4512
      %v4838 = vunpack.c.h.b16 %v4512
      %v4839 = vunpack.c.l.b16 %v4513
      %v4840 = vunpack.c.l.b16 %v4514
      %v4841 = vunpack.c.h.b16 %v4514
      %v4842 = vunpack.c.l.b16 %v4515
      %v4843 = vunpack.c.h.b16 %v4515
      %v4844 = vunpack.c.l.b16 %v4516
      %v4845 = vunpack.c.l.b16 %v4517
      %v4846 = vunpack.c.h.b16 %v4517
      %v4847 = vunpack.c.l.b16 %v4518
      %v4848 = vunpack.c.h.b16 %v4518
      %v4849 = vunpack.c.l.b16 %v4519
      %v4850 = vunpack.c.l.b16 %v4520
      %v4851 = vunpack.c.h.b16 %v4520
      %v4852 = vunpack.c.l.b16 %v4521
      %v4853 = vunpack.c.h.b16 %v4521
      %v4854 = vunpack.c.l.b16 %v4522
      %v4855 = vpack.c.b16 %v4700, %v4695
      %v4856 = vpack.c.b16 %v4701, %v4696
      %v4857 = vpack.c.b16 %v4702, %v4697
      %v4858 = vpack.c.b16 %v4703, %v4698
      %v4859 = vpack.c.b16 %v4704, %v4699
      %v4860 = vpack.c.b16 %v4710, %v4705
      %v4861 = vpack.c.b16 %v4711, %v4706
      %v4862 = vpack.c.b16 %v4712, %v4707
      %v4863 = vpack.c.b16 %v4713, %v4708
      %v4864 = vpack.c.b16 %v4714, %v4709
      %v4865 = vpack.c.b16 %v4720, %v4715
      %v4866 = vpack.c.b16 %v4721, %v4716
      %v4867 = vpack.c.b16 %v4722, %v4717
      %v4868 = vpack.c.b16 %v4723, %v4718
      %v4869 = vpack.c.b16 %v4724, %v4719
      %v4870 = vpack.c.b16 %v4730, %v4725
      %v4871 = vpack.c.b16 %v4731, %v4726
      %v4872 = vpack.c.b16 %v4732, %v4727
      %v4873 = vpack.c.b16 %v4733, %v4728
      %v4874 = vpack.c.b16 %v4734, %v4729
      %v4875 = vpack.c.b16 %v4740, %v4735
      %v4876 = vpack.c.b16 %v4741, %v4736
      %v4877 = vpack.c.b16 %v4742, %v4737
      %v4878 = vpack.c.b16 %v4743, %v4738
      %v4879 = vpack.c.b16 %v4744, %v4739
      %v4880 = vpack.c.b16 %v4750, %v4745
      %v4881 = vpack.c.b16 %v4751, %v4746
      %v4882 = vpack.c.b16 %v4752, %v4747
      %v4883 = vpack.c.b16 %v4753, %v4748
      %v4884 = vpack.c.b16 %v4754, %v4749
      %v4885 = vpack.c.b16 %v4760, %v4755
      %v4886 = vpack.c.b16 %v4761, %v4756
      %v4887 = vpack.c.b16 %v4762, %v4757
      %v4888 = vpack.c.b16 %v4763, %v4758
      %v4889 = vpack.c.b16 %v4764, %v4759
      %v4890 = vpack.c.b16 %v4770, %v4765
      %v4891 = vpack.c.b16 %v4771, %v4766
      %v4892 = vpack.c.b16 %v4772, %v4767
      %v4893 = vpack.c.b16 %v4773, %v4768
      %v4894 = vpack.c.b16 %v4774, %v4769
      %v4895 = vpack.c.b16 %v4780, %v4775
      %v4896 = vpack.c.b16 %v4781, %v4776
      %v4897 = vpack.c.b16 %v4782, %v4777
      %v4898 = vpack.c.b16 %v4783, %v4778
      %v4899 = vpack.c.b16 %v4784, %v4779
      %v4900 = vpack.c.b16 %v4790, %v4785
      %v4901 = vpack.c.b16 %v4791, %v4786
      %v4902 = vpack.c.b16 %v4792, %v4787
      %v4903 = vpack.c.b16 %v4793, %v4788
      %v4904 = vpack.c.b16 %v4794, %v4789
      %v4905 = vpack.c.b16 %v4800, %v4795
      %v4906 = vpack.c.b16 %v4801, %v4796
      %v4907 = vpack.c.b16 %v4802, %v4797
      %v4908 = vpack.c.b16 %v4803, %v4798
      %v4909 = vpack.c.b16 %v4804, %v4799
      %v4910 = vpack.c.b16 %v4810, %v4805
      %v4911 = vpack.c.b16 %v4811, %v4806
      %v4912 = vpack.c.b16 %v4812, %v4807
      %v4913 = vpack.c.b16 %v4813, %v4808
      %v4914 = vpack.c.b16 %v4814, %v4809
      %v4915 = vpack.c.b16 %v4820, %v4815
      %v4916 = vpack.c.b16 %v4821, %v4816
      %v4917 = vpack.c.b16 %v4822, %v4817
      %v4918 = vpack.c.b16 %v4823, %v4818
      %v4919 = vpack.c.b16 %v4824, %v4819
      %v4920 = vpack.c.b16 %v4830, %v4825
      %v4921 = vpack.c.b16 %v4831, %v4826
      %v4922 = vpack.c.b16 %v4832, %v4827
      %v4923 = vpack.c.b16 %v4833, %v4828
      %v4924 = vpack.c.b16 %v4834, %v4829
      %v4925 = vpack.c.b16 %v4840, %v4835
      %v4926 = vpack.c.b16 %v4841, %v4836
      %v4927 = vpack.c.b16 %v4842, %v4837
      %v4928 = vpack.c.b16 %v4843, %v4838
      %v4929 = vpack.c.b16 %v4844, %v4839
      %v4930 = vpack.c.b16 %v4850, %v4845
      %v4931 = vpack.c.b16 %v4851, %v4846
      %v4932 = vpack.c.b16 %v4852, %v4847
      %v4933 = vpack.c.b16 %v4853, %v4848
      %v4934 = vpack.c.b16 %v4854, %v4849
      %v5071 = vunpack.c.l.b16 %v4523
      %v5072 = vunpack.c.l.b16 %v4524
      %v5073 = vunpack.c.l.b16 %v4525
      %v5074 = vunpack.c.l.b16 %v4526
      %v5075 = vunpack.c.l.b16 %v4527
      %v5076 = vunpack.c.l.b16 %v4528
      %v5077 = vunpack.c.l.b16 %v4529
      %v5078 = vunpack.c.l.b16 %v4530
      %v5079 = vunpack.c.l.b16 %v4531
      %v5080 = vunpack.c.l.b16 %v4532
      %v5081 = vunpack.c.l.b16 %v4533
      %v5082 = vunpack.c.l.b16 %v4534
      %v5083 = vunpack.c.l.b16 %v4535
      %v5084 = vunpack.c.l.b16 %v4536
      %v5085 = vunpack.c.l.b16 %v4537
      %v5086 = vunpack.c.l.b16 %v4538
      %v5087 = vunpack.c.l.b16 %v4539
      %v5088 = vunpack.c.l.b16 %v4540
      %v5089 = vunpack.c.l.b16 %v4541
      %v5090 = vunpack.c.l.b16 %v4542
      %v5091 = vunpack.c.l.b16 %v4543
      %v5092 = vunpack.c.l.b16 %v4544
      %v5093 = vunpack.c.l.b16 %v4545
      %v5094 = vunpack.c.l.b16 %v4546
      %v5095 = vunpack.c.l.b16 %v4547
      %v5096 = vunpack.c.l.b16 %v4548
      %v5097 = vunpack.c.l.b16 %v4549
      %v5098 = vunpack.c.l.b16 %v4550
      %v5099 = vunpack.c.l.b16 %v4551
      %v5100 = vunpack.c.l.b16 %v4552
      %v5101 = vunpack.c.l.b16 %v4553
      %v5102 = vunpack.c.l.b16 %v4554
      %v5103 = vunpack.c.l.b16 %v4555
      %v5104 = vunpack.c.l.b16 %v4556
      %v5105 = vunpack.c.l.b16 %v4557
      %v5106 = vunpack.c.l.b16 %v4558
      %v5107 = vunpack.c.l.b16 %v4559
      %v5108 = vunpack.c.l.b16 %v4560
      %v5109 = vunpack.c.l.b16 %v4561
      %v5110 = vunpack.c.l.b16 %v4562
      %v5111 = vunpack.c.l.b16 %v4563
      %v5112 = vunpack.c.l.b16 %v4564
      %v5113 = vunpack.c.l.b16 %v4565
      %v5114 = vunpack.c.l.b16 %v4566
      %v5115 = vunpack.c.l.b16 %v4567
      %v5116 = vunpack.c.l.b16 %v4568
      %v5117 = vunpack.c.l.b16 %v4569
      %v5118 = vunpack.c.l.b16 %v4570
      %v5119 = vunpack.c.l.b16 %v4571
      %v5120 = vunpack.c.l.b16 %v4572
      %v5121 = vunpack.c.l.b16 %v4573
      %v5122 = vunpack.c.l.b16 %v4574
      %v5123 = vunpack.c.l.b16 %v4575
      %v5124 = vunpack.c.l.b16 %v4576
      %v5125 = vunpack.c.l.b16 %v4577
      %v5126 = vunpack.c.l.b16 %v4578
      %v5127 = vunpack.c.l.b16 %v4579
      %v5128 = vunpack.c.l.b16 %v4580
      %v5129 = vunpack.c.l.b16 %v4581
      %v5130 = vunpack.c.l.b16 %v4582
      %v5131 = vunpack.c.l.b16 %v4583
      %v5132 = vunpack.c.l.b16 %v4584
      %v5133 = vunpack.c.l.b16 %v4585
      %v5134 = vunpack.c.l.b16 %v4586
      %v5135 = vunpack.c.l.b16 %v4587
      %v5136 = vunpack.c.l.b16 %v4588
      %v5137 = vunpack.c.l.b16 %v4589
      %v5138 = vunpack.c.l.b16 %v4590
      %v5139 = vunpack.c.l.b16 %v4591
      %v5140 = vunpack.c.l.b16 %v4592
      %v5141 = vunpack.c.l.b16 %v4593
      %v5142 = vunpack.c.l.b16 %v4594
      %v5143 = vpack.c.b16 %v5072, %v5071
      %v5144 = vpack.c.b16 %v5074, %v5073
      %v5145 = vpack.c.b16 %v5076, %v5075
      %v5146 = vpack.c.b16 %v5078, %v5077
      %v5147 = vpack.c.b16 %v5080, %v5079
      %v5148 = vpack.c.b16 %v5082, %v5081
      %v5149 = vpack.c.b16 %v5084, %v5083
      %v5150 = vpack.c.b16 %v5086, %v5085
      %v5151 = vpack.c.b16 %v5088, %v5087
      %v5152 = vpack.c.b16 %v5090, %v5089
      %v5153 = vpack.c.b16 %v5092, %v5091
      %v5154 = vpack.c.b16 %v5094, %v5093
      %v5155 = vpack.c.b16 %v5096, %v5095
      %v5156 = vpack.c.b16 %v5098, %v5097
      %v5157 = vpack.c.b16 %v5100, %v5099
      %v5158 = vpack.c.b16 %v5102, %v5101
      %v5159 = vpack.c.b16 %v5104, %v5103
      %v5160 = vpack.c.b16 %v5106, %v5105
      %v5161 = vpack.c.b16 %v5108, %v5107
      %v5162 = vpack.c.b16 %v5110, %v5109
      %v5163 = vpack.c.b16 %v5112, %v5111
      %v5164 = vpack.c.b16 %v5114, %v5113
      %v5165 = vpack.c.b16 %v5116, %v5115
      %v5166 = vpack.c.b16 %v5118, %v5117
      %v5167 = vpack.c.b16 %v5120, %v5119
      %v5168 = vpack.c.b16 %v5122, %v5121
      %v5169 = vpack.c.b16 %v5124, %v5123
      %v5170 = vpack.c.b16 %v5126, %v5125
      %v5171 = vpack.c.b16 %v5128, %v5127
      %v5172 = vpack.c.b16 %v5130, %v5129
      %v5173 = vpack.c.b16 %v5132, %v5131
      %v5174 = vpack.c.b16 %v5134, %v5133
      %v5175 = vpack.c.b16 %v5136, %v5135
      %v5176 = vpack.c.b16 %v5138, %v5137
      %v5177 = vpack.c.b16 %v5140, %v5139
      %v5178 = vpack.c.b16 %v5142, %v5141
      %v5216 = vsel %vm334, %v4859, 0
      %v5219 = vsel %vm334, %v4864, 0
      %v5222 = vsel %vm334, %v4869, 0
      %v5225 = vsel %vm334, %v4874, 0
      %v5228 = vsel %vm334, %v4879, 0
      %v5231 = vsel %vm334, %v4884, 0
      %v5234 = vsel %vm334, %v4889, 0
      %v5237 = vsel %vm334, %v4894, 0
      %v5240 = vsel %vm334, %v4899, 0
      %v5243 = vsel %vm334, %v4904, 0
      %v5246 = vsel %vm334, %v4909, 0
      %v5249 = vsel %vm334, %v4914, 0
      %v5252 = vsel %vm334, %v4919, 0
      %v5255 = vsel %vm334, %v4924, 0
      %v5258 = vsel %vm334, %v4929, 0
      %v5261 = vsel %vm334, %v4934, 0
      %5263 = vmatpush.bf16.msra.mxu0 %v5150
      %5264 = vmatpush.bf16.msra.mxu0 %v5149
      %5265 = vmatpush.bf16.msra.mxu0 %v5148
      %5266 = vmatpush.bf16.msra.mxu0 %v5147
      %5267 = vmatpush.bf16.msra.mxu0 %v5146
      %5268 = vmatpush.bf16.msra.mxu0 %v5145
      %5269 = vmatpush.bf16.msra.mxu0 %v5144
      %5270 = vmatpush.bf16.msra.mxu0 %v5143
      %5271 = vmatmul.bf16.gmra.mxu0 %v4855
      %v5272 = vpop.f32.mrf.mxu0
      %v5273 = vadd.f32 %v4597, %v5272
      %v5274 = vpop.f32.mrf.mxu0
      %v5275 = vadd.f32 %v4597, %v5274
      %5276 = vmatmul.bf16.gmra.mxu0 %v4860
      %v5277 = vpop.f32.mrf.mxu0
      %v5278 = vadd.f32 %v4597, %v5277
      %v5279 = vpop.f32.mrf.mxu0
      %v5280 = vadd.f32 %v4597, %v5279
      %5281 = vmatmul.bf16.gmra.mxu0 %v4865
      %v5282 = vpop.f32.mrf.mxu0
      %v5283 = vadd.f32 %v4597, %v5282
      %v5284 = vpop.f32.mrf.mxu0
      %v5285 = vadd.f32 %v4597, %v5284
      %5286 = vmatmul.bf16.gmra.mxu0 %v4870
      %v5287 = vpop.f32.mrf.mxu0
      %v5288 = vadd.f32 %v4597, %v5287
      %v5289 = vpop.f32.mrf.mxu0
      %v5290 = vadd.f32 %v4597, %v5289
      %5291 = vmatmul.bf16.gmra.mxu0 %v4875
      %v5292 = vpop.f32.mrf.mxu0
      %v5293 = vadd.f32 %v4597, %v5292
      %v5294 = vpop.f32.mrf.mxu0
      %v5295 = vadd.f32 %v4597, %v5294
      %5296 = vmatmul.bf16.gmra.mxu0 %v4880
      %v5297 = vpop.f32.mrf.mxu0
      %v5298 = vadd.f32 %v4597, %v5297
      %v5299 = vpop.f32.mrf.mxu0
      %v5300 = vadd.f32 %v4597, %v5299
      %5301 = vmatmul.bf16.gmra.mxu0 %v4885
      %v5302 = vpop.f32.mrf.mxu0
      %v5303 = vadd.f32 %v4597, %v5302
      %v5304 = vpop.f32.mrf.mxu0
      %v5305 = vadd.f32 %v4597, %v5304
      %5306 = vmatmul.bf16.gmra.mxu0 %v4890
      %v5307 = vpop.f32.mrf.mxu0
      %v5308 = vadd.f32 %v4597, %v5307
      %v5309 = vpop.f32.mrf.mxu0
      %v5310 = vadd.f32 %v4597, %v5309
      %5311 = vmatmul.bf16.gmra.mxu0 %v4895
      %v5312 = vpop.f32.mrf.mxu0
      %v5313 = vadd.f32 %v4597, %v5312
      %v5314 = vpop.f32.mrf.mxu0
      %v5315 = vadd.f32 %v4597, %v5314
      %5316 = vmatmul.bf16.gmra.mxu0 %v4900
      %v5317 = vpop.f32.mrf.mxu0
      %v5318 = vadd.f32 %v4597, %v5317
      %v5319 = vpop.f32.mrf.mxu0
      %v5320 = vadd.f32 %v4597, %v5319
      %5321 = vmatmul.bf16.gmra.mxu0 %v4905
      %v5322 = vpop.f32.mrf.mxu0
      %v5323 = vadd.f32 %v4597, %v5322
      %v5324 = vpop.f32.mrf.mxu0
      %v5325 = vadd.f32 %v4597, %v5324
      %5326 = vmatmul.bf16.gmra.mxu0 %v4910
      %v5327 = vpop.f32.mrf.mxu0
      %v5328 = vadd.f32 %v4597, %v5327
      %v5329 = vpop.f32.mrf.mxu0
      %v5330 = vadd.f32 %v4597, %v5329
      %5331 = vmatmul.bf16.gmra.mxu0 %v4915
      %v5332 = vpop.f32.mrf.mxu0
      %v5333 = vadd.f32 %v4597, %v5332
      %v5334 = vpop.f32.mrf.mxu0
      %v5335 = vadd.f32 %v4597, %v5334
      %5336 = vmatmul.bf16.gmra.mxu0 %v4920
      %v5337 = vpop.f32.mrf.mxu0
      %v5338 = vadd.f32 %v4597, %v5337
      %v5339 = vpop.f32.mrf.mxu0
      %v5340 = vadd.f32 %v4597, %v5339
      %5341 = vmatmul.bf16.gmra.mxu0 %v4925
      %v5342 = vpop.f32.mrf.mxu0
      %v5343 = vadd.f32 %v4597, %v5342
      %v5344 = vpop.f32.mrf.mxu0
      %v5345 = vadd.f32 %v4597, %v5344
      %5346 = vmatmul.bf16.gmra.mxu0 %v4930
      %v5347 = vpop.f32.mrf.mxu0
      %v5348 = vadd.f32 %v4597, %v5347
      %v5349 = vpop.f32.mrf.mxu0
      %v5350 = vadd.f32 %v4597, %v5349
      %5351 = vdwg.mxu0
      %5352 = vmatpush.bf16.msra.mxu0 %v5158
      %5353 = vmatpush.bf16.msra.mxu0 %v5157
      %5354 = vmatpush.bf16.msra.mxu0 %v5156
      %5355 = vmatpush.bf16.msra.mxu0 %v5155
      %5356 = vmatpush.bf16.msra.mxu0 %v5154
      %5357 = vmatpush.bf16.msra.mxu0 %v5153
      %5358 = vmatpush.bf16.msra.mxu0 %v5152
      %5359 = vmatpush.bf16.msra.mxu0 %v5151
      %5360 = vmatmul.bf16.gmra.mxu0 %v4856
      %v5361 = vpop.f32.mrf.mxu0
      %v5362 = vadd.f32 %v5273, %v5361
      %v5363 = vpop.f32.mrf.mxu0
      %v5364 = vadd.f32 %v5275, %v5363
      %5365 = vmatmul.bf16.gmra.mxu0 %v4861
      %v5366 = vpop.f32.mrf.mxu0
      %v5367 = vadd.f32 %v5278, %v5366
      %v5368 = vpop.f32.mrf.mxu0
      %v5369 = vadd.f32 %v5280, %v5368
      %5370 = vmatmul.bf16.gmra.mxu0 %v4866
      %v5371 = vpop.f32.mrf.mxu0
      %v5372 = vadd.f32 %v5283, %v5371
      %v5373 = vpop.f32.mrf.mxu0
      %v5374 = vadd.f32 %v5285, %v5373
      %5375 = vmatmul.bf16.gmra.mxu0 %v4871
      %v5376 = vpop.f32.mrf.mxu0
      %v5377 = vadd.f32 %v5288, %v5376
      %v5378 = vpop.f32.mrf.mxu0
      %v5379 = vadd.f32 %v5290, %v5378
      %5380 = vmatmul.bf16.gmra.mxu0 %v4876
      %v5381 = vpop.f32.mrf.mxu0
      %v5382 = vadd.f32 %v5293, %v5381
      %v5383 = vpop.f32.mrf.mxu0
      %v5384 = vadd.f32 %v5295, %v5383
      %5385 = vmatmul.bf16.gmra.mxu0 %v4881
      %v5386 = vpop.f32.mrf.mxu0
      %v5387 = vadd.f32 %v5298, %v5386
      %v5388 = vpop.f32.mrf.mxu0
      %v5389 = vadd.f32 %v5300, %v5388
      %5390 = vmatmul.bf16.gmra.mxu0 %v4886
      %v5391 = vpop.f32.mrf.mxu0
      %v5392 = vadd.f32 %v5303, %v5391
      %v5393 = vpop.f32.mrf.mxu0
      %v5394 = vadd.f32 %v5305, %v5393
      %5395 = vmatmul.bf16.gmra.mxu0 %v4891
      %v5396 = vpop.f32.mrf.mxu0
      %v5397 = vadd.f32 %v5308, %v5396
      %v5398 = vpop.f32.mrf.mxu0
      %v5399 = vadd.f32 %v5310, %v5398
      %5400 = vmatmul.bf16.gmra.mxu0 %v4896
      %v5401 = vpop.f32.mrf.mxu0
      %v5402 = vadd.f32 %v5313, %v5401
      %v5403 = vpop.f32.mrf.mxu0
      %v5404 = vadd.f32 %v5315, %v5403
      %5405 = vmatmul.bf16.gmra.mxu0 %v4901
      %v5406 = vpop.f32.mrf.mxu0
      %v5407 = vadd.f32 %v5318, %v5406
      %v5408 = vpop.f32.mrf.mxu0
      %v5409 = vadd.f32 %v5320, %v5408
      %5410 = vmatmul.bf16.gmra.mxu0 %v4906
      %v5411 = vpop.f32.mrf.mxu0
      %v5412 = vadd.f32 %v5323, %v5411
      %v5413 = vpop.f32.mrf.mxu0
      %v5414 = vadd.f32 %v5325, %v5413
      %5415 = vmatmul.bf16.gmra.mxu0 %v4911
      %v5416 = vpop.f32.mrf.mxu0
      %v5417 = vadd.f32 %v5328, %v5416
      %v5418 = vpop.f32.mrf.mxu0
      %v5419 = vadd.f32 %v5330, %v5418
      %5420 = vmatmul.bf16.gmra.mxu0 %v4916
      %v5421 = vpop.f32.mrf.mxu0
      %v5422 = vadd.f32 %v5333, %v5421
      %v5423 = vpop.f32.mrf.mxu0
      %v5424 = vadd.f32 %v5335, %v5423
      %5425 = vmatmul.bf16.gmra.mxu0 %v4921
      %v5426 = vpop.f32.mrf.mxu0
      %v5427 = vadd.f32 %v5338, %v5426
      %v5428 = vpop.f32.mrf.mxu0
      %v5429 = vadd.f32 %v5340, %v5428
      %5430 = vmatmul.bf16.gmra.mxu0 %v4926
      %v5431 = vpop.f32.mrf.mxu0
      %v5432 = vadd.f32 %v5343, %v5431
      %v5433 = vpop.f32.mrf.mxu0
      %v5434 = vadd.f32 %v5345, %v5433
      %5435 = vmatmul.bf16.gmra.mxu0 %v4931
      %v5436 = vpop.f32.mrf.mxu0
      %v5437 = vadd.f32 %v5348, %v5436
      %v5438 = vpop.f32.mrf.mxu0
      %v5439 = vadd.f32 %v5350, %v5438
      %5440 = vdwg.mxu0
      %5441 = vmatpush.bf16.msra.mxu0 %v5166
      %5442 = vmatpush.bf16.msra.mxu0 %v5165
      %5443 = vmatpush.bf16.msra.mxu0 %v5164
      %5444 = vmatpush.bf16.msra.mxu0 %v5163
      %5445 = vmatpush.bf16.msra.mxu0 %v5162
      %5446 = vmatpush.bf16.msra.mxu0 %v5161
      %5447 = vmatpush.bf16.msra.mxu0 %v5160
      %5448 = vmatpush.bf16.msra.mxu0 %v5159
      %5449 = vmatmul.bf16.gmra.mxu0 %v4857
      %v5450 = vpop.f32.mrf.mxu0
      %v5451 = vadd.f32 %v5362, %v5450
      %v5452 = vpop.f32.mrf.mxu0
      %v5453 = vadd.f32 %v5364, %v5452
      %5454 = vmatmul.bf16.gmra.mxu0 %v4862
      %v5455 = vpop.f32.mrf.mxu0
      %v5456 = vadd.f32 %v5367, %v5455
      %v5457 = vpop.f32.mrf.mxu0
      %v5458 = vadd.f32 %v5369, %v5457
      %5459 = vmatmul.bf16.gmra.mxu0 %v4867
      %v5460 = vpop.f32.mrf.mxu0
      %v5461 = vadd.f32 %v5372, %v5460
      %v5462 = vpop.f32.mrf.mxu0
      %v5463 = vadd.f32 %v5374, %v5462
      %5464 = vmatmul.bf16.gmra.mxu0 %v4872
      %v5465 = vpop.f32.mrf.mxu0
      %v5466 = vadd.f32 %v5377, %v5465
      %v5467 = vpop.f32.mrf.mxu0
      %v5468 = vadd.f32 %v5379, %v5467
      %5469 = vmatmul.bf16.gmra.mxu0 %v4877
      %v5470 = vpop.f32.mrf.mxu0
      %v5471 = vadd.f32 %v5382, %v5470
      %v5472 = vpop.f32.mrf.mxu0
      %v5473 = vadd.f32 %v5384, %v5472
      %5474 = vmatmul.bf16.gmra.mxu0 %v4882
      %v5475 = vpop.f32.mrf.mxu0
      %v5476 = vadd.f32 %v5387, %v5475
      %v5477 = vpop.f32.mrf.mxu0
      %v5478 = vadd.f32 %v5389, %v5477
      %5479 = vmatmul.bf16.gmra.mxu0 %v4887
      %v5480 = vpop.f32.mrf.mxu0
      %v5481 = vadd.f32 %v5392, %v5480
      %v5482 = vpop.f32.mrf.mxu0
      %v5483 = vadd.f32 %v5394, %v5482
      %5484 = vmatmul.bf16.gmra.mxu0 %v4892
      %v5485 = vpop.f32.mrf.mxu0
      %v5486 = vadd.f32 %v5397, %v5485
      %v5487 = vpop.f32.mrf.mxu0
      %v5488 = vadd.f32 %v5399, %v5487
      %5489 = vmatmul.bf16.gmra.mxu0 %v4897
      %v5490 = vpop.f32.mrf.mxu0
      %v5491 = vadd.f32 %v5402, %v5490
      %v5492 = vpop.f32.mrf.mxu0
      %v5493 = vadd.f32 %v5404, %v5492
      %5494 = vmatmul.bf16.gmra.mxu0 %v4902
      %v5495 = vpop.f32.mrf.mxu0
      %v5496 = vadd.f32 %v5407, %v5495
      %v5497 = vpop.f32.mrf.mxu0
      %v5498 = vadd.f32 %v5409, %v5497
      %5499 = vmatmul.bf16.gmra.mxu0 %v4907
      %v5500 = vpop.f32.mrf.mxu0
      %v5501 = vadd.f32 %v5412, %v5500
      %v5502 = vpop.f32.mrf.mxu0
      %v5503 = vadd.f32 %v5414, %v5502
      %5504 = vmatmul.bf16.gmra.mxu0 %v4912
      %v5505 = vpop.f32.mrf.mxu0
      %v5506 = vadd.f32 %v5417, %v5505
      %v5507 = vpop.f32.mrf.mxu0
      %v5508 = vadd.f32 %v5419, %v5507
      %5509 = vmatmul.bf16.gmra.mxu0 %v4917
      %v5510 = vpop.f32.mrf.mxu0
      %v5511 = vadd.f32 %v5422, %v5510
      %v5512 = vpop.f32.mrf.mxu0
      %v5513 = vadd.f32 %v5424, %v5512
      %5514 = vmatmul.bf16.gmra.mxu0 %v4922
      %v5515 = vpop.f32.mrf.mxu0
      %v5516 = vadd.f32 %v5427, %v5515
      %v5517 = vpop.f32.mrf.mxu0
      %v5518 = vadd.f32 %v5429, %v5517
      %5519 = vmatmul.bf16.gmra.mxu0 %v4927
      %v5520 = vpop.f32.mrf.mxu0
      %v5521 = vadd.f32 %v5432, %v5520
      %v5522 = vpop.f32.mrf.mxu0
      %v5523 = vadd.f32 %v5434, %v5522
      %5524 = vmatmul.bf16.gmra.mxu0 %v4932
      %v5525 = vpop.f32.mrf.mxu0
      %v5526 = vadd.f32 %v5437, %v5525
      %v5527 = vpop.f32.mrf.mxu0
      %v5528 = vadd.f32 %v5439, %v5527
      %5529 = vdwg.mxu0
      %5530 = vmatpush.bf16.msra.mxu0 %v5174
      %5531 = vmatpush.bf16.msra.mxu0 %v5173
      %5532 = vmatpush.bf16.msra.mxu0 %v5172
      %5533 = vmatpush.bf16.msra.mxu0 %v5171
      %5534 = vmatpush.bf16.msra.mxu0 %v5170
      %5535 = vmatpush.bf16.msra.mxu0 %v5169
      %5536 = vmatpush.bf16.msra.mxu0 %v5168
      %5537 = vmatpush.bf16.msra.mxu0 %v5167
      %5538 = vmatmul.bf16.gmra.mxu0 %v4858
      %v5539 = vpop.f32.mrf.mxu0
      %v5540 = vadd.f32 %v5451, %v5539
      %v5541 = vpop.f32.mrf.mxu0
      %v5542 = vadd.f32 %v5453, %v5541
      %5543 = vmatmul.bf16.gmra.mxu0 %v4863
      %v5544 = vpop.f32.mrf.mxu0
      %v5545 = vadd.f32 %v5456, %v5544
      %v5546 = vpop.f32.mrf.mxu0
      %v5547 = vadd.f32 %v5458, %v5546
      %5548 = vmatmul.bf16.gmra.mxu0 %v4868
      %v5549 = vpop.f32.mrf.mxu0
      %v5550 = vadd.f32 %v5461, %v5549
      %v5551 = vpop.f32.mrf.mxu0
      %v5552 = vadd.f32 %v5463, %v5551
      %5553 = vmatmul.bf16.gmra.mxu0 %v4873
      %v5554 = vpop.f32.mrf.mxu0
      %v5555 = vadd.f32 %v5466, %v5554
      %v5556 = vpop.f32.mrf.mxu0
      %v5557 = vadd.f32 %v5468, %v5556
      %5558 = vmatmul.bf16.gmra.mxu0 %v4878
      %v5559 = vpop.f32.mrf.mxu0
      %v5560 = vadd.f32 %v5471, %v5559
      %v5561 = vpop.f32.mrf.mxu0
      %v5562 = vadd.f32 %v5473, %v5561
      %5563 = vmatmul.bf16.gmra.mxu0 %v4883
      %v5564 = vpop.f32.mrf.mxu0
      %v5565 = vadd.f32 %v5476, %v5564
      %v5566 = vpop.f32.mrf.mxu0
      %v5567 = vadd.f32 %v5478, %v5566
      %5568 = vmatmul.bf16.gmra.mxu0 %v4888
      %v5569 = vpop.f32.mrf.mxu0
      %v5570 = vadd.f32 %v5481, %v5569
      %v5571 = vpop.f32.mrf.mxu0
      %v5572 = vadd.f32 %v5483, %v5571
      %5573 = vmatmul.bf16.gmra.mxu0 %v4893
      %v5574 = vpop.f32.mrf.mxu0
      %v5575 = vadd.f32 %v5486, %v5574
      %v5576 = vpop.f32.mrf.mxu0
      %v5577 = vadd.f32 %v5488, %v5576
      %5578 = vmatmul.bf16.gmra.mxu0 %v4898
      %v5579 = vpop.f32.mrf.mxu0
      %v5580 = vadd.f32 %v5491, %v5579
      %v5581 = vpop.f32.mrf.mxu0
      %v5582 = vadd.f32 %v5493, %v5581
      %5583 = vmatmul.bf16.gmra.mxu0 %v4903
      %v5584 = vpop.f32.mrf.mxu0
      %v5585 = vadd.f32 %v5496, %v5584
      %v5586 = vpop.f32.mrf.mxu0
      %v5587 = vadd.f32 %v5498, %v5586
      %5588 = vmatmul.bf16.gmra.mxu0 %v4908
      %v5589 = vpop.f32.mrf.mxu0
      %v5590 = vadd.f32 %v5501, %v5589
      %v5591 = vpop.f32.mrf.mxu0
      %v5592 = vadd.f32 %v5503, %v5591
      %5593 = vmatmul.bf16.gmra.mxu0 %v4913
      %v5594 = vpop.f32.mrf.mxu0
      %v5595 = vadd.f32 %v5506, %v5594
      %v5596 = vpop.f32.mrf.mxu0
      %v5597 = vadd.f32 %v5508, %v5596
      %5598 = vmatmul.bf16.gmra.mxu0 %v4918
      %v5599 = vpop.f32.mrf.mxu0
      %v5600 = vadd.f32 %v5511, %v5599
      %v5601 = vpop.f32.mrf.mxu0
      %v5602 = vadd.f32 %v5513, %v5601
      %5603 = vmatmul.bf16.gmra.mxu0 %v4923
      %v5604 = vpop.f32.mrf.mxu0
      %v5605 = vadd.f32 %v5516, %v5604
      %v5606 = vpop.f32.mrf.mxu0
      %v5607 = vadd.f32 %v5518, %v5606
      %5608 = vmatmul.bf16.gmra.mxu0 %v4928
      %v5609 = vpop.f32.mrf.mxu0
      %v5610 = vadd.f32 %v5521, %v5609
      %v5611 = vpop.f32.mrf.mxu0
      %v5612 = vadd.f32 %v5523, %v5611
      %5613 = vmatmul.bf16.gmra.mxu0 %v4933
      %v5614 = vpop.f32.mrf.mxu0
      %v5615 = vadd.f32 %v5526, %v5614
      %v5616 = vpop.f32.mrf.mxu0
      %v5617 = vadd.f32 %v5528, %v5616
      %5618 = vdwg.mxu0
      %5619 = vmatpush.bf16.msra.mxu0 0
      %5620 = vmatpush.bf16.msra.mxu0 0
      %5621 = vmatpush.bf16.msra.mxu0 0
      %5622 = vmatpush.bf16.msra.mxu0 0
      %5623 = vmatpush.bf16.msra.mxu0 %v5178
      %5624 = vmatpush.bf16.msra.mxu0 %v5177
      %5625 = vmatpush.bf16.msra.mxu0 %v5176
      %5626 = vmatpush.bf16.msra.mxu0 %v5175
      %5627 = vmatmul.bf16.gmra.mxu0 %v5216
      %v5628 = vpop.f32.mrf.mxu0
      %v5629 = vadd.f32 %v5540, %v5628
      %v5630 = vpop.f32.mrf.mxu0
      %v5631 = vadd.f32 %v5542, %v5630
      %5632 = vmatmul.bf16.gmra.mxu0 %v5219
      %v5633 = vpop.f32.mrf.mxu0
      %v5634 = vadd.f32 %v5545, %v5633
      %v5635 = vpop.f32.mrf.mxu0
      %v5636 = vadd.f32 %v5547, %v5635
      %5637 = vmatmul.bf16.gmra.mxu0 %v5222
      %v5638 = vpop.f32.mrf.mxu0
      %v5639 = vadd.f32 %v5550, %v5638
      %v5640 = vpop.f32.mrf.mxu0
      %v5641 = vadd.f32 %v5552, %v5640
      %5642 = vmatmul.bf16.gmra.mxu0 %v5225
      %v5643 = vpop.f32.mrf.mxu0
      %v5644 = vadd.f32 %v5555, %v5643
      %v5645 = vpop.f32.mrf.mxu0
      %v5646 = vadd.f32 %v5557, %v5645
      %5647 = vmatmul.bf16.gmra.mxu0 %v5228
      %v5648 = vpop.f32.mrf.mxu0
      %v5649 = vadd.f32 %v5560, %v5648
      %v5650 = vpop.f32.mrf.mxu0
      %v5651 = vadd.f32 %v5562, %v5650
      %5652 = vmatmul.bf16.gmra.mxu0 %v5231
      %v5653 = vpop.f32.mrf.mxu0
      %v5654 = vadd.f32 %v5565, %v5653
      %v5655 = vpop.f32.mrf.mxu0
      %v5656 = vadd.f32 %v5567, %v5655
      %5657 = vmatmul.bf16.gmra.mxu0 %v5234
      %v5658 = vpop.f32.mrf.mxu0
      %v5659 = vadd.f32 %v5570, %v5658
      %v5660 = vpop.f32.mrf.mxu0
      %v5661 = vadd.f32 %v5572, %v5660
      %5662 = vmatmul.bf16.gmra.mxu0 %v5237
      %v5663 = vpop.f32.mrf.mxu0
      %v5664 = vadd.f32 %v5575, %v5663
      %v5665 = vpop.f32.mrf.mxu0
      %v5666 = vadd.f32 %v5577, %v5665
      %5667 = vmatmul.bf16.gmra.mxu0 %v5240
      %v5668 = vpop.f32.mrf.mxu0
      %v5669 = vadd.f32 %v5580, %v5668
      %v5670 = vpop.f32.mrf.mxu0
      %v5671 = vadd.f32 %v5582, %v5670
      %5672 = vmatmul.bf16.gmra.mxu0 %v5243
      %v5673 = vpop.f32.mrf.mxu0
      %v5674 = vadd.f32 %v5585, %v5673
      %v5675 = vpop.f32.mrf.mxu0
      %v5676 = vadd.f32 %v5587, %v5675
      %5677 = vmatmul.bf16.gmra.mxu0 %v5246
      %v5678 = vpop.f32.mrf.mxu0
      %v5679 = vadd.f32 %v5590, %v5678
      %v5680 = vpop.f32.mrf.mxu0
      %v5681 = vadd.f32 %v5592, %v5680
      %5682 = vmatmul.bf16.gmra.mxu0 %v5249
      %v5683 = vpop.f32.mrf.mxu0
      %v5684 = vadd.f32 %v5595, %v5683
      %v5685 = vpop.f32.mrf.mxu0
      %v5686 = vadd.f32 %v5597, %v5685
      %5687 = vmatmul.bf16.gmra.mxu0 %v5252
      %v5688 = vpop.f32.mrf.mxu0
      %v5689 = vadd.f32 %v5600, %v5688
      %v5690 = vpop.f32.mrf.mxu0
      %v5691 = vadd.f32 %v5602, %v5690
      %5692 = vmatmul.bf16.gmra.mxu0 %v5255
      %v5693 = vpop.f32.mrf.mxu0
      %v5694 = vadd.f32 %v5605, %v5693
      %v5695 = vpop.f32.mrf.mxu0
      %v5696 = vadd.f32 %v5607, %v5695
      %5697 = vmatmul.bf16.gmra.mxu0 %v5258
      %v5698 = vpop.f32.mrf.mxu0
      %v5699 = vadd.f32 %v5610, %v5698
      %v5700 = vpop.f32.mrf.mxu0
      %v5701 = vadd.f32 %v5612, %v5700
      %5702 = vmatmul.bf16.gmra.mxu0 %v5261
      %v5703 = vpop.f32.mrf.mxu0
      %v5704 = vadd.f32 %v5615, %v5703
      %v5705 = vpop.f32.mrf.mxu0
      %v5706 = vadd.f32 %v5617, %v5705
      %5707 = vdwg.mxu0
      %vm5708 = vcmask 64512
      %5709 = vst.msk [vmem:[%s332] sm:$0xff] %vm5708, %v5629
      %5710 = vst.msk [vmem:[%s332 + $0x8] sm:$0xff] %vm5708, %v5631
      %5711 = vst.msk [vmem:[%s332 + $0x10] sm:$0xff] %vm5708, %v5634
      %5712 = vst.msk [vmem:[%s332 + $0x18] sm:$0xff] %vm5708, %v5636
      %5713 = vst.msk [vmem:[%s332 + $0x20] sm:$0xff] %vm5708, %v5639
      %5714 = vst.msk [vmem:[%s332 + $0x28] sm:$0xff] %vm5708, %v5641
      %5715 = vst.msk [vmem:[%s332 + $0x30] sm:$0xff] %vm5708, %v5644
      %5716 = vst.msk [vmem:[%s332 + $0x38] sm:$0xff] %vm5708, %v5646
      %5717 = vst.msk [vmem:[%s332 + $0x40] sm:$0xff] %vm5708, %v5649
      %5718 = vst.msk [vmem:[%s332 + $0x48] sm:$0xff] %vm5708, %v5651
      %5719 = vst.msk [vmem:[%s332 + $0x50] sm:$0xff] %vm5708, %v5654
      %5720 = vst.msk [vmem:[%s332 + $0x58] sm:$0xff] %vm5708, %v5656
      %5721 = vst.msk [vmem:[%s332 + $0x60] sm:$0xff] %vm5708, %v5659
      %5722 = vst.msk [vmem:[%s332 + $0x68] sm:$0xff] %vm5708, %v5661
      %5723 = vst.msk [vmem:[%s332 + $0x70] sm:$0xff] %vm5708, %v5664
      %5724 = vst.msk [vmem:[%s332 + $0x78] sm:$0xff] %vm5708, %v5666
      %5725 = vst.msk [vmem:[%s332 + $0x80] sm:$0xff] %vm5708, %v5669
      %5726 = vst.msk [vmem:[%s332 + $0x88] sm:$0xff] %vm5708, %v5671
      %5727 = vst.msk [vmem:[%s332 + $0x90] sm:$0xff] %vm5708, %v5674
      %5728 = vst.msk [vmem:[%s332 + $0x98] sm:$0xff] %vm5708, %v5676
      %5729 = vst.msk [vmem:[%s332 + $0xa0] sm:$0xff] %vm5708, %v5679
      %5730 = vst.msk [vmem:[%s332 + $0xa8] sm:$0xff] %vm5708, %v5681
      %5731 = vst.msk [vmem:[%s332 + $0xb0] sm:$0xff] %vm5708, %v5684
      %5732 = vst.msk [vmem:[%s332 + $0xb8] sm:$0xff] %vm5708, %v5686
      %5733 = vst.msk [vmem:[%s332 + $0xc0] sm:$0xff] %vm5708, %v5689
      %5734 = vst.msk [vmem:[%s332 + $0xc8] sm:$0xff] %vm5708, %v5691
      %5735 = vst.msk [vmem:[%s332 + $0xd0] sm:$0xff] %vm5708, %v5694
      %5736 = vst.msk [vmem:[%s332 + $0xd8] sm:$0xff] %vm5708, %v5696
      %5737 = vst.msk [vmem:[%s332 + $0xe0] sm:$0xff] %vm5708, %v5699
      %5738 = vst.msk [vmem:[%s332 + $0xe8] sm:$0xff] %vm5708, %v5701
      %5739 = vst.msk [vmem:[%s332 + $0xf0] sm:$0xff] %vm5708, %v5704
      %5740 = vst.msk [vmem:[%s332 + $0xf8] sm:$0xff] %vm5708, %v5706
      %p5741 = scmp.lt.s32.totalorder %s20, 1
      %s5742 = scalar_select %p5741, %s20, 1
      %s5743 = smul.addr %s5742, 32
      %s5744 = smul.addr %s5743, 8
      %s5745 = scalar_lea.vmem %s9, %s5744
      // Predicated region
      $region57: #{upscale_net_forward.1} parent=55 // pred_check
        %p5746 = pneg %p232
      $region58: #{upscale_net_forward.1} parent=55 // pred_check_branch
        %5748 = sbr.rel (%p5746) target = $region60
      $region59: #{upscale_net_forward.1} parent=55 // pred_region
        _
      $region60: #{upscale_net_forward.1} parent=55 // pred_fallthru
        _
    $region56: #{upscale_net_forward.1} parent=5 // pred_fallthru
      _
    %p5749 = scmp.le.s32.totalorder 2, %s15
    // Predicated region
    $region61: #{upscale_net_forward.1} parent=5 // pred_check
      %p5750 = pneg %p5749
    $region62: #{upscale_net_forward.1} parent=5 // pred_check_branch
      %5752 = sbr.rel (%p5750) target = $region64
    $region63: #{upscale_net_forward.1} parent=5 // pred_region
      %s5753 = ssub.s32 %s15, 2
      // Predicated region
      $region65: #{upscale_net_forward.1} parent=63 // pred_check
        %p5754 = pneg %p238
      $region66: #{upscale_net_forward.1} parent=63 // pred_check_branch
        %5756 = sbr.rel (%p5754) target = $region68
      $region67: #{upscale_net_forward.1} parent=63 // pred_region
        %p5757 = scmp.lt.s32.totalorder %s21, 1
        %s5758 = scalar_select %p5757, %s21, 1
        %s5759 = smul.addr %s5758, 32
        %s5760 = smul.addr %s5759, 8
        %s5761 = scalar_lea.vmem %s9, %s5760
      $region68: #{upscale_net_forward.1} parent=63 // pred_fallthru
        _
    $region64: #{upscale_net_forward.1} parent=5 // pred_fallthru
      _
  $region6: #{upscale_net_forward.1} parent=0 // loop_footer
    %s19 = sadd.s32 1, %s15
  $region7: #{upscale_net_forward.1} parent=0 // loop_footer_branch
    %14 = sbr.rel target = $region3
  $region8: #{upscale_net_forward.1} parent=0 // loop_exit
    _

</llo_original>
